<compile_context>
chip_gen: v7x
topology: tpu7x:2x2x1
jax: 0.10.0
libtpu: 0.0.40
codegen_flags: <defaults>
</compile_context>

<pallas_src>
import numpy as np
import jax
import jax.numpy as jnp
from jax.experimental import pallas as pl
from jax.experimental.pallas import tpu as pltpu


def _pad128(c):
    return max(128, ((c + 127) // 128) * 128)


# --------------------------- in-kernel value helpers ---------------------------
def _shift_rows(a, s):
    """t[r] = a[r + s] for 0 <= r + s < M, else 0.  `s` is a static int."""
    if s == 0:
        return a
    M, C = a.shape
    pad = jnp.zeros((abs(s), C), a.dtype)
    if s > 0:
        return jnp.concatenate([a[s:, :], pad], axis=0)
    return jnp.concatenate([pad, a[: M + s, :]], axis=0)


def _conv3x3_relu(a, w_ref, b_ref, h, w, i_f, j_f):
    """3x3 SAME conv + bias + ReLU on an (h*w, Cin) activation.

    Rows are ordered (i, j).  Each of the 9 taps is a row shift of `a`
    (zero filled), boundary-masked, cast to bf16 and fed to the MXU against
    the (Cin_pad, Cout_pad) tap weight w_ref[k].  Accumulation is f32.
    """
    acc = None
    k = 0
    for di in (-1, 0, 1):
        for dj in (-1, 0, 1):
            t = _shift_rows(a, di * w + dj)
            conds = []
            if di == -1:
                conds.append(i_f >= 0.5)            # i >= 1
            elif di == 1:
                conds.append(i_f <= h - 1.5)        # i <= h - 2
            if dj == -1:
                conds.append(j_f >= 0.5)            # j >= 1
            elif dj == 1:
                conds.append(j_f <= w - 1.5)        # j <= w - 2
            if conds:
                valid = conds[0]
                for c in conds[1:]:
                    valid = jnp.logical_and(valid, c)
                t = jnp.where(valid, t, 0.0)
            part = jnp.dot(t.astype(jnp.bfloat16), w_ref[k],
                           preferred_element_type=jnp.float32)
            acc = part if acc is None else acc + part
            k += 1
    return jnp.maximum(acc + b_ref[...], 0.0)       # f32 (h*w, Cout_pad)


# ------------------------------ fused kernel ------------------------------
def _make_fused_kernel(H, W, n_layers):
    def kernel(x_ref, *refs):
        # x_ref : (1, H*W, Cin0)  one image, rows = (i, j), lanes = channels
        # refs  : [cw_0, cb_0, ..., cw_{2L-1}, cb_{2L-1}, w1, b1, w2, b2, out]
        o_ref = refs[-1]
        wr = refs[:-1]

        a = x_ref[0]                                 # (H*W, Cin0) f32
        h, w = H, W
        idx = 0
        for _blk in range(n_layers):
            M = h * w
            # Row / column indices of each row r = i*w + j (float math: Mosaic
            # has no vector integer div/mod; +0.5 makes floor robust).
            rows = jax.lax.broadcasted_iota(jnp.int32, (M, 1), 0)
            rows_f = rows.astype(jnp.float32)
            i_f = jnp.floor((rows_f + 0.5) / w)
            j_f = rows_f - i_f * w

            for _cv in range(2):                     # conv -> relu, twice
                a = _conv3x3_relu(a, wr[idx], wr[idx + 1], h, w, i_f, j_f)
                idx += 2

            # 2x2 / stride-2 max pool, staying in the (rows, 128-lane) layout.
            Cp = a.shape[-1]
            y = a.reshape(h // 2, 2, w // 2, 2 * Cp)
            y = jnp.max(y, axis=1)                   # pool row pairs
            y = jnp.maximum(y[..., :Cp], y[..., Cp:])  # pool column pairs
            h, w = h // 2, w // 2
            a = y.reshape(h * w, Cp)

        # global max pool (adaptive_max_pool2d -> 1x1) + Linear -> ReLU -> Linear
        w1, b1, w2, b2 = wr[4 * n_layers: 4 * n_layers + 4]
        g = jnp.max(a, axis=0, keepdims=True)        # (1, C_feat_pad) f32
        z = jnp.dot(g.astype(jnp.bfloat16), w1[...],
                    preferred_element_type=jnp.float32)
        z = jnp.maximum(z + b1[...], 0.0)
        logits = jnp.dot(z.astype(jnp.bfloat16), w2[...],
                         preferred_element_type=jnp.float32) + b2[...]
        o_ref[0] = logits                            # (1, out_pad) lane-dense

    return kernel


# --------------------------------- wrapper ---------------------------------
def cnn_forward(params, x_nchw, n_layers):
    N, Cin0, H, W = x_nchw.shape
    # NCHW -> NHWC -> (N, H*W, C): rows = pixels, lanes = channels.
    # (First-conv lane width is only Cin0=4: accepted — the whole input is
    #  4 KiB / image; everything after the first matmul is 128-lane dense.)
    x = jnp.transpose(x_nchw, (0, 2, 3, 1)).reshape(N, H * W, Cin0)

    packed = []
    in_specs = [pl.BlockSpec((1, H * W, Cin0), lambda n: (n, 0, 0))]

    prev_pad = Cin0                                  # first conv input unpadded
    for (wgt, b) in params["convs"]:
        cin, cout = wgt.shape[2], wgt.shape[3]
        pin, pout = prev_pad, _pad128(cout)
        wp = jnp.zeros((3, 3, pin, pout), jnp.float32)
        wp = wp.at[:, :, :cin, :cout].set(wgt).reshape(9, pin, pout)
        wp = wp.astype(jnp.bfloat16)
        bp = jnp.zeros((1, pout), jnp.float32).at[:, :cout].set(b)
        packed += [wp, bp]
        in_specs += [pl.BlockSpec((9, pin, pout), lambda n: (0, 0, 0)),
                     pl.BlockSpec((1, pout), lambda n: (0, 0))]
        prev_pad = pout

    feat_p = prev_pad
    feat_r, hid = params["w1"].shape
    out_dim = params["w2"].shape[1]
    hid_p, out_p = _pad128(hid), _pad128(out_dim)
    w1p = jnp.zeros((feat_p, hid_p), jnp.float32)
    w1p = w1p.at[:feat_r, :hid].set(params["w1"]).astype(jnp.bfloat16)
    b1p = jnp.zeros((1, hid_p), jnp.float32).at[:, :hid].set(params["b1"])
    w2p = jnp.zeros((hid_p, out_p), jnp.float32)
    w2p = w2p.at[:hid, :out_dim].set(params["w2"]).astype(jnp.bfloat16)
    b2p = jnp.zeros((1, out_p), jnp.float32).at[:, :out_dim].set(params["b2"])
    packed += [w1p, b1p, w2p, b2p]
    in_specs += [pl.BlockSpec((feat_p, hid_p), lambda n: (0, 0)),
                 pl.BlockSpec((1, hid_p), lambda n: (0, 0)),
                 pl.BlockSpec((hid_p, out_p), lambda n: (0, 0)),
                 pl.BlockSpec((1, out_p), lambda n: (0, 0))]

    out = pl.pallas_call(
        _make_fused_kernel(H, W, n_layers),
        out_shape=jax.ShapeDtypeStruct((N, 1, out_p), jnp.float32),
        grid=(N,),
        in_specs=in_specs,
        out_specs=pl.BlockSpec((1, 1, out_p), lambda n: (n, 0, 0)),
        compiler_params=pltpu.CompilerParams(dimension_semantics=("parallel",)),
    )(x, *packed)
    return out.reshape(N, out_p)[:, :out_dim]


# --------------------------------- model glue ---------------------------------
def init_params(key, input_size, output_size, hidden_size, n_layers):
    params = {"convs": []}
    c_in = input_size
    for i in range(n_layers):
        c_mid = input_size * 2 ** (2 * i + 1)
        c_out = input_size * 2 ** (2 * i + 2)
        for cin, cout in ((c_in, c_mid), (c_mid, c_out)):
            key, kw, kb = jax.random.split(key, 3)
            w = jax.random.normal(kw, (3, 3, cin, cout), jnp.float32) * (2.0 / (9 * cin)) ** 0.5
            b = jax.random.normal(kb, (1, cout), jnp.float32) * 0.01
            params["convs"].append((w, b))
        c_in = c_out
    feat = input_size * 2 ** ((n_layers - 1) * 2 + 2)
    key, k1, k2, k3, k4 = jax.random.split(key, 5)
    params["w1"] = jax.random.normal(k1, (feat, hidden_size), jnp.float32) * (2.0 / feat) ** 0.5
    params["b1"] = jax.random.normal(k2, (1, hidden_size), jnp.float32) * 0.01
    params["w2"] = jax.random.normal(k3, (hidden_size, output_size), jnp.float32) * (1.0 / hidden_size) ** 0.5
    params["b2"] = jax.random.normal(k4, (1, output_size), jnp.float32) * 0.01
    return params


def cnn_reference(params, x_nchw, n_layers):
    # Pure-JAX reference mirroring the kernel's numerics
    # (bf16 matmul operands, f32 accumulation / bias / ReLU / pooling).
    x = jnp.transpose(x_nchw, (0, 2, 3, 1)).astype(jnp.float32)
    for i in range(n_layers):
        for (w, b) in (params["convs"][2 * i], params["convs"][2 * i + 1]):
            y = jax.lax.conv_general_dilated(
                x.astype(jnp.bfloat16), w.astype(jnp.bfloat16), (1, 1), 'SAME',
                dimension_numbers=('NHWC', 'HWIO', 'NHWC'),
                preferred_element_type=jnp.float32)
            x = jnp.maximum(y + b.reshape(1, 1, 1, -1), 0.0)
        x = jax.lax.reduce_window(x, -jnp.inf, jax.lax.max,
                                  (1, 2, 2, 1), (1, 2, 2, 1), 'VALID')
    f = jnp.max(x, axis=(1, 2))
    h = jnp.maximum(
        jnp.dot(f.astype(jnp.bfloat16), params["w1"].astype(jnp.bfloat16),
                preferred_element_type=jnp.float32) + params["b1"], 0.0)
    return jnp.dot(h.astype(jnp.bfloat16), params["w2"].astype(jnp.bfloat16),
                   preferred_element_type=jnp.float32) + params["b2"]


if __name__ == "__main__":
    input_size, output_size, hidden_size, n_layers = 4, 10, 32, 2
    N, H, W = 2, 16, 16

    key = jax.random.PRNGKey(0)
    key, kx = jax.random.split(key)
    x = jax.random.normal(kx, (N, input_size, H, W), jnp.float32)  # NCHW like PyTorch
    params = init_params(key, input_size, output_size, hidden_size, n_layers)

    fwd = jax.jit(cnn_forward, static_argnums=(2,))
    out = jax.block_until_ready(fwd(params, x, n_layers))
    assert out.shape == (N, output_size)

    ref = cnn_reference(params, x, n_layers)
    np.testing.assert_allclose(np.asarray(out, dtype=np.float32),
                               np.asarray(ref, dtype=np.float32),
                               rtol=1e-2, atol=1e-2)

    print("KERNEL_OK")
</pallas_src>

<mosaic_0001>
module attributes {stable_mosaic.version = 11 : i64} {
  func.func @kernel(%arg0: i32, %arg1: memref<1x256x4xf32, #tpu.memory_space<vmem>>, %arg2: memref<9x4x128xbf16, #tpu.memory_space<vmem>>, %arg3: memref<1x128xf32, #tpu.memory_space<vmem>>, %arg4: memref<9x128x128xbf16, #tpu.memory_space<vmem>>, %arg5: memref<1x128xf32, #tpu.memory_space<vmem>>, %arg6: memref<9x128x128xbf16, #tpu.memory_space<vmem>>, %arg7: memref<1x128xf32, #tpu.memory_space<vmem>>, %arg8: memref<9x128x128xbf16, #tpu.memory_space<vmem>>, %arg9: memref<1x128xf32, #tpu.memory_space<vmem>>, %arg10: memref<128x128xbf16, #tpu.memory_space<vmem>>, %arg11: memref<1x128xf32, #tpu.memory_space<vmem>>, %arg12: memref<128x128xbf16, #tpu.memory_space<vmem>>, %arg13: memref<1x128xf32, #tpu.memory_space<vmem>>, %arg14: memref<1x1x128xf32, #tpu.memory_space<vmem>>) attributes {dimension_semantics = [#tpu.dimension_semantics<parallel>], iteration_bounds = array<i64: 2>, scalar_prefetch = 0 : i64, scratch_operands = 0 : i64, tpu.core_type = #tpu.core_type<tc>, window_params = [{transform_indices = @transform_0, window_bounds = array<i64: 1, 256, 4>}, {pipeline_mode = #tpu.pipeline_mode<synchronous>, transform_indices = @transform_1, window_bounds = array<i64: 9, 4, 128>}, {pipeline_mode = #tpu.pipeline_mode<synchronous>, transform_indices = @transform_2, window_bounds = array<i64: 1, 128>}, {pipeline_mode = #tpu.pipeline_mode<synchronous>, transform_indices = @transform_3, window_bounds = array<i64: 9, 128, 128>}, {pipeline_mode = #tpu.pipeline_mode<synchronous>, transform_indices = @transform_4, window_bounds = array<i64: 1, 128>}, {pipeline_mode = #tpu.pipeline_mode<synchronous>, transform_indices = @transform_5, window_bounds = array<i64: 9, 128, 128>}, {pipeline_mode = #tpu.pipeline_mode<synchronous>, transform_indices = @transform_6, window_bounds = array<i64: 1, 128>}, {pipeline_mode = #tpu.pipeline_mode<synchronous>, transform_indices = @transform_7, window_bounds = array<i64: 9, 128, 128>}, {pipeline_mode = #tpu.pipeline_mode<synchronous>, transform_indices = @transform_8, window_bounds = array<i64: 1, 128>}, {pipeline_mode = #tpu.pipeline_mode<synchronous>, transform_indices = @transform_9, window_bounds = array<i64: 128, 128>}, {pipeline_mode = #tpu.pipeline_mode<synchronous>, transform_indices = @transform_10, window_bounds = array<i64: 1, 128>}, {pipeline_mode = #tpu.pipeline_mode<synchronous>, transform_indices = @transform_11, window_bounds = array<i64: 128, 128>}, {pipeline_mode = #tpu.pipeline_mode<synchronous>, transform_indices = @transform_12, window_bounds = array<i64: 1, 128>}, {transform_indices = @transform_13, window_bounds = array<i64: 1, 1, 128>}]} {
    %c0 = arith.constant 0 : index
    %c0_0 = arith.constant 0 : index
    %c0_1 = arith.constant 0 : index
    %0 = vector.load %arg1[%c0, %c0_0, %c0_1] : memref<1x256x4xf32, #tpu.memory_space<vmem>>, vector<1x256x4xf32>
    %1 = vector.shape_cast %0 : vector<1x256x4xf32> to vector<256x4xf32>
    %2 = tpu.iota {dimensions = array<i32: 0>} : vector<256x1xi32>
    %3 = arith.sitofp %2 : vector<256x1xi32> to vector<256x1xf32>
    %cst = arith.constant 5.000000e-01 : f32
    %4 = vector.broadcast %cst : f32 to vector<256x1xf32>
    %5 = arith.addf %3, %4 : vector<256x1xf32>
    %cst_2 = arith.constant 1.600000e+01 : f32
    %6 = vector.broadcast %cst_2 : f32 to vector<256x1xf32>
    %7 = arith.divf %5, %6 : vector<256x1xf32>
    %8 = math.floor %7 : vector<256x1xf32>
    %cst_3 = arith.constant 1.600000e+01 : f32
    %9 = vector.broadcast %cst_3 : f32 to vector<256x1xf32>
    %10 = arith.mulf %8, %9 : vector<256x1xf32>
    %11 = arith.subf %3, %10 : vector<256x1xf32>
    %cst_4 = arith.constant 0.000000e+00 : f32
    %12 = vector.broadcast %cst_4 : f32 to vector<17x4xf32>
    %13 = vector.extract_strided_slice %1 {offsets = [0, 0], sizes = [239, 4], strides = [1, 1]} : vector<256x4xf32> to vector<239x4xf32>
    %14 = tpu.concatenate %12, %13 in 0 : vector<17x4xf32>, vector<239x4xf32> -> vector<256x4xf32>
    %cst_5 = arith.constant 5.000000e-01 : f32
    %15 = vector.broadcast %cst_5 : f32 to vector<256x1xf32>
    %16 = arith.cmpf oge, %8, %15 : vector<256x1xf32>
    %cst_6 = arith.constant 5.000000e-01 : f32
    %17 = vector.broadcast %cst_6 : f32 to vector<256x1xf32>
    %18 = arith.cmpf oge, %11, %17 : vector<256x1xf32>
    %19 = arith.andi %16, %18 : vector<256x1xi1>
    %cst_7 = arith.constant 0.000000e+00 : f32
    %20 = vector.shape_cast %19 : vector<256x1xi1> to vector<256x1xi1>
    %21 = vector.broadcast %20 : vector<256x1xi1> to vector<256x4xi1>
    %22 = vector.broadcast %cst_7 : f32 to vector<256x4xf32>
    %23 = arith.select %21, %14, %22 : vector<256x4xi1>, vector<256x4xf32>
    %24 = arith.truncf %23 : vector<256x4xf32> to vector<256x4xbf16>
    %c0_8 = arith.constant 0 : index
    %c0_9 = arith.constant 0 : index
    %c0_10 = arith.constant 0 : index
    %25 = vector.load %arg2[%c0_8, %c0_9, %c0_10] : memref<9x4x128xbf16, #tpu.memory_space<vmem>>, vector<1x4x128xbf16>
    %26 = vector.shape_cast %25 : vector<1x4x128xbf16> to vector<4x128xbf16>
    %cst_11 = arith.constant dense<0.000000e+00> : vector<256x128xf32>
    %27 = tpu.matmul %24, %26, %cst_11 {dimension_numbers = #tpu.dot_dimension_numbers<[1], [0], [0], [1], [0, 0, 1, 1], [], []>} : vector<256x4xbf16>, vector<4x128xbf16>, vector<256x128xf32> -> vector<256x128xf32>
    %cst_12 = arith.constant 0.000000e+00 : f32
    %28 = vector.broadcast %cst_12 : f32 to vector<16x4xf32>
    %29 = vector.extract_strided_slice %1 {offsets = [0, 0], sizes = [240, 4], strides = [1, 1]} : vector<256x4xf32> to vector<240x4xf32>
    %30 = tpu.concatenate %28, %29 in 0 : vector<16x4xf32>, vector<240x4xf32> -> vector<256x4xf32>
    %cst_13 = arith.constant 5.000000e-01 : f32
    %31 = vector.broadcast %cst_13 : f32 to vector<256x1xf32>
    %32 = arith.cmpf oge, %8, %31 : vector<256x1xf32>
    %cst_14 = arith.constant 0.000000e+00 : f32
    %33 = vector.shape_cast %32 : vector<256x1xi1> to vector<256x1xi1>
    %34 = vector.broadcast %33 : vector<256x1xi1> to vector<256x4xi1>
    %35 = vector.broadcast %cst_14 : f32 to vector<256x4xf32>
    %36 = arith.select %34, %30, %35 : vector<256x4xi1>, vector<256x4xf32>
    %37 = arith.truncf %36 : vector<256x4xf32> to vector<256x4xbf16>
    %c1 = arith.constant 1 : index
    %c0_15 = arith.constant 0 : index
    %c0_16 = arith.constant 0 : index
    %38 = vector.load %arg2[%c1, %c0_15, %c0_16] : memref<9x4x128xbf16, #tpu.memory_space<vmem>>, vector<1x4x128xbf16>
    %39 = vector.shape_cast %38 : vector<1x4x128xbf16> to vector<4x128xbf16>
    %cst_17 = arith.constant dense<0.000000e+00> : vector<256x128xf32>
    %40 = tpu.matmul %37, %39, %cst_17 {dimension_numbers = #tpu.dot_dimension_numbers<[1], [0], [0], [1], [0, 0, 1, 1], [], []>} : vector<256x4xbf16>, vector<4x128xbf16>, vector<256x128xf32> -> vector<256x128xf32>
    %41 = arith.addf %27, %40 : vector<256x128xf32>
    %cst_18 = arith.constant 0.000000e+00 : f32
    %42 = vector.broadcast %cst_18 : f32 to vector<15x4xf32>
    %43 = vector.extract_strided_slice %1 {offsets = [0, 0], sizes = [241, 4], strides = [1, 1]} : vector<256x4xf32> to vector<241x4xf32>
    %44 = tpu.concatenate %42, %43 in 0 : vector<15x4xf32>, vector<241x4xf32> -> vector<256x4xf32>
    %cst_19 = arith.constant 5.000000e-01 : f32
    %45 = vector.broadcast %cst_19 : f32 to vector<256x1xf32>
    %46 = arith.cmpf oge, %8, %45 : vector<256x1xf32>
    %cst_20 = arith.constant 1.450000e+01 : f32
    %47 = vector.broadcast %cst_20 : f32 to vector<256x1xf32>
    %48 = arith.cmpf ole, %11, %47 : vector<256x1xf32>
    %49 = arith.andi %46, %48 : vector<256x1xi1>
    %cst_21 = arith.constant 0.000000e+00 : f32
    %50 = vector.shape_cast %49 : vector<256x1xi1> to vector<256x1xi1>
    %51 = vector.broadcast %50 : vector<256x1xi1> to vector<256x4xi1>
    %52 = vector.broadcast %cst_21 : f32 to vector<256x4xf32>
    %53 = arith.select %51, %44, %52 : vector<256x4xi1>, vector<256x4xf32>
    %54 = arith.truncf %53 : vector<256x4xf32> to vector<256x4xbf16>
    %c2 = arith.constant 2 : index
    %c0_22 = arith.constant 0 : index
    %c0_23 = arith.constant 0 : index
    %55 = vector.load %arg2[%c2, %c0_22, %c0_23] : memref<9x4x128xbf16, #tpu.memory_space<vmem>>, vector<1x4x128xbf16>
    %56 = vector.shape_cast %55 : vector<1x4x128xbf16> to vector<4x128xbf16>
    %cst_24 = arith.constant dense<0.000000e+00> : vector<256x128xf32>
    %57 = tpu.matmul %54, %56, %cst_24 {dimension_numbers = #tpu.dot_dimension_numbers<[1], [0], [0], [1], [0, 0, 1, 1], [], []>} : vector<256x4xbf16>, vector<4x128xbf16>, vector<256x128xf32> -> vector<256x128xf32>
    %58 = arith.addf %41, %57 : vector<256x128xf32>
    %cst_25 = arith.constant 0.000000e+00 : f32
    %59 = vector.broadcast %cst_25 : f32 to vector<1x4xf32>
    %60 = vector.extract_strided_slice %1 {offsets = [0, 0], sizes = [255, 4], strides = [1, 1]} : vector<256x4xf32> to vector<255x4xf32>
    %61 = tpu.concatenate %59, %60 in 0 : vector<1x4xf32>, vector<255x4xf32> -> vector<256x4xf32>
    %cst_26 = arith.constant 5.000000e-01 : f32
    %62 = vector.broadcast %cst_26 : f32 to vector<256x1xf32>
    %63 = arith.cmpf oge, %11, %62 : vector<256x1xf32>
    %cst_27 = arith.constant 0.000000e+00 : f32
    %64 = vector.shape_cast %63 : vector<256x1xi1> to vector<256x1xi1>
    %65 = vector.broadcast %64 : vector<256x1xi1> to vector<256x4xi1>
    %66 = vector.broadcast %cst_27 : f32 to vector<256x4xf32>
    %67 = arith.select %65, %61, %66 : vector<256x4xi1>, vector<256x4xf32>
    %68 = arith.truncf %67 : vector<256x4xf32> to vector<256x4xbf16>
    %c3 = arith.constant 3 : index
    %c0_28 = arith.constant 0 : index
    %c0_29 = arith.constant 0 : index
    %69 = vector.load %arg2[%c3, %c0_28, %c0_29] : memref<9x4x128xbf16, #tpu.memory_space<vmem>>, vector<1x4x128xbf16>
    %70 = vector.shape_cast %69 : vector<1x4x128xbf16> to vector<4x128xbf16>
    %cst_30 = arith.constant dense<0.000000e+00> : vector<256x128xf32>
    %71 = tpu.matmul %68, %70, %cst_30 {dimension_numbers = #tpu.dot_dimension_numbers<[1], [0], [0], [1], [0, 0, 1, 1], [], []>} : vector<256x4xbf16>, vector<4x128xbf16>, vector<256x128xf32> -> vector<256x128xf32>
    %72 = arith.addf %58, %71 : vector<256x128xf32>
    %73 = arith.truncf %1 : vector<256x4xf32> to vector<256x4xbf16>
    %c4 = arith.constant 4 : index
    %c0_31 = arith.constant 0 : index
    %c0_32 = arith.constant 0 : index
    %74 = vector.load %arg2[%c4, %c0_31, %c0_32] : memref<9x4x128xbf16, #tpu.memory_space<vmem>>, vector<1x4x128xbf16>
    %75 = vector.shape_cast %74 : vector<1x4x128xbf16> to vector<4x128xbf16>
    %cst_33 = arith.constant dense<0.000000e+00> : vector<256x128xf32>
    %76 = tpu.matmul %73, %75, %cst_33 {dimension_numbers = #tpu.dot_dimension_numbers<[1], [0], [0], [1], [0, 0, 1, 1], [], []>} : vector<256x4xbf16>, vector<4x128xbf16>, vector<256x128xf32> -> vector<256x128xf32>
    %77 = arith.addf %72, %76 : vector<256x128xf32>
    %cst_34 = arith.constant 0.000000e+00 : f32
    %78 = vector.broadcast %cst_34 : f32 to vector<1x4xf32>
    %79 = vector.extract_strided_slice %1 {offsets = [1, 0], sizes = [255, 4], strides = [1, 1]} : vector<256x4xf32> to vector<255x4xf32>
    %80 = tpu.concatenate %79, %78 in 0 : vector<255x4xf32>, vector<1x4xf32> -> vector<256x4xf32>
    %cst_35 = arith.constant 1.450000e+01 : f32
    %81 = vector.broadcast %cst_35 : f32 to vector<256x1xf32>
    %82 = arith.cmpf ole, %11, %81 : vector<256x1xf32>
    %cst_36 = arith.constant 0.000000e+00 : f32
    %83 = vector.shape_cast %82 : vector<256x1xi1> to vector<256x1xi1>
    %84 = vector.broadcast %83 : vector<256x1xi1> to vector<256x4xi1>
    %85 = vector.broadcast %cst_36 : f32 to vector<256x4xf32>
    %86 = arith.select %84, %80, %85 : vector<256x4xi1>, vector<256x4xf32>
    %87 = arith.truncf %86 : vector<256x4xf32> to vector<256x4xbf16>
    %c5 = arith.constant 5 : index
    %c0_37 = arith.constant 0 : index
    %c0_38 = arith.constant 0 : index
    %88 = vector.load %arg2[%c5, %c0_37, %c0_38] : memref<9x4x128xbf16, #tpu.memory_space<vmem>>, vector<1x4x128xbf16>
    %89 = vector.shape_cast %88 : vector<1x4x128xbf16> to vector<4x128xbf16>
    %cst_39 = arith.constant dense<0.000000e+00> : vector<256x128xf32>
    %90 = tpu.matmul %87, %89, %cst_39 {dimension_numbers = #tpu.dot_dimension_numbers<[1], [0], [0], [1], [0, 0, 1, 1], [], []>} : vector<256x4xbf16>, vector<4x128xbf16>, vector<256x128xf32> -> vector<256x128xf32>
    %91 = arith.addf %77, %90 : vector<256x128xf32>
    %cst_40 = arith.constant 0.000000e+00 : f32
    %92 = vector.broadcast %cst_40 : f32 to vector<15x4xf32>
    %93 = vector.extract_strided_slice %1 {offsets = [15, 0], sizes = [241, 4], strides = [1, 1]} : vector<256x4xf32> to vector<241x4xf32>
    %94 = tpu.concatenate %93, %92 in 0 : vector<241x4xf32>, vector<15x4xf32> -> vector<256x4xf32>
    %cst_41 = arith.constant 1.450000e+01 : f32
    %95 = vector.broadcast %cst_41 : f32 to vector<256x1xf32>
    %96 = arith.cmpf ole, %8, %95 : vector<256x1xf32>
    %cst_42 = arith.constant 5.000000e-01 : f32
    %97 = vector.broadcast %cst_42 : f32 to vector<256x1xf32>
    %98 = arith.cmpf oge, %11, %97 : vector<256x1xf32>
    %99 = arith.andi %96, %98 : vector<256x1xi1>
    %cst_43 = arith.constant 0.000000e+00 : f32
    %100 = vector.shape_cast %99 : vector<256x1xi1> to vector<256x1xi1>
    %101 = vector.broadcast %100 : vector<256x1xi1> to vector<256x4xi1>
    %102 = vector.broadcast %cst_43 : f32 to vector<256x4xf32>
    %103 = arith.select %101, %94, %102 : vector<256x4xi1>, vector<256x4xf32>
    %104 = arith.truncf %103 : vector<256x4xf32> to vector<256x4xbf16>
    %c6 = arith.constant 6 : index
    %c0_44 = arith.constant 0 : index
    %c0_45 = arith.constant 0 : index
    %105 = vector.load %arg2[%c6, %c0_44, %c0_45] : memref<9x4x128xbf16, #tpu.memory_space<vmem>>, vector<1x4x128xbf16>
    %106 = vector.shape_cast %105 : vector<1x4x128xbf16> to vector<4x128xbf16>
    %cst_46 = arith.constant dense<0.000000e+00> : vector<256x128xf32>
    %107 = tpu.matmul %104, %106, %cst_46 {dimension_numbers = #tpu.dot_dimension_numbers<[1], [0], [0], [1], [0, 0, 1, 1], [], []>} : vector<256x4xbf16>, vector<4x128xbf16>, vector<256x128xf32> -> vector<256x128xf32>
    %108 = arith.addf %91, %107 : vector<256x128xf32>
    %cst_47 = arith.constant 0.000000e+00 : f32
    %109 = vector.broadcast %cst_47 : f32 to vector<16x4xf32>
    %110 = vector.extract_strided_slice %1 {offsets = [16, 0], sizes = [240, 4], strides = [1, 1]} : vector<256x4xf32> to vector<240x4xf32>
    %111 = tpu.concatenate %110, %109 in 0 : vector<240x4xf32>, vector<16x4xf32> -> vector<256x4xf32>
    %cst_48 = arith.constant 1.450000e+01 : f32
    %112 = vector.broadcast %cst_48 : f32 to vector<256x1xf32>
    %113 = arith.cmpf ole, %8, %112 : vector<256x1xf32>
    %cst_49 = arith.constant 0.000000e+00 : f32
    %114 = vector.shape_cast %113 : vector<256x1xi1> to vector<256x1xi1>
    %115 = vector.broadcast %114 : vector<256x1xi1> to vector<256x4xi1>
    %116 = vector.broadcast %cst_49 : f32 to vector<256x4xf32>
    %117 = arith.select %115, %111, %116 : vector<256x4xi1>, vector<256x4xf32>
    %118 = arith.truncf %117 : vector<256x4xf32> to vector<256x4xbf16>
    %c7 = arith.constant 7 : index
    %c0_50 = arith.constant 0 : index
    %c0_51 = arith.constant 0 : index
    %119 = vector.load %arg2[%c7, %c0_50, %c0_51] : memref<9x4x128xbf16, #tpu.memory_space<vmem>>, vector<1x4x128xbf16>
    %120 = vector.shape_cast %119 : vector<1x4x128xbf16> to vector<4x128xbf16>
    %cst_52 = arith.constant dense<0.000000e+00> : vector<256x128xf32>
    %121 = tpu.matmul %118, %120, %cst_52 {dimension_numbers = #tpu.dot_dimension_numbers<[1], [0], [0], [1], [0, 0, 1, 1], [], []>} : vector<256x4xbf16>, vector<4x128xbf16>, vector<256x128xf32> -> vector<256x128xf32>
    %122 = arith.addf %108, %121 : vector<256x128xf32>
    %cst_53 = arith.constant 0.000000e+00 : f32
    %123 = vector.broadcast %cst_53 : f32 to vector<17x4xf32>
    %124 = vector.extract_strided_slice %1 {offsets = [17, 0], sizes = [239, 4], strides = [1, 1]} : vector<256x4xf32> to vector<239x4xf32>
    %125 = tpu.concatenate %124, %123 in 0 : vector<239x4xf32>, vector<17x4xf32> -> vector<256x4xf32>
    %cst_54 = arith.constant 1.450000e+01 : f32
    %126 = vector.broadcast %cst_54 : f32 to vector<256x1xf32>
    %127 = arith.cmpf ole, %8, %126 : vector<256x1xf32>
    %cst_55 = arith.constant 1.450000e+01 : f32
    %128 = vector.broadcast %cst_55 : f32 to vector<256x1xf32>
    %129 = arith.cmpf ole, %11, %128 : vector<256x1xf32>
    %130 = arith.andi %127, %129 : vector<256x1xi1>
    %cst_56 = arith.constant 0.000000e+00 : f32
    %131 = vector.shape_cast %130 : vector<256x1xi1> to vector<256x1xi1>
    %132 = vector.broadcast %131 : vector<256x1xi1> to vector<256x4xi1>
    %133 = vector.broadcast %cst_56 : f32 to vector<256x4xf32>
    %134 = arith.select %132, %125, %133 : vector<256x4xi1>, vector<256x4xf32>
    %135 = arith.truncf %134 : vector<256x4xf32> to vector<256x4xbf16>
    %c8 = arith.constant 8 : index
    %c0_57 = arith.constant 0 : index
    %c0_58 = arith.constant 0 : index
    %136 = vector.load %arg2[%c8, %c0_57, %c0_58] : memref<9x4x128xbf16, #tpu.memory_space<vmem>>, vector<1x4x128xbf16>
    %137 = vector.shape_cast %136 : vector<1x4x128xbf16> to vector<4x128xbf16>
    %cst_59 = arith.constant dense<0.000000e+00> : vector<256x128xf32>
    %138 = tpu.matmul %135, %137, %cst_59 {dimension_numbers = #tpu.dot_dimension_numbers<[1], [0], [0], [1], [0, 0, 1, 1], [], []>} : vector<256x4xbf16>, vector<4x128xbf16>, vector<256x128xf32> -> vector<256x128xf32>
    %139 = arith.addf %122, %138 : vector<256x128xf32>
    %c0_60 = arith.constant 0 : index
    %c0_61 = arith.constant 0 : index
    %140 = vector.load %arg3[%c0_60, %c0_61] : memref<1x128xf32, #tpu.memory_space<vmem>>, vector<1x128xf32>
    %141 = vector.broadcast %140 : vector<1x128xf32> to vector<256x128xf32>
    %142 = arith.addf %139, %141 : vector<256x128xf32>
    %cst_62 = arith.constant 0.000000e+00 : f32
    %143 = vector.broadcast %cst_62 : f32 to vector<256x128xf32>
    %144 = arith.maximumf %142, %143 : vector<256x128xf32>
    %cst_63 = arith.constant 0.000000e+00 : f32
    %145 = vector.broadcast %cst_63 : f32 to vector<17x128xf32>
    %146 = vector.extract_strided_slice %144 {offsets = [0, 0], sizes = [239, 128], strides = [1, 1]} : vector<256x128xf32> to vector<239x128xf32>
    %147 = tpu.concatenate %145, %146 in 0 : vector<17x128xf32>, vector<239x128xf32> -> vector<256x128xf32>
    %cst_64 = arith.constant 5.000000e-01 : f32
    %148 = vector.broadcast %cst_64 : f32 to vector<256x1xf32>
    %149 = arith.cmpf oge, %8, %148 : vector<256x1xf32>
    %cst_65 = arith.constant 5.000000e-01 : f32
    %150 = vector.broadcast %cst_65 : f32 to vector<256x1xf32>
    %151 = arith.cmpf oge, %11, %150 : vector<256x1xf32>
    %152 = arith.andi %149, %151 : vector<256x1xi1>
    %cst_66 = arith.constant 0.000000e+00 : f32
    %153 = vector.shape_cast %152 : vector<256x1xi1> to vector<256x1xi1>
    %154 = vector.broadcast %153 : vector<256x1xi1> to vector<256x128xi1>
    %155 = vector.broadcast %cst_66 : f32 to vector<256x128xf32>
    %156 = arith.select %154, %147, %155 : vector<256x128xi1>, vector<256x128xf32>
    %157 = arith.truncf %156 : vector<256x128xf32> to vector<256x128xbf16>
    %c0_67 = arith.constant 0 : index
    %c0_68 = arith.constant 0 : index
    %c0_69 = arith.constant 0 : index
    %158 = vector.load %arg4[%c0_67, %c0_68, %c0_69] : memref<9x128x128xbf16, #tpu.memory_space<vmem>>, vector<1x128x128xbf16>
    %159 = vector.shape_cast %158 : vector<1x128x128xbf16> to vector<128x128xbf16>
    %cst_70 = arith.constant dense<0.000000e+00> : vector<256x128xf32>
    %160 = tpu.matmul %157, %159, %cst_70 {dimension_numbers = #tpu.dot_dimension_numbers<[1], [0], [0], [1], [0, 0, 1, 1], [], []>} : vector<256x128xbf16>, vector<128x128xbf16>, vector<256x128xf32> -> vector<256x128xf32>
    %cst_71 = arith.constant 0.000000e+00 : f32
    %161 = vector.broadcast %cst_71 : f32 to vector<16x128xf32>
    %162 = vector.extract_strided_slice %144 {offsets = [0, 0], sizes = [240, 128], strides = [1, 1]} : vector<256x128xf32> to vector<240x128xf32>
    %163 = tpu.concatenate %161, %162 in 0 : vector<16x128xf32>, vector<240x128xf32> -> vector<256x128xf32>
    %cst_72 = arith.constant 5.000000e-01 : f32
    %164 = vector.broadcast %cst_72 : f32 to vector<256x1xf32>
    %165 = arith.cmpf oge, %8, %164 : vector<256x1xf32>
    %cst_73 = arith.constant 0.000000e+00 : f32
    %166 = vector.shape_cast %165 : vector<256x1xi1> to vector<256x1xi1>
    %167 = vector.broadcast %166 : vector<256x1xi1> to vector<256x128xi1>
    %168 = vector.broadcast %cst_73 : f32 to vector<256x128xf32>
    %169 = arith.select %167, %163, %168 : vector<256x128xi1>, vector<256x128xf32>
    %170 = arith.truncf %169 : vector<256x128xf32> to vector<256x128xbf16>
    %c1_74 = arith.constant 1 : index
    %c0_75 = arith.constant 0 : index
    %c0_76 = arith.constant 0 : index
    %171 = vector.load %arg4[%c1_74, %c0_75, %c0_76] : memref<9x128x128xbf16, #tpu.memory_space<vmem>>, vector<1x128x128xbf16>
    %172 = vector.shape_cast %171 : vector<1x128x128xbf16> to vector<128x128xbf16>
    %cst_77 = arith.constant dense<0.000000e+00> : vector<256x128xf32>
    %173 = tpu.matmul %170, %172, %cst_77 {dimension_numbers = #tpu.dot_dimension_numbers<[1], [0], [0], [1], [0, 0, 1, 1], [], []>} : vector<256x128xbf16>, vector<128x128xbf16>, vector<256x128xf32> -> vector<256x128xf32>
    %174 = arith.addf %160, %173 : vector<256x128xf32>
    %cst_78 = arith.constant 0.000000e+00 : f32
    %175 = vector.broadcast %cst_78 : f32 to vector<15x128xf32>
    %176 = vector.extract_strided_slice %144 {offsets = [0, 0], sizes = [241, 128], strides = [1, 1]} : vector<256x128xf32> to vector<241x128xf32>
    %177 = tpu.concatenate %175, %176 in 0 : vector<15x128xf32>, vector<241x128xf32> -> vector<256x128xf32>
    %cst_79 = arith.constant 5.000000e-01 : f32
    %178 = vector.broadcast %cst_79 : f32 to vector<256x1xf32>
    %179 = arith.cmpf oge, %8, %178 : vector<256x1xf32>
    %cst_80 = arith.constant 1.450000e+01 : f32
    %180 = vector.broadcast %cst_80 : f32 to vector<256x1xf32>
    %181 = arith.cmpf ole, %11, %180 : vector<256x1xf32>
    %182 = arith.andi %179, %181 : vector<256x1xi1>
    %cst_81 = arith.constant 0.000000e+00 : f32
    %183 = vector.shape_cast %182 : vector<256x1xi1> to vector<256x1xi1>
    %184 = vector.broadcast %183 : vector<256x1xi1> to vector<256x128xi1>
    %185 = vector.broadcast %cst_81 : f32 to vector<256x128xf32>
    %186 = arith.select %184, %177, %185 : vector<256x128xi1>, vector<256x128xf32>
    %187 = arith.truncf %186 : vector<256x128xf32> to vector<256x128xbf16>
    %c2_82 = arith.constant 2 : index
    %c0_83 = arith.constant 0 : index
    %c0_84 = arith.constant 0 : index
    %188 = vector.load %arg4[%c2_82, %c0_83, %c0_84] : memref<9x128x128xbf16, #tpu.memory_space<vmem>>, vector<1x128x128xbf16>
    %189 = vector.shape_cast %188 : vector<1x128x128xbf16> to vector<128x128xbf16>
    %cst_85 = arith.constant dense<0.000000e+00> : vector<256x128xf32>
    %190 = tpu.matmul %187, %189, %cst_85 {dimension_numbers = #tpu.dot_dimension_numbers<[1], [0], [0], [1], [0, 0, 1, 1], [], []>} : vector<256x128xbf16>, vector<128x128xbf16>, vector<256x128xf32> -> vector<256x128xf32>
    %191 = arith.addf %174, %190 : vector<256x128xf32>
    %cst_86 = arith.constant 0.000000e+00 : f32
    %192 = vector.broadcast %cst_86 : f32 to vector<1x128xf32>
    %193 = vector.extract_strided_slice %144 {offsets = [0, 0], sizes = [255, 128], strides = [1, 1]} : vector<256x128xf32> to vector<255x128xf32>
    %194 = tpu.concatenate %192, %193 in 0 : vector<1x128xf32>, vector<255x128xf32> -> vector<256x128xf32>
    %cst_87 = arith.constant 5.000000e-01 : f32
    %195 = vector.broadcast %cst_87 : f32 to vector<256x1xf32>
    %196 = arith.cmpf oge, %11, %195 : vector<256x1xf32>
    %cst_88 = arith.constant 0.000000e+00 : f32
    %197 = vector.shape_cast %196 : vector<256x1xi1> to vector<256x1xi1>
    %198 = vector.broadcast %197 : vector<256x1xi1> to vector<256x128xi1>
    %199 = vector.broadcast %cst_88 : f32 to vector<256x128xf32>
    %200 = arith.select %198, %194, %199 : vector<256x128xi1>, vector<256x128xf32>
    %201 = arith.truncf %200 : vector<256x128xf32> to vector<256x128xbf16>
    %c3_89 = arith.constant 3 : index
    %c0_90 = arith.constant 0 : index
    %c0_91 = arith.constant 0 : index
    %202 = vector.load %arg4[%c3_89, %c0_90, %c0_91] : memref<9x128x128xbf16, #tpu.memory_space<vmem>>, vector<1x128x128xbf16>
    %203 = vector.shape_cast %202 : vector<1x128x128xbf16> to vector<128x128xbf16>
    %cst_92 = arith.constant dense<0.000000e+00> : vector<256x128xf32>
    %204 = tpu.matmul %201, %203, %cst_92 {dimension_numbers = #tpu.dot_dimension_numbers<[1], [0], [0], [1], [0, 0, 1, 1], [], []>} : vector<256x128xbf16>, vector<128x128xbf16>, vector<256x128xf32> -> vector<256x128xf32>
    %205 = arith.addf %191, %204 : vector<256x128xf32>
    %206 = arith.truncf %144 : vector<256x128xf32> to vector<256x128xbf16>
    %c4_93 = arith.constant 4 : index
    %c0_94 = arith.constant 0 : index
    %c0_95 = arith.constant 0 : index
    %207 = vector.load %arg4[%c4_93, %c0_94, %c0_95] : memref<9x128x128xbf16, #tpu.memory_space<vmem>>, vector<1x128x128xbf16>
    %208 = vector.shape_cast %207 : vector<1x128x128xbf16> to vector<128x128xbf16>
    %cst_96 = arith.constant dense<0.000000e+00> : vector<256x128xf32>
    %209 = tpu.matmul %206, %208, %cst_96 {dimension_numbers = #tpu.dot_dimension_numbers<[1], [0], [0], [1], [0, 0, 1, 1], [], []>} : vector<256x128xbf16>, vector<128x128xbf16>, vector<256x128xf32> -> vector<256x128xf32>
    %210 = arith.addf %205, %209 : vector<256x128xf32>
    %cst_97 = arith.constant 0.000000e+00 : f32
    %211 = vector.broadcast %cst_97 : f32 to vector<1x128xf32>
    %212 = vector.extract_strided_slice %144 {offsets = [1, 0], sizes = [255, 128], strides = [1, 1]} : vector<256x128xf32> to vector<255x128xf32>
    %213 = tpu.concatenate %212, %211 in 0 : vector<255x128xf32>, vector<1x128xf32> -> vector<256x128xf32>
    %cst_98 = arith.constant 1.450000e+01 : f32
    %214 = vector.broadcast %cst_98 : f32 to vector<256x1xf32>
    %215 = arith.cmpf ole, %11, %214 : vector<256x1xf32>
    %cst_99 = arith.constant 0.000000e+00 : f32
    %216 = vector.shape_cast %215 : vector<256x1xi1> to vector<256x1xi1>
    %217 = vector.broadcast %216 : vector<256x1xi1> to vector<256x128xi1>
    %218 = vector.broadcast %cst_99 : f32 to vector<256x128xf32>
    %219 = arith.select %217, %213, %218 : vector<256x128xi1>, vector<256x128xf32>
    %220 = arith.truncf %219 : vector<256x128xf32> to vector<256x128xbf16>
    %c5_100 = arith.constant 5 : index
    %c0_101 = arith.constant 0 : index
    %c0_102 = arith.constant 0 : index
    %221 = vector.load %arg4[%c5_100, %c0_101, %c0_102] : memref<9x128x128xbf16, #tpu.memory_space<vmem>>, vector<1x128x128xbf16>
    %222 = vector.shape_cast %221 : vector<1x128x128xbf16> to vector<128x128xbf16>
    %cst_103 = arith.constant dense<0.000000e+00> : vector<256x128xf32>
    %223 = tpu.matmul %220, %222, %cst_103 {dimension_numbers = #tpu.dot_dimension_numbers<[1], [0], [0], [1], [0, 0, 1, 1], [], []>} : vector<256x128xbf16>, vector<128x128xbf16>, vector<256x128xf32> -> vector<256x128xf32>
    %224 = arith.addf %210, %223 : vector<256x128xf32>
    %cst_104 = arith.constant 0.000000e+00 : f32
    %225 = vector.broadcast %cst_104 : f32 to vector<15x128xf32>
    %226 = vector.extract_strided_slice %144 {offsets = [15, 0], sizes = [241, 128], strides = [1, 1]} : vector<256x128xf32> to vector<241x128xf32>
    %227 = tpu.concatenate %226, %225 in 0 : vector<241x128xf32>, vector<15x128xf32> -> vector<256x128xf32>
    %cst_105 = arith.constant 1.450000e+01 : f32
    %228 = vector.broadcast %cst_105 : f32 to vector<256x1xf32>
    %229 = arith.cmpf ole, %8, %228 : vector<256x1xf32>
    %cst_106 = arith.constant 5.000000e-01 : f32
    %230 = vector.broadcast %cst_106 : f32 to vector<256x1xf32>
    %231 = arith.cmpf oge, %11, %230 : vector<256x1xf32>
    %232 = arith.andi %229, %231 : vector<256x1xi1>
    %cst_107 = arith.constant 0.000000e+00 : f32
    %233 = vector.shape_cast %232 : vector<256x1xi1> to vector<256x1xi1>
    %234 = vector.broadcast %233 : vector<256x1xi1> to vector<256x128xi1>
    %235 = vector.broadcast %cst_107 : f32 to vector<256x128xf32>
    %236 = arith.select %234, %227, %235 : vector<256x128xi1>, vector<256x128xf32>
    %237 = arith.truncf %236 : vector<256x128xf32> to vector<256x128xbf16>
    %c6_108 = arith.constant 6 : index
    %c0_109 = arith.constant 0 : index
    %c0_110 = arith.constant 0 : index
    %238 = vector.load %arg4[%c6_108, %c0_109, %c0_110] : memref<9x128x128xbf16, #tpu.memory_space<vmem>>, vector<1x128x128xbf16>
    %239 = vector.shape_cast %238 : vector<1x128x128xbf16> to vector<128x128xbf16>
    %cst_111 = arith.constant dense<0.000000e+00> : vector<256x128xf32>
    %240 = tpu.matmul %237, %239, %cst_111 {dimension_numbers = #tpu.dot_dimension_numbers<[1], [0], [0], [1], [0, 0, 1, 1], [], []>} : vector<256x128xbf16>, vector<128x128xbf16>, vector<256x128xf32> -> vector<256x128xf32>
    %241 = arith.addf %224, %240 : vector<256x128xf32>
    %cst_112 = arith.constant 0.000000e+00 : f32
    %242 = vector.broadcast %cst_112 : f32 to vector<16x128xf32>
    %243 = vector.extract_strided_slice %144 {offsets = [16, 0], sizes = [240, 128], strides = [1, 1]} : vector<256x128xf32> to vector<240x128xf32>
    %244 = tpu.concatenate %243, %242 in 0 : vector<240x128xf32>, vector<16x128xf32> -> vector<256x128xf32>
    %cst_113 = arith.constant 1.450000e+01 : f32
    %245 = vector.broadcast %cst_113 : f32 to vector<256x1xf32>
    %246 = arith.cmpf ole, %8, %245 : vector<256x1xf32>
    %cst_114 = arith.constant 0.000000e+00 : f32
    %247 = vector.shape_cast %246 : vector<256x1xi1> to vector<256x1xi1>
    %248 = vector.broadcast %247 : vector<256x1xi1> to vector<256x128xi1>
    %249 = vector.broadcast %cst_114 : f32 to vector<256x128xf32>
    %250 = arith.select %248, %244, %249 : vector<256x128xi1>, vector<256x128xf32>
    %251 = arith.truncf %250 : vector<256x128xf32> to vector<256x128xbf16>
    %c7_115 = arith.constant 7 : index
    %c0_116 = arith.constant 0 : index
    %c0_117 = arith.constant 0 : index
    %252 = vector.load %arg4[%c7_115, %c0_116, %c0_117] : memref<9x128x128xbf16, #tpu.memory_space<vmem>>, vector<1x128x128xbf16>
    %253 = vector.shape_cast %252 : vector<1x128x128xbf16> to vector<128x128xbf16>
    %cst_118 = arith.constant dense<0.000000e+00> : vector<256x128xf32>
    %254 = tpu.matmul %251, %253, %cst_118 {dimension_numbers = #tpu.dot_dimension_numbers<[1], [0], [0], [1], [0, 0, 1, 1], [], []>} : vector<256x128xbf16>, vector<128x128xbf16>, vector<256x128xf32> -> vector<256x128xf32>
    %255 = arith.addf %241, %254 : vector<256x128xf32>
    %cst_119 = arith.constant 0.000000e+00 : f32
    %256 = vector.broadcast %cst_119 : f32 to vector<17x128xf32>
    %257 = vector.extract_strided_slice %144 {offsets = [17, 0], sizes = [239, 128], strides = [1, 1]} : vector<256x128xf32> to vector<239x128xf32>
    %258 = tpu.concatenate %257, %256 in 0 : vector<239x128xf32>, vector<17x128xf32> -> vector<256x128xf32>
    %cst_120 = arith.constant 1.450000e+01 : f32
    %259 = vector.broadcast %cst_120 : f32 to vector<256x1xf32>
    %260 = arith.cmpf ole, %8, %259 : vector<256x1xf32>
    %cst_121 = arith.constant 1.450000e+01 : f32
    %261 = vector.broadcast %cst_121 : f32 to vector<256x1xf32>
    %262 = arith.cmpf ole, %11, %261 : vector<256x1xf32>
    %263 = arith.andi %260, %262 : vector<256x1xi1>
    %cst_122 = arith.constant 0.000000e+00 : f32
    %264 = vector.shape_cast %263 : vector<256x1xi1> to vector<256x1xi1>
    %265 = vector.broadcast %264 : vector<256x1xi1> to vector<256x128xi1>
    %266 = vector.broadcast %cst_122 : f32 to vector<256x128xf32>
    %267 = arith.select %265, %258, %266 : vector<256x128xi1>, vector<256x128xf32>
    %268 = arith.truncf %267 : vector<256x128xf32> to vector<256x128xbf16>
    %c8_123 = arith.constant 8 : index
    %c0_124 = arith.constant 0 : index
    %c0_125 = arith.constant 0 : index
    %269 = vector.load %arg4[%c8_123, %c0_124, %c0_125] : memref<9x128x128xbf16, #tpu.memory_space<vmem>>, vector<1x128x128xbf16>
    %270 = vector.shape_cast %269 : vector<1x128x128xbf16> to vector<128x128xbf16>
    %cst_126 = arith.constant dense<0.000000e+00> : vector<256x128xf32>
    %271 = tpu.matmul %268, %270, %cst_126 {dimension_numbers = #tpu.dot_dimension_numbers<[1], [0], [0], [1], [0, 0, 1, 1], [], []>} : vector<256x128xbf16>, vector<128x128xbf16>, vector<256x128xf32> -> vector<256x128xf32>
    %272 = arith.addf %255, %271 : vector<256x128xf32>
    %c0_127 = arith.constant 0 : index
    %c0_128 = arith.constant 0 : index
    %273 = vector.load %arg5[%c0_127, %c0_128] : memref<1x128xf32, #tpu.memory_space<vmem>>, vector<1x128xf32>
    %274 = vector.broadcast %273 : vector<1x128xf32> to vector<256x128xf32>
    %275 = arith.addf %272, %274 : vector<256x128xf32>
    %cst_129 = arith.constant 0.000000e+00 : f32
    %276 = vector.broadcast %cst_129 : f32 to vector<256x128xf32>
    %277 = arith.maximumf %275, %276 : vector<256x128xf32>
    %278 = vector.shape_cast %277 : vector<256x128xf32> to vector<8x2x8x256xf32>
    %cst_130 = arith.constant dense<0xFF800000> : vector<8x8x256xf32>
    %279 = vector.multi_reduction <maximumf>, %278, %cst_130 [1] : vector<8x2x8x256xf32> to vector<8x8x256xf32>
    %280 = vector.extract_strided_slice %279 {offsets = [0, 0, 0], sizes = [8, 8, 128], strides = [1, 1, 1]} : vector<8x8x256xf32> to vector<8x8x128xf32>
    %281 = vector.extract_strided_slice %279 {offsets = [0, 0, 128], sizes = [8, 8, 128], strides = [1, 1, 1]} : vector<8x8x256xf32> to vector<8x8x128xf32>
    %282 = arith.maximumf %280, %281 : vector<8x8x128xf32>
    %283 = vector.shape_cast %282 : vector<8x8x128xf32> to vector<64x128xf32>
    %284 = tpu.iota {dimensions = array<i32: 0>} : vector<64x1xi32>
    %285 = arith.sitofp %284 : vector<64x1xi32> to vector<64x1xf32>
    %cst_131 = arith.constant 5.000000e-01 : f32
    %286 = vector.broadcast %cst_131 : f32 to vector<64x1xf32>
    %287 = arith.addf %285, %286 : vector<64x1xf32>
    %cst_132 = arith.constant 8.000000e+00 : f32
    %288 = vector.broadcast %cst_132 : f32 to vector<64x1xf32>
    %289 = arith.divf %287, %288 : vector<64x1xf32>
    %290 = math.floor %289 : vector<64x1xf32>
    %cst_133 = arith.constant 8.000000e+00 : f32
    %291 = vector.broadcast %cst_133 : f32 to vector<64x1xf32>
    %292 = arith.mulf %290, %291 : vector<64x1xf32>
    %293 = arith.subf %285, %292 : vector<64x1xf32>
    %cst_134 = arith.constant 0.000000e+00 : f32
    %294 = vector.broadcast %cst_134 : f32 to vector<9x128xf32>
    %295 = vector.extract_strided_slice %283 {offsets = [0, 0], sizes = [55, 128], strides = [1, 1]} : vector<64x128xf32> to vector<55x128xf32>
    %296 = tpu.concatenate %294, %295 in 0 : vector<9x128xf32>, vector<55x128xf32> -> vector<64x128xf32>
    %cst_135 = arith.constant 5.000000e-01 : f32
    %297 = vector.broadcast %cst_135 : f32 to vector<64x1xf32>
    %298 = arith.cmpf oge, %290, %297 : vector<64x1xf32>
    %cst_136 = arith.constant 5.000000e-01 : f32
    %299 = vector.broadcast %cst_136 : f32 to vector<64x1xf32>
    %300 = arith.cmpf oge, %293, %299 : vector<64x1xf32>
    %301 = arith.andi %298, %300 : vector<64x1xi1>
    %cst_137 = arith.constant 0.000000e+00 : f32
    %302 = vector.shape_cast %301 : vector<64x1xi1> to vector<64x1xi1>
    %303 = vector.broadcast %302 : vector<64x1xi1> to vector<64x128xi1>
    %304 = vector.broadcast %cst_137 : f32 to vector<64x128xf32>
    %305 = arith.select %303, %296, %304 : vector<64x128xi1>, vector<64x128xf32>
    %306 = arith.truncf %305 : vector<64x128xf32> to vector<64x128xbf16>
    %c0_138 = arith.constant 0 : index
    %c0_139 = arith.constant 0 : index
    %c0_140 = arith.constant 0 : index
    %307 = vector.load %arg6[%c0_138, %c0_139, %c0_140] : memref<9x128x128xbf16, #tpu.memory_space<vmem>>, vector<1x128x128xbf16>
    %308 = vector.shape_cast %307 : vector<1x128x128xbf16> to vector<128x128xbf16>
    %cst_141 = arith.constant dense<0.000000e+00> : vector<64x128xf32>
    %309 = tpu.matmul %306, %308, %cst_141 {dimension_numbers = #tpu.dot_dimension_numbers<[1], [0], [0], [1], [0, 0, 1, 1], [], []>} : vector<64x128xbf16>, vector<128x128xbf16>, vector<64x128xf32> -> vector<64x128xf32>
    %cst_142 = arith.constant 0.000000e+00 : f32
    %310 = vector.broadcast %cst_142 : f32 to vector<8x128xf32>
    %311 = vector.extract_strided_slice %283 {offsets = [0, 0], sizes = [56, 128], strides = [1, 1]} : vector<64x128xf32> to vector<56x128xf32>
    %312 = tpu.concatenate %310, %311 in 0 : vector<8x128xf32>, vector<56x128xf32> -> vector<64x128xf32>
    %cst_143 = arith.constant 5.000000e-01 : f32
    %313 = vector.broadcast %cst_143 : f32 to vector<64x1xf32>
    %314 = arith.cmpf oge, %290, %313 : vector<64x1xf32>
    %cst_144 = arith.constant 0.000000e+00 : f32
    %315 = vector.shape_cast %314 : vector<64x1xi1> to vector<64x1xi1>
    %316 = vector.broadcast %315 : vector<64x1xi1> to vector<64x128xi1>
    %317 = vector.broadcast %cst_144 : f32 to vector<64x128xf32>
    %318 = arith.select %316, %312, %317 : vector<64x128xi1>, vector<64x128xf32>
    %319 = arith.truncf %318 : vector<64x128xf32> to vector<64x128xbf16>
    %c1_145 = arith.constant 1 : index
    %c0_146 = arith.constant 0 : index
    %c0_147 = arith.constant 0 : index
    %320 = vector.load %arg6[%c1_145, %c0_146, %c0_147] : memref<9x128x128xbf16, #tpu.memory_space<vmem>>, vector<1x128x128xbf16>
    %321 = vector.shape_cast %320 : vector<1x128x128xbf16> to vector<128x128xbf16>
    %cst_148 = arith.constant dense<0.000000e+00> : vector<64x128xf32>
    %322 = tpu.matmul %319, %321, %cst_148 {dimension_numbers = #tpu.dot_dimension_numbers<[1], [0], [0], [1], [0, 0, 1, 1], [], []>} : vector<64x128xbf16>, vector<128x128xbf16>, vector<64x128xf32> -> vector<64x128xf32>
    %323 = arith.addf %309, %322 : vector<64x128xf32>
    %cst_149 = arith.constant 0.000000e+00 : f32
    %324 = vector.broadcast %cst_149 : f32 to vector<7x128xf32>
    %325 = vector.extract_strided_slice %283 {offsets = [0, 0], sizes = [57, 128], strides = [1, 1]} : vector<64x128xf32> to vector<57x128xf32>
    %326 = tpu.concatenate %324, %325 in 0 : vector<7x128xf32>, vector<57x128xf32> -> vector<64x128xf32>
    %cst_150 = arith.constant 5.000000e-01 : f32
    %327 = vector.broadcast %cst_150 : f32 to vector<64x1xf32>
    %328 = arith.cmpf oge, %290, %327 : vector<64x1xf32>
    %cst_151 = arith.constant 6.500000e+00 : f32
    %329 = vector.broadcast %cst_151 : f32 to vector<64x1xf32>
    %330 = arith.cmpf ole, %293, %329 : vector<64x1xf32>
    %331 = arith.andi %328, %330 : vector<64x1xi1>
    %cst_152 = arith.constant 0.000000e+00 : f32
    %332 = vector.shape_cast %331 : vector<64x1xi1> to vector<64x1xi1>
    %333 = vector.broadcast %332 : vector<64x1xi1> to vector<64x128xi1>
    %334 = vector.broadcast %cst_152 : f32 to vector<64x128xf32>
    %335 = arith.select %333, %326, %334 : vector<64x128xi1>, vector<64x128xf32>
    %336 = arith.truncf %335 : vector<64x128xf32> to vector<64x128xbf16>
    %c2_153 = arith.constant 2 : index
    %c0_154 = arith.constant 0 : index
    %c0_155 = arith.constant 0 : index
    %337 = vector.load %arg6[%c2_153, %c0_154, %c0_155] : memref<9x128x128xbf16, #tpu.memory_space<vmem>>, vector<1x128x128xbf16>
    %338 = vector.shape_cast %337 : vector<1x128x128xbf16> to vector<128x128xbf16>
    %cst_156 = arith.constant dense<0.000000e+00> : vector<64x128xf32>
    %339 = tpu.matmul %336, %338, %cst_156 {dimension_numbers = #tpu.dot_dimension_numbers<[1], [0], [0], [1], [0, 0, 1, 1], [], []>} : vector<64x128xbf16>, vector<128x128xbf16>, vector<64x128xf32> -> vector<64x128xf32>
    %340 = arith.addf %323, %339 : vector<64x128xf32>
    %cst_157 = arith.constant 0.000000e+00 : f32
    %341 = vector.broadcast %cst_157 : f32 to vector<1x128xf32>
    %342 = vector.extract_strided_slice %283 {offsets = [0, 0], sizes = [63, 128], strides = [1, 1]} : vector<64x128xf32> to vector<63x128xf32>
    %343 = tpu.concatenate %341, %342 in 0 : vector<1x128xf32>, vector<63x128xf32> -> vector<64x128xf32>
    %cst_158 = arith.constant 5.000000e-01 : f32
    %344 = vector.broadcast %cst_158 : f32 to vector<64x1xf32>
    %345 = arith.cmpf oge, %293, %344 : vector<64x1xf32>
    %cst_159 = arith.constant 0.000000e+00 : f32
    %346 = vector.shape_cast %345 : vector<64x1xi1> to vector<64x1xi1>
    %347 = vector.broadcast %346 : vector<64x1xi1> to vector<64x128xi1>
    %348 = vector.broadcast %cst_159 : f32 to vector<64x128xf32>
    %349 = arith.select %347, %343, %348 : vector<64x128xi1>, vector<64x128xf32>
    %350 = arith.truncf %349 : vector<64x128xf32> to vector<64x128xbf16>
    %c3_160 = arith.constant 3 : index
    %c0_161 = arith.constant 0 : index
    %c0_162 = arith.constant 0 : index
    %351 = vector.load %arg6[%c3_160, %c0_161, %c0_162] : memref<9x128x128xbf16, #tpu.memory_space<vmem>>, vector<1x128x128xbf16>
    %352 = vector.shape_cast %351 : vector<1x128x128xbf16> to vector<128x128xbf16>
    %cst_163 = arith.constant dense<0.000000e+00> : vector<64x128xf32>
    %353 = tpu.matmul %350, %352, %cst_163 {dimension_numbers = #tpu.dot_dimension_numbers<[1], [0], [0], [1], [0, 0, 1, 1], [], []>} : vector<64x128xbf16>, vector<128x128xbf16>, vector<64x128xf32> -> vector<64x128xf32>
    %354 = arith.addf %340, %353 : vector<64x128xf32>
    %355 = arith.truncf %283 : vector<64x128xf32> to vector<64x128xbf16>
    %c4_164 = arith.constant 4 : index
    %c0_165 = arith.constant 0 : index
    %c0_166 = arith.constant 0 : index
    %356 = vector.load %arg6[%c4_164, %c0_165, %c0_166] : memref<9x128x128xbf16, #tpu.memory_space<vmem>>, vector<1x128x128xbf16>
    %357 = vector.shape_cast %356 : vector<1x128x128xbf16> to vector<128x128xbf16>
    %cst_167 = arith.constant dense<0.000000e+00> : vector<64x128xf32>
    %358 = tpu.matmul %355, %357, %cst_167 {dimension_numbers = #tpu.dot_dimension_numbers<[1], [0], [0], [1], [0, 0, 1, 1], [], []>} : vector<64x128xbf16>, vector<128x128xbf16>, vector<64x128xf32> -> vector<64x128xf32>
    %359 = arith.addf %354, %358 : vector<64x128xf32>
    %cst_168 = arith.constant 0.000000e+00 : f32
    %360 = vector.broadcast %cst_168 : f32 to vector<1x128xf32>
    %361 = vector.extract_strided_slice %283 {offsets = [1, 0], sizes = [63, 128], strides = [1, 1]} : vector<64x128xf32> to vector<63x128xf32>
    %362 = tpu.concatenate %361, %360 in 0 : vector<63x128xf32>, vector<1x128xf32> -> vector<64x128xf32>
    %cst_169 = arith.constant 6.500000e+00 : f32
    %363 = vector.broadcast %cst_169 : f32 to vector<64x1xf32>
    %364 = arith.cmpf ole, %293, %363 : vector<64x1xf32>
    %cst_170 = arith.constant 0.000000e+00 : f32
    %365 = vector.shape_cast %364 : vector<64x1xi1> to vector<64x1xi1>
    %366 = vector.broadcast %365 : vector<64x1xi1> to vector<64x128xi1>
    %367 = vector.broadcast %cst_170 : f32 to vector<64x128xf32>
    %368 = arith.select %366, %362, %367 : vector<64x128xi1>, vector<64x128xf32>
    %369 = arith.truncf %368 : vector<64x128xf32> to vector<64x128xbf16>
    %c5_171 = arith.constant 5 : index
    %c0_172 = arith.constant 0 : index
    %c0_173 = arith.constant 0 : index
    %370 = vector.load %arg6[%c5_171, %c0_172, %c0_173] : memref<9x128x128xbf16, #tpu.memory_space<vmem>>, vector<1x128x128xbf16>
    %371 = vector.shape_cast %370 : vector<1x128x128xbf16> to vector<128x128xbf16>
    %cst_174 = arith.constant dense<0.000000e+00> : vector<64x128xf32>
    %372 = tpu.matmul %369, %371, %cst_174 {dimension_numbers = #tpu.dot_dimension_numbers<[1], [0], [0], [1], [0, 0, 1, 1], [], []>} : vector<64x128xbf16>, vector<128x128xbf16>, vector<64x128xf32> -> vector<64x128xf32>
    %373 = arith.addf %359, %372 : vector<64x128xf32>
    %cst_175 = arith.constant 0.000000e+00 : f32
    %374 = vector.broadcast %cst_175 : f32 to vector<7x128xf32>
    %375 = vector.extract_strided_slice %283 {offsets = [7, 0], sizes = [57, 128], strides = [1, 1]} : vector<64x128xf32> to vector<57x128xf32>
    %376 = tpu.concatenate %375, %374 in 0 : vector<57x128xf32>, vector<7x128xf32> -> vector<64x128xf32>
    %cst_176 = arith.constant 6.500000e+00 : f32
    %377 = vector.broadcast %cst_176 : f32 to vector<64x1xf32>
    %378 = arith.cmpf ole, %290, %377 : vector<64x1xf32>
    %cst_177 = arith.constant 5.000000e-01 : f32
    %379 = vector.broadcast %cst_177 : f32 to vector<64x1xf32>
    %380 = arith.cmpf oge, %293, %379 : vector<64x1xf32>
    %381 = arith.andi %378, %380 : vector<64x1xi1>
    %cst_178 = arith.constant 0.000000e+00 : f32
    %382 = vector.shape_cast %381 : vector<64x1xi1> to vector<64x1xi1>
    %383 = vector.broadcast %382 : vector<64x1xi1> to vector<64x128xi1>
    %384 = vector.broadcast %cst_178 : f32 to vector<64x128xf32>
    %385 = arith.select %383, %376, %384 : vector<64x128xi1>, vector<64x128xf32>
    %386 = arith.truncf %385 : vector<64x128xf32> to vector<64x128xbf16>
    %c6_179 = arith.constant 6 : index
    %c0_180 = arith.constant 0 : index
    %c0_181 = arith.constant 0 : index
    %387 = vector.load %arg6[%c6_179, %c0_180, %c0_181] : memref<9x128x128xbf16, #tpu.memory_space<vmem>>, vector<1x128x128xbf16>
    %388 = vector.shape_cast %387 : vector<1x128x128xbf16> to vector<128x128xbf16>
    %cst_182 = arith.constant dense<0.000000e+00> : vector<64x128xf32>
    %389 = tpu.matmul %386, %388, %cst_182 {dimension_numbers = #tpu.dot_dimension_numbers<[1], [0], [0], [1], [0, 0, 1, 1], [], []>} : vector<64x128xbf16>, vector<128x128xbf16>, vector<64x128xf32> -> vector<64x128xf32>
    %390 = arith.addf %373, %389 : vector<64x128xf32>
    %cst_183 = arith.constant 0.000000e+00 : f32
    %391 = vector.broadcast %cst_183 : f32 to vector<8x128xf32>
    %392 = vector.extract_strided_slice %283 {offsets = [8, 0], sizes = [56, 128], strides = [1, 1]} : vector<64x128xf32> to vector<56x128xf32>
    %393 = tpu.concatenate %392, %391 in 0 : vector<56x128xf32>, vector<8x128xf32> -> vector<64x128xf32>
    %cst_184 = arith.constant 6.500000e+00 : f32
    %394 = vector.broadcast %cst_184 : f32 to vector<64x1xf32>
    %395 = arith.cmpf ole, %290, %394 : vector<64x1xf32>
    %cst_185 = arith.constant 0.000000e+00 : f32
    %396 = vector.shape_cast %395 : vector<64x1xi1> to vector<64x1xi1>
    %397 = vector.broadcast %396 : vector<64x1xi1> to vector<64x128xi1>
    %398 = vector.broadcast %cst_185 : f32 to vector<64x128xf32>
    %399 = arith.select %397, %393, %398 : vector<64x128xi1>, vector<64x128xf32>
    %400 = arith.truncf %399 : vector<64x128xf32> to vector<64x128xbf16>
    %c7_186 = arith.constant 7 : index
    %c0_187 = arith.constant 0 : index
    %c0_188 = arith.constant 0 : index
    %401 = vector.load %arg6[%c7_186, %c0_187, %c0_188] : memref<9x128x128xbf16, #tpu.memory_space<vmem>>, vector<1x128x128xbf16>
    %402 = vector.shape_cast %401 : vector<1x128x128xbf16> to vector<128x128xbf16>
    %cst_189 = arith.constant dense<0.000000e+00> : vector<64x128xf32>
    %403 = tpu.matmul %400, %402, %cst_189 {dimension_numbers = #tpu.dot_dimension_numbers<[1], [0], [0], [1], [0, 0, 1, 1], [], []>} : vector<64x128xbf16>, vector<128x128xbf16>, vector<64x128xf32> -> vector<64x128xf32>
    %404 = arith.addf %390, %403 : vector<64x128xf32>
    %cst_190 = arith.constant 0.000000e+00 : f32
    %405 = vector.broadcast %cst_190 : f32 to vector<9x128xf32>
    %406 = vector.extract_strided_slice %283 {offsets = [9, 0], sizes = [55, 128], strides = [1, 1]} : vector<64x128xf32> to vector<55x128xf32>
    %407 = tpu.concatenate %406, %405 in 0 : vector<55x128xf32>, vector<9x128xf32> -> vector<64x128xf32>
    %cst_191 = arith.constant 6.500000e+00 : f32
    %408 = vector.broadcast %cst_191 : f32 to vector<64x1xf32>
    %409 = arith.cmpf ole, %290, %408 : vector<64x1xf32>
    %cst_192 = arith.constant 6.500000e+00 : f32
    %410 = vector.broadcast %cst_192 : f32 to vector<64x1xf32>
    %411 = arith.cmpf ole, %293, %410 : vector<64x1xf32>
    %412 = arith.andi %409, %411 : vector<64x1xi1>
    %cst_193 = arith.constant 0.000000e+00 : f32
    %413 = vector.shape_cast %412 : vector<64x1xi1> to vector<64x1xi1>
    %414 = vector.broadcast %413 : vector<64x1xi1> to vector<64x128xi1>
    %415 = vector.broadcast %cst_193 : f32 to vector<64x128xf32>
    %416 = arith.select %414, %407, %415 : vector<64x128xi1>, vector<64x128xf32>
    %417 = arith.truncf %416 : vector<64x128xf32> to vector<64x128xbf16>
    %c8_194 = arith.constant 8 : index
    %c0_195 = arith.constant 0 : index
    %c0_196 = arith.constant 0 : index
    %418 = vector.load %arg6[%c8_194, %c0_195, %c0_196] : memref<9x128x128xbf16, #tpu.memory_space<vmem>>, vector<1x128x128xbf16>
    %419 = vector.shape_cast %418 : vector<1x128x128xbf16> to vector<128x128xbf16>
    %cst_197 = arith.constant dense<0.000000e+00> : vector<64x128xf32>
    %420 = tpu.matmul %417, %419, %cst_197 {dimension_numbers = #tpu.dot_dimension_numbers<[1], [0], [0], [1], [0, 0, 1, 1], [], []>} : vector<64x128xbf16>, vector<128x128xbf16>, vector<64x128xf32> -> vector<64x128xf32>
    %421 = arith.addf %404, %420 : vector<64x128xf32>
    %c0_198 = arith.constant 0 : index
    %c0_199 = arith.constant 0 : index
    %422 = vector.load %arg7[%c0_198, %c0_199] : memref<1x128xf32, #tpu.memory_space<vmem>>, vector<1x128xf32>
    %423 = vector.broadcast %422 : vector<1x128xf32> to vector<64x128xf32>
    %424 = arith.addf %421, %423 : vector<64x128xf32>
    %cst_200 = arith.constant 0.000000e+00 : f32
    %425 = vector.broadcast %cst_200 : f32 to vector<64x128xf32>
    %426 = arith.maximumf %424, %425 : vector<64x128xf32>
    %cst_201 = arith.constant 0.000000e+00 : f32
    %427 = vector.broadcast %cst_201 : f32 to vector<9x128xf32>
    %428 = vector.extract_strided_slice %426 {offsets = [0, 0], sizes = [55, 128], strides = [1, 1]} : vector<64x128xf32> to vector<55x128xf32>
    %429 = tpu.concatenate %427, %428 in 0 : vector<9x128xf32>, vector<55x128xf32> -> vector<64x128xf32>
    %cst_202 = arith.constant 5.000000e-01 : f32
    %430 = vector.broadcast %cst_202 : f32 to vector<64x1xf32>
    %431 = arith.cmpf oge, %290, %430 : vector<64x1xf32>
    %cst_203 = arith.constant 5.000000e-01 : f32
    %432 = vector.broadcast %cst_203 : f32 to vector<64x1xf32>
    %433 = arith.cmpf oge, %293, %432 : vector<64x1xf32>
    %434 = arith.andi %431, %433 : vector<64x1xi1>
    %cst_204 = arith.constant 0.000000e+00 : f32
    %435 = vector.shape_cast %434 : vector<64x1xi1> to vector<64x1xi1>
    %436 = vector.broadcast %435 : vector<64x1xi1> to vector<64x128xi1>
    %437 = vector.broadcast %cst_204 : f32 to vector<64x128xf32>
    %438 = arith.select %436, %429, %437 : vector<64x128xi1>, vector<64x128xf32>
    %439 = arith.truncf %438 : vector<64x128xf32> to vector<64x128xbf16>
    %c0_205 = arith.constant 0 : index
    %c0_206 = arith.constant 0 : index
    %c0_207 = arith.constant 0 : index
    %440 = vector.load %arg8[%c0_205, %c0_206, %c0_207] : memref<9x128x128xbf16, #tpu.memory_space<vmem>>, vector<1x128x128xbf16>
    %441 = vector.shape_cast %440 : vector<1x128x128xbf16> to vector<128x128xbf16>
    %cst_208 = arith.constant dense<0.000000e+00> : vector<64x128xf32>
    %442 = tpu.matmul %439, %441, %cst_208 {dimension_numbers = #tpu.dot_dimension_numbers<[1], [0], [0], [1], [0, 0, 1, 1], [], []>} : vector<64x128xbf16>, vector<128x128xbf16>, vector<64x128xf32> -> vector<64x128xf32>
    %cst_209 = arith.constant 0.000000e+00 : f32
    %443 = vector.broadcast %cst_209 : f32 to vector<8x128xf32>
    %444 = vector.extract_strided_slice %426 {offsets = [0, 0], sizes = [56, 128], strides = [1, 1]} : vector<64x128xf32> to vector<56x128xf32>
    %445 = tpu.concatenate %443, %444 in 0 : vector<8x128xf32>, vector<56x128xf32> -> vector<64x128xf32>
    %cst_210 = arith.constant 5.000000e-01 : f32
    %446 = vector.broadcast %cst_210 : f32 to vector<64x1xf32>
    %447 = arith.cmpf oge, %290, %446 : vector<64x1xf32>
    %cst_211 = arith.constant 0.000000e+00 : f32
    %448 = vector.shape_cast %447 : vector<64x1xi1> to vector<64x1xi1>
    %449 = vector.broadcast %448 : vector<64x1xi1> to vector<64x128xi1>
    %450 = vector.broadcast %cst_211 : f32 to vector<64x128xf32>
    %451 = arith.select %449, %445, %450 : vector<64x128xi1>, vector<64x128xf32>
    %452 = arith.truncf %451 : vector<64x128xf32> to vector<64x128xbf16>
    %c1_212 = arith.constant 1 : index
    %c0_213 = arith.constant 0 : index
    %c0_214 = arith.constant 0 : index
    %453 = vector.load %arg8[%c1_212, %c0_213, %c0_214] : memref<9x128x128xbf16, #tpu.memory_space<vmem>>, vector<1x128x128xbf16>
    %454 = vector.shape_cast %453 : vector<1x128x128xbf16> to vector<128x128xbf16>
    %cst_215 = arith.constant dense<0.000000e+00> : vector<64x128xf32>
    %455 = tpu.matmul %452, %454, %cst_215 {dimension_numbers = #tpu.dot_dimension_numbers<[1], [0], [0], [1], [0, 0, 1, 1], [], []>} : vector<64x128xbf16>, vector<128x128xbf16>, vector<64x128xf32> -> vector<64x128xf32>
    %456 = arith.addf %442, %455 : vector<64x128xf32>
    %cst_216 = arith.constant 0.000000e+00 : f32
    %457 = vector.broadcast %cst_216 : f32 to vector<7x128xf32>
    %458 = vector.extract_strided_slice %426 {offsets = [0, 0], sizes = [57, 128], strides = [1, 1]} : vector<64x128xf32> to vector<57x128xf32>
    %459 = tpu.concatenate %457, %458 in 0 : vector<7x128xf32>, vector<57x128xf32> -> vector<64x128xf32>
    %cst_217 = arith.constant 5.000000e-01 : f32
    %460 = vector.broadcast %cst_217 : f32 to vector<64x1xf32>
    %461 = arith.cmpf oge, %290, %460 : vector<64x1xf32>
    %cst_218 = arith.constant 6.500000e+00 : f32
    %462 = vector.broadcast %cst_218 : f32 to vector<64x1xf32>
    %463 = arith.cmpf ole, %293, %462 : vector<64x1xf32>
    %464 = arith.andi %461, %463 : vector<64x1xi1>
    %cst_219 = arith.constant 0.000000e+00 : f32
    %465 = vector.shape_cast %464 : vector<64x1xi1> to vector<64x1xi1>
    %466 = vector.broadcast %465 : vector<64x1xi1> to vector<64x128xi1>
    %467 = vector.broadcast %cst_219 : f32 to vector<64x128xf32>
    %468 = arith.select %466, %459, %467 : vector<64x128xi1>, vector<64x128xf32>
    %469 = arith.truncf %468 : vector<64x128xf32> to vector<64x128xbf16>
    %c2_220 = arith.constant 2 : index
    %c0_221 = arith.constant 0 : index
    %c0_222 = arith.constant 0 : index
    %470 = vector.load %arg8[%c2_220, %c0_221, %c0_222] : memref<9x128x128xbf16, #tpu.memory_space<vmem>>, vector<1x128x128xbf16>
    %471 = vector.shape_cast %470 : vector<1x128x128xbf16> to vector<128x128xbf16>
    %cst_223 = arith.constant dense<0.000000e+00> : vector<64x128xf32>
    %472 = tpu.matmul %469, %471, %cst_223 {dimension_numbers = #tpu.dot_dimension_numbers<[1], [0], [0], [1], [0, 0, 1, 1], [], []>} : vector<64x128xbf16>, vector<128x128xbf16>, vector<64x128xf32> -> vector<64x128xf32>
    %473 = arith.addf %456, %472 : vector<64x128xf32>
    %cst_224 = arith.constant 0.000000e+00 : f32
    %474 = vector.broadcast %cst_224 : f32 to vector<1x128xf32>
    %475 = vector.extract_strided_slice %426 {offsets = [0, 0], sizes = [63, 128], strides = [1, 1]} : vector<64x128xf32> to vector<63x128xf32>
    %476 = tpu.concatenate %474, %475 in 0 : vector<1x128xf32>, vector<63x128xf32> -> vector<64x128xf32>
    %cst_225 = arith.constant 5.000000e-01 : f32
    %477 = vector.broadcast %cst_225 : f32 to vector<64x1xf32>
    %478 = arith.cmpf oge, %293, %477 : vector<64x1xf32>
    %cst_226 = arith.constant 0.000000e+00 : f32
    %479 = vector.shape_cast %478 : vector<64x1xi1> to vector<64x1xi1>
    %480 = vector.broadcast %479 : vector<64x1xi1> to vector<64x128xi1>
    %481 = vector.broadcast %cst_226 : f32 to vector<64x128xf32>
    %482 = arith.select %480, %476, %481 : vector<64x128xi1>, vector<64x128xf32>
    %483 = arith.truncf %482 : vector<64x128xf32> to vector<64x128xbf16>
    %c3_227 = arith.constant 3 : index
    %c0_228 = arith.constant 0 : index
    %c0_229 = arith.constant 0 : index
    %484 = vector.load %arg8[%c3_227, %c0_228, %c0_229] : memref<9x128x128xbf16, #tpu.memory_space<vmem>>, vector<1x128x128xbf16>
    %485 = vector.shape_cast %484 : vector<1x128x128xbf16> to vector<128x128xbf16>
    %cst_230 = arith.constant dense<0.000000e+00> : vector<64x128xf32>
    %486 = tpu.matmul %483, %485, %cst_230 {dimension_numbers = #tpu.dot_dimension_numbers<[1], [0], [0], [1], [0, 0, 1, 1], [], []>} : vector<64x128xbf16>, vector<128x128xbf16>, vector<64x128xf32> -> vector<64x128xf32>
    %487 = arith.addf %473, %486 : vector<64x128xf32>
    %488 = arith.truncf %426 : vector<64x128xf32> to vector<64x128xbf16>
    %c4_231 = arith.constant 4 : index
    %c0_232 = arith.constant 0 : index
    %c0_233 = arith.constant 0 : index
    %489 = vector.load %arg8[%c4_231, %c0_232, %c0_233] : memref<9x128x128xbf16, #tpu.memory_space<vmem>>, vector<1x128x128xbf16>
    %490 = vector.shape_cast %489 : vector<1x128x128xbf16> to vector<128x128xbf16>
    %cst_234 = arith.constant dense<0.000000e+00> : vector<64x128xf32>
    %491 = tpu.matmul %488, %490, %cst_234 {dimension_numbers = #tpu.dot_dimension_numbers<[1], [0], [0], [1], [0, 0, 1, 1], [], []>} : vector<64x128xbf16>, vector<128x128xbf16>, vector<64x128xf32> -> vector<64x128xf32>
    %492 = arith.addf %487, %491 : vector<64x128xf32>
    %cst_235 = arith.constant 0.000000e+00 : f32
    %493 = vector.broadcast %cst_235 : f32 to vector<1x128xf32>
    %494 = vector.extract_strided_slice %426 {offsets = [1, 0], sizes = [63, 128], strides = [1, 1]} : vector<64x128xf32> to vector<63x128xf32>
    %495 = tpu.concatenate %494, %493 in 0 : vector<63x128xf32>, vector<1x128xf32> -> vector<64x128xf32>
    %cst_236 = arith.constant 6.500000e+00 : f32
    %496 = vector.broadcast %cst_236 : f32 to vector<64x1xf32>
    %497 = arith.cmpf ole, %293, %496 : vector<64x1xf32>
    %cst_237 = arith.constant 0.000000e+00 : f32
    %498 = vector.shape_cast %497 : vector<64x1xi1> to vector<64x1xi1>
    %499 = vector.broadcast %498 : vector<64x1xi1> to vector<64x128xi1>
    %500 = vector.broadcast %cst_237 : f32 to vector<64x128xf32>
    %501 = arith.select %499, %495, %500 : vector<64x128xi1>, vector<64x128xf32>
    %502 = arith.truncf %501 : vector<64x128xf32> to vector<64x128xbf16>
    %c5_238 = arith.constant 5 : index
    %c0_239 = arith.constant 0 : index
    %c0_240 = arith.constant 0 : index
    %503 = vector.load %arg8[%c5_238, %c0_239, %c0_240] : memref<9x128x128xbf16, #tpu.memory_space<vmem>>, vector<1x128x128xbf16>
    %504 = vector.shape_cast %503 : vector<1x128x128xbf16> to vector<128x128xbf16>
    %cst_241 = arith.constant dense<0.000000e+00> : vector<64x128xf32>
    %505 = tpu.matmul %502, %504, %cst_241 {dimension_numbers = #tpu.dot_dimension_numbers<[1], [0], [0], [1], [0, 0, 1, 1], [], []>} : vector<64x128xbf16>, vector<128x128xbf16>, vector<64x128xf32> -> vector<64x128xf32>
    %506 = arith.addf %492, %505 : vector<64x128xf32>
    %cst_242 = arith.constant 0.000000e+00 : f32
    %507 = vector.broadcast %cst_242 : f32 to vector<7x128xf32>
    %508 = vector.extract_strided_slice %426 {offsets = [7, 0], sizes = [57, 128], strides = [1, 1]} : vector<64x128xf32> to vector<57x128xf32>
    %509 = tpu.concatenate %508, %507 in 0 : vector<57x128xf32>, vector<7x128xf32> -> vector<64x128xf32>
    %cst_243 = arith.constant 6.500000e+00 : f32
    %510 = vector.broadcast %cst_243 : f32 to vector<64x1xf32>
    %511 = arith.cmpf ole, %290, %510 : vector<64x1xf32>
    %cst_244 = arith.constant 5.000000e-01 : f32
    %512 = vector.broadcast %cst_244 : f32 to vector<64x1xf32>
    %513 = arith.cmpf oge, %293, %512 : vector<64x1xf32>
    %514 = arith.andi %511, %513 : vector<64x1xi1>
    %cst_245 = arith.constant 0.000000e+00 : f32
    %515 = vector.shape_cast %514 : vector<64x1xi1> to vector<64x1xi1>
    %516 = vector.broadcast %515 : vector<64x1xi1> to vector<64x128xi1>
    %517 = vector.broadcast %cst_245 : f32 to vector<64x128xf32>
    %518 = arith.select %516, %509, %517 : vector<64x128xi1>, vector<64x128xf32>
    %519 = arith.truncf %518 : vector<64x128xf32> to vector<64x128xbf16>
    %c6_246 = arith.constant 6 : index
    %c0_247 = arith.constant 0 : index
    %c0_248 = arith.constant 0 : index
    %520 = vector.load %arg8[%c6_246, %c0_247, %c0_248] : memref<9x128x128xbf16, #tpu.memory_space<vmem>>, vector<1x128x128xbf16>
    %521 = vector.shape_cast %520 : vector<1x128x128xbf16> to vector<128x128xbf16>
    %cst_249 = arith.constant dense<0.000000e+00> : vector<64x128xf32>
    %522 = tpu.matmul %519, %521, %cst_249 {dimension_numbers = #tpu.dot_dimension_numbers<[1], [0], [0], [1], [0, 0, 1, 1], [], []>} : vector<64x128xbf16>, vector<128x128xbf16>, vector<64x128xf32> -> vector<64x128xf32>
    %523 = arith.addf %506, %522 : vector<64x128xf32>
    %cst_250 = arith.constant 0.000000e+00 : f32
    %524 = vector.broadcast %cst_250 : f32 to vector<8x128xf32>
    %525 = vector.extract_strided_slice %426 {offsets = [8, 0], sizes = [56, 128], strides = [1, 1]} : vector<64x128xf32> to vector<56x128xf32>
    %526 = tpu.concatenate %525, %524 in 0 : vector<56x128xf32>, vector<8x128xf32> -> vector<64x128xf32>
    %cst_251 = arith.constant 6.500000e+00 : f32
    %527 = vector.broadcast %cst_251 : f32 to vector<64x1xf32>
    %528 = arith.cmpf ole, %290, %527 : vector<64x1xf32>
    %cst_252 = arith.constant 0.000000e+00 : f32
    %529 = vector.shape_cast %528 : vector<64x1xi1> to vector<64x1xi1>
    %530 = vector.broadcast %529 : vector<64x1xi1> to vector<64x128xi1>
    %531 = vector.broadcast %cst_252 : f32 to vector<64x128xf32>
    %532 = arith.select %530, %526, %531 : vector<64x128xi1>, vector<64x128xf32>
    %533 = arith.truncf %532 : vector<64x128xf32> to vector<64x128xbf16>
    %c7_253 = arith.constant 7 : index
    %c0_254 = arith.constant 0 : index
    %c0_255 = arith.constant 0 : index
    %534 = vector.load %arg8[%c7_253, %c0_254, %c0_255] : memref<9x128x128xbf16, #tpu.memory_space<vmem>>, vector<1x128x128xbf16>
    %535 = vector.shape_cast %534 : vector<1x128x128xbf16> to vector<128x128xbf16>
    %cst_256 = arith.constant dense<0.000000e+00> : vector<64x128xf32>
    %536 = tpu.matmul %533, %535, %cst_256 {dimension_numbers = #tpu.dot_dimension_numbers<[1], [0], [0], [1], [0, 0, 1, 1], [], []>} : vector<64x128xbf16>, vector<128x128xbf16>, vector<64x128xf32> -> vector<64x128xf32>
    %537 = arith.addf %523, %536 : vector<64x128xf32>
    %cst_257 = arith.constant 0.000000e+00 : f32
    %538 = vector.broadcast %cst_257 : f32 to vector<9x128xf32>
    %539 = vector.extract_strided_slice %426 {offsets = [9, 0], sizes = [55, 128], strides = [1, 1]} : vector<64x128xf32> to vector<55x128xf32>
    %540 = tpu.concatenate %539, %538 in 0 : vector<55x128xf32>, vector<9x128xf32> -> vector<64x128xf32>
    %cst_258 = arith.constant 6.500000e+00 : f32
    %541 = vector.broadcast %cst_258 : f32 to vector<64x1xf32>
    %542 = arith.cmpf ole, %290, %541 : vector<64x1xf32>
    %cst_259 = arith.constant 6.500000e+00 : f32
    %543 = vector.broadcast %cst_259 : f32 to vector<64x1xf32>
    %544 = arith.cmpf ole, %293, %543 : vector<64x1xf32>
    %545 = arith.andi %542, %544 : vector<64x1xi1>
    %cst_260 = arith.constant 0.000000e+00 : f32
    %546 = vector.shape_cast %545 : vector<64x1xi1> to vector<64x1xi1>
    %547 = vector.broadcast %546 : vector<64x1xi1> to vector<64x128xi1>
    %548 = vector.broadcast %cst_260 : f32 to vector<64x128xf32>
    %549 = arith.select %547, %540, %548 : vector<64x128xi1>, vector<64x128xf32>
    %550 = arith.truncf %549 : vector<64x128xf32> to vector<64x128xbf16>
    %c8_261 = arith.constant 8 : index
    %c0_262 = arith.constant 0 : index
    %c0_263 = arith.constant 0 : index
    %551 = vector.load %arg8[%c8_261, %c0_262, %c0_263] : memref<9x128x128xbf16, #tpu.memory_space<vmem>>, vector<1x128x128xbf16>
    %552 = vector.shape_cast %551 : vector<1x128x128xbf16> to vector<128x128xbf16>
    %cst_264 = arith.constant dense<0.000000e+00> : vector<64x128xf32>
    %553 = tpu.matmul %550, %552, %cst_264 {dimension_numbers = #tpu.dot_dimension_numbers<[1], [0], [0], [1], [0, 0, 1, 1], [], []>} : vector<64x128xbf16>, vector<128x128xbf16>, vector<64x128xf32> -> vector<64x128xf32>
    %554 = arith.addf %537, %553 : vector<64x128xf32>
    %c0_265 = arith.constant 0 : index
    %c0_266 = arith.constant 0 : index
    %555 = vector.load %arg9[%c0_265, %c0_266] : memref<1x128xf32, #tpu.memory_space<vmem>>, vector<1x128xf32>
    %556 = vector.broadcast %555 : vector<1x128xf32> to vector<64x128xf32>
    %557 = arith.addf %554, %556 : vector<64x128xf32>
    %cst_267 = arith.constant 0.000000e+00 : f32
    %558 = vector.broadcast %cst_267 : f32 to vector<64x128xf32>
    %559 = arith.maximumf %557, %558 : vector<64x128xf32>
    %560 = vector.shape_cast %559 : vector<64x128xf32> to vector<4x2x4x256xf32>
    %cst_268 = arith.constant dense<0xFF800000> : vector<4x4x256xf32>
    %561 = vector.multi_reduction <maximumf>, %560, %cst_268 [1] : vector<4x2x4x256xf32> to vector<4x4x256xf32>
    %562 = vector.extract_strided_slice %561 {offsets = [0, 0, 0], sizes = [4, 4, 128], strides = [1, 1, 1]} : vector<4x4x256xf32> to vector<4x4x128xf32>
    %563 = vector.extract_strided_slice %561 {offsets = [0, 0, 128], sizes = [4, 4, 128], strides = [1, 1, 1]} : vector<4x4x256xf32> to vector<4x4x128xf32>
    %564 = arith.maximumf %562, %563 : vector<4x4x128xf32>
    %565 = vector.shape_cast %564 : vector<4x4x128xf32> to vector<16x128xf32>
    %cst_269 = arith.constant dense<0xFF800000> : vector<128xf32>
    %566 = vector.multi_reduction <maximumf>, %565, %cst_269 [0] : vector<16x128xf32> to vector<128xf32>
    %567 = vector.shape_cast %566 : vector<128xf32> to vector<1x128xf32>
    %568 = arith.truncf %567 : vector<1x128xf32> to vector<1x128xbf16>
    %c0_270 = arith.constant 0 : index
    %c0_271 = arith.constant 0 : index
    %569 = vector.load %arg10[%c0_270, %c0_271] : memref<128x128xbf16, #tpu.memory_space<vmem>>, vector<128x128xbf16>
    %cst_272 = arith.constant dense<0.000000e+00> : vector<1x128xf32>
    %570 = tpu.matmul %568, %569, %cst_272 {dimension_numbers = #tpu.dot_dimension_numbers<[1], [0], [0], [1], [0, 0, 1, 1], [], []>} : vector<1x128xbf16>, vector<128x128xbf16>, vector<1x128xf32> -> vector<1x128xf32>
    %c0_273 = arith.constant 0 : index
    %c0_274 = arith.constant 0 : index
    %571 = vector.load %arg11[%c0_273, %c0_274] : memref<1x128xf32, #tpu.memory_space<vmem>>, vector<1x128xf32>
    %572 = arith.addf %570, %571 : vector<1x128xf32>
    %cst_275 = arith.constant 0.000000e+00 : f32
    %573 = vector.broadcast %cst_275 : f32 to vector<1x128xf32>
    %574 = arith.maximumf %572, %573 : vector<1x128xf32>
    %575 = arith.truncf %574 : vector<1x128xf32> to vector<1x128xbf16>
    %c0_276 = arith.constant 0 : index
    %c0_277 = arith.constant 0 : index
    %576 = vector.load %arg12[%c0_276, %c0_277] : memref<128x128xbf16, #tpu.memory_space<vmem>>, vector<128x128xbf16>
    %cst_278 = arith.constant dense<0.000000e+00> : vector<1x128xf32>
    %577 = tpu.matmul %575, %576, %cst_278 {dimension_numbers = #tpu.dot_dimension_numbers<[1], [0], [0], [1], [0, 0, 1, 1], [], []>} : vector<1x128xbf16>, vector<128x128xbf16>, vector<1x128xf32> -> vector<1x128xf32>
    %c0_279 = arith.constant 0 : index
    %c0_280 = arith.constant 0 : index
    %578 = vector.load %arg13[%c0_279, %c0_280] : memref<1x128xf32, #tpu.memory_space<vmem>>, vector<1x128xf32>
    %579 = arith.addf %577, %578 : vector<1x128xf32>
    %c0_281 = arith.constant 0 : index
    %c0_282 = arith.constant 0 : index
    %c0_283 = arith.constant 0 : index
    %580 = vector.load %arg14[%c0_281, %c0_282, %c0_283] : memref<1x1x128xf32, #tpu.memory_space<vmem>>, vector<1x1x128xf32>
    %581 = vector.shape_cast %580 : vector<1x1x128xf32> to vector<1x128xf32>
    %582 = vector.shape_cast %579 : vector<1x128xf32> to vector<1x1x128xf32>
    tpu.vector_store %arg14[%c0_281, %c0_282, %c0_283], %582 {strides = array<i32>} : memref<1x1x128xf32, #tpu.memory_space<vmem>>, vector<1x1x128xf32>,
    return
  }
  func.func @transform_0(%arg0: i32) -> (i32, i32, i32) {
    %c0_i32 = arith.constant 0 : i32
    %c0_i32_0 = arith.constant 0 : i32
    %c0_i32_1 = arith.constant 0 : i32
    return %arg0, %c0_i32, %c0_i32_0 : i32, i32, i32
  }
  func.func @transform_1(%arg0: i32) -> (i32, i32, i32) {
    %c0_i32 = arith.constant 0 : i32
    %c0_i32_0 = arith.constant 0 : i32
    %c0_i32_1 = arith.constant 0 : i32
    %c0_i32_2 = arith.constant 0 : i32
    return %c0_i32, %c0_i32_0, %c0_i32_1 : i32, i32, i32
  }
  func.func @transform_2(%arg0: i32) -> (i32, i32) {
    %c0_i32 = arith.constant 0 : i32
    %c0_i32_0 = arith.constant 0 : i32
    %c0_i32_1 = arith.constant 0 : i32
    return %c0_i32, %c0_i32_0 : i32, i32
  }
  func.func @transform_3(%arg0: i32) -> (i32, i32, i32) {
    %c0_i32 = arith.constant 0 : i32
    %c0_i32_0 = arith.constant 0 : i32
    %c0_i32_1 = arith.constant 0 : i32
    %c0_i32_2 = arith.constant 0 : i32
    return %c0_i32, %c0_i32_0, %c0_i32_1 : i32, i32, i32
  }
  func.func @transform_4(%arg0: i32) -> (i32, i32) {
    %c0_i32 = arith.constant 0 : i32
    %c0_i32_0 = arith.constant 0 : i32
    %c0_i32_1 = arith.constant 0 : i32
    return %c0_i32, %c0_i32_0 : i32, i32
  }
  func.func @transform_5(%arg0: i32) -> (i32, i32, i32) {
    %c0_i32 = arith.constant 0 : i32
    %c0_i32_0 = arith.constant 0 : i32
    %c0_i32_1 = arith.constant 0 : i32
    %c0_i32_2 = arith.constant 0 : i32
    return %c0_i32, %c0_i32_0, %c0_i32_1 : i32, i32, i32
  }
  func.func @transform_6(%arg0: i32) -> (i32, i32) {
    %c0_i32 = arith.constant 0 : i32
    %c0_i32_0 = arith.constant 0 : i32
    %c0_i32_1 = arith.constant 0 : i32
    return %c0_i32, %c0_i32_0 : i32, i32
  }
  func.func @transform_7(%arg0: i32) -> (i32, i32, i32) {
    %c0_i32 = arith.constant 0 : i32
    %c0_i32_0 = arith.constant 0 : i32
    %c0_i32_1 = arith.constant 0 : i32
    %c0_i32_2 = arith.constant 0 : i32
    return %c0_i32, %c0_i32_0, %c0_i32_1 : i32, i32, i32
  }
  func.func @transform_8(%arg0: i32) -> (i32, i32) {
    %c0_i32 = arith.constant 0 : i32
    %c0_i32_0 = arith.constant 0 : i32
    %c0_i32_1 = arith.constant 0 : i32
    return %c0_i32, %c0_i32_0 : i32, i32
  }
  func.func @transform_9(%arg0: i32) -> (i32, i32) {
    %c0_i32 = arith.constant 0 : i32
    %c0_i32_0 = arith.constant 0 : i32
    %c0_i32_1 = arith.constant 0 : i32
    return %c0_i32, %c0_i32_0 : i32, i32
  }
  func.func @transform_10(%arg0: i32) -> (i32, i32) {
    %c0_i32 = arith.constant 0 : i32
    %c0_i32_0 = arith.constant 0 : i32
    %c0_i32_1 = arith.constant 0 : i32
    return %c0_i32, %c0_i32_0 : i32, i32
  }
  func.func @transform_11(%arg0: i32) -> (i32, i32) {
    %c0_i32 = arith.constant 0 : i32
    %c0_i32_0 = arith.constant 0 : i32
    %c0_i32_1 = arith.constant 0 : i32
    return %c0_i32, %c0_i32_0 : i32, i32
  }
  func.func @transform_12(%arg0: i32) -> (i32, i32) {
    %c0_i32 = arith.constant 0 : i32
    %c0_i32_0 = arith.constant 0 : i32
    %c0_i32_1 = arith.constant 0 : i32
    return %c0_i32, %c0_i32_0 : i32, i32
  }
  func.func @transform_13(%arg0: i32) -> (i32, i32, i32) {
    %c0_i32 = arith.constant 0 : i32
    %c0_i32_0 = arith.constant 0 : i32
    %c0_i32_1 = arith.constant 0 : i32
    return %arg0, %c0_i32, %c0_i32_0 : i32, i32, i32
  }
}

</mosaic_0001>

<llo_original>
// kernel: cnn_forward.1
$region0: #{cnn_forward.1}
  #allocation0 [shape = 'u32[]', space=smem, size = 0x4, offset = 0x4, fixed_abs, tag = 'smem constant byte address 0x4 - core index']
  #allocation1 [shape = 'u32[144,128]{1,0:T(1,128)}', space=vmem, size = 0x12000, scoped, tag = 'internal scratch']
  %s0 = inlined_call_operand.vmem [shape: f32[2,256,4], index: 0, kind: input, shape index: {}]
  %s1 = inlined_call_operand.vmem [shape: bf16[9,4,128], index: 1, kind: input, shape index: {}]
  %s2 = inlined_call_operand.vmem [shape: f32[1,128], index: 2, kind: input, shape index: {}]
  %s3 = inlined_call_operand.vmem [shape: bf16[9,128,128], index: 3, kind: input, shape index: {}]
  %s4 = inlined_call_operand.vmem [shape: f32[1,128], index: 4, kind: input, shape index: {}]
  %s5 = inlined_call_operand.vmem [shape: bf16[9,128,128], index: 5, kind: input, shape index: {}]
  %s6 = inlined_call_operand.vmem [shape: f32[1,128], index: 6, kind: input, shape index: {}]
  %s7 = inlined_call_operand.vmem [shape: bf16[9,128,128], index: 7, kind: input, shape index: {}]
  %s8 = inlined_call_operand.vmem [shape: f32[1,128], index: 8, kind: input, shape index: {}]
  %s9 = inlined_call_operand.vmem [shape: bf16[128,128], index: 9, kind: input, shape index: {}]
  %s10 = inlined_call_operand.vmem [shape: f32[1,128], index: 10, kind: input, shape index: {}]
  %s11 = inlined_call_operand.vmem [shape: bf16[128,128], index: 11, kind: input, shape index: {}]
  %s12 = inlined_call_operand.vmem [shape: f32[1,128], index: 12, kind: input, shape index: {}]
  %s13 = inlined_call_operand.hbm [shape: f32[2,1,128], index: 13, kind: output, shape index: {}]
  %s14 = sld [smem:[#allocation0]]
  $region85: #{cnn_forward.1} parent=0
    _
  %s16 = ssub.s32 1, %s14
  %s17 = scalar_select 0, %s16, %s14
  $region1: #{cnn_forward.1} parent=0
    #allocation2 [shape = 'u8[1024]{0}', space=vmem, size = 0x400, scoped, tag = 'output window, operand 0']
    #allocation3 [shape = 's32[2]{0}', space=sflag, size = 0x8, scoped, tag = 'scoped memory for cnn_forward.1']
    %18 = vsyncpa [#allocation3], 0
    %s19 = scalar_lea.sflag [#allocation3], 1
    %20 = vsyncpa %s19, 0
    loop: start=0, step=1, limit=4
    $region2: #{cnn_forward.1} parent=1 // loop_pre_header
      _
    $region3: #{cnn_forward.1} parent=1 // loop_header
      %s22 = sphi 0, %s26
      %p23 = scmp.ge.s32.totalorder %s22, 4
      %s32 = sphi 0, %s34
      %s35 = sphi 0, %s32
      %s36 = sphi 0, %s35
      %s52 = sphi 0, %s36
      %s56 = sphi 0, %s56
      %s58 = sphi 0, %s56
      %s59 = sphi 0, %s58
      %s73 = sphi 0, %s59
      %s77 = sphi 0, %s77
      %s79 = sphi 0, %s77
      %s80 = sphi 0, %s79
      %s94 = sphi 0, %s80
      %s98 = sphi 0, %s98
      %s100 = sphi 0, %s98
      %s101 = sphi 0, %s100
      %s115 = sphi 0, %s101
      %s119 = sphi 0, %s119
      %s121 = sphi 0, %s119
      %s122 = sphi 0, %s121
      %s136 = sphi 0, %s122
      %s140 = sphi 0, %s140
      %s142 = sphi 0, %s140
      %s143 = sphi 0, %s142
      %s157 = sphi 0, %s143
      %s161 = sphi 0, %s161
      %s163 = sphi 0, %s161
      %s164 = sphi 0, %s163
      %s178 = sphi 0, %s164
      %s182 = sphi 0, %s182
      %s184 = sphi 0, %s182
      %s185 = sphi 0, %s184
      %s199 = sphi 0, %s185
      %s203 = sphi 0, %s203
      %s205 = sphi 0, %s203
      %s206 = sphi 0, %s205
      %s220 = sphi 0, %s206
      %s224 = sphi 0, %s224
      %s226 = sphi 0, %s224
      %s227 = sphi 0, %s226
      %s241 = sphi 0, %s227
      %s245 = sphi 0, %s245
      %s247 = sphi 0, %s245
      %s248 = sphi 0, %s247
      %s262 = sphi 0, %s248
      %s266 = sphi 0, %s266
      %s268 = sphi 0, %s266
      %s269 = sphi 0, %s268
      %s283 = sphi 0, %s269
      %s287 = sphi 0, %s287
      %s289 = sphi 0, %s287
      %s290 = sphi 0, %s289
      %s304 = sphi 0, %s290
      %s310 = sphi 0, %s312
      %s313 = sphi 0, %s310
      %s314 = sphi 0, %s313
      %s330 = sphi 0, %s314
    $region4: #{cnn_forward.1} parent=1 // loop_header_branch
      %25 = sbr.rel (%p23) target = $region8
    $region5: #{cnn_forward.1} parent=1 // loop_body
      %s27 = ssub.s32 %s22, 1
      %s28 = ssub.s32 %s22, 2
      %s29 = sadd.s32 %s22, 1
      %s30 = ssub.s32 %s22, %s29
      %p31 = scmp.eq.s32.totalorder %s30, 0
      %s33 = sadd.s32 %s32, 1
      %s34 = scalar_select %p31, %s32, %s33
      %p37 = pneg %p31
      %p38 = scmp.eq.s32.totalorder %s22, 1
      %p39 = por %p37, %p38
      %p40 = scmp.ne.s32.totalorder %s32, %s35
      %p41 = scmp.eq.s32.totalorder %s22, 0
      %p42 = por %p40, %p41
      %p43 = scmp.ne.s32.totalorder %s32, %s35
      %p44 = scmp.eq.s32.totalorder %s27, 1
      %p45 = por %p43, %p44
      %p46 = scmp.ne.s32.totalorder %s35, %s36
      %p47 = scmp.eq.s32.totalorder %s27, 0
      %p48 = por %p46, %p47
      %p49 = scmp.ne.s32.totalorder %s35, %s36
      %p50 = scmp.eq.s32.totalorder %s28, 1
      %p51 = por %p49, %p50
      %p53 = scmp.ne.s32.totalorder %s36, %s52
      %p54 = scmp.eq.s32.totalorder %s28, 0
      %p55 = por %p53, %p54
      %s57 = sadd.s32 %s56, 1
      %p60 = scmp.eq.s32.totalorder %s22, 1
      %p61 = scmp.ne.s32.totalorder %s56, %s58
      %p62 = scmp.eq.s32.totalorder %s22, 0
      %p63 = por %p61, %p62
      %p64 = scmp.ne.s32.totalorder %s56, %s58
      %p65 = scmp.eq.s32.totalorder %s27, 1
      %p66 = por %p64, %p65
      %p67 = scmp.ne.s32.totalorder %s58, %s59
      %p68 = scmp.eq.s32.totalorder %s27, 0
      %p69 = por %p67, %p68
      %p70 = scmp.ne.s32.totalorder %s58, %s59
      %p71 = scmp.eq.s32.totalorder %s28, 1
      %p72 = por %p70, %p71
      %p74 = scmp.ne.s32.totalorder %s59, %s73
      %p75 = scmp.eq.s32.totalorder %s28, 0
      %p76 = por %p74, %p75
      %s78 = sadd.s32 %s77, 1
      %p81 = scmp.eq.s32.totalorder %s22, 1
      %p82 = scmp.ne.s32.totalorder %s77, %s79
      %p83 = scmp.eq.s32.totalorder %s22, 0
      %p84 = por %p82, %p83
      %p85 = scmp.ne.s32.totalorder %s77, %s79
      %p86 = scmp.eq.s32.totalorder %s27, 1
      %p87 = por %p85, %p86
      %p88 = scmp.ne.s32.totalorder %s79, %s80
      %p89 = scmp.eq.s32.totalorder %s27, 0
      %p90 = por %p88, %p89
      %p91 = scmp.ne.s32.totalorder %s79, %s80
      %p92 = scmp.eq.s32.totalorder %s28, 1
      %p93 = por %p91, %p92
      %p95 = scmp.ne.s32.totalorder %s80, %s94
      %p96 = scmp.eq.s32.totalorder %s28, 0
      %p97 = por %p95, %p96
      %s99 = sadd.s32 %s98, 1
      %p102 = scmp.eq.s32.totalorder %s22, 1
      %p103 = scmp.ne.s32.totalorder %s98, %s100
      %p104 = scmp.eq.s32.totalorder %s22, 0
      %p105 = por %p103, %p104
      %p106 = scmp.ne.s32.totalorder %s98, %s100
      %p107 = scmp.eq.s32.totalorder %s27, 1
      %p108 = por %p106, %p107
      %p109 = scmp.ne.s32.totalorder %s100, %s101
      %p110 = scmp.eq.s32.totalorder %s27, 0
      %p111 = por %p109, %p110
      %p112 = scmp.ne.s32.totalorder %s100, %s101
      %p113 = scmp.eq.s32.totalorder %s28, 1
      %p114 = por %p112, %p113
      %p116 = scmp.ne.s32.totalorder %s101, %s115
      %p117 = scmp.eq.s32.totalorder %s28, 0
      %p118 = por %p116, %p117
      %s120 = sadd.s32 %s119, 1
      %p123 = scmp.eq.s32.totalorder %s22, 1
      %p124 = scmp.ne.s32.totalorder %s119, %s121
      %p125 = scmp.eq.s32.totalorder %s22, 0
      %p126 = por %p124, %p125
      %p127 = scmp.ne.s32.totalorder %s119, %s121
      %p128 = scmp.eq.s32.totalorder %s27, 1
      %p129 = por %p127, %p128
      %p130 = scmp.ne.s32.totalorder %s121, %s122
      %p131 = scmp.eq.s32.totalorder %s27, 0
      %p132 = por %p130, %p131
      %p133 = scmp.ne.s32.totalorder %s121, %s122
      %p134 = scmp.eq.s32.totalorder %s28, 1
      %p135 = por %p133, %p134
      %p137 = scmp.ne.s32.totalorder %s122, %s136
      %p138 = scmp.eq.s32.totalorder %s28, 0
      %p139 = por %p137, %p138
      %s141 = sadd.s32 %s140, 1
      %p144 = scmp.eq.s32.totalorder %s22, 1
      %p145 = scmp.ne.s32.totalorder %s140, %s142
      %p146 = scmp.eq.s32.totalorder %s22, 0
      %p147 = por %p145, %p146
      %p148 = scmp.ne.s32.totalorder %s140, %s142
      %p149 = scmp.eq.s32.totalorder %s27, 1
      %p150 = por %p148, %p149
      %p151 = scmp.ne.s32.totalorder %s142, %s143
      %p152 = scmp.eq.s32.totalorder %s27, 0
      %p153 = por %p151, %p152
      %p154 = scmp.ne.s32.totalorder %s142, %s143
      %p155 = scmp.eq.s32.totalorder %s28, 1
      %p156 = por %p154, %p155
      %p158 = scmp.ne.s32.totalorder %s143, %s157
      %p159 = scmp.eq.s32.totalorder %s28, 0
      %p160 = por %p158, %p159
      %s162 = sadd.s32 %s161, 1
      %p165 = scmp.eq.s32.totalorder %s22, 1
      %p166 = scmp.ne.s32.totalorder %s161, %s163
      %p167 = scmp.eq.s32.totalorder %s22, 0
      %p168 = por %p166, %p167
      %p169 = scmp.ne.s32.totalorder %s161, %s163
      %p170 = scmp.eq.s32.totalorder %s27, 1
      %p171 = por %p169, %p170
      %p172 = scmp.ne.s32.totalorder %s163, %s164
      %p173 = scmp.eq.s32.totalorder %s27, 0
      %p174 = por %p172, %p173
      %p175 = scmp.ne.s32.totalorder %s163, %s164
      %p176 = scmp.eq.s32.totalorder %s28, 1
      %p177 = por %p175, %p176
      %p179 = scmp.ne.s32.totalorder %s164, %s178
      %p180 = scmp.eq.s32.totalorder %s28, 0
      %p181 = por %p179, %p180
      %s183 = sadd.s32 %s182, 1
      %p186 = scmp.eq.s32.totalorder %s22, 1
      %p187 = scmp.ne.s32.totalorder %s182, %s184
      %p188 = scmp.eq.s32.totalorder %s22, 0
      %p189 = por %p187, %p188
      %p190 = scmp.ne.s32.totalorder %s182, %s184
      %p191 = scmp.eq.s32.totalorder %s27, 1
      %p192 = por %p190, %p191
      %p193 = scmp.ne.s32.totalorder %s184, %s185
      %p194 = scmp.eq.s32.totalorder %s27, 0
      %p195 = por %p193, %p194
      %p196 = scmp.ne.s32.totalorder %s184, %s185
      %p197 = scmp.eq.s32.totalorder %s28, 1
      %p198 = por %p196, %p197
      %p200 = scmp.ne.s32.totalorder %s185, %s199
      %p201 = scmp.eq.s32.totalorder %s28, 0
      %p202 = por %p200, %p201
      %s204 = sadd.s32 %s203, 1
      %p207 = scmp.eq.s32.totalorder %s22, 1
      %p208 = scmp.ne.s32.totalorder %s203, %s205
      %p209 = scmp.eq.s32.totalorder %s22, 0
      %p210 = por %p208, %p209
      %p211 = scmp.ne.s32.totalorder %s203, %s205
      %p212 = scmp.eq.s32.totalorder %s27, 1
      %p213 = por %p211, %p212
      %p214 = scmp.ne.s32.totalorder %s205, %s206
      %p215 = scmp.eq.s32.totalorder %s27, 0
      %p216 = por %p214, %p215
      %p217 = scmp.ne.s32.totalorder %s205, %s206
      %p218 = scmp.eq.s32.totalorder %s28, 1
      %p219 = por %p217, %p218
      %p221 = scmp.ne.s32.totalorder %s206, %s220
      %p222 = scmp.eq.s32.totalorder %s28, 0
      %p223 = por %p221, %p222
      %s225 = sadd.s32 %s224, 1
      %p228 = scmp.eq.s32.totalorder %s22, 1
      %p229 = scmp.ne.s32.totalorder %s224, %s226
      %p230 = scmp.eq.s32.totalorder %s22, 0
      %p231 = por %p229, %p230
      %p232 = scmp.ne.s32.totalorder %s224, %s226
      %p233 = scmp.eq.s32.totalorder %s27, 1
      %p234 = por %p232, %p233
      %p235 = scmp.ne.s32.totalorder %s226, %s227
      %p236 = scmp.eq.s32.totalorder %s27, 0
      %p237 = por %p235, %p236
      %p238 = scmp.ne.s32.totalorder %s226, %s227
      %p239 = scmp.eq.s32.totalorder %s28, 1
      %p240 = por %p238, %p239
      %p242 = scmp.ne.s32.totalorder %s227, %s241
      %p243 = scmp.eq.s32.totalorder %s28, 0
      %p244 = por %p242, %p243
      %s246 = sadd.s32 %s245, 1
      %p249 = scmp.eq.s32.totalorder %s22, 1
      %p250 = scmp.ne.s32.totalorder %s245, %s247
      %p251 = scmp.eq.s32.totalorder %s22, 0
      %p252 = por %p250, %p251
      %p253 = scmp.ne.s32.totalorder %s245, %s247
      %p254 = scmp.eq.s32.totalorder %s27, 1
      %p255 = por %p253, %p254
      %p256 = scmp.ne.s32.totalorder %s247, %s248
      %p257 = scmp.eq.s32.totalorder %s27, 0
      %p258 = por %p256, %p257
      %p259 = scmp.ne.s32.totalorder %s247, %s248
      %p260 = scmp.eq.s32.totalorder %s28, 1
      %p261 = por %p259, %p260
      %p263 = scmp.ne.s32.totalorder %s248, %s262
      %p264 = scmp.eq.s32.totalorder %s28, 0
      %p265 = por %p263, %p264
      %s267 = sadd.s32 %s266, 1
      %p270 = scmp.eq.s32.totalorder %s22, 1
      %p271 = scmp.ne.s32.totalorder %s266, %s268
      %p272 = scmp.eq.s32.totalorder %s22, 0
      %p273 = por %p271, %p272
      %p274 = scmp.ne.s32.totalorder %s266, %s268
      %p275 = scmp.eq.s32.totalorder %s27, 1
      %p276 = por %p274, %p275
      %p277 = scmp.ne.s32.totalorder %s268, %s269
      %p278 = scmp.eq.s32.totalorder %s27, 0
      %p279 = por %p277, %p278
      %p280 = scmp.ne.s32.totalorder %s268, %s269
      %p281 = scmp.eq.s32.totalorder %s28, 1
      %p282 = por %p280, %p281
      %p284 = scmp.ne.s32.totalorder %s269, %s283
      %p285 = scmp.eq.s32.totalorder %s28, 0
      %p286 = por %p284, %p285
      %s288 = sadd.s32 %s287, 1
      %p291 = scmp.eq.s32.totalorder %s22, 1
      %p292 = scmp.ne.s32.totalorder %s287, %s289
      %p293 = scmp.eq.s32.totalorder %s22, 0
      %p294 = por %p292, %p293
      %p295 = scmp.ne.s32.totalorder %s287, %s289
      %p296 = scmp.eq.s32.totalorder %s27, 1
      %p297 = por %p295, %p296
      %p298 = scmp.ne.s32.totalorder %s289, %s290
      %p299 = scmp.eq.s32.totalorder %s27, 0
      %p300 = por %p298, %p299
      %p301 = scmp.ne.s32.totalorder %s289, %s290
      %p302 = scmp.eq.s32.totalorder %s28, 1
      %p303 = por %p301, %p302
      %p305 = scmp.ne.s32.totalorder %s290, %s304
      %p306 = scmp.eq.s32.totalorder %s28, 0
      %p307 = por %p305, %p306
      %s308 = ssub.s32 %s22, %s29
      %p309 = scmp.eq.s32.totalorder %s308, 0
      %s311 = sadd.s32 %s310, 1
      %s312 = scalar_select %p309, %s310, %s311
      %p315 = pneg %p309
      %p316 = scmp.eq.s32.totalorder %s22, 1
      %p317 = por %p315, %p316
      %p318 = scmp.ne.s32.totalorder %s310, %s313
      %p319 = scmp.eq.s32.totalorder %s22, 0
      %p320 = por %p318, %p319
      %p321 = scmp.ne.s32.totalorder %s310, %s313
      %p322 = scmp.eq.s32.totalorder %s27, 1
      %p323 = por %p321, %p322
      %p324 = scmp.ne.s32.totalorder %s313, %s314
      %p325 = scmp.eq.s32.totalorder %s27, 0
      %p326 = por %p324, %p325
      %p327 = scmp.ne.s32.totalorder %s313, %s314
      %p328 = scmp.eq.s32.totalorder %s28, 1
      %p329 = por %p327, %p328
      %p331 = scmp.ne.s32.totalorder %s314, %s330
      %p332 = scmp.eq.s32.totalorder %s28, 0
      %p333 = por %p331, %p332
      %p334 = scmp.le.s32.totalorder 1, %s22
      %p335 = scmp.lt.s32.totalorder %s22, 3
      %p336 = pnand %p334, %p335
      %p337 = pneg %p336
      // Predicated region
      $region9: #{cnn_forward.1} parent=5 // pred_check
        _
      $region10: #{cnn_forward.1} parent=5 // pred_check_branch
        %339 = sbr.rel (%p336) target = $region12
      $region11: #{cnn_forward.1} parent=5 // pred_region
        %s340 = ssub.s32 %s22, 1
        // Predicated region
        $region13: #{cnn_forward.1} parent=11 // pred_check
          %p341 = pneg %p69
        $region14: #{cnn_forward.1} parent=11 // pred_check_branch
          %343 = sbr.rel (%p341) target = $region16
        $region15: #{cnn_forward.1} parent=11 // pred_region
          _
        $region16: #{cnn_forward.1} parent=11 // pred_fallthru
          _
        // Predicated region
        $region17: #{cnn_forward.1} parent=11 // pred_check
          %p344 = pneg %p90
        $region18: #{cnn_forward.1} parent=11 // pred_check_branch
          %346 = sbr.rel (%p344) target = $region20
        $region19: #{cnn_forward.1} parent=11 // pred_region
          _
        $region20: #{cnn_forward.1} parent=11 // pred_fallthru
          _
        // Predicated region
        $region21: #{cnn_forward.1} parent=11 // pred_check
          %p347 = pneg %p111
        $region22: #{cnn_forward.1} parent=11 // pred_check_branch
          %349 = sbr.rel (%p347) target = $region24
        $region23: #{cnn_forward.1} parent=11 // pred_region
          _
        $region24: #{cnn_forward.1} parent=11 // pred_fallthru
          _
        // Predicated region
        $region25: #{cnn_forward.1} parent=11 // pred_check
          %p350 = pneg %p132
        $region26: #{cnn_forward.1} parent=11 // pred_check_branch
          %352 = sbr.rel (%p350) target = $region28
        $region27: #{cnn_forward.1} parent=11 // pred_region
          _
        $region28: #{cnn_forward.1} parent=11 // pred_fallthru
          _
        // Predicated region
        $region29: #{cnn_forward.1} parent=11 // pred_check
          %p353 = pneg %p153
        $region30: #{cnn_forward.1} parent=11 // pred_check_branch
          %355 = sbr.rel (%p353) target = $region32
        $region31: #{cnn_forward.1} parent=11 // pred_region
          _
        $region32: #{cnn_forward.1} parent=11 // pred_fallthru
          _
        // Predicated region
        $region33: #{cnn_forward.1} parent=11 // pred_check
          %p356 = pneg %p174
        $region34: #{cnn_forward.1} parent=11 // pred_check_branch
          %358 = sbr.rel (%p356) target = $region36
        $region35: #{cnn_forward.1} parent=11 // pred_region
          _
        $region36: #{cnn_forward.1} parent=11 // pred_fallthru
          _
        // Predicated region
        $region37: #{cnn_forward.1} parent=11 // pred_check
          %p359 = pneg %p195
        $region38: #{cnn_forward.1} parent=11 // pred_check_branch
          %361 = sbr.rel (%p359) target = $region40
        $region39: #{cnn_forward.1} parent=11 // pred_region
          _
        $region40: #{cnn_forward.1} parent=11 // pred_fallthru
          _
        // Predicated region
        $region41: #{cnn_forward.1} parent=11 // pred_check
          %p362 = pneg %p216
        $region42: #{cnn_forward.1} parent=11 // pred_check_branch
          %364 = sbr.rel (%p362) target = $region44
        $region43: #{cnn_forward.1} parent=11 // pred_region
          _
        $region44: #{cnn_forward.1} parent=11 // pred_fallthru
          _
        // Predicated region
        $region45: #{cnn_forward.1} parent=11 // pred_check
          %p365 = pneg %p237
        $region46: #{cnn_forward.1} parent=11 // pred_check_branch
          %367 = sbr.rel (%p365) target = $region48
        $region47: #{cnn_forward.1} parent=11 // pred_region
          _
        $region48: #{cnn_forward.1} parent=11 // pred_fallthru
          _
        // Predicated region
        $region49: #{cnn_forward.1} parent=11 // pred_check
          %p368 = pneg %p258
        $region50: #{cnn_forward.1} parent=11 // pred_check_branch
          %370 = sbr.rel (%p368) target = $region52
        $region51: #{cnn_forward.1} parent=11 // pred_region
          _
        $region52: #{cnn_forward.1} parent=11 // pred_fallthru
          _
        // Predicated region
        $region53: #{cnn_forward.1} parent=11 // pred_check
          %p371 = pneg %p279
        $region54: #{cnn_forward.1} parent=11 // pred_check_branch
          %373 = sbr.rel (%p371) target = $region56
        $region55: #{cnn_forward.1} parent=11 // pred_region
          _
        $region56: #{cnn_forward.1} parent=11 // pred_fallthru
          _
        // Predicated region
        $region57: #{cnn_forward.1} parent=11 // pred_check
          %p374 = pneg %p300
        $region58: #{cnn_forward.1} parent=11 // pred_check_branch
          %376 = sbr.rel (%p374) target = $region60
        $region59: #{cnn_forward.1} parent=11 // pred_region
          _
        $region60: #{cnn_forward.1} parent=11 // pred_fallthru
          _
      $region12: #{cnn_forward.1} parent=5 // pred_fallthru
        _
      %p377 = scmp.lt.s32.totalorder %s22, 2
      // Predicated region
      $region61: #{cnn_forward.1} parent=5 // pred_check
        %p378 = pneg %p377
      $region62: #{cnn_forward.1} parent=5 // pred_check_branch
        %380 = sbr.rel (%p378) target = $region64
      $region63: #{cnn_forward.1} parent=5 // pred_region
        // Predicated region
        $region65: #{cnn_forward.1} parent=63 // pred_check
          %p381 = pneg %p42
        $region66: #{cnn_forward.1} parent=63 // pred_check_branch
          %383 = sbr.rel (%p381) target = $region68
        $region67: #{cnn_forward.1} parent=63 // pred_region
          %p384 = scmp.lt.s32.totalorder %s22, 1
          %s385 = scalar_select %p384, %s22, 1
          %s386 = smul.addr %s385, 32
          %s387 = smul.addr %s386, 8
          %s388 = scalar_lea.vmem %s0, %s387
        $region68: #{cnn_forward.1} parent=63 // pred_fallthru
          _
      $region64: #{cnn_forward.1} parent=5 // pred_fallthru
        _
      %p389 = scmp.le.s32.totalorder 1, %s22
      %p390 = scmp.lt.s32.totalorder %s22, 3
      %p391 = pnand %p389, %p390
      %p392 = pneg %p391
      // Predicated region
      $region69: #{cnn_forward.1} parent=5 // pred_check
        _
      $region70: #{cnn_forward.1} parent=5 // pred_check_branch
        %394 = sbr.rel (%p391) target = $region72
      $region71: #{cnn_forward.1} parent=5 // pred_region
        %s395 = ssub.s32 %s22, 1
        %p396 = scmp.lt.s32.totalorder %s27, 1
        %s397 = scalar_select %p396, %s27, 1
        %s398 = smul.addr %s397, 32
        %s399 = smul.addr %s398, 8
        %s400 = scalar_lea.vmem %s0, %s399
        %p401 = pneg %p48
        %p402 = pneg %p45
        %p403 = pneg %p69
        %p404 = pneg %p66
        %p405 = pneg %p90
        %p406 = pneg %p87
        %p407 = pneg %p111
        %p408 = pneg %p108
        %p409 = pneg %p132
        %p410 = pneg %p129
        %p411 = pneg %p153
        %p412 = pneg %p150
        %p413 = pneg %p174
        %p414 = pneg %p171
        %p415 = pneg %p195
        %p416 = pneg %p192
        %p417 = pneg %p216
        %p418 = pneg %p213
        %p419 = pneg %p237
        %p420 = pneg %p234
        %p421 = pneg %p258
        %p422 = pneg %p255
        %p423 = pneg %p279
        %p424 = pneg %p276
        %p425 = pneg %p300
        %p426 = pneg %p297
        %p427 = pneg %p326
        %p428 = pneg %p323
        %s429 = sand.u32 %s313, 1
        %s430 = scalar_lea.sflag [#allocation3], %s429
        %s431 = sand.u32 %s313, 1
        %s432 = scalar_lea.vmem [#allocation2], %s431
        %p433 = scmp.lt.s32.totalorder %s27, 1
        %s434 = scalar_select %p433, %s27, 1
        %s435 = smul.addr %s434, 32
        %s436 = smul.addr %s435, 8
        %s437 = scalar_lea.vmem %s0, %s436
        %v439 = vld [vmem:[%s437] sm:$0xff]
        %v440 = vld [vmem:[%s437 + $0x8] sm:$0xff]
        %v441 = vld [vmem:[%s437 + $0x10] sm:$0xff]
        %v442 = vld [vmem:[%s437 + $0x18] sm:$0xff]
        %v443 = vld [vmem:[%s437 + $0x20] sm:$0xff]
        %v444 = vld [vmem:[%s437 + $0x28] sm:$0xff]
        %v445 = vld [vmem:[%s437 + $0x30] sm:$0xff]
        %v446 = vld [vmem:[%s437 + $0x38] sm:$0xff]
        %v447 = vld [vmem:[%s437 + $0x40] sm:$0xff]
        %v448 = vld [vmem:[%s437 + $0x48] sm:$0xff]
        %v449 = vld [vmem:[%s437 + $0x50] sm:$0xff]
        %v450 = vld [vmem:[%s437 + $0x58] sm:$0xff]
        %v451 = vld [vmem:[%s437 + $0x60] sm:$0xff]
        %v452 = vld [vmem:[%s437 + $0x68] sm:$0xff]
        %v453 = vld [vmem:[%s437 + $0x70] sm:$0xff]
        %v454 = vld [vmem:[%s437 + $0x78] sm:$0xff]
        %v455 = vld [vmem:[%s437 + $0x80] sm:$0xff]
        %v456 = vld [vmem:[%s437 + $0x88] sm:$0xff]
        %v457 = vld [vmem:[%s437 + $0x90] sm:$0xff]
        %v458 = vld [vmem:[%s437 + $0x98] sm:$0xff]
        %v459 = vld [vmem:[%s437 + $0xa0] sm:$0xff]
        %v460 = vld [vmem:[%s437 + $0xa8] sm:$0xff]
        %v461 = vld [vmem:[%s437 + $0xb0] sm:$0xff]
        %v462 = vld [vmem:[%s437 + $0xb8] sm:$0xff]
        %v463 = vld [vmem:[%s437 + $0xc0] sm:$0xff]
        %v464 = vld [vmem:[%s437 + $0xc8] sm:$0xff]
        %v465 = vld [vmem:[%s437 + $0xd0] sm:$0xff]
        %v466 = vld [vmem:[%s437 + $0xd8] sm:$0xff]
        %v467 = vld [vmem:[%s437 + $0xe0] sm:$0xff]
        %v468 = vld [vmem:[%s437 + $0xe8] sm:$0xff]
        %v469 = vld [vmem:[%s437 + $0xf0] sm:$0xff]
        %v470 = vld [vmem:[%s437 + $0xf8] sm:$0xff]
        %v471 = vlaneseq
        %v472 = vshrl.u32 %v471, 7
        %v473 = vadd.s32 %v472, 8
        %v474 = vadd.s32 %v472, 16
        %v475 = vadd.s32 %v472, 24
        %v476 = vadd.s32 %v472, 32
        %v477 = vadd.s32 %v472, 40
        %v478 = vadd.s32 %v472, 48
        %v479 = vadd.s32 %v472, 56
        %v480 = vadd.s32 %v472, 64
        %v481 = vadd.s32 %v472, 72
        %v482 = vadd.s32 %v472, 80
        %v483 = vadd.s32 %v472, 88
        %v484 = vadd.s32 %v472, 96
        %v485 = vadd.s32 %v472, 104
        %v486 = vadd.s32 %v472, 112
        %v487 = vadd.s32 %v472, 120
        %v488 = vadd.s32 %v472, 128
        %v489 = vadd.s32 %v472, 136
        %v490 = vadd.s32 %v472, 144
        %v491 = vadd.s32 %v472, 152
        %v492 = vadd.s32 %v472, 160
        %v493 = vadd.s32 %v472, 168
        %v494 = vadd.s32 %v472, 176
        %v495 = vadd.s32 %v472, 184
        %v496 = vadd.s32 %v472, 192
        %v497 = vadd.s32 %v472, 200
        %v498 = vadd.s32 %v472, 208
        %v499 = vadd.s32 %v472, 216
        %v500 = vadd.s32 %v472, 224
        %v501 = vadd.s32 %v472, 232
        %v502 = vadd.s32 %v472, 240
        %v503 = vadd.s32 %v472, 248
        %v504 = vcvt.s32.f32 %v472
        %v505 = vcvt.s32.f32 %v473
        %v506 = vcvt.s32.f32 %v474
        %v507 = vcvt.s32.f32 %v475
        %v508 = vcvt.s32.f32 %v476
        %v509 = vcvt.s32.f32 %v477
        %v510 = vcvt.s32.f32 %v478
        %v511 = vcvt.s32.f32 %v479
        %v512 = vcvt.s32.f32 %v480
        %v513 = vcvt.s32.f32 %v481
        %v514 = vcvt.s32.f32 %v482
        %v515 = vcvt.s32.f32 %v483
        %v516 = vcvt.s32.f32 %v484
        %v517 = vcvt.s32.f32 %v485
        %v518 = vcvt.s32.f32 %v486
        %v519 = vcvt.s32.f32 %v487
        %v520 = vcvt.s32.f32 %v488
        %v521 = vcvt.s32.f32 %v489
        %v522 = vcvt.s32.f32 %v490
        %v523 = vcvt.s32.f32 %v491
        %v524 = vcvt.s32.f32 %v492
        %v525 = vcvt.s32.f32 %v493
        %v526 = vcvt.s32.f32 %v494
        %v527 = vcvt.s32.f32 %v495
        %v528 = vcvt.s32.f32 %v496
        %v529 = vcvt.s32.f32 %v497
        %v530 = vcvt.s32.f32 %v498
        %v531 = vcvt.s32.f32 %v499
        %v532 = vcvt.s32.f32 %v500
        %v533 = vcvt.s32.f32 %v501
        %v534 = vcvt.s32.f32 %v502
        %v535 = vcvt.s32.f32 %v503
        %v536 = vadd.f32 %v504, 0.5
        %v537 = vadd.f32 %v505, 0.5
        %v538 = vadd.f32 %v506, 0.5
        %v539 = vadd.f32 %v507, 0.5
        %v540 = vadd.f32 %v508, 0.5
        %v541 = vadd.f32 %v509, 0.5
        %v542 = vadd.f32 %v510, 0.5
        %v543 = vadd.f32 %v511, 0.5
        %v544 = vadd.f32 %v512, 0.5
        %v545 = vadd.f32 %v513, 0.5
        %v546 = vadd.f32 %v514, 0.5
        %v547 = vadd.f32 %v515, 0.5
        %v548 = vadd.f32 %v516, 0.5
        %v549 = vadd.f32 %v517, 0.5
        %v550 = vadd.f32 %v518, 0.5
        %v551 = vadd.f32 %v519, 0.5
        %v552 = vadd.f32 %v520, 0.5
        %v553 = vadd.f32 %v521, 0.5
        %v554 = vadd.f32 %v522, 0.5
        %v555 = vadd.f32 %v523, 0.5
        %v556 = vadd.f32 %v524, 0.5
        %v557 = vadd.f32 %v525, 0.5
        %v558 = vadd.f32 %v526, 0.5
        %v559 = vadd.f32 %v527, 0.5
        %v560 = vadd.f32 %v528, 0.5
        %v561 = vadd.f32 %v529, 0.5
        %v562 = vadd.f32 %v530, 0.5
        %v563 = vadd.f32 %v531, 0.5
        %v564 = vadd.f32 %v532, 0.5
        %v565 = vadd.f32 %v533, 0.5
        %v566 = vadd.f32 %v534, 0.5
        %v567 = vadd.f32 %v535, 0.5
        %v568 = vrcp.pop 16.0
        %v569 = vmul.f32 %v536, %v568
        %v570 = vmul.f32 %v537, %v568
        %v571 = vmul.f32 %v538, %v568
        %v572 = vmul.f32 %v539, %v568
        %v573 = vmul.f32 %v540, %v568
        %v574 = vmul.f32 %v541, %v568
        %v575 = vmul.f32 %v542, %v568
        %v576 = vmul.f32 %v543, %v568
        %v577 = vmul.f32 %v544, %v568
        %v578 = vmul.f32 %v545, %v568
        %v579 = vmul.f32 %v546, %v568
        %v580 = vmul.f32 %v547, %v568
        %v581 = vmul.f32 %v548, %v568
        %v582 = vmul.f32 %v549, %v568
        %v583 = vmul.f32 %v550, %v568
        %v584 = vmul.f32 %v551, %v568
        %v585 = vmul.f32 %v552, %v568
        %v586 = vmul.f32 %v553, %v568
        %v587 = vmul.f32 %v554, %v568
        %v588 = vmul.f32 %v555, %v568
        %v589 = vmul.f32 %v556, %v568
        %v590 = vmul.f32 %v557, %v568
        %v591 = vmul.f32 %v558, %v568
        %v592 = vmul.f32 %v559, %v568
        %v593 = vmul.f32 %v560, %v568
        %v594 = vmul.f32 %v561, %v568
        %v595 = vmul.f32 %v562, %v568
        %v596 = vmul.f32 %v563, %v568
        %v597 = vmul.f32 %v564, %v568
        %v598 = vmul.f32 %v565, %v568
        %v599 = vmul.f32 %v566, %v568
        %v600 = vmul.f32 %v567, %v568
        %v601 = vfloor.f32 %v569
        %v602 = vfloor.f32 %v570
        %v603 = vfloor.f32 %v571
        %v604 = vfloor.f32 %v572
        %v605 = vfloor.f32 %v573
        %v606 = vfloor.f32 %v574
        %v607 = vfloor.f32 %v575
        %v608 = vfloor.f32 %v576
        %v609 = vfloor.f32 %v577
        %v610 = vfloor.f32 %v578
        %v611 = vfloor.f32 %v579
        %v612 = vfloor.f32 %v580
        %v613 = vfloor.f32 %v581
        %v614 = vfloor.f32 %v582
        %v615 = vfloor.f32 %v583
        %v616 = vfloor.f32 %v584
        %v617 = vfloor.f32 %v585
        %v618 = vfloor.f32 %v586
        %v619 = vfloor.f32 %v587
        %v620 = vfloor.f32 %v588
        %v621 = vfloor.f32 %v589
        %v622 = vfloor.f32 %v590
        %v623 = vfloor.f32 %v591
        %v624 = vfloor.f32 %v592
        %v625 = vfloor.f32 %v593
        %v626 = vfloor.f32 %v594
        %v627 = vfloor.f32 %v595
        %v628 = vfloor.f32 %v596
        %v629 = vfloor.f32 %v597
        %v630 = vfloor.f32 %v598
        %v631 = vfloor.f32 %v599
        %v632 = vfloor.f32 %v600
        %v633 = vmul.f32 %v601, 16.0
        %v634 = vmul.f32 %v602, 16.0
        %v635 = vmul.f32 %v603, 16.0
        %v636 = vmul.f32 %v604, 16.0
        %v637 = vmul.f32 %v605, 16.0
        %v638 = vmul.f32 %v606, 16.0
        %v639 = vmul.f32 %v607, 16.0
        %v640 = vmul.f32 %v608, 16.0
        %v641 = vmul.f32 %v609, 16.0
        %v642 = vmul.f32 %v610, 16.0
        %v643 = vmul.f32 %v611, 16.0
        %v644 = vmul.f32 %v612, 16.0
        %v645 = vmul.f32 %v613, 16.0
        %v646 = vmul.f32 %v614, 16.0
        %v647 = vmul.f32 %v615, 16.0
        %v648 = vmul.f32 %v616, 16.0
        %v649 = vmul.f32 %v617, 16.0
        %v650 = vmul.f32 %v618, 16.0
        %v651 = vmul.f32 %v619, 16.0
        %v652 = vmul.f32 %v620, 16.0
        %v653 = vmul.f32 %v621, 16.0
        %v654 = vmul.f32 %v622, 16.0
        %v655 = vmul.f32 %v623, 16.0
        %v656 = vmul.f32 %v624, 16.0
        %v657 = vmul.f32 %v625, 16.0
        %v658 = vmul.f32 %v626, 16.0
        %v659 = vmul.f32 %v627, 16.0
        %v660 = vmul.f32 %v628, 16.0
        %v661 = vmul.f32 %v629, 16.0
        %v662 = vmul.f32 %v630, 16.0
        %v663 = vmul.f32 %v631, 16.0
        %v664 = vmul.f32 %v632, 16.0
        %v665 = vsub.f32 %v504, %v633
        %v666 = vsub.f32 %v505, %v634
        %v667 = vsub.f32 %v506, %v635
        %v668 = vsub.f32 %v507, %v636
        %v669 = vsub.f32 %v508, %v637
        %v670 = vsub.f32 %v509, %v638
        %v671 = vsub.f32 %v510, %v639
        %v672 = vsub.f32 %v511, %v640
        %v673 = vsub.f32 %v512, %v641
        %v674 = vsub.f32 %v513, %v642
        %v675 = vsub.f32 %v514, %v643
        %v676 = vsub.f32 %v515, %v644
        %v677 = vsub.f32 %v516, %v645
        %v678 = vsub.f32 %v517, %v646
        %v679 = vsub.f32 %v518, %v647
        %v680 = vsub.f32 %v519, %v648
        %v681 = vsub.f32 %v520, %v649
        %v682 = vsub.f32 %v521, %v650
        %v683 = vsub.f32 %v522, %v651
        %v684 = vsub.f32 %v523, %v652
        %v685 = vsub.f32 %v524, %v653
        %v686 = vsub.f32 %v525, %v654
        %v687 = vsub.f32 %v526, %v655
        %v688 = vsub.f32 %v527, %v656
        %v689 = vsub.f32 %v528, %v657
        %v690 = vsub.f32 %v529, %v658
        %v691 = vsub.f32 %v530, %v659
        %v692 = vsub.f32 %v531, %v660
        %v693 = vsub.f32 %v532, %v661
        %v694 = vsub.f32 %v533, %v662
        %v695 = vsub.f32 %v534, %v663
        %v696 = vsub.f32 %v535, %v664
        %vm727 = vcmask 1040384
        %v728 = vrot.slane %v439, 7
        %v729 = vrot.slane %v440, 7
        %v730 = vsel %vm727, %v728, %v729
        %v731 = vrot.slane %v441, 7
        %v732 = vsel %vm727, %v729, %v731
        %v733 = vrot.slane %v442, 7
        %v734 = vsel %vm727, %v731, %v733
        %v735 = vrot.slane %v443, 7
        %v736 = vsel %vm727, %v733, %v735
        %v737 = vrot.slane %v444, 7
        %v738 = vsel %vm727, %v735, %v737
        %v739 = vrot.slane %v445, 7
        %v740 = vsel %vm727, %v737, %v739
        %v741 = vrot.slane %v446, 7
        %v742 = vsel %vm727, %v739, %v741
        %v743 = vrot.slane %v447, 7
        %v744 = vsel %vm727, %v741, %v743
        %v745 = vrot.slane %v448, 7
        %v746 = vsel %vm727, %v743, %v745
        %v747 = vrot.slane %v449, 7
        %v748 = vsel %vm727, %v745, %v747
        %v749 = vrot.slane %v450, 7
        %v750 = vsel %vm727, %v747, %v749
        %v751 = vrot.slane %v451, 7
        %v752 = vsel %vm727, %v749, %v751
        %v753 = vrot.slane %v452, 7
        %v754 = vsel %vm727, %v751, %v753
        %v755 = vrot.slane %v453, 7
        %v756 = vsel %vm727, %v753, %v755
        %v757 = vrot.slane %v454, 7
        %v758 = vsel %vm727, %v755, %v757
        %v759 = vrot.slane %v455, 7
        %v760 = vsel %vm727, %v757, %v759
        %v761 = vrot.slane %v456, 7
        %v762 = vsel %vm727, %v759, %v761
        %v763 = vrot.slane %v457, 7
        %v764 = vsel %vm727, %v761, %v763
        %v765 = vrot.slane %v458, 7
        %v766 = vsel %vm727, %v763, %v765
        %v767 = vrot.slane %v459, 7
        %v768 = vsel %vm727, %v765, %v767
        %v769 = vrot.slane %v460, 7
        %v770 = vsel %vm727, %v767, %v769
        %v771 = vrot.slane %v461, 7
        %v772 = vsel %vm727, %v769, %v771
        %v773 = vrot.slane %v462, 7
        %v774 = vsel %vm727, %v771, %v773
        %v775 = vrot.slane %v463, 7
        %v776 = vsel %vm727, %v773, %v775
        %v777 = vrot.slane %v464, 7
        %v778 = vsel %vm727, %v775, %v777
        %v779 = vrot.slane %v465, 7
        %v780 = vsel %vm727, %v777, %v779
        %v781 = vrot.slane %v466, 7
        %v782 = vsel %vm727, %v779, %v781
        %v783 = vrot.slane %v467, 7
        %v784 = vsel %vm727, %v781, %v783
        %v785 = vrot.slane %v468, 7
        %v786 = vsel %vm727, %v783, %v785
        %v817 = vsel %vm727, 0.0, %v728
        %vm818 = vcmp.ge.f32.partialorder %v602, 0.5
        %vm819 = vcmp.ge.f32.partialorder %v603, 0.5
        %vm820 = vcmp.ge.f32.partialorder %v604, 0.5
        %vm821 = vcmp.ge.f32.partialorder %v605, 0.5
        %vm822 = vcmp.ge.f32.partialorder %v606, 0.5
        %vm823 = vcmp.ge.f32.partialorder %v607, 0.5
        %vm824 = vcmp.ge.f32.partialorder %v608, 0.5
        %vm825 = vcmp.ge.f32.partialorder %v609, 0.5
        %vm826 = vcmp.ge.f32.partialorder %v610, 0.5
        %vm827 = vcmp.ge.f32.partialorder %v611, 0.5
        %vm828 = vcmp.ge.f32.partialorder %v612, 0.5
        %vm829 = vcmp.ge.f32.partialorder %v613, 0.5
        %vm830 = vcmp.ge.f32.partialorder %v614, 0.5
        %vm831 = vcmp.ge.f32.partialorder %v615, 0.5
        %vm832 = vcmp.ge.f32.partialorder %v616, 0.5
        %vm833 = vcmp.ge.f32.partialorder %v617, 0.5
        %vm834 = vcmp.ge.f32.partialorder %v618, 0.5
        %vm835 = vcmp.ge.f32.partialorder %v619, 0.5
        %vm836 = vcmp.ge.f32.partialorder %v620, 0.5
        %vm837 = vcmp.ge.f32.partialorder %v621, 0.5
        %vm838 = vcmp.ge.f32.partialorder %v622, 0.5
        %vm839 = vcmp.ge.f32.partialorder %v623, 0.5
        %vm840 = vcmp.ge.f32.partialorder %v624, 0.5
        %vm841 = vcmp.ge.f32.partialorder %v625, 0.5
        %vm842 = vcmp.ge.f32.partialorder %v626, 0.5
        %vm843 = vcmp.ge.f32.partialorder %v627, 0.5
        %vm844 = vcmp.ge.f32.partialorder %v628, 0.5
        %vm845 = vcmp.ge.f32.partialorder %v629, 0.5
        %vm846 = vcmp.ge.f32.partialorder %v630, 0.5
        %vm847 = vcmp.ge.f32.partialorder %v631, 0.5
        %vm848 = vcmp.ge.f32.partialorder %v632, 0.5
        %vm849 = vcmp.ge.f32.partialorder %v665, 0.5
        %vm850 = vcmp.ge.f32.partialorder %v666, 0.5
        %vm851 = vcmp.ge.f32.partialorder %v667, 0.5
        %vm852 = vcmp.ge.f32.partialorder %v668, 0.5
        %vm853 = vcmp.ge.f32.partialorder %v669, 0.5
        %vm854 = vcmp.ge.f32.partialorder %v670, 0.5
        %vm855 = vcmp.ge.f32.partialorder %v671, 0.5
        %vm856 = vcmp.ge.f32.partialorder %v672, 0.5
        %vm857 = vcmp.ge.f32.partialorder %v673, 0.5
        %vm858 = vcmp.ge.f32.partialorder %v674, 0.5
        %vm859 = vcmp.ge.f32.partialorder %v675, 0.5
        %vm860 = vcmp.ge.f32.partialorder %v676, 0.5
        %vm861 = vcmp.ge.f32.partialorder %v677, 0.5
        %vm862 = vcmp.ge.f32.partialorder %v678, 0.5
        %vm863 = vcmp.ge.f32.partialorder %v679, 0.5
        %vm864 = vcmp.ge.f32.partialorder %v680, 0.5
        %vm865 = vcmp.ge.f32.partialorder %v681, 0.5
        %vm866 = vcmp.ge.f32.partialorder %v682, 0.5
        %vm867 = vcmp.ge.f32.partialorder %v683, 0.5
        %vm868 = vcmp.ge.f32.partialorder %v684, 0.5
        %vm869 = vcmp.ge.f32.partialorder %v685, 0.5
        %vm870 = vcmp.ge.f32.partialorder %v686, 0.5
        %vm871 = vcmp.ge.f32.partialorder %v687, 0.5
        %vm872 = vcmp.ge.f32.partialorder %v688, 0.5
        %vm873 = vcmp.ge.f32.partialorder %v689, 0.5
        %vm874 = vcmp.ge.f32.partialorder %v690, 0.5
        %vm875 = vcmp.ge.f32.partialorder %v691, 0.5
        %vm876 = vcmp.ge.f32.partialorder %v692, 0.5
        %vm877 = vcmp.ge.f32.partialorder %v693, 0.5
        %vm878 = vcmp.ge.f32.partialorder %v694, 0.5
        %vm879 = vcmp.ge.f32.partialorder %v695, 0.5
        %vm880 = vcmp.ge.f32.partialorder %v696, 0.5
        %vm881 = vmand %vm819, %vm851
        %vm882 = vmand %vm820, %vm852
        %vm883 = vmand %vm821, %vm853
        %vm884 = vmand %vm822, %vm854
        %vm885 = vmand %vm823, %vm855
        %vm886 = vmand %vm824, %vm856
        %vm887 = vmand %vm825, %vm857
        %vm888 = vmand %vm826, %vm858
        %vm889 = vmand %vm827, %vm859
        %vm890 = vmand %vm828, %vm860
        %vm891 = vmand %vm829, %vm861
        %vm892 = vmand %vm830, %vm862
        %vm893 = vmand %vm831, %vm863
        %vm894 = vmand %vm832, %vm864
        %vm895 = vmand %vm833, %vm865
        %vm896 = vmand %vm834, %vm866
        %vm897 = vmand %vm835, %vm867
        %vm898 = vmand %vm836, %vm868
        %vm899 = vmand %vm837, %vm869
        %vm900 = vmand %vm838, %vm870
        %vm901 = vmand %vm839, %vm871
        %vm902 = vmand %vm840, %vm872
        %vm903 = vmand %vm841, %vm873
        %vm904 = vmand %vm842, %vm874
        %vm905 = vmand %vm843, %vm875
        %vm906 = vmand %vm844, %vm876
        %vm907 = vmand %vm845, %vm877
        %vm908 = vmand %vm846, %vm878
        %vm909 = vmand %vm847, %vm879
        %vm910 = vmand %vm848, %vm880
        %v911 = vsel %vm881, 1, 0
        %v912 = vsel %vm882, 1, 0
        %v913 = vsel %vm883, 1, 0
        %v914 = vsel %vm884, 1, 0
        %v915 = vsel %vm885, 1, 0
        %v916 = vsel %vm886, 1, 0
        %v917 = vsel %vm887, 1, 0
        %v918 = vsel %vm888, 1, 0
        %v919 = vsel %vm889, 1, 0
        %v920 = vsel %vm890, 1, 0
        %v921 = vsel %vm891, 1, 0
        %v922 = vsel %vm892, 1, 0
        %v923 = vsel %vm893, 1, 0
        %v924 = vsel %vm894, 1, 0
        %v925 = vsel %vm895, 1, 0
        %v926 = vsel %vm896, 1, 0
        %v927 = vsel %vm897, 1, 0
        %v928 = vsel %vm898, 1, 0
        %v929 = vsel %vm899, 1, 0
        %v930 = vsel %vm900, 1, 0
        %v931 = vsel %vm901, 1, 0
        %v932 = vsel %vm902, 1, 0
        %v933 = vsel %vm903, 1, 0
        %v934 = vsel %vm904, 1, 0
        %v935 = vsel %vm905, 1, 0
        %v936 = vsel %vm906, 1, 0
        %v937 = vsel %vm907, 1, 0
        %v938 = vsel %vm908, 1, 0
        %v939 = vsel %vm909, 1, 0
        %v940 = vsel %vm910, 1, 0
        %vm941 = vcmp.eq.s32.totalorder %v911, 1
        %vm942 = vcmp.eq.s32.totalorder %v912, 1
        %vm943 = vcmp.eq.s32.totalorder %v913, 1
        %vm944 = vcmp.eq.s32.totalorder %v914, 1
        %vm945 = vcmp.eq.s32.totalorder %v915, 1
        %vm946 = vcmp.eq.s32.totalorder %v916, 1
        %vm947 = vcmp.eq.s32.totalorder %v917, 1
        %vm948 = vcmp.eq.s32.totalorder %v918, 1
        %vm949 = vcmp.eq.s32.totalorder %v919, 1
        %vm950 = vcmp.eq.s32.totalorder %v920, 1
        %vm951 = vcmp.eq.s32.totalorder %v921, 1
        %vm952 = vcmp.eq.s32.totalorder %v922, 1
        %vm953 = vcmp.eq.s32.totalorder %v923, 1
        %vm954 = vcmp.eq.s32.totalorder %v924, 1
        %vm955 = vcmp.eq.s32.totalorder %v925, 1
        %vm956 = vcmp.eq.s32.totalorder %v926, 1
        %vm957 = vcmp.eq.s32.totalorder %v927, 1
        %vm958 = vcmp.eq.s32.totalorder %v928, 1
        %vm959 = vcmp.eq.s32.totalorder %v929, 1
        %vm960 = vcmp.eq.s32.totalorder %v930, 1
        %vm961 = vcmp.eq.s32.totalorder %v931, 1
        %vm962 = vcmp.eq.s32.totalorder %v932, 1
        %vm963 = vcmp.eq.s32.totalorder %v933, 1
        %vm964 = vcmp.eq.s32.totalorder %v934, 1
        %vm965 = vcmp.eq.s32.totalorder %v935, 1
        %vm966 = vcmp.eq.s32.totalorder %v936, 1
        %vm967 = vcmp.eq.s32.totalorder %v937, 1
        %vm968 = vcmp.eq.s32.totalorder %v938, 1
        %vm969 = vcmp.eq.s32.totalorder %v939, 1
        %vm970 = vcmp.eq.s32.totalorder %v940, 1
        %v971 = vsel %vm941, %v817, 0.0
        %v972 = vsel %vm942, %v730, 0.0
        %v973 = vsel %vm943, %v732, 0.0
        %v974 = vsel %vm944, %v734, 0.0
        %v975 = vsel %vm945, %v736, 0.0
        %v976 = vsel %vm946, %v738, 0.0
        %v977 = vsel %vm947, %v740, 0.0
        %v978 = vsel %vm948, %v742, 0.0
        %v979 = vsel %vm949, %v744, 0.0
        %v980 = vsel %vm950, %v746, 0.0
        %v981 = vsel %vm951, %v748, 0.0
        %v982 = vsel %vm952, %v750, 0.0
        %v983 = vsel %vm953, %v752, 0.0
        %v984 = vsel %vm954, %v754, 0.0
        %v985 = vsel %vm955, %v756, 0.0
        %v986 = vsel %vm956, %v758, 0.0
        %v987 = vsel %vm957, %v760, 0.0
        %v988 = vsel %vm958, %v762, 0.0
        %v989 = vsel %vm959, %v764, 0.0
        %v990 = vsel %vm960, %v766, 0.0
        %v991 = vsel %vm961, %v768, 0.0
        %v992 = vsel %vm962, %v770, 0.0
        %v993 = vsel %vm963, %v772, 0.0
        %v994 = vsel %vm964, %v774, 0.0
        %v995 = vsel %vm965, %v776, 0.0
        %v996 = vsel %vm966, %v778, 0.0
        %v997 = vsel %vm967, %v780, 0.0
        %v998 = vsel %vm968, %v782, 0.0
        %v999 = vsel %vm969, %v784, 0.0
        %v1000 = vsel %vm970, %v786, 0.0
        %v1001 = vpack.c.bf16 0.0, 0.0
        %v1002 = vpack.c.bf16 %v972, %v971
        %v1003 = vpack.c.bf16 %v974, %v973
        %v1004 = vpack.c.bf16 %v976, %v975
        %v1005 = vpack.c.bf16 %v978, %v977
        %v1006 = vpack.c.bf16 %v980, %v979
        %v1007 = vpack.c.bf16 %v982, %v981
        %v1008 = vpack.c.bf16 %v984, %v983
        %v1009 = vpack.c.bf16 %v986, %v985
        %v1010 = vpack.c.bf16 %v988, %v987
        %v1011 = vpack.c.bf16 %v990, %v989
        %v1012 = vpack.c.bf16 %v992, %v991
        %v1013 = vpack.c.bf16 %v994, %v993
        %v1014 = vpack.c.bf16 %v996, %v995
        %v1015 = vpack.c.bf16 %v998, %v997
        %v1016 = vpack.c.bf16 %v1000, %v999
        %v1017 = vld [vmem:[%s1] sm:$0x3]
        %v1018 = vsel %vm819, 1, 0
        %v1019 = vsel %vm820, 1, 0
        %v1020 = vsel %vm821, 1, 0
        %v1021 = vsel %vm822, 1, 0
        %v1022 = vsel %vm823, 1, 0
        %v1023 = vsel %vm824, 1, 0
        %v1024 = vsel %vm825, 1, 0
        %v1025 = vsel %vm826, 1, 0
        %v1026 = vsel %vm827, 1, 0
        %v1027 = vsel %vm828, 1, 0
        %v1028 = vsel %vm829, 1, 0
        %v1029 = vsel %vm830, 1, 0
        %v1030 = vsel %vm831, 1, 0
        %v1031 = vsel %vm832, 1, 0
        %v1032 = vsel %vm833, 1, 0
        %v1033 = vsel %vm834, 1, 0
        %v1034 = vsel %vm835, 1, 0
        %v1035 = vsel %vm836, 1, 0
        %v1036 = vsel %vm837, 1, 0
        %v1037 = vsel %vm838, 1, 0
        %v1038 = vsel %vm839, 1, 0
        %v1039 = vsel %vm840, 1, 0
        %v1040 = vsel %vm841, 1, 0
        %v1041 = vsel %vm842, 1, 0
        %v1042 = vsel %vm843, 1, 0
        %v1043 = vsel %vm844, 1, 0
        %v1044 = vsel %vm845, 1, 0
        %v1045 = vsel %vm846, 1, 0
        %v1046 = vsel %vm847, 1, 0
        %v1047 = vsel %vm848, 1, 0
        %vm1048 = vcmp.eq.s32.totalorder %v1018, 1
        %vm1049 = vcmp.eq.s32.totalorder %v1019, 1
        %vm1050 = vcmp.eq.s32.totalorder %v1020, 1
        %vm1051 = vcmp.eq.s32.totalorder %v1021, 1
        %vm1052 = vcmp.eq.s32.totalorder %v1022, 1
        %vm1053 = vcmp.eq.s32.totalorder %v1023, 1
        %vm1054 = vcmp.eq.s32.totalorder %v1024, 1
        %vm1055 = vcmp.eq.s32.totalorder %v1025, 1
        %vm1056 = vcmp.eq.s32.totalorder %v1026, 1
        %vm1057 = vcmp.eq.s32.totalorder %v1027, 1
        %vm1058 = vcmp.eq.s32.totalorder %v1028, 1
        %vm1059 = vcmp.eq.s32.totalorder %v1029, 1
        %vm1060 = vcmp.eq.s32.totalorder %v1030, 1
        %vm1061 = vcmp.eq.s32.totalorder %v1031, 1
        %vm1062 = vcmp.eq.s32.totalorder %v1032, 1
        %vm1063 = vcmp.eq.s32.totalorder %v1033, 1
        %vm1064 = vcmp.eq.s32.totalorder %v1034, 1
        %vm1065 = vcmp.eq.s32.totalorder %v1035, 1
        %vm1066 = vcmp.eq.s32.totalorder %v1036, 1
        %vm1067 = vcmp.eq.s32.totalorder %v1037, 1
        %vm1068 = vcmp.eq.s32.totalorder %v1038, 1
        %vm1069 = vcmp.eq.s32.totalorder %v1039, 1
        %vm1070 = vcmp.eq.s32.totalorder %v1040, 1
        %vm1071 = vcmp.eq.s32.totalorder %v1041, 1
        %vm1072 = vcmp.eq.s32.totalorder %v1042, 1
        %vm1073 = vcmp.eq.s32.totalorder %v1043, 1
        %vm1074 = vcmp.eq.s32.totalorder %v1044, 1
        %vm1075 = vcmp.eq.s32.totalorder %v1045, 1
        %vm1076 = vcmp.eq.s32.totalorder %v1046, 1
        %vm1077 = vcmp.eq.s32.totalorder %v1047, 1
        %v1078 = vsel %vm1048, %v439, 0.0
        %v1079 = vsel %vm1049, %v440, 0.0
        %v1080 = vsel %vm1050, %v441, 0.0
        %v1081 = vsel %vm1051, %v442, 0.0
        %v1082 = vsel %vm1052, %v443, 0.0
        %v1083 = vsel %vm1053, %v444, 0.0
        %v1084 = vsel %vm1054, %v445, 0.0
        %v1085 = vsel %vm1055, %v446, 0.0
        %v1086 = vsel %vm1056, %v447, 0.0
        %v1087 = vsel %vm1057, %v448, 0.0
        %v1088 = vsel %vm1058, %v449, 0.0
        %v1089 = vsel %vm1059, %v450, 0.0
        %v1090 = vsel %vm1060, %v451, 0.0
        %v1091 = vsel %vm1061, %v452, 0.0
        %v1092 = vsel %vm1062, %v453, 0.0
        %v1093 = vsel %vm1063, %v454, 0.0
        %v1094 = vsel %vm1064, %v455, 0.0
        %v1095 = vsel %vm1065, %v456, 0.0
        %v1096 = vsel %vm1066, %v457, 0.0
        %v1097 = vsel %vm1067, %v458, 0.0
        %v1098 = vsel %vm1068, %v459, 0.0
        %v1099 = vsel %vm1069, %v460, 0.0
        %v1100 = vsel %vm1070, %v461, 0.0
        %v1101 = vsel %vm1071, %v462, 0.0
        %v1102 = vsel %vm1072, %v463, 0.0
        %v1103 = vsel %vm1073, %v464, 0.0
        %v1104 = vsel %vm1074, %v465, 0.0
        %v1105 = vsel %vm1075, %v466, 0.0
        %v1106 = vsel %vm1076, %v467, 0.0
        %v1107 = vsel %vm1077, %v468, 0.0
        %v1108 = vpack.c.bf16 %v1079, %v1078
        %v1109 = vpack.c.bf16 %v1081, %v1080
        %v1110 = vpack.c.bf16 %v1083, %v1082
        %v1111 = vpack.c.bf16 %v1085, %v1084
        %v1112 = vpack.c.bf16 %v1087, %v1086
        %v1113 = vpack.c.bf16 %v1089, %v1088
        %v1114 = vpack.c.bf16 %v1091, %v1090
        %v1115 = vpack.c.bf16 %v1093, %v1092
        %v1116 = vpack.c.bf16 %v1095, %v1094
        %v1117 = vpack.c.bf16 %v1097, %v1096
        %v1118 = vpack.c.bf16 %v1099, %v1098
        %v1119 = vpack.c.bf16 %v1101, %v1100
        %v1120 = vpack.c.bf16 %v1103, %v1102
        %v1121 = vpack.c.bf16 %v1105, %v1104
        %v1122 = vpack.c.bf16 %v1107, %v1106
        %s1123 = scalar_lea.vmem %s1, 2
        %v1124 = vld [vmem:[%s1123] sm:$0x3]
        %vm1125 = vcmask 31744
        %v1127 = vsel %vm1125, %v1001, 0
        %v1130 = vsel %vm1125, %v1108, 0
        %v1133 = vsel %vm1125, %v1109, 0
        %v1136 = vsel %vm1125, %v1110, 0
        %v1139 = vsel %vm1125, %v1111, 0
        %v1142 = vsel %vm1125, %v1112, 0
        %v1145 = vsel %vm1125, %v1113, 0
        %v1148 = vsel %vm1125, %v1114, 0
        %v1151 = vsel %vm1125, %v1115, 0
        %v1154 = vsel %vm1125, %v1116, 0
        %v1157 = vsel %vm1125, %v1117, 0
        %v1160 = vsel %vm1125, %v1118, 0
        %v1163 = vsel %vm1125, %v1119, 0
        %v1166 = vsel %vm1125, %v1120, 0
        %v1169 = vsel %vm1125, %v1121, 0
        %v1172 = vsel %vm1125, %v1122, 0
        %vm1174 = vcmask 1041408
        %v1176 = vsel %vm1174, %v1124, 0
        %1178 = vmatprep.subr.bf16.mxu0 0
        %1179 = vmatpush1.bf16.msra.mxu0 %v1176
        %1180 = vmatprep.subr.bf16.mxu0 0
        %1181 = vmatpush1.bf16.msra.mxu0 0
        %1182 = vmatprep.subr.bf16.mxu0 0
        %1183 = vmatpush1.bf16.msra.mxu0 0
        %1184 = vmatprep.subr.bf16.mxu0 0
        %1185 = vmatpush1.bf16.msra.mxu0 0
        %1186 = vmatprep.subr.bf16.mxu0 0
        %1187 = vmatpush1.bf16.msra.mxu0 0
        %1188 = vmatprep.subr.bf16.mxu0 0
        %1189 = vmatpush1.bf16.msra.mxu0 0
        %1190 = vmatprep.subr.bf16.mxu0 0
        %1191 = vmatpush1.bf16.msra.mxu0 0
        %1192 = vmatprep.subr.bf16.mxu0 0
        %1193 = vmatpush1.bf16.msra.mxu0 0
        %1194 = vmatprep.subr.bf16.mxu0 0
        %1195 = vmatpush1.bf16.msra.mxu0 0
        %1196 = vmatprep.subr.bf16.mxu0 0
        %1197 = vmatpush1.bf16.msra.mxu0 0
        %1198 = vmatprep.subr.bf16.mxu0 0
        %1199 = vmatpush1.bf16.msra.mxu0 0
        %1200 = vmatprep.subr.bf16.mxu0 0
        %1201 = vmatpush1.bf16.msra.mxu0 0
        %1202 = vmatprep.subr.bf16.mxu0 0
        %1203 = vmatpush1.bf16.msra.mxu0 0
        %1204 = vmatprep.subr.bf16.mxu0 0
        %1205 = vmatpush1.bf16.msra.mxu0 0
        %1206 = vmatprep.subr.bf16.mxu0 0
        %1207 = vmatpush1.bf16.msra.mxu0 0
        %1208 = vmatprep.subr.bf16.mxu0 0
        %1209 = vmatpush1.bf16.msra.mxu0 0
        %1210 = vmatprep.mubr.bf16.mxu0 0
        %1211 = vmatmul.mubr.bf16.gmra.mrb[0].mxu0 %v1127
        %v1212 = vpop.f32.mrb[0].mxu0
        %v1213 = vadd.f32 0.0, %v1212
        %v1214 = vpop.f32.mrb[0].mxu0
        %v1215 = vpop.f32.mrb[0].mxu0
        %v1216 = vadd.f32 0.0, %v1215
        %v1217 = vpop.f32.mrb[0].mxu0
        %1218 = vmatprep.mubr.bf16.mxu0 0
        %1219 = vmatmul.mubr.bf16.gmra.mrb[0].mxu0 %v1130
        %v1220 = vpop.f32.mrb[0].mxu0
        %v1221 = vadd.f32 0.0, %v1220
        %v1222 = vpop.f32.mrb[0].mxu0
        %v1223 = vpop.f32.mrb[0].mxu0
        %v1224 = vadd.f32 0.0, %v1223
        %v1225 = vpop.f32.mrb[0].mxu0
        %1226 = vmatprep.mubr.bf16.mxu0 0
        %1227 = vmatmul.mubr.bf16.gmra.mrb[0].mxu0 %v1133
        %v1228 = vpop.f32.mrb[0].mxu0
        %v1229 = vadd.f32 0.0, %v1228
        %v1230 = vpop.f32.mrb[0].mxu0
        %v1231 = vpop.f32.mrb[0].mxu0
        %v1232 = vadd.f32 0.0, %v1231
        %v1233 = vpop.f32.mrb[0].mxu0
        %1234 = vmatprep.mubr.bf16.mxu0 0
        %1235 = vmatmul.mubr.bf16.gmra.mrb[0].mxu0 %v1136
        %v1236 = vpop.f32.mrb[0].mxu0
        %v1237 = vadd.f32 0.0, %v1236
        %v1238 = vpop.f32.mrb[0].mxu0
        %v1239 = vpop.f32.mrb[0].mxu0
        %v1240 = vadd.f32 0.0, %v1239
        %v1241 = vpop.f32.mrb[0].mxu0
        %1242 = vmatprep.mubr.bf16.mxu0 0
        %1243 = vmatmul.mubr.bf16.gmra.mrb[0].mxu0 %v1139
        %v1244 = vpop.f32.mrb[0].mxu0
        %v1245 = vadd.f32 0.0, %v1244
        %v1246 = vpop.f32.mrb[0].mxu0
        %v1247 = vpop.f32.mrb[0].mxu0
        %v1248 = vadd.f32 0.0, %v1247
        %v1249 = vpop.f32.mrb[0].mxu0
        %1250 = vmatprep.mubr.bf16.mxu0 0
        %1251 = vmatmul.mubr.bf16.gmra.mrb[0].mxu0 %v1142
        %v1252 = vpop.f32.mrb[0].mxu0
        %v1253 = vadd.f32 0.0, %v1252
        %v1254 = vpop.f32.mrb[0].mxu0
        %v1255 = vpop.f32.mrb[0].mxu0
        %v1256 = vadd.f32 0.0, %v1255
        %v1257 = vpop.f32.mrb[0].mxu0
        %1258 = vmatprep.mubr.bf16.mxu0 0
        %1259 = vmatmul.mubr.bf16.gmra.mrb[0].mxu0 %v1145
        %v1260 = vpop.f32.mrb[0].mxu0
        %v1261 = vadd.f32 0.0, %v1260
        %v1262 = vpop.f32.mrb[0].mxu0
        %v1263 = vpop.f32.mrb[0].mxu0
        %v1264 = vadd.f32 0.0, %v1263
        %v1265 = vpop.f32.mrb[0].mxu0
        %1266 = vmatprep.mubr.bf16.mxu0 0
        %1267 = vmatmul.mubr.bf16.gmra.mrb[0].mxu0 %v1148
        %v1268 = vpop.f32.mrb[0].mxu0
        %v1269 = vadd.f32 0.0, %v1268
        %v1270 = vpop.f32.mrb[0].mxu0
        %v1271 = vpop.f32.mrb[0].mxu0
        %v1272 = vadd.f32 0.0, %v1271
        %v1273 = vpop.f32.mrb[0].mxu0
        %1274 = vmatprep.mubr.bf16.mxu0 0
        %1275 = vmatmul.mubr.bf16.gmra.mrb[0].mxu0 %v1151
        %v1276 = vpop.f32.mrb[0].mxu0
        %v1277 = vadd.f32 0.0, %v1276
        %v1278 = vpop.f32.mrb[0].mxu0
        %v1279 = vpop.f32.mrb[0].mxu0
        %v1280 = vadd.f32 0.0, %v1279
        %v1281 = vpop.f32.mrb[0].mxu0
        %1282 = vmatprep.mubr.bf16.mxu0 0
        %1283 = vmatmul.mubr.bf16.gmra.mrb[0].mxu0 %v1154
        %v1284 = vpop.f32.mrb[0].mxu0
        %v1285 = vadd.f32 0.0, %v1284
        %v1286 = vpop.f32.mrb[0].mxu0
        %v1287 = vpop.f32.mrb[0].mxu0
        %v1288 = vadd.f32 0.0, %v1287
        %v1289 = vpop.f32.mrb[0].mxu0
        %1290 = vmatprep.mubr.bf16.mxu0 0
        %1291 = vmatmul.mubr.bf16.gmra.mrb[0].mxu0 %v1157
        %v1292 = vpop.f32.mrb[0].mxu0
        %v1293 = vadd.f32 0.0, %v1292
        %v1294 = vpop.f32.mrb[0].mxu0
        %v1295 = vpop.f32.mrb[0].mxu0
        %v1296 = vadd.f32 0.0, %v1295
        %v1297 = vpop.f32.mrb[0].mxu0
        %1298 = vmatprep.mubr.bf16.mxu0 0
        %1299 = vmatmul.mubr.bf16.gmra.mrb[0].mxu0 %v1160
        %v1300 = vpop.f32.mrb[0].mxu0
        %v1301 = vadd.f32 0.0, %v1300
        %v1302 = vpop.f32.mrb[0].mxu0
        %v1303 = vpop.f32.mrb[0].mxu0
        %v1304 = vadd.f32 0.0, %v1303
        %v1305 = vpop.f32.mrb[0].mxu0
        %1306 = vmatprep.mubr.bf16.mxu0 0
        %1307 = vmatmul.mubr.bf16.gmra.mrb[0].mxu0 %v1163
        %v1308 = vpop.f32.mrb[0].mxu0
        %v1309 = vadd.f32 0.0, %v1308
        %v1310 = vpop.f32.mrb[0].mxu0
        %v1311 = vpop.f32.mrb[0].mxu0
        %v1312 = vadd.f32 0.0, %v1311
        %v1313 = vpop.f32.mrb[0].mxu0
        %1314 = vmatprep.mubr.bf16.mxu0 0
        %1315 = vmatmul.mubr.bf16.gmra.mrb[0].mxu0 %v1166
        %v1316 = vpop.f32.mrb[0].mxu0
        %v1317 = vadd.f32 0.0, %v1316
        %v1318 = vpop.f32.mrb[0].mxu0
        %v1319 = vpop.f32.mrb[0].mxu0
        %v1320 = vadd.f32 0.0, %v1319
        %v1321 = vpop.f32.mrb[0].mxu0
        %1322 = vmatprep.mubr.bf16.mxu0 0
        %1323 = vmatmul.mubr.bf16.gmra.mrb[0].mxu0 %v1169
        %v1324 = vpop.f32.mrb[0].mxu0
        %v1325 = vadd.f32 0.0, %v1324
        %v1326 = vpop.f32.mrb[0].mxu0
        %v1327 = vpop.f32.mrb[0].mxu0
        %v1328 = vadd.f32 0.0, %v1327
        %v1329 = vpop.f32.mrb[0].mxu0
        %1330 = vmatprep.mubr.bf16.mxu0 0
        %1331 = vmatmul.mubr.bf16.gmra.mrb[0].mxu0 %v1172
        %v1332 = vpop.f32.mrb[0].mxu0
        %v1333 = vadd.f32 0.0, %v1332
        %v1334 = vpop.f32.mrb[0].mxu0
        %v1335 = vpop.f32.mrb[0].mxu0
        %v1336 = vadd.f32 0.0, %v1335
        %v1337 = vpop.f32.mrb[0].mxu0
        %1338 = vdwg.mxu0
        %v1340 = vsel %vm1125, %v1002, 0
        %v1343 = vsel %vm1125, %v1003, 0
        %v1346 = vsel %vm1125, %v1004, 0
        %v1349 = vsel %vm1125, %v1005, 0
        %v1352 = vsel %vm1125, %v1006, 0
        %v1355 = vsel %vm1125, %v1007, 0
        %v1358 = vsel %vm1125, %v1008, 0
        %v1361 = vsel %vm1125, %v1009, 0
        %v1364 = vsel %vm1125, %v1010, 0
        %v1367 = vsel %vm1125, %v1011, 0
        %v1370 = vsel %vm1125, %v1012, 0
        %v1373 = vsel %vm1125, %v1013, 0
        %v1376 = vsel %vm1125, %v1014, 0
        %v1379 = vsel %vm1125, %v1015, 0
        %v1382 = vsel %vm1125, %v1016, 0
        %v1385 = vsel %vm1174, %v1017, 0
        %1387 = vmatprep.subr.bf16.mxu0 0
        %1388 = vmatpush1.bf16.msra.mxu0 %v1385
        %1389 = vmatprep.subr.bf16.mxu0 0
        %1390 = vmatpush1.bf16.msra.mxu0 0
        %1391 = vmatprep.subr.bf16.mxu0 0
        %1392 = vmatpush1.bf16.msra.mxu0 0
        %1393 = vmatprep.subr.bf16.mxu0 0
        %1394 = vmatpush1.bf16.msra.mxu0 0
        %1395 = vmatprep.subr.bf16.mxu0 0
        %1396 = vmatpush1.bf16.msra.mxu0 0
        %1397 = vmatprep.subr.bf16.mxu0 0
        %1398 = vmatpush1.bf16.msra.mxu0 0
        %1399 = vmatprep.subr.bf16.mxu0 0
        %1400 = vmatpush1.bf16.msra.mxu0 0
        %1401 = vmatprep.subr.bf16.mxu0 0
        %1402 = vmatpush1.bf16.msra.mxu0 0
        %1403 = vmatprep.subr.bf16.mxu0 0
        %1404 = vmatpush1.bf16.msra.mxu0 0
        %1405 = vmatprep.subr.bf16.mxu0 0
        %1406 = vmatpush1.bf16.msra.mxu0 0
        %1407 = vmatprep.subr.bf16.mxu0 0
        %1408 = vmatpush1.bf16.msra.mxu0 0
        %1409 = vmatprep.subr.bf16.mxu0 0
        %1410 = vmatpush1.bf16.msra.mxu0 0
        %1411 = vmatprep.subr.bf16.mxu0 0
        %1412 = vmatpush1.bf16.msra.mxu0 0
        %1413 = vmatprep.subr.bf16.mxu0 0
        %1414 = vmatpush1.bf16.msra.mxu0 0
        %1415 = vmatprep.subr.bf16.mxu0 0
        %1416 = vmatpush1.bf16.msra.mxu0 0
        %1417 = vmatprep.subr.bf16.mxu0 0
        %1418 = vmatpush1.bf16.msra.mxu0 0
        %1419 = vmatprep.mubr.bf16.mxu0 0
        %1420 = vmatmul.mubr.bf16.gmra.mrb[0].mxu0 %v1127
        %v1421 = vpop.f32.mrb[0].mxu0
        %v1422 = vadd.f32 %v1213, %v1421
        %v1423 = vpop.f32.mrb[0].mxu0
        %v1424 = vpop.f32.mrb[0].mxu0
        %v1425 = vadd.f32 %v1216, %v1424
        %v1426 = vpop.f32.mrb[0].mxu0
        %1427 = vmatprep.mubr.bf16.mxu0 0
        %1428 = vmatmul.mubr.bf16.gmra.mrb[0].mxu0 %v1340
        %v1429 = vpop.f32.mrb[0].mxu0
        %v1430 = vadd.f32 %v1221, %v1429
        %v1431 = vpop.f32.mrb[0].mxu0
        %v1432 = vpop.f32.mrb[0].mxu0
        %v1433 = vadd.f32 %v1224, %v1432
        %v1434 = vpop.f32.mrb[0].mxu0
        %1435 = vmatprep.mubr.bf16.mxu0 0
        %1436 = vmatmul.mubr.bf16.gmra.mrb[0].mxu0 %v1343
        %v1437 = vpop.f32.mrb[0].mxu0
        %v1438 = vadd.f32 %v1229, %v1437
        %v1439 = vpop.f32.mrb[0].mxu0
        %v1440 = vpop.f32.mrb[0].mxu0
        %v1441 = vadd.f32 %v1232, %v1440
        %v1442 = vpop.f32.mrb[0].mxu0
        %1443 = vmatprep.mubr.bf16.mxu0 0
        %1444 = vmatmul.mubr.bf16.gmra.mrb[0].mxu0 %v1346
        %v1445 = vpop.f32.mrb[0].mxu0
        %v1446 = vadd.f32 %v1237, %v1445
        %v1447 = vpop.f32.mrb[0].mxu0
        %v1448 = vpop.f32.mrb[0].mxu0
        %v1449 = vadd.f32 %v1240, %v1448
        %v1450 = vpop.f32.mrb[0].mxu0
        %1451 = vmatprep.mubr.bf16.mxu0 0
        %1452 = vmatmul.mubr.bf16.gmra.mrb[0].mxu0 %v1349
        %v1453 = vpop.f32.mrb[0].mxu0
        %v1454 = vadd.f32 %v1245, %v1453
        %v1455 = vpop.f32.mrb[0].mxu0
        %v1456 = vpop.f32.mrb[0].mxu0
        %v1457 = vadd.f32 %v1248, %v1456
        %v1458 = vpop.f32.mrb[0].mxu0
        %1459 = vmatprep.mubr.bf16.mxu0 0
        %1460 = vmatmul.mubr.bf16.gmra.mrb[0].mxu0 %v1352
        %v1461 = vpop.f32.mrb[0].mxu0
        %v1462 = vadd.f32 %v1253, %v1461
        %v1463 = vpop.f32.mrb[0].mxu0
        %v1464 = vpop.f32.mrb[0].mxu0
        %v1465 = vadd.f32 %v1256, %v1464
        %v1466 = vpop.f32.mrb[0].mxu0
        %1467 = vmatprep.mubr.bf16.mxu0 0
        %1468 = vmatmul.mubr.bf16.gmra.mrb[0].mxu0 %v1355
        %v1469 = vpop.f32.mrb[0].mxu0
        %v1470 = vadd.f32 %v1261, %v1469
        %v1471 = vpop.f32.mrb[0].mxu0
        %v1472 = vpop.f32.mrb[0].mxu0
        %v1473 = vadd.f32 %v1264, %v1472
        %v1474 = vpop.f32.mrb[0].mxu0
        %1475 = vmatprep.mubr.bf16.mxu0 0
        %1476 = vmatmul.mubr.bf16.gmra.mrb[0].mxu0 %v1358
        %v1477 = vpop.f32.mrb[0].mxu0
        %v1478 = vadd.f32 %v1269, %v1477
        %v1479 = vpop.f32.mrb[0].mxu0
        %v1480 = vpop.f32.mrb[0].mxu0
        %v1481 = vadd.f32 %v1272, %v1480
        %v1482 = vpop.f32.mrb[0].mxu0
        %1483 = vmatprep.mubr.bf16.mxu0 0
        %1484 = vmatmul.mubr.bf16.gmra.mrb[0].mxu0 %v1361
        %v1485 = vpop.f32.mrb[0].mxu0
        %v1486 = vadd.f32 %v1277, %v1485
        %v1487 = vpop.f32.mrb[0].mxu0
        %v1488 = vpop.f32.mrb[0].mxu0
        %v1489 = vadd.f32 %v1280, %v1488
        %v1490 = vpop.f32.mrb[0].mxu0
        %1491 = vmatprep.mubr.bf16.mxu0 0
        %1492 = vmatmul.mubr.bf16.gmra.mrb[0].mxu0 %v1364
        %v1493 = vpop.f32.mrb[0].mxu0
        %v1494 = vadd.f32 %v1285, %v1493
        %v1495 = vpop.f32.mrb[0].mxu0
        %v1496 = vpop.f32.mrb[0].mxu0
        %v1497 = vadd.f32 %v1288, %v1496
        %v1498 = vpop.f32.mrb[0].mxu0
        %1499 = vmatprep.mubr.bf16.mxu0 0
        %1500 = vmatmul.mubr.bf16.gmra.mrb[0].mxu0 %v1367
        %v1501 = vpop.f32.mrb[0].mxu0
        %v1502 = vadd.f32 %v1293, %v1501
        %v1503 = vpop.f32.mrb[0].mxu0
        %v1504 = vpop.f32.mrb[0].mxu0
        %v1505 = vadd.f32 %v1296, %v1504
        %v1506 = vpop.f32.mrb[0].mxu0
        %1507 = vmatprep.mubr.bf16.mxu0 0
        %1508 = vmatmul.mubr.bf16.gmra.mrb[0].mxu0 %v1370
        %v1509 = vpop.f32.mrb[0].mxu0
        %v1510 = vadd.f32 %v1301, %v1509
        %v1511 = vpop.f32.mrb[0].mxu0
        %v1512 = vpop.f32.mrb[0].mxu0
        %v1513 = vadd.f32 %v1304, %v1512
        %v1514 = vpop.f32.mrb[0].mxu0
        %1515 = vmatprep.mubr.bf16.mxu0 0
        %1516 = vmatmul.mubr.bf16.gmra.mrb[0].mxu0 %v1373
        %v1517 = vpop.f32.mrb[0].mxu0
        %v1518 = vadd.f32 %v1309, %v1517
        %v1519 = vpop.f32.mrb[0].mxu0
        %v1520 = vpop.f32.mrb[0].mxu0
        %v1521 = vadd.f32 %v1312, %v1520
        %v1522 = vpop.f32.mrb[0].mxu0
        %1523 = vmatprep.mubr.bf16.mxu0 0
        %1524 = vmatmul.mubr.bf16.gmra.mrb[0].mxu0 %v1376
        %v1525 = vpop.f32.mrb[0].mxu0
        %v1526 = vadd.f32 %v1317, %v1525
        %v1527 = vpop.f32.mrb[0].mxu0
        %v1528 = vpop.f32.mrb[0].mxu0
        %v1529 = vadd.f32 %v1320, %v1528
        %v1530 = vpop.f32.mrb[0].mxu0
        %1531 = vmatprep.mubr.bf16.mxu0 0
        %1532 = vmatmul.mubr.bf16.gmra.mrb[0].mxu0 %v1379
        %v1533 = vpop.f32.mrb[0].mxu0
        %v1534 = vadd.f32 %v1325, %v1533
        %v1535 = vpop.f32.mrb[0].mxu0
        %v1536 = vpop.f32.mrb[0].mxu0
        %v1537 = vadd.f32 %v1328, %v1536
        %v1538 = vpop.f32.mrb[0].mxu0
        %1539 = vmatprep.mubr.bf16.mxu0 0
        %1540 = vmatmul.mubr.bf16.gmra.mrb[0].mxu0 %v1382
        %v1541 = vpop.f32.mrb[0].mxu0
        %v1542 = vadd.f32 %v1333, %v1541
        %v1543 = vpop.f32.mrb[0].mxu0
        %v1544 = vpop.f32.mrb[0].mxu0
        %v1545 = vadd.f32 %v1336, %v1544
        %v1546 = vpop.f32.mrb[0].mxu0
        %1547 = vdwg.mxu0
        %vm1549 = vcmask 1046528
        %v1550 = vrot.slane %v439, 1
        %v1551 = vrot.slane %v440, 1
        %v1552 = vsel %vm1549, %v1550, %v1551
        %v1553 = vrot.slane %v441, 1
        %v1554 = vsel %vm1549, %v1551, %v1553
        %v1555 = vrot.slane %v442, 1
        %v1556 = vsel %vm1549, %v1553, %v1555
        %v1557 = vrot.slane %v443, 1
        %v1558 = vsel %vm1549, %v1555, %v1557
        %v1559 = vrot.slane %v444, 1
        %v1560 = vsel %vm1549, %v1557, %v1559
        %v1561 = vrot.slane %v445, 1
        %v1562 = vsel %vm1549, %v1559, %v1561
        %v1563 = vrot.slane %v446, 1
        %v1564 = vsel %vm1549, %v1561, %v1563
        %v1565 = vrot.slane %v447, 1
        %v1566 = vsel %vm1549, %v1563, %v1565
        %v1567 = vrot.slane %v448, 1
        %v1568 = vsel %vm1549, %v1565, %v1567
        %v1569 = vrot.slane %v449, 1
        %v1570 = vsel %vm1549, %v1567, %v1569
        %v1571 = vrot.slane %v450, 1
        %v1572 = vsel %vm1549, %v1569, %v1571
        %v1573 = vrot.slane %v451, 1
        %v1574 = vsel %vm1549, %v1571, %v1573
        %v1575 = vrot.slane %v452, 1
        %v1576 = vsel %vm1549, %v1573, %v1575
        %v1577 = vrot.slane %v453, 1
        %v1578 = vsel %vm1549, %v1575, %v1577
        %v1579 = vrot.slane %v454, 1
        %v1580 = vsel %vm1549, %v1577, %v1579
        %v1581 = vrot.slane %v455, 1
        %v1582 = vsel %vm1549, %v1579, %v1581
        %v1583 = vrot.slane %v456, 1
        %v1584 = vsel %vm1549, %v1581, %v1583
        %v1585 = vrot.slane %v457, 1
        %v1586 = vsel %vm1549, %v1583, %v1585
        %v1587 = vrot.slane %v458, 1
        %v1588 = vsel %vm1549, %v1585, %v1587
        %v1589 = vrot.slane %v459, 1
        %v1590 = vsel %vm1549, %v1587, %v1589
        %v1591 = vrot.slane %v460, 1
        %v1592 = vsel %vm1549, %v1589, %v1591
        %v1593 = vrot.slane %v461, 1
        %v1594 = vsel %vm1549, %v1591, %v1593
        %v1595 = vrot.slane %v462, 1
        %v1596 = vsel %vm1549, %v1593, %v1595
        %v1597 = vrot.slane %v463, 1
        %v1598 = vsel %vm1549, %v1595, %v1597
        %v1599 = vrot.slane %v464, 1
        %v1600 = vsel %vm1549, %v1597, %v1599
        %v1601 = vrot.slane %v465, 1
        %v1602 = vsel %vm1549, %v1599, %v1601
        %v1603 = vrot.slane %v466, 1
        %v1604 = vsel %vm1549, %v1601, %v1603
        %v1605 = vrot.slane %v467, 1
        %v1606 = vsel %vm1549, %v1603, %v1605
        %v1607 = vrot.slane %v468, 1
        %v1608 = vsel %vm1549, %v1605, %v1607
        %v1609 = vrot.slane %v469, 1
        %v1610 = vsel %vm1549, %v1607, %v1609
        %v1642 = vsel %vm1549, 0.0, %v1550
        %vm1643 = vcmp.le.f32.partialorder %v665, 14.5
        %vm1644 = vcmp.le.f32.partialorder %v666, 14.5
        %vm1645 = vcmp.le.f32.partialorder %v667, 14.5
        %vm1646 = vcmp.le.f32.partialorder %v668, 14.5
        %vm1647 = vcmp.le.f32.partialorder %v669, 14.5
        %vm1648 = vcmp.le.f32.partialorder %v670, 14.5
        %vm1649 = vcmp.le.f32.partialorder %v671, 14.5
        %vm1650 = vcmp.le.f32.partialorder %v672, 14.5
        %vm1651 = vcmp.le.f32.partialorder %v673, 14.5
        %vm1652 = vcmp.le.f32.partialorder %v674, 14.5
        %vm1653 = vcmp.le.f32.partialorder %v675, 14.5
        %vm1654 = vcmp.le.f32.partialorder %v676, 14.5
        %vm1655 = vcmp.le.f32.partialorder %v677, 14.5
        %vm1656 = vcmp.le.f32.partialorder %v678, 14.5
        %vm1657 = vcmp.le.f32.partialorder %v679, 14.5
        %vm1658 = vcmp.le.f32.partialorder %v680, 14.5
        %vm1659 = vcmp.le.f32.partialorder %v681, 14.5
        %vm1660 = vcmp.le.f32.partialorder %v682, 14.5
        %vm1661 = vcmp.le.f32.partialorder %v683, 14.5
        %vm1662 = vcmp.le.f32.partialorder %v684, 14.5
        %vm1663 = vcmp.le.f32.partialorder %v685, 14.5
        %vm1664 = vcmp.le.f32.partialorder %v686, 14.5
        %vm1665 = vcmp.le.f32.partialorder %v687, 14.5
        %vm1666 = vcmp.le.f32.partialorder %v688, 14.5
        %vm1667 = vcmp.le.f32.partialorder %v689, 14.5
        %vm1668 = vcmp.le.f32.partialorder %v690, 14.5
        %vm1669 = vcmp.le.f32.partialorder %v691, 14.5
        %vm1670 = vcmp.le.f32.partialorder %v692, 14.5
        %vm1671 = vcmp.le.f32.partialorder %v693, 14.5
        %vm1672 = vcmp.le.f32.partialorder %v694, 14.5
        %vm1673 = vcmp.le.f32.partialorder %v695, 14.5
        %vm1674 = vcmp.le.f32.partialorder %v696, 14.5
        %vm1675 = vmand %vm818, %vm1644
        %vm1676 = vmand %vm819, %vm1645
        %vm1677 = vmand %vm820, %vm1646
        %vm1678 = vmand %vm821, %vm1647
        %vm1679 = vmand %vm822, %vm1648
        %vm1680 = vmand %vm823, %vm1649
        %vm1681 = vmand %vm824, %vm1650
        %vm1682 = vmand %vm825, %vm1651
        %vm1683 = vmand %vm826, %vm1652
        %vm1684 = vmand %vm827, %vm1653
        %vm1685 = vmand %vm828, %vm1654
        %vm1686 = vmand %vm829, %vm1655
        %vm1687 = vmand %vm830, %vm1656
        %vm1688 = vmand %vm831, %vm1657
        %vm1689 = vmand %vm832, %vm1658
        %vm1690 = vmand %vm833, %vm1659
        %vm1691 = vmand %vm834, %vm1660
        %vm1692 = vmand %vm835, %vm1661
        %vm1693 = vmand %vm836, %vm1662
        %vm1694 = vmand %vm837, %vm1663
        %vm1695 = vmand %vm838, %vm1664
        %vm1696 = vmand %vm839, %vm1665
        %vm1697 = vmand %vm840, %vm1666
        %vm1698 = vmand %vm841, %vm1667
        %vm1699 = vmand %vm842, %vm1668
        %vm1700 = vmand %vm843, %vm1669
        %vm1701 = vmand %vm844, %vm1670
        %vm1702 = vmand %vm845, %vm1671
        %vm1703 = vmand %vm846, %vm1672
        %vm1704 = vmand %vm847, %vm1673
        %vm1705 = vmand %vm848, %vm1674
        %v1706 = vsel %vm1675, 1, 0
        %v1707 = vsel %vm1676, 1, 0
        %v1708 = vsel %vm1677, 1, 0
        %v1709 = vsel %vm1678, 1, 0
        %v1710 = vsel %vm1679, 1, 0
        %v1711 = vsel %vm1680, 1, 0
        %v1712 = vsel %vm1681, 1, 0
        %v1713 = vsel %vm1682, 1, 0
        %v1714 = vsel %vm1683, 1, 0
        %v1715 = vsel %vm1684, 1, 0
        %v1716 = vsel %vm1685, 1, 0
        %v1717 = vsel %vm1686, 1, 0
        %v1718 = vsel %vm1687, 1, 0
        %v1719 = vsel %vm1688, 1, 0
        %v1720 = vsel %vm1689, 1, 0
        %v1721 = vsel %vm1690, 1, 0
        %v1722 = vsel %vm1691, 1, 0
        %v1723 = vsel %vm1692, 1, 0
        %v1724 = vsel %vm1693, 1, 0
        %v1725 = vsel %vm1694, 1, 0
        %v1726 = vsel %vm1695, 1, 0
        %v1727 = vsel %vm1696, 1, 0
        %v1728 = vsel %vm1697, 1, 0
        %v1729 = vsel %vm1698, 1, 0
        %v1730 = vsel %vm1699, 1, 0
        %v1731 = vsel %vm1700, 1, 0
        %v1732 = vsel %vm1701, 1, 0
        %v1733 = vsel %vm1702, 1, 0
        %v1734 = vsel %vm1703, 1, 0
        %v1735 = vsel %vm1704, 1, 0
        %v1736 = vsel %vm1705, 1, 0
        %vm1737 = vcmp.eq.s32.totalorder %v1706, 1
        %vm1738 = vcmp.eq.s32.totalorder %v1707, 1
        %vm1739 = vcmp.eq.s32.totalorder %v1708, 1
        %vm1740 = vcmp.eq.s32.totalorder %v1709, 1
        %vm1741 = vcmp.eq.s32.totalorder %v1710, 1
        %vm1742 = vcmp.eq.s32.totalorder %v1711, 1
        %vm1743 = vcmp.eq.s32.totalorder %v1712, 1
        %vm1744 = vcmp.eq.s32.totalorder %v1713, 1
        %vm1745 = vcmp.eq.s32.totalorder %v1714, 1
        %vm1746 = vcmp.eq.s32.totalorder %v1715, 1
        %vm1747 = vcmp.eq.s32.totalorder %v1716, 1
        %vm1748 = vcmp.eq.s32.totalorder %v1717, 1
        %vm1749 = vcmp.eq.s32.totalorder %v1718, 1
        %vm1750 = vcmp.eq.s32.totalorder %v1719, 1
        %vm1751 = vcmp.eq.s32.totalorder %v1720, 1
        %vm1752 = vcmp.eq.s32.totalorder %v1721, 1
        %vm1753 = vcmp.eq.s32.totalorder %v1722, 1
        %vm1754 = vcmp.eq.s32.totalorder %v1723, 1
        %vm1755 = vcmp.eq.s32.totalorder %v1724, 1
        %vm1756 = vcmp.eq.s32.totalorder %v1725, 1
        %vm1757 = vcmp.eq.s32.totalorder %v1726, 1
        %vm1758 = vcmp.eq.s32.totalorder %v1727, 1
        %vm1759 = vcmp.eq.s32.totalorder %v1728, 1
        %vm1760 = vcmp.eq.s32.totalorder %v1729, 1
        %vm1761 = vcmp.eq.s32.totalorder %v1730, 1
        %vm1762 = vcmp.eq.s32.totalorder %v1731, 1
        %vm1763 = vcmp.eq.s32.totalorder %v1732, 1
        %vm1764 = vcmp.eq.s32.totalorder %v1733, 1
        %vm1765 = vcmp.eq.s32.totalorder %v1734, 1
        %vm1766 = vcmp.eq.s32.totalorder %v1735, 1
        %vm1767 = vcmp.eq.s32.totalorder %v1736, 1
        %v1768 = vsel %vm1737, %v1642, 0.0
        %v1769 = vsel %vm1738, %v1552, 0.0
        %v1770 = vsel %vm1739, %v1554, 0.0
        %v1771 = vsel %vm1740, %v1556, 0.0
        %v1772 = vsel %vm1741, %v1558, 0.0
        %v1773 = vsel %vm1742, %v1560, 0.0
        %v1774 = vsel %vm1743, %v1562, 0.0
        %v1775 = vsel %vm1744, %v1564, 0.0
        %v1776 = vsel %vm1745, %v1566, 0.0
        %v1777 = vsel %vm1746, %v1568, 0.0
        %v1778 = vsel %vm1747, %v1570, 0.0
        %v1779 = vsel %vm1748, %v1572, 0.0
        %v1780 = vsel %vm1749, %v1574, 0.0
        %v1781 = vsel %vm1750, %v1576, 0.0
        %v1782 = vsel %vm1751, %v1578, 0.0
        %v1783 = vsel %vm1752, %v1580, 0.0
        %v1784 = vsel %vm1753, %v1582, 0.0
        %v1785 = vsel %vm1754, %v1584, 0.0
        %v1786 = vsel %vm1755, %v1586, 0.0
        %v1787 = vsel %vm1756, %v1588, 0.0
        %v1788 = vsel %vm1757, %v1590, 0.0
        %v1789 = vsel %vm1758, %v1592, 0.0
        %v1790 = vsel %vm1759, %v1594, 0.0
        %v1791 = vsel %vm1760, %v1596, 0.0
        %v1792 = vsel %vm1761, %v1598, 0.0
        %v1793 = vsel %vm1762, %v1600, 0.0
        %v1794 = vsel %vm1763, %v1602, 0.0
        %v1795 = vsel %vm1764, %v1604, 0.0
        %v1796 = vsel %vm1765, %v1606, 0.0
        %v1797 = vsel %vm1766, %v1608, 0.0
        %v1798 = vsel %vm1767, %v1610, 0.0
        %v1799 = vpack.c.bf16 %v1768, 0.0
        %v1800 = vpack.c.bf16 %v1770, %v1769
        %v1801 = vpack.c.bf16 %v1772, %v1771
        %v1802 = vpack.c.bf16 %v1774, %v1773
        %v1803 = vpack.c.bf16 %v1776, %v1775
        %v1804 = vpack.c.bf16 %v1778, %v1777
        %v1805 = vpack.c.bf16 %v1780, %v1779
        %v1806 = vpack.c.bf16 %v1782, %v1781
        %v1807 = vpack.c.bf16 %v1784, %v1783
        %v1808 = vpack.c.bf16 %v1786, %v1785
        %v1809 = vpack.c.bf16 %v1788, %v1787
        %v1810 = vpack.c.bf16 %v1790, %v1789
        %v1811 = vpack.c.bf16 %v1792, %v1791
        %v1812 = vpack.c.bf16 %v1794, %v1793
        %v1813 = vpack.c.bf16 %v1796, %v1795
        %v1814 = vpack.c.bf16 %v1798, %v1797
        %s1815 = scalar_lea.vmem %s1, 4
        %v1816 = vld [vmem:[%s1815] sm:$0x3]
        %v1818 = vsel %vm1125, %v1799, 0
        %v1821 = vsel %vm1125, %v1800, 0
        %v1824 = vsel %vm1125, %v1801, 0
        %v1827 = vsel %vm1125, %v1802, 0
        %v1830 = vsel %vm1125, %v1803, 0
        %v1833 = vsel %vm1125, %v1804, 0
        %v1836 = vsel %vm1125, %v1805, 0
        %v1839 = vsel %vm1125, %v1806, 0
        %v1842 = vsel %vm1125, %v1807, 0
        %v1845 = vsel %vm1125, %v1808, 0
        %v1848 = vsel %vm1125, %v1809, 0
        %v1851 = vsel %vm1125, %v1810, 0
        %v1854 = vsel %vm1125, %v1811, 0
        %v1857 = vsel %vm1125, %v1812, 0
        %v1860 = vsel %vm1125, %v1813, 0
        %v1863 = vsel %vm1125, %v1814, 0
        %v1866 = vsel %vm1174, %v1816, 0
        %1868 = vmatprep.subr.bf16.mxu0 0
        %1869 = vmatpush1.bf16.msra.mxu0 %v1866
        %1870 = vmatprep.subr.bf16.mxu0 0
        %1871 = vmatpush1.bf16.msra.mxu0 0
        %1872 = vmatprep.subr.bf16.mxu0 0
        %1873 = vmatpush1.bf16.msra.mxu0 0
        %1874 = vmatprep.subr.bf16.mxu0 0
        %1875 = vmatpush1.bf16.msra.mxu0 0
        %1876 = vmatprep.subr.bf16.mxu0 0
        %1877 = vmatpush1.bf16.msra.mxu0 0
        %1878 = vmatprep.subr.bf16.mxu0 0
        %1879 = vmatpush1.bf16.msra.mxu0 0
        %1880 = vmatprep.subr.bf16.mxu0 0
        %1881 = vmatpush1.bf16.msra.mxu0 0
        %1882 = vmatprep.subr.bf16.mxu0 0
        %1883 = vmatpush1.bf16.msra.mxu0 0
        %1884 = vmatprep.subr.bf16.mxu0 0
        %1885 = vmatpush1.bf16.msra.mxu0 0
        %1886 = vmatprep.subr.bf16.mxu0 0
        %1887 = vmatpush1.bf16.msra.mxu0 0
        %1888 = vmatprep.subr.bf16.mxu0 0
        %1889 = vmatpush1.bf16.msra.mxu0 0
        %1890 = vmatprep.subr.bf16.mxu0 0
        %1891 = vmatpush1.bf16.msra.mxu0 0
        %1892 = vmatprep.subr.bf16.mxu0 0
        %1893 = vmatpush1.bf16.msra.mxu0 0
        %1894 = vmatprep.subr.bf16.mxu0 0
        %1895 = vmatpush1.bf16.msra.mxu0 0
        %1896 = vmatprep.subr.bf16.mxu0 0
        %1897 = vmatpush1.bf16.msra.mxu0 0
        %1898 = vmatprep.subr.bf16.mxu0 0
        %1899 = vmatpush1.bf16.msra.mxu0 0
        %1900 = vmatprep.mubr.bf16.mxu0 0
        %1901 = vmatmul.mubr.bf16.gmra.mrb[0].mxu0 %v1818
        %v1902 = vpop.f32.mrb[0].mxu0
        %v1903 = vadd.f32 0.0, %v1902
        %v1904 = vpop.f32.mrb[0].mxu0
        %v1905 = vpop.f32.mrb[0].mxu0
        %v1906 = vadd.f32 0.0, %v1905
        %v1907 = vpop.f32.mrb[0].mxu0
        %1908 = vmatprep.mubr.bf16.mxu0 0
        %1909 = vmatmul.mubr.bf16.gmra.mrb[0].mxu0 %v1821
        %v1910 = vpop.f32.mrb[0].mxu0
        %v1911 = vadd.f32 0.0, %v1910
        %v1912 = vpop.f32.mrb[0].mxu0
        %v1913 = vpop.f32.mrb[0].mxu0
        %v1914 = vadd.f32 0.0, %v1913
        %v1915 = vpop.f32.mrb[0].mxu0
        %1916 = vmatprep.mubr.bf16.mxu0 0
        %1917 = vmatmul.mubr.bf16.gmra.mrb[0].mxu0 %v1824
        %v1918 = vpop.f32.mrb[0].mxu0
        %v1919 = vadd.f32 0.0, %v1918
        %v1920 = vpop.f32.mrb[0].mxu0
        %v1921 = vpop.f32.mrb[0].mxu0
        %v1922 = vadd.f32 0.0, %v1921
        %v1923 = vpop.f32.mrb[0].mxu0
        %1924 = vmatprep.mubr.bf16.mxu0 0
        %1925 = vmatmul.mubr.bf16.gmra.mrb[0].mxu0 %v1827
        %v1926 = vpop.f32.mrb[0].mxu0
        %v1927 = vadd.f32 0.0, %v1926
        %v1928 = vpop.f32.mrb[0].mxu0
        %v1929 = vpop.f32.mrb[0].mxu0
        %v1930 = vadd.f32 0.0, %v1929
        %v1931 = vpop.f32.mrb[0].mxu0
        %1932 = vmatprep.mubr.bf16.mxu0 0
        %1933 = vmatmul.mubr.bf16.gmra.mrb[0].mxu0 %v1830
        %v1934 = vpop.f32.mrb[0].mxu0
        %v1935 = vadd.f32 0.0, %v1934
        %v1936 = vpop.f32.mrb[0].mxu0
        %v1937 = vpop.f32.mrb[0].mxu0
        %v1938 = vadd.f32 0.0, %v1937
        %v1939 = vpop.f32.mrb[0].mxu0
        %1940 = vmatprep.mubr.bf16.mxu0 0
        %1941 = vmatmul.mubr.bf16.gmra.mrb[0].mxu0 %v1833
        %v1942 = vpop.f32.mrb[0].mxu0
        %v1943 = vadd.f32 0.0, %v1942
        %v1944 = vpop.f32.mrb[0].mxu0
        %v1945 = vpop.f32.mrb[0].mxu0
        %v1946 = vadd.f32 0.0, %v1945
        %v1947 = vpop.f32.mrb[0].mxu0
        %1948 = vmatprep.mubr.bf16.mxu0 0
        %1949 = vmatmul.mubr.bf16.gmra.mrb[0].mxu0 %v1836
        %v1950 = vpop.f32.mrb[0].mxu0
        %v1951 = vadd.f32 0.0, %v1950
        %v1952 = vpop.f32.mrb[0].mxu0
        %v1953 = vpop.f32.mrb[0].mxu0
        %v1954 = vadd.f32 0.0, %v1953
        %v1955 = vpop.f32.mrb[0].mxu0
        %1956 = vmatprep.mubr.bf16.mxu0 0
        %1957 = vmatmul.mubr.bf16.gmra.mrb[0].mxu0 %v1839
        %v1958 = vpop.f32.mrb[0].mxu0
        %v1959 = vadd.f32 0.0, %v1958
        %v1960 = vpop.f32.mrb[0].mxu0
        %v1961 = vpop.f32.mrb[0].mxu0
        %v1962 = vadd.f32 0.0, %v1961
        %v1963 = vpop.f32.mrb[0].mxu0
        %1964 = vmatprep.mubr.bf16.mxu0 0
        %1965 = vmatmul.mubr.bf16.gmra.mrb[0].mxu0 %v1842
        %v1966 = vpop.f32.mrb[0].mxu0
        %v1967 = vadd.f32 0.0, %v1966
        %v1968 = vpop.f32.mrb[0].mxu0
        %v1969 = vpop.f32.mrb[0].mxu0
        %v1970 = vadd.f32 0.0, %v1969
        %v1971 = vpop.f32.mrb[0].mxu0
        %1972 = vmatprep.mubr.bf16.mxu0 0
        %1973 = vmatmul.mubr.bf16.gmra.mrb[0].mxu0 %v1845
        %v1974 = vpop.f32.mrb[0].mxu0
        %v1975 = vadd.f32 0.0, %v1974
        %v1976 = vpop.f32.mrb[0].mxu0
        %v1977 = vpop.f32.mrb[0].mxu0
        %v1978 = vadd.f32 0.0, %v1977
        %v1979 = vpop.f32.mrb[0].mxu0
        %1980 = vmatprep.mubr.bf16.mxu0 0
        %1981 = vmatmul.mubr.bf16.gmra.mrb[0].mxu0 %v1848
        %v1982 = vpop.f32.mrb[0].mxu0
        %v1983 = vadd.f32 0.0, %v1982
        %v1984 = vpop.f32.mrb[0].mxu0
        %v1985 = vpop.f32.mrb[0].mxu0
        %v1986 = vadd.f32 0.0, %v1985
        %v1987 = vpop.f32.mrb[0].mxu0
        %1988 = vmatprep.mubr.bf16.mxu0 0
        %1989 = vmatmul.mubr.bf16.gmra.mrb[0].mxu0 %v1851
        %v1990 = vpop.f32.mrb[0].mxu0
        %v1991 = vadd.f32 0.0, %v1990
        %v1992 = vpop.f32.mrb[0].mxu0
        %v1993 = vpop.f32.mrb[0].mxu0
        %v1994 = vadd.f32 0.0, %v1993
        %v1995 = vpop.f32.mrb[0].mxu0
        %1996 = vmatprep.mubr.bf16.mxu0 0
        %1997 = vmatmul.mubr.bf16.gmra.mrb[0].mxu0 %v1854
        %v1998 = vpop.f32.mrb[0].mxu0
        %v1999 = vadd.f32 0.0, %v1998
        %v2000 = vpop.f32.mrb[0].mxu0
        %v2001 = vpop.f32.mrb[0].mxu0
        %v2002 = vadd.f32 0.0, %v2001
        %v2003 = vpop.f32.mrb[0].mxu0
        %2004 = vmatprep.mubr.bf16.mxu0 0
        %2005 = vmatmul.mubr.bf16.gmra.mrb[0].mxu0 %v1857
        %v2006 = vpop.f32.mrb[0].mxu0
        %v2007 = vadd.f32 0.0, %v2006
        %v2008 = vpop.f32.mrb[0].mxu0
        %v2009 = vpop.f32.mrb[0].mxu0
        %v2010 = vadd.f32 0.0, %v2009
        %v2011 = vpop.f32.mrb[0].mxu0
        %2012 = vmatprep.mubr.bf16.mxu0 0
        %2013 = vmatmul.mubr.bf16.gmra.mrb[0].mxu0 %v1860
        %v2014 = vpop.f32.mrb[0].mxu0
        %v2015 = vadd.f32 0.0, %v2014
        %v2016 = vpop.f32.mrb[0].mxu0
        %v2017 = vpop.f32.mrb[0].mxu0
        %v2018 = vadd.f32 0.0, %v2017
        %v2019 = vpop.f32.mrb[0].mxu0
        %2020 = vmatprep.mubr.bf16.mxu0 0
        %2021 = vmatmul.mubr.bf16.gmra.mrb[0].mxu0 %v1863
        %v2022 = vpop.f32.mrb[0].mxu0
        %v2023 = vadd.f32 0.0, %v2022
        %v2024 = vpop.f32.mrb[0].mxu0
        %v2025 = vpop.f32.mrb[0].mxu0
        %v2026 = vadd.f32 0.0, %v2025
        %v2027 = vpop.f32.mrb[0].mxu0
        %2028 = vdwg.mxu0
        %v2029 = vadd.f32 %v1422, %v1903
        %v2030 = vadd.f32 %v1425, %v1906
        %v2031 = vadd.f32 %v1430, %v1911
        %v2032 = vadd.f32 %v1433, %v1914
        %v2033 = vadd.f32 %v1438, %v1919
        %v2034 = vadd.f32 %v1441, %v1922
        %v2035 = vadd.f32 %v1446, %v1927
        %v2036 = vadd.f32 %v1449, %v1930
        %v2037 = vadd.f32 %v1454, %v1935
        %v2038 = vadd.f32 %v1457, %v1938
        %v2039 = vadd.f32 %v1462, %v1943
        %v2040 = vadd.f32 %v1465, %v1946
        %v2041 = vadd.f32 %v1470, %v1951
        %v2042 = vadd.f32 %v1473, %v1954
        %v2043 = vadd.f32 %v1478, %v1959
        %v2044 = vadd.f32 %v1481, %v1962
        %v2045 = vadd.f32 %v1486, %v1967
        %v2046 = vadd.f32 %v1489, %v1970
        %v2047 = vadd.f32 %v1494, %v1975
        %v2048 = vadd.f32 %v1497, %v1978
        %v2049 = vadd.f32 %v1502, %v1983
        %v2050 = vadd.f32 %v1505, %v1986
        %v2051 = vadd.f32 %v1510, %v1991
        %v2052 = vadd.f32 %v1513, %v1994
        %v2053 = vadd.f32 %v1518, %v1999
        %v2054 = vadd.f32 %v1521, %v2002
        %v2055 = vadd.f32 %v1526, %v2007
        %v2056 = vadd.f32 %v1529, %v2010
        %v2057 = vadd.f32 %v1534, %v2015
        %v2058 = vadd.f32 %v1537, %v2018
        %v2059 = vadd.f32 %v1542, %v2023
        %v2060 = vadd.f32 %v1545, %v2026
        %v2062 = vrot.slane %v469, 7
        %v2063 = vsel %vm727, %v785, %v2062
        %v2064 = vrot.slane %v470, 7
        %v2065 = vsel %vm727, %v2062, %v2064
        %v2068 = vsel %vm849, 1, 0
        %v2069 = vsel %vm850, 1, 0
        %v2070 = vsel %vm851, 1, 0
        %v2071 = vsel %vm852, 1, 0
        %v2072 = vsel %vm853, 1, 0
        %v2073 = vsel %vm854, 1, 0
        %v2074 = vsel %vm855, 1, 0
        %v2075 = vsel %vm856, 1, 0
        %v2076 = vsel %vm857, 1, 0
        %v2077 = vsel %vm858, 1, 0
        %v2078 = vsel %vm859, 1, 0
        %v2079 = vsel %vm860, 1, 0
        %v2080 = vsel %vm861, 1, 0
        %v2081 = vsel %vm862, 1, 0
        %v2082 = vsel %vm863, 1, 0
        %v2083 = vsel %vm864, 1, 0
        %v2084 = vsel %vm865, 1, 0
        %v2085 = vsel %vm866, 1, 0
        %v2086 = vsel %vm867, 1, 0
        %v2087 = vsel %vm868, 1, 0
        %v2088 = vsel %vm869, 1, 0
        %v2089 = vsel %vm870, 1, 0
        %v2090 = vsel %vm871, 1, 0
        %v2091 = vsel %vm872, 1, 0
        %v2092 = vsel %vm873, 1, 0
        %v2093 = vsel %vm874, 1, 0
        %v2094 = vsel %vm875, 1, 0
        %v2095 = vsel %vm876, 1, 0
        %v2096 = vsel %vm877, 1, 0
        %v2097 = vsel %vm878, 1, 0
        %v2098 = vsel %vm879, 1, 0
        %v2099 = vsel %vm880, 1, 0
        %vm2100 = vcmp.eq.s32.totalorder %v2068, 1
        %vm2101 = vcmp.eq.s32.totalorder %v2069, 1
        %vm2102 = vcmp.eq.s32.totalorder %v2070, 1
        %vm2103 = vcmp.eq.s32.totalorder %v2071, 1
        %vm2104 = vcmp.eq.s32.totalorder %v2072, 1
        %vm2105 = vcmp.eq.s32.totalorder %v2073, 1
        %vm2106 = vcmp.eq.s32.totalorder %v2074, 1
        %vm2107 = vcmp.eq.s32.totalorder %v2075, 1
        %vm2108 = vcmp.eq.s32.totalorder %v2076, 1
        %vm2109 = vcmp.eq.s32.totalorder %v2077, 1
        %vm2110 = vcmp.eq.s32.totalorder %v2078, 1
        %vm2111 = vcmp.eq.s32.totalorder %v2079, 1
        %vm2112 = vcmp.eq.s32.totalorder %v2080, 1
        %vm2113 = vcmp.eq.s32.totalorder %v2081, 1
        %vm2114 = vcmp.eq.s32.totalorder %v2082, 1
        %vm2115 = vcmp.eq.s32.totalorder %v2083, 1
        %vm2116 = vcmp.eq.s32.totalorder %v2084, 1
        %vm2117 = vcmp.eq.s32.totalorder %v2085, 1
        %vm2118 = vcmp.eq.s32.totalorder %v2086, 1
        %vm2119 = vcmp.eq.s32.totalorder %v2087, 1
        %vm2120 = vcmp.eq.s32.totalorder %v2088, 1
        %vm2121 = vcmp.eq.s32.totalorder %v2089, 1
        %vm2122 = vcmp.eq.s32.totalorder %v2090, 1
        %vm2123 = vcmp.eq.s32.totalorder %v2091, 1
        %vm2124 = vcmp.eq.s32.totalorder %v2092, 1
        %vm2125 = vcmp.eq.s32.totalorder %v2093, 1
        %vm2126 = vcmp.eq.s32.totalorder %v2094, 1
        %vm2127 = vcmp.eq.s32.totalorder %v2095, 1
        %vm2128 = vcmp.eq.s32.totalorder %v2096, 1
        %vm2129 = vcmp.eq.s32.totalorder %v2097, 1
        %vm2130 = vcmp.eq.s32.totalorder %v2098, 1
        %vm2131 = vcmp.eq.s32.totalorder %v2099, 1
        %v2132 = vsel %vm2100, %v817, 0.0
        %v2133 = vsel %vm2101, %v730, 0.0
        %v2134 = vsel %vm2102, %v732, 0.0
        %v2135 = vsel %vm2103, %v734, 0.0
        %v2136 = vsel %vm2104, %v736, 0.0
        %v2137 = vsel %vm2105, %v738, 0.0
        %v2138 = vsel %vm2106, %v740, 0.0
        %v2139 = vsel %vm2107, %v742, 0.0
        %v2140 = vsel %vm2108, %v744, 0.0
        %v2141 = vsel %vm2109, %v746, 0.0
        %v2142 = vsel %vm2110, %v748, 0.0
        %v2143 = vsel %vm2111, %v750, 0.0
        %v2144 = vsel %vm2112, %v752, 0.0
        %v2145 = vsel %vm2113, %v754, 0.0
        %v2146 = vsel %vm2114, %v756, 0.0
        %v2147 = vsel %vm2115, %v758, 0.0
        %v2148 = vsel %vm2116, %v760, 0.0
        %v2149 = vsel %vm2117, %v762, 0.0
        %v2150 = vsel %vm2118, %v764, 0.0
        %v2151 = vsel %vm2119, %v766, 0.0
        %v2152 = vsel %vm2120, %v768, 0.0
        %v2153 = vsel %vm2121, %v770, 0.0
        %v2154 = vsel %vm2122, %v772, 0.0
        %v2155 = vsel %vm2123, %v774, 0.0
        %v2156 = vsel %vm2124, %v776, 0.0
        %v2157 = vsel %vm2125, %v778, 0.0
        %v2158 = vsel %vm2126, %v780, 0.0
        %v2159 = vsel %vm2127, %v782, 0.0
        %v2160 = vsel %vm2128, %v784, 0.0
        %v2161 = vsel %vm2129, %v786, 0.0
        %v2162 = vsel %vm2130, %v2063, 0.0
        %v2163 = vsel %vm2131, %v2065, 0.0
        %v2164 = vpack.c.bf16 %v2133, %v2132
        %v2165 = vpack.c.bf16 %v2135, %v2134
        %v2166 = vpack.c.bf16 %v2137, %v2136
        %v2167 = vpack.c.bf16 %v2139, %v2138
        %v2168 = vpack.c.bf16 %v2141, %v2140
        %v2169 = vpack.c.bf16 %v2143, %v2142
        %v2170 = vpack.c.bf16 %v2145, %v2144
        %v2171 = vpack.c.bf16 %v2147, %v2146
        %v2172 = vpack.c.bf16 %v2149, %v2148
        %v2173 = vpack.c.bf16 %v2151, %v2150
        %v2174 = vpack.c.bf16 %v2153, %v2152
        %v2175 = vpack.c.bf16 %v2155, %v2154
        %v2176 = vpack.c.bf16 %v2157, %v2156
        %v2177 = vpack.c.bf16 %v2159, %v2158
        %v2178 = vpack.c.bf16 %v2161, %v2160
        %v2179 = vpack.c.bf16 %v2163, %v2162
        %s2180 = scalar_lea.vmem %s1, 6
        %v2181 = vld [vmem:[%s2180] sm:$0x3]
        %v2183 = vsel %vm1125, %v2164, 0
        %v2186 = vsel %vm1125, %v2165, 0
        %v2189 = vsel %vm1125, %v2166, 0
        %v2192 = vsel %vm1125, %v2167, 0
        %v2195 = vsel %vm1125, %v2168, 0
        %v2198 = vsel %vm1125, %v2169, 0
        %v2201 = vsel %vm1125, %v2170, 0
        %v2204 = vsel %vm1125, %v2171, 0
        %v2207 = vsel %vm1125, %v2172, 0
        %v2210 = vsel %vm1125, %v2173, 0
        %v2213 = vsel %vm1125, %v2174, 0
        %v2216 = vsel %vm1125, %v2175, 0
        %v2219 = vsel %vm1125, %v2176, 0
        %v2222 = vsel %vm1125, %v2177, 0
        %v2225 = vsel %vm1125, %v2178, 0
        %v2228 = vsel %vm1125, %v2179, 0
        %v2231 = vsel %vm1174, %v2181, 0
        %2233 = vmatprep.subr.bf16.mxu0 0
        %2234 = vmatpush1.bf16.msra.mxu0 %v2231
        %2235 = vmatprep.subr.bf16.mxu0 0
        %2236 = vmatpush1.bf16.msra.mxu0 0
        %2237 = vmatprep.subr.bf16.mxu0 0
        %2238 = vmatpush1.bf16.msra.mxu0 0
        %2239 = vmatprep.subr.bf16.mxu0 0
        %2240 = vmatpush1.bf16.msra.mxu0 0
        %2241 = vmatprep.subr.bf16.mxu0 0
        %2242 = vmatpush1.bf16.msra.mxu0 0
        %2243 = vmatprep.subr.bf16.mxu0 0
        %2244 = vmatpush1.bf16.msra.mxu0 0
        %2245 = vmatprep.subr.bf16.mxu0 0
        %2246 = vmatpush1.bf16.msra.mxu0 0
        %2247 = vmatprep.subr.bf16.mxu0 0
        %2248 = vmatpush1.bf16.msra.mxu0 0
        %2249 = vmatprep.subr.bf16.mxu0 0
        %2250 = vmatpush1.bf16.msra.mxu0 0
        %2251 = vmatprep.subr.bf16.mxu0 0
        %2252 = vmatpush1.bf16.msra.mxu0 0
        %2253 = vmatprep.subr.bf16.mxu0 0
        %2254 = vmatpush1.bf16.msra.mxu0 0
        %2255 = vmatprep.subr.bf16.mxu0 0
        %2256 = vmatpush1.bf16.msra.mxu0 0
        %2257 = vmatprep.subr.bf16.mxu0 0
        %2258 = vmatpush1.bf16.msra.mxu0 0
        %2259 = vmatprep.subr.bf16.mxu0 0
        %2260 = vmatpush1.bf16.msra.mxu0 0
        %2261 = vmatprep.subr.bf16.mxu0 0
        %2262 = vmatpush1.bf16.msra.mxu0 0
        %2263 = vmatprep.subr.bf16.mxu0 0
        %2264 = vmatpush1.bf16.msra.mxu0 0
        %2265 = vmatprep.mubr.bf16.mxu0 0
        %2266 = vmatmul.mubr.bf16.gmra.mrb[0].mxu0 %v2183
        %v2267 = vpop.f32.mrb[0].mxu0
        %v2268 = vadd.f32 0.0, %v2267
        %v2269 = vpop.f32.mrb[0].mxu0
        %v2270 = vpop.f32.mrb[0].mxu0
        %v2271 = vadd.f32 0.0, %v2270
        %v2272 = vpop.f32.mrb[0].mxu0
        %2273 = vmatprep.mubr.bf16.mxu0 0
        %2274 = vmatmul.mubr.bf16.gmra.mrb[0].mxu0 %v2186
        %v2275 = vpop.f32.mrb[0].mxu0
        %v2276 = vadd.f32 0.0, %v2275
        %v2277 = vpop.f32.mrb[0].mxu0
        %v2278 = vpop.f32.mrb[0].mxu0
        %v2279 = vadd.f32 0.0, %v2278
        %v2280 = vpop.f32.mrb[0].mxu0
        %2281 = vmatprep.mubr.bf16.mxu0 0
        %2282 = vmatmul.mubr.bf16.gmra.mrb[0].mxu0 %v2189
        %v2283 = vpop.f32.mrb[0].mxu0
        %v2284 = vadd.f32 0.0, %v2283
        %v2285 = vpop.f32.mrb[0].mxu0
        %v2286 = vpop.f32.mrb[0].mxu0
        %v2287 = vadd.f32 0.0, %v2286
        %v2288 = vpop.f32.mrb[0].mxu0
        %2289 = vmatprep.mubr.bf16.mxu0 0
        %2290 = vmatmul.mubr.bf16.gmra.mrb[0].mxu0 %v2192
        %v2291 = vpop.f32.mrb[0].mxu0
        %v2292 = vadd.f32 0.0, %v2291
        %v2293 = vpop.f32.mrb[0].mxu0
        %v2294 = vpop.f32.mrb[0].mxu0
        %v2295 = vadd.f32 0.0, %v2294
        %v2296 = vpop.f32.mrb[0].mxu0
        %2297 = vmatprep.mubr.bf16.mxu0 0
        %2298 = vmatmul.mubr.bf16.gmra.mrb[0].mxu0 %v2195
        %v2299 = vpop.f32.mrb[0].mxu0
        %v2300 = vadd.f32 0.0, %v2299
        %v2301 = vpop.f32.mrb[0].mxu0
        %v2302 = vpop.f32.mrb[0].mxu0
        %v2303 = vadd.f32 0.0, %v2302
        %v2304 = vpop.f32.mrb[0].mxu0
        %2305 = vmatprep.mubr.bf16.mxu0 0
        %2306 = vmatmul.mubr.bf16.gmra.mrb[0].mxu0 %v2198
        %v2307 = vpop.f32.mrb[0].mxu0
        %v2308 = vadd.f32 0.0, %v2307
        %v2309 = vpop.f32.mrb[0].mxu0
        %v2310 = vpop.f32.mrb[0].mxu0
        %v2311 = vadd.f32 0.0, %v2310
        %v2312 = vpop.f32.mrb[0].mxu0
        %2313 = vmatprep.mubr.bf16.mxu0 0
        %2314 = vmatmul.mubr.bf16.gmra.mrb[0].mxu0 %v2201
        %v2315 = vpop.f32.mrb[0].mxu0
        %v2316 = vadd.f32 0.0, %v2315
        %v2317 = vpop.f32.mrb[0].mxu0
        %v2318 = vpop.f32.mrb[0].mxu0
        %v2319 = vadd.f32 0.0, %v2318
        %v2320 = vpop.f32.mrb[0].mxu0
        %2321 = vmatprep.mubr.bf16.mxu0 0
        %2322 = vmatmul.mubr.bf16.gmra.mrb[0].mxu0 %v2204
        %v2323 = vpop.f32.mrb[0].mxu0
        %v2324 = vadd.f32 0.0, %v2323
        %v2325 = vpop.f32.mrb[0].mxu0
        %v2326 = vpop.f32.mrb[0].mxu0
        %v2327 = vadd.f32 0.0, %v2326
        %v2328 = vpop.f32.mrb[0].mxu0
        %2329 = vmatprep.mubr.bf16.mxu0 0
        %2330 = vmatmul.mubr.bf16.gmra.mrb[0].mxu0 %v2207
        %v2331 = vpop.f32.mrb[0].mxu0
        %v2332 = vadd.f32 0.0, %v2331
        %v2333 = vpop.f32.mrb[0].mxu0
        %v2334 = vpop.f32.mrb[0].mxu0
        %v2335 = vadd.f32 0.0, %v2334
        %v2336 = vpop.f32.mrb[0].mxu0
        %2337 = vmatprep.mubr.bf16.mxu0 0
        %2338 = vmatmul.mubr.bf16.gmra.mrb[0].mxu0 %v2210
        %v2339 = vpop.f32.mrb[0].mxu0
        %v2340 = vadd.f32 0.0, %v2339
        %v2341 = vpop.f32.mrb[0].mxu0
        %v2342 = vpop.f32.mrb[0].mxu0
        %v2343 = vadd.f32 0.0, %v2342
        %v2344 = vpop.f32.mrb[0].mxu0
        %2345 = vmatprep.mubr.bf16.mxu0 0
        %2346 = vmatmul.mubr.bf16.gmra.mrb[0].mxu0 %v2213
        %v2347 = vpop.f32.mrb[0].mxu0
        %v2348 = vadd.f32 0.0, %v2347
        %v2349 = vpop.f32.mrb[0].mxu0
        %v2350 = vpop.f32.mrb[0].mxu0
        %v2351 = vadd.f32 0.0, %v2350
        %v2352 = vpop.f32.mrb[0].mxu0
        %2353 = vmatprep.mubr.bf16.mxu0 0
        %2354 = vmatmul.mubr.bf16.gmra.mrb[0].mxu0 %v2216
        %v2355 = vpop.f32.mrb[0].mxu0
        %v2356 = vadd.f32 0.0, %v2355
        %v2357 = vpop.f32.mrb[0].mxu0
        %v2358 = vpop.f32.mrb[0].mxu0
        %v2359 = vadd.f32 0.0, %v2358
        %v2360 = vpop.f32.mrb[0].mxu0
        %2361 = vmatprep.mubr.bf16.mxu0 0
        %2362 = vmatmul.mubr.bf16.gmra.mrb[0].mxu0 %v2219
        %v2363 = vpop.f32.mrb[0].mxu0
        %v2364 = vadd.f32 0.0, %v2363
        %v2365 = vpop.f32.mrb[0].mxu0
        %v2366 = vpop.f32.mrb[0].mxu0
        %v2367 = vadd.f32 0.0, %v2366
        %v2368 = vpop.f32.mrb[0].mxu0
        %2369 = vmatprep.mubr.bf16.mxu0 0
        %2370 = vmatmul.mubr.bf16.gmra.mrb[0].mxu0 %v2222
        %v2371 = vpop.f32.mrb[0].mxu0
        %v2372 = vadd.f32 0.0, %v2371
        %v2373 = vpop.f32.mrb[0].mxu0
        %v2374 = vpop.f32.mrb[0].mxu0
        %v2375 = vadd.f32 0.0, %v2374
        %v2376 = vpop.f32.mrb[0].mxu0
        %2377 = vmatprep.mubr.bf16.mxu0 0
        %2378 = vmatmul.mubr.bf16.gmra.mrb[0].mxu0 %v2225
        %v2379 = vpop.f32.mrb[0].mxu0
        %v2380 = vadd.f32 0.0, %v2379
        %v2381 = vpop.f32.mrb[0].mxu0
        %v2382 = vpop.f32.mrb[0].mxu0
        %v2383 = vadd.f32 0.0, %v2382
        %v2384 = vpop.f32.mrb[0].mxu0
        %2385 = vmatprep.mubr.bf16.mxu0 0
        %2386 = vmatmul.mubr.bf16.gmra.mrb[0].mxu0 %v2228
        %v2387 = vpop.f32.mrb[0].mxu0
        %v2388 = vadd.f32 0.0, %v2387
        %v2389 = vpop.f32.mrb[0].mxu0
        %v2390 = vpop.f32.mrb[0].mxu0
        %v2391 = vadd.f32 0.0, %v2390
        %v2392 = vpop.f32.mrb[0].mxu0
        %2393 = vdwg.mxu0
        %v2394 = vadd.f32 %v2029, %v2268
        %v2395 = vadd.f32 %v2030, %v2271
        %v2396 = vadd.f32 %v2031, %v2276
        %v2397 = vadd.f32 %v2032, %v2279
        %v2398 = vadd.f32 %v2033, %v2284
        %v2399 = vadd.f32 %v2034, %v2287
        %v2400 = vadd.f32 %v2035, %v2292
        %v2401 = vadd.f32 %v2036, %v2295
        %v2402 = vadd.f32 %v2037, %v2300
        %v2403 = vadd.f32 %v2038, %v2303
        %v2404 = vadd.f32 %v2039, %v2308
        %v2405 = vadd.f32 %v2040, %v2311
        %v2406 = vadd.f32 %v2041, %v2316
        %v2407 = vadd.f32 %v2042, %v2319
        %v2408 = vadd.f32 %v2043, %v2324
        %v2409 = vadd.f32 %v2044, %v2327
        %v2410 = vadd.f32 %v2045, %v2332
        %v2411 = vadd.f32 %v2046, %v2335
        %v2412 = vadd.f32 %v2047, %v2340
        %v2413 = vadd.f32 %v2048, %v2343
        %v2414 = vadd.f32 %v2049, %v2348
        %v2415 = vadd.f32 %v2050, %v2351
        %v2416 = vadd.f32 %v2051, %v2356
        %v2417 = vadd.f32 %v2052, %v2359
        %v2418 = vadd.f32 %v2053, %v2364
        %v2419 = vadd.f32 %v2054, %v2367
        %v2420 = vadd.f32 %v2055, %v2372
        %v2421 = vadd.f32 %v2056, %v2375
        %v2422 = vadd.f32 %v2057, %v2380
        %v2423 = vadd.f32 %v2058, %v2383
        %v2424 = vadd.f32 %v2059, %v2388
        %v2425 = vadd.f32 %v2060, %v2391
        %v2426 = vpack.c.bf16 %v440, %v439
        %v2427 = vpack.c.bf16 %v442, %v441
        %v2428 = vpack.c.bf16 %v444, %v443
        %v2429 = vpack.c.bf16 %v446, %v445
        %v2430 = vpack.c.bf16 %v448, %v447
        %v2431 = vpack.c.bf16 %v450, %v449
        %v2432 = vpack.c.bf16 %v452, %v451
        %v2433 = vpack.c.bf16 %v454, %v453
        %v2434 = vpack.c.bf16 %v456, %v455
        %v2435 = vpack.c.bf16 %v458, %v457
        %v2436 = vpack.c.bf16 %v460, %v459
        %v2437 = vpack.c.bf16 %v462, %v461
        %v2438 = vpack.c.bf16 %v464, %v463
        %v2439 = vpack.c.bf16 %v466, %v465
        %v2440 = vpack.c.bf16 %v468, %v467
        %v2441 = vpack.c.bf16 %v470, %v469
        %s2442 = scalar_lea.vmem %s1, 8
        %v2443 = vld [vmem:[%s2442] sm:$0x3]
        %v2445 = vsel %vm1125, %v2426, 0
        %v2448 = vsel %vm1125, %v2427, 0
        %v2451 = vsel %vm1125, %v2428, 0
        %v2454 = vsel %vm1125, %v2429, 0
        %v2457 = vsel %vm1125, %v2430, 0
        %v2460 = vsel %vm1125, %v2431, 0
        %v2463 = vsel %vm1125, %v2432, 0
        %v2466 = vsel %vm1125, %v2433, 0
        %v2469 = vsel %vm1125, %v2434, 0
        %v2472 = vsel %vm1125, %v2435, 0
        %v2475 = vsel %vm1125, %v2436, 0
        %v2478 = vsel %vm1125, %v2437, 0
        %v2481 = vsel %vm1125, %v2438, 0
        %v2484 = vsel %vm1125, %v2439, 0
        %v2487 = vsel %vm1125, %v2440, 0
        %v2490 = vsel %vm1125, %v2441, 0
        %v2493 = vsel %vm1174, %v2443, 0
        %2495 = vmatprep.subr.bf16.mxu0 0
        %2496 = vmatpush1.bf16.msra.mxu0 %v2493
        %2497 = vmatprep.subr.bf16.mxu0 0
        %2498 = vmatpush1.bf16.msra.mxu0 0
        %2499 = vmatprep.subr.bf16.mxu0 0
        %2500 = vmatpush1.bf16.msra.mxu0 0
        %2501 = vmatprep.subr.bf16.mxu0 0
        %2502 = vmatpush1.bf16.msra.mxu0 0
        %2503 = vmatprep.subr.bf16.mxu0 0
        %2504 = vmatpush1.bf16.msra.mxu0 0
        %2505 = vmatprep.subr.bf16.mxu0 0
        %2506 = vmatpush1.bf16.msra.mxu0 0
        %2507 = vmatprep.subr.bf16.mxu0 0
        %2508 = vmatpush1.bf16.msra.mxu0 0
        %2509 = vmatprep.subr.bf16.mxu0 0
        %2510 = vmatpush1.bf16.msra.mxu0 0
        %2511 = vmatprep.subr.bf16.mxu0 0
        %2512 = vmatpush1.bf16.msra.mxu0 0
        %2513 = vmatprep.subr.bf16.mxu0 0
        %2514 = vmatpush1.bf16.msra.mxu0 0
        %2515 = vmatprep.subr.bf16.mxu0 0
        %2516 = vmatpush1.bf16.msra.mxu0 0
        %2517 = vmatprep.subr.bf16.mxu0 0
        %2518 = vmatpush1.bf16.msra.mxu0 0
        %2519 = vmatprep.subr.bf16.mxu0 0
        %2520 = vmatpush1.bf16.msra.mxu0 0
        %2521 = vmatprep.subr.bf16.mxu0 0
        %2522 = vmatpush1.bf16.msra.mxu0 0
        %2523 = vmatprep.subr.bf16.mxu0 0
        %2524 = vmatpush1.bf16.msra.mxu0 0
        %2525 = vmatprep.subr.bf16.mxu0 0
        %2526 = vmatpush1.bf16.msra.mxu0 0
        %2527 = vmatprep.mubr.bf16.mxu0 0
        %2528 = vmatmul.mubr.bf16.gmra.mrb[0].mxu0 %v2445
        %v2529 = vpop.f32.mrb[0].mxu0
        %v2530 = vadd.f32 0.0, %v2529
        %v2531 = vpop.f32.mrb[0].mxu0
        %v2532 = vpop.f32.mrb[0].mxu0
        %v2533 = vadd.f32 0.0, %v2532
        %v2534 = vpop.f32.mrb[0].mxu0
        %2535 = vmatprep.mubr.bf16.mxu0 0
        %2536 = vmatmul.mubr.bf16.gmra.mrb[0].mxu0 %v2448
        %v2537 = vpop.f32.mrb[0].mxu0
        %v2538 = vadd.f32 0.0, %v2537
        %v2539 = vpop.f32.mrb[0].mxu0
        %v2540 = vpop.f32.mrb[0].mxu0
        %v2541 = vadd.f32 0.0, %v2540
        %v2542 = vpop.f32.mrb[0].mxu0
        %2543 = vmatprep.mubr.bf16.mxu0 0
        %2544 = vmatmul.mubr.bf16.gmra.mrb[0].mxu0 %v2451
        %v2545 = vpop.f32.mrb[0].mxu0
        %v2546 = vadd.f32 0.0, %v2545
        %v2547 = vpop.f32.mrb[0].mxu0
        %v2548 = vpop.f32.mrb[0].mxu0
        %v2549 = vadd.f32 0.0, %v2548
        %v2550 = vpop.f32.mrb[0].mxu0
        %2551 = vmatprep.mubr.bf16.mxu0 0
        %2552 = vmatmul.mubr.bf16.gmra.mrb[0].mxu0 %v2454
        %v2553 = vpop.f32.mrb[0].mxu0
        %v2554 = vadd.f32 0.0, %v2553
        %v2555 = vpop.f32.mrb[0].mxu0
        %v2556 = vpop.f32.mrb[0].mxu0
        %v2557 = vadd.f32 0.0, %v2556
        %v2558 = vpop.f32.mrb[0].mxu0
        %2559 = vmatprep.mubr.bf16.mxu0 0
        %2560 = vmatmul.mubr.bf16.gmra.mrb[0].mxu0 %v2457
        %v2561 = vpop.f32.mrb[0].mxu0
        %v2562 = vadd.f32 0.0, %v2561
        %v2563 = vpop.f32.mrb[0].mxu0
        %v2564 = vpop.f32.mrb[0].mxu0
        %v2565 = vadd.f32 0.0, %v2564
        %v2566 = vpop.f32.mrb[0].mxu0
        %2567 = vmatprep.mubr.bf16.mxu0 0
        %2568 = vmatmul.mubr.bf16.gmra.mrb[0].mxu0 %v2460
        %v2569 = vpop.f32.mrb[0].mxu0
        %v2570 = vadd.f32 0.0, %v2569
        %v2571 = vpop.f32.mrb[0].mxu0
        %v2572 = vpop.f32.mrb[0].mxu0
        %v2573 = vadd.f32 0.0, %v2572
        %v2574 = vpop.f32.mrb[0].mxu0
        %2575 = vmatprep.mubr.bf16.mxu0 0
        %2576 = vmatmul.mubr.bf16.gmra.mrb[0].mxu0 %v2463
        %v2577 = vpop.f32.mrb[0].mxu0
        %v2578 = vadd.f32 0.0, %v2577
        %v2579 = vpop.f32.mrb[0].mxu0
        %v2580 = vpop.f32.mrb[0].mxu0
        %v2581 = vadd.f32 0.0, %v2580
        %v2582 = vpop.f32.mrb[0].mxu0
        %2583 = vmatprep.mubr.bf16.mxu0 0
        %2584 = vmatmul.mubr.bf16.gmra.mrb[0].mxu0 %v2466
        %v2585 = vpop.f32.mrb[0].mxu0
        %v2586 = vadd.f32 0.0, %v2585
        %v2587 = vpop.f32.mrb[0].mxu0
        %v2588 = vpop.f32.mrb[0].mxu0
        %v2589 = vadd.f32 0.0, %v2588
        %v2590 = vpop.f32.mrb[0].mxu0
        %2591 = vmatprep.mubr.bf16.mxu0 0
        %2592 = vmatmul.mubr.bf16.gmra.mrb[0].mxu0 %v2469
        %v2593 = vpop.f32.mrb[0].mxu0
        %v2594 = vadd.f32 0.0, %v2593
        %v2595 = vpop.f32.mrb[0].mxu0
        %v2596 = vpop.f32.mrb[0].mxu0
        %v2597 = vadd.f32 0.0, %v2596
        %v2598 = vpop.f32.mrb[0].mxu0
        %2599 = vmatprep.mubr.bf16.mxu0 0
        %2600 = vmatmul.mubr.bf16.gmra.mrb[0].mxu0 %v2472
        %v2601 = vpop.f32.mrb[0].mxu0
        %v2602 = vadd.f32 0.0, %v2601
        %v2603 = vpop.f32.mrb[0].mxu0
        %v2604 = vpop.f32.mrb[0].mxu0
        %v2605 = vadd.f32 0.0, %v2604
        %v2606 = vpop.f32.mrb[0].mxu0
        %2607 = vmatprep.mubr.bf16.mxu0 0
        %2608 = vmatmul.mubr.bf16.gmra.mrb[0].mxu0 %v2475
        %v2609 = vpop.f32.mrb[0].mxu0
        %v2610 = vadd.f32 0.0, %v2609
        %v2611 = vpop.f32.mrb[0].mxu0
        %v2612 = vpop.f32.mrb[0].mxu0
        %v2613 = vadd.f32 0.0, %v2612
        %v2614 = vpop.f32.mrb[0].mxu0
        %2615 = vmatprep.mubr.bf16.mxu0 0
        %2616 = vmatmul.mubr.bf16.gmra.mrb[0].mxu0 %v2478
        %v2617 = vpop.f32.mrb[0].mxu0
        %v2618 = vadd.f32 0.0, %v2617
        %v2619 = vpop.f32.mrb[0].mxu0
        %v2620 = vpop.f32.mrb[0].mxu0
        %v2621 = vadd.f32 0.0, %v2620
        %v2622 = vpop.f32.mrb[0].mxu0
        %2623 = vmatprep.mubr.bf16.mxu0 0
        %2624 = vmatmul.mubr.bf16.gmra.mrb[0].mxu0 %v2481
        %v2625 = vpop.f32.mrb[0].mxu0
        %v2626 = vadd.f32 0.0, %v2625
        %v2627 = vpop.f32.mrb[0].mxu0
        %v2628 = vpop.f32.mrb[0].mxu0
        %v2629 = vadd.f32 0.0, %v2628
        %v2630 = vpop.f32.mrb[0].mxu0
        %2631 = vmatprep.mubr.bf16.mxu0 0
        %2632 = vmatmul.mubr.bf16.gmra.mrb[0].mxu0 %v2484
        %v2633 = vpop.f32.mrb[0].mxu0
        %v2634 = vadd.f32 0.0, %v2633
        %v2635 = vpop.f32.mrb[0].mxu0
        %v2636 = vpop.f32.mrb[0].mxu0
        %v2637 = vadd.f32 0.0, %v2636
        %v2638 = vpop.f32.mrb[0].mxu0
        %2639 = vmatprep.mubr.bf16.mxu0 0
        %2640 = vmatmul.mubr.bf16.gmra.mrb[0].mxu0 %v2487
        %v2641 = vpop.f32.mrb[0].mxu0
        %v2642 = vadd.f32 0.0, %v2641
        %v2643 = vpop.f32.mrb[0].mxu0
        %v2644 = vpop.f32.mrb[0].mxu0
        %v2645 = vadd.f32 0.0, %v2644
        %v2646 = vpop.f32.mrb[0].mxu0
        %2647 = vmatprep.mubr.bf16.mxu0 0
        %2648 = vmatmul.mubr.bf16.gmra.mrb[0].mxu0 %v2490
        %v2649 = vpop.f32.mrb[0].mxu0
        %v2650 = vadd.f32 0.0, %v2649
        %v2651 = vpop.f32.mrb[0].mxu0
        %v2652 = vpop.f32.mrb[0].mxu0
        %v2653 = vadd.f32 0.0, %v2652
        %v2654 = vpop.f32.mrb[0].mxu0
        %2655 = vdwg.mxu0
        %v2656 = vadd.f32 %v2394, %v2530
        %v2657 = vadd.f32 %v2395, %v2533
        %v2658 = vadd.f32 %v2396, %v2538
        %v2659 = vadd.f32 %v2397, %v2541
        %v2660 = vadd.f32 %v2398, %v2546
        %v2661 = vadd.f32 %v2399, %v2549
        %v2662 = vadd.f32 %v2400, %v2554
        %v2663 = vadd.f32 %v2401, %v2557
        %v2664 = vadd.f32 %v2402, %v2562
        %v2665 = vadd.f32 %v2403, %v2565
        %v2666 = vadd.f32 %v2404, %v2570
        %v2667 = vadd.f32 %v2405, %v2573
        %v2668 = vadd.f32 %v2406, %v2578
        %v2669 = vadd.f32 %v2407, %v2581
        %v2670 = vadd.f32 %v2408, %v2586
        %v2671 = vadd.f32 %v2409, %v2589
        %v2672 = vadd.f32 %v2410, %v2594
        %v2673 = vadd.f32 %v2411, %v2597
        %v2674 = vadd.f32 %v2412, %v2602
        %v2675 = vadd.f32 %v2413, %v2605
        %v2676 = vadd.f32 %v2414, %v2610
        %v2677 = vadd.f32 %v2415, %v2613
        %v2678 = vadd.f32 %v2416, %v2618
        %v2679 = vadd.f32 %v2417, %v2621
        %v2680 = vadd.f32 %v2418, %v2626
        %v2681 = vadd.f32 %v2419, %v2629
        %v2682 = vadd.f32 %v2420, %v2634
        %v2683 = vadd.f32 %v2421, %v2637
        %v2684 = vadd.f32 %v2422, %v2642
        %v2685 = vadd.f32 %v2423, %v2645
        %v2686 = vadd.f32 %v2424, %v2650
        %v2687 = vadd.f32 %v2425, %v2653
        %v2688 = vrot.slane %v470, 1
        %v2689 = vsel %vm1549, %v1609, %v2688
        %v2692 = vsel %vm1549, %v2688, 0.0
        %v2693 = vsel %vm1643, 1, 0
        %v2694 = vsel %vm1644, 1, 0
        %v2695 = vsel %vm1645, 1, 0
        %v2696 = vsel %vm1646, 1, 0
        %v2697 = vsel %vm1647, 1, 0
        %v2698 = vsel %vm1648, 1, 0
        %v2699 = vsel %vm1649, 1, 0
        %v2700 = vsel %vm1650, 1, 0
        %v2701 = vsel %vm1651, 1, 0
        %v2702 = vsel %vm1652, 1, 0
        %v2703 = vsel %vm1653, 1, 0
        %v2704 = vsel %vm1654, 1, 0
        %v2705 = vsel %vm1655, 1, 0
        %v2706 = vsel %vm1656, 1, 0
        %v2707 = vsel %vm1657, 1, 0
        %v2708 = vsel %vm1658, 1, 0
        %v2709 = vsel %vm1659, 1, 0
        %v2710 = vsel %vm1660, 1, 0
        %v2711 = vsel %vm1661, 1, 0
        %v2712 = vsel %vm1662, 1, 0
        %v2713 = vsel %vm1663, 1, 0
        %v2714 = vsel %vm1664, 1, 0
        %v2715 = vsel %vm1665, 1, 0
        %v2716 = vsel %vm1666, 1, 0
        %v2717 = vsel %vm1667, 1, 0
        %v2718 = vsel %vm1668, 1, 0
        %v2719 = vsel %vm1669, 1, 0
        %v2720 = vsel %vm1670, 1, 0
        %v2721 = vsel %vm1671, 1, 0
        %v2722 = vsel %vm1672, 1, 0
        %v2723 = vsel %vm1673, 1, 0
        %v2724 = vsel %vm1674, 1, 0
        %vm2725 = vcmp.eq.s32.totalorder %v2693, 1
        %vm2726 = vcmp.eq.s32.totalorder %v2694, 1
        %vm2727 = vcmp.eq.s32.totalorder %v2695, 1
        %vm2728 = vcmp.eq.s32.totalorder %v2696, 1
        %vm2729 = vcmp.eq.s32.totalorder %v2697, 1
        %vm2730 = vcmp.eq.s32.totalorder %v2698, 1
        %vm2731 = vcmp.eq.s32.totalorder %v2699, 1
        %vm2732 = vcmp.eq.s32.totalorder %v2700, 1
        %vm2733 = vcmp.eq.s32.totalorder %v2701, 1
        %vm2734 = vcmp.eq.s32.totalorder %v2702, 1
        %vm2735 = vcmp.eq.s32.totalorder %v2703, 1
        %vm2736 = vcmp.eq.s32.totalorder %v2704, 1
        %vm2737 = vcmp.eq.s32.totalorder %v2705, 1
        %vm2738 = vcmp.eq.s32.totalorder %v2706, 1
        %vm2739 = vcmp.eq.s32.totalorder %v2707, 1
        %vm2740 = vcmp.eq.s32.totalorder %v2708, 1
        %vm2741 = vcmp.eq.s32.totalorder %v2709, 1
        %vm2742 = vcmp.eq.s32.totalorder %v2710, 1
        %vm2743 = vcmp.eq.s32.totalorder %v2711, 1
        %vm2744 = vcmp.eq.s32.totalorder %v2712, 1
        %vm2745 = vcmp.eq.s32.totalorder %v2713, 1
        %vm2746 = vcmp.eq.s32.totalorder %v2714, 1
        %vm2747 = vcmp.eq.s32.totalorder %v2715, 1
        %vm2748 = vcmp.eq.s32.totalorder %v2716, 1
        %vm2749 = vcmp.eq.s32.totalorder %v2717, 1
        %vm2750 = vcmp.eq.s32.totalorder %v2718, 1
        %vm2751 = vcmp.eq.s32.totalorder %v2719, 1
        %vm2752 = vcmp.eq.s32.totalorder %v2720, 1
        %vm2753 = vcmp.eq.s32.totalorder %v2721, 1
        %vm2754 = vcmp.eq.s32.totalorder %v2722, 1
        %vm2755 = vcmp.eq.s32.totalorder %v2723, 1
        %vm2756 = vcmp.eq.s32.totalorder %v2724, 1
        %v2757 = vsel %vm2725, %v1552, 0.0
        %v2758 = vsel %vm2726, %v1554, 0.0
        %v2759 = vsel %vm2727, %v1556, 0.0
        %v2760 = vsel %vm2728, %v1558, 0.0
        %v2761 = vsel %vm2729, %v1560, 0.0
        %v2762 = vsel %vm2730, %v1562, 0.0
        %v2763 = vsel %vm2731, %v1564, 0.0
        %v2764 = vsel %vm2732, %v1566, 0.0
        %v2765 = vsel %vm2733, %v1568, 0.0
        %v2766 = vsel %vm2734, %v1570, 0.0
        %v2767 = vsel %vm2735, %v1572, 0.0
        %v2768 = vsel %vm2736, %v1574, 0.0
        %v2769 = vsel %vm2737, %v1576, 0.0
        %v2770 = vsel %vm2738, %v1578, 0.0
        %v2771 = vsel %vm2739, %v1580, 0.0
        %v2772 = vsel %vm2740, %v1582, 0.0
        %v2773 = vsel %vm2741, %v1584, 0.0
        %v2774 = vsel %vm2742, %v1586, 0.0
        %v2775 = vsel %vm2743, %v1588, 0.0
        %v2776 = vsel %vm2744, %v1590, 0.0
        %v2777 = vsel %vm2745, %v1592, 0.0
        %v2778 = vsel %vm2746, %v1594, 0.0
        %v2779 = vsel %vm2747, %v1596, 0.0
        %v2780 = vsel %vm2748, %v1598, 0.0
        %v2781 = vsel %vm2749, %v1600, 0.0
        %v2782 = vsel %vm2750, %v1602, 0.0
        %v2783 = vsel %vm2751, %v1604, 0.0
        %v2784 = vsel %vm2752, %v1606, 0.0
        %v2785 = vsel %vm2753, %v1608, 0.0
        %v2786 = vsel %vm2754, %v1610, 0.0
        %v2787 = vsel %vm2755, %v2689, 0.0
        %v2788 = vsel %vm2756, %v2692, 0.0
        %v2789 = vpack.c.bf16 %v2758, %v2757
        %v2790 = vpack.c.bf16 %v2760, %v2759
        %v2791 = vpack.c.bf16 %v2762, %v2761
        %v2792 = vpack.c.bf16 %v2764, %v2763
        %v2793 = vpack.c.bf16 %v2766, %v2765
        %v2794 = vpack.c.bf16 %v2768, %v2767
        %v2795 = vpack.c.bf16 %v2770, %v2769
        %v2796 = vpack.c.bf16 %v2772, %v2771
        %v2797 = vpack.c.bf16 %v2774, %v2773
        %v2798 = vpack.c.bf16 %v2776, %v2775
        %v2799 = vpack.c.bf16 %v2778, %v2777
        %v2800 = vpack.c.bf16 %v2780, %v2779
        %v2801 = vpack.c.bf16 %v2782, %v2781
        %v2802 = vpack.c.bf16 %v2784, %v2783
        %v2803 = vpack.c.bf16 %v2786, %v2785
        %v2804 = vpack.c.bf16 %v2788, %v2787
        %s2805 = scalar_lea.vmem %s1, 10
        %v2806 = vld [vmem:[%s2805] sm:$0x3]
        %v2808 = vsel %vm1125, %v2789, 0
        %v2811 = vsel %vm1125, %v2790, 0
        %v2814 = vsel %vm1125, %v2791, 0
        %v2817 = vsel %vm1125, %v2792, 0
        %v2820 = vsel %vm1125, %v2793, 0
        %v2823 = vsel %vm1125, %v2794, 0
        %v2826 = vsel %vm1125, %v2795, 0
        %v2829 = vsel %vm1125, %v2796, 0
        %v2832 = vsel %vm1125, %v2797, 0
        %v2835 = vsel %vm1125, %v2798, 0
        %v2838 = vsel %vm1125, %v2799, 0
        %v2841 = vsel %vm1125, %v2800, 0
        %v2844 = vsel %vm1125, %v2801, 0
        %v2847 = vsel %vm1125, %v2802, 0
        %v2850 = vsel %vm1125, %v2803, 0
        %v2853 = vsel %vm1125, %v2804, 0
        %v2856 = vsel %vm1174, %v2806, 0
        %2858 = vmatprep.subr.bf16.mxu0 0
        %2859 = vmatpush1.bf16.msra.mxu0 %v2856
        %2860 = vmatprep.subr.bf16.mxu0 0
        %2861 = vmatpush1.bf16.msra.mxu0 0
        %2862 = vmatprep.subr.bf16.mxu0 0
        %2863 = vmatpush1.bf16.msra.mxu0 0
        %2864 = vmatprep.subr.bf16.mxu0 0
        %2865 = vmatpush1.bf16.msra.mxu0 0
        %2866 = vmatprep.subr.bf16.mxu0 0
        %2867 = vmatpush1.bf16.msra.mxu0 0
        %2868 = vmatprep.subr.bf16.mxu0 0
        %2869 = vmatpush1.bf16.msra.mxu0 0
        %2870 = vmatprep.subr.bf16.mxu0 0
        %2871 = vmatpush1.bf16.msra.mxu0 0
        %2872 = vmatprep.subr.bf16.mxu0 0
        %2873 = vmatpush1.bf16.msra.mxu0 0
        %2874 = vmatprep.subr.bf16.mxu0 0
        %2875 = vmatpush1.bf16.msra.mxu0 0
        %2876 = vmatprep.subr.bf16.mxu0 0
        %2877 = vmatpush1.bf16.msra.mxu0 0
        %2878 = vmatprep.subr.bf16.mxu0 0
        %2879 = vmatpush1.bf16.msra.mxu0 0
        %2880 = vmatprep.subr.bf16.mxu0 0
        %2881 = vmatpush1.bf16.msra.mxu0 0
        %2882 = vmatprep.subr.bf16.mxu0 0
        %2883 = vmatpush1.bf16.msra.mxu0 0
        %2884 = vmatprep.subr.bf16.mxu0 0
        %2885 = vmatpush1.bf16.msra.mxu0 0
        %2886 = vmatprep.subr.bf16.mxu0 0
        %2887 = vmatpush1.bf16.msra.mxu0 0
        %2888 = vmatprep.subr.bf16.mxu0 0
        %2889 = vmatpush1.bf16.msra.mxu0 0
        %2890 = vmatprep.mubr.bf16.mxu0 0
        %2891 = vmatmul.mubr.bf16.gmra.mrb[0].mxu0 %v2808
        %v2892 = vpop.f32.mrb[0].mxu0
        %v2893 = vadd.f32 0.0, %v2892
        %v2894 = vpop.f32.mrb[0].mxu0
        %v2895 = vpop.f32.mrb[0].mxu0
        %v2896 = vadd.f32 0.0, %v2895
        %v2897 = vpop.f32.mrb[0].mxu0
        %2898 = vmatprep.mubr.bf16.mxu0 0
        %2899 = vmatmul.mubr.bf16.gmra.mrb[0].mxu0 %v2811
        %v2900 = vpop.f32.mrb[0].mxu0
        %v2901 = vadd.f32 0.0, %v2900
        %v2902 = vpop.f32.mrb[0].mxu0
        %v2903 = vpop.f32.mrb[0].mxu0
        %v2904 = vadd.f32 0.0, %v2903
        %v2905 = vpop.f32.mrb[0].mxu0
        %2906 = vmatprep.mubr.bf16.mxu0 0
        %2907 = vmatmul.mubr.bf16.gmra.mrb[0].mxu0 %v2814
        %v2908 = vpop.f32.mrb[0].mxu0
        %v2909 = vadd.f32 0.0, %v2908
        %v2910 = vpop.f32.mrb[0].mxu0
        %v2911 = vpop.f32.mrb[0].mxu0
        %v2912 = vadd.f32 0.0, %v2911
        %v2913 = vpop.f32.mrb[0].mxu0
        %2914 = vmatprep.mubr.bf16.mxu0 0
        %2915 = vmatmul.mubr.bf16.gmra.mrb[0].mxu0 %v2817
        %v2916 = vpop.f32.mrb[0].mxu0
        %v2917 = vadd.f32 0.0, %v2916
        %v2918 = vpop.f32.mrb[0].mxu0
        %v2919 = vpop.f32.mrb[0].mxu0
        %v2920 = vadd.f32 0.0, %v2919
        %v2921 = vpop.f32.mrb[0].mxu0
        %2922 = vmatprep.mubr.bf16.mxu0 0
        %2923 = vmatmul.mubr.bf16.gmra.mrb[0].mxu0 %v2820
        %v2924 = vpop.f32.mrb[0].mxu0
        %v2925 = vadd.f32 0.0, %v2924
        %v2926 = vpop.f32.mrb[0].mxu0
        %v2927 = vpop.f32.mrb[0].mxu0
        %v2928 = vadd.f32 0.0, %v2927
        %v2929 = vpop.f32.mrb[0].mxu0
        %2930 = vmatprep.mubr.bf16.mxu0 0
        %2931 = vmatmul.mubr.bf16.gmra.mrb[0].mxu0 %v2823
        %v2932 = vpop.f32.mrb[0].mxu0
        %v2933 = vadd.f32 0.0, %v2932
        %v2934 = vpop.f32.mrb[0].mxu0
        %v2935 = vpop.f32.mrb[0].mxu0
        %v2936 = vadd.f32 0.0, %v2935
        %v2937 = vpop.f32.mrb[0].mxu0
        %2938 = vmatprep.mubr.bf16.mxu0 0
        %2939 = vmatmul.mubr.bf16.gmra.mrb[0].mxu0 %v2826
        %v2940 = vpop.f32.mrb[0].mxu0
        %v2941 = vadd.f32 0.0, %v2940
        %v2942 = vpop.f32.mrb[0].mxu0
        %v2943 = vpop.f32.mrb[0].mxu0
        %v2944 = vadd.f32 0.0, %v2943
        %v2945 = vpop.f32.mrb[0].mxu0
        %2946 = vmatprep.mubr.bf16.mxu0 0
        %2947 = vmatmul.mubr.bf16.gmra.mrb[0].mxu0 %v2829
        %v2948 = vpop.f32.mrb[0].mxu0
        %v2949 = vadd.f32 0.0, %v2948
        %v2950 = vpop.f32.mrb[0].mxu0
        %v2951 = vpop.f32.mrb[0].mxu0
        %v2952 = vadd.f32 0.0, %v2951
        %v2953 = vpop.f32.mrb[0].mxu0
        %2954 = vmatprep.mubr.bf16.mxu0 0
        %2955 = vmatmul.mubr.bf16.gmra.mrb[0].mxu0 %v2832
        %v2956 = vpop.f32.mrb[0].mxu0
        %v2957 = vadd.f32 0.0, %v2956
        %v2958 = vpop.f32.mrb[0].mxu0
        %v2959 = vpop.f32.mrb[0].mxu0
        %v2960 = vadd.f32 0.0, %v2959
        %v2961 = vpop.f32.mrb[0].mxu0
        %2962 = vmatprep.mubr.bf16.mxu0 0
        %2963 = vmatmul.mubr.bf16.gmra.mrb[0].mxu0 %v2835
        %v2964 = vpop.f32.mrb[0].mxu0
        %v2965 = vadd.f32 0.0, %v2964
        %v2966 = vpop.f32.mrb[0].mxu0
        %v2967 = vpop.f32.mrb[0].mxu0
        %v2968 = vadd.f32 0.0, %v2967
        %v2969 = vpop.f32.mrb[0].mxu0
        %2970 = vmatprep.mubr.bf16.mxu0 0
        %2971 = vmatmul.mubr.bf16.gmra.mrb[0].mxu0 %v2838
        %v2972 = vpop.f32.mrb[0].mxu0
        %v2973 = vadd.f32 0.0, %v2972
        %v2974 = vpop.f32.mrb[0].mxu0
        %v2975 = vpop.f32.mrb[0].mxu0
        %v2976 = vadd.f32 0.0, %v2975
        %v2977 = vpop.f32.mrb[0].mxu0
        %2978 = vmatprep.mubr.bf16.mxu0 0
        %2979 = vmatmul.mubr.bf16.gmra.mrb[0].mxu0 %v2841
        %v2980 = vpop.f32.mrb[0].mxu0
        %v2981 = vadd.f32 0.0, %v2980
        %v2982 = vpop.f32.mrb[0].mxu0
        %v2983 = vpop.f32.mrb[0].mxu0
        %v2984 = vadd.f32 0.0, %v2983
        %v2985 = vpop.f32.mrb[0].mxu0
        %2986 = vmatprep.mubr.bf16.mxu0 0
        %2987 = vmatmul.mubr.bf16.gmra.mrb[0].mxu0 %v2844
        %v2988 = vpop.f32.mrb[0].mxu0
        %v2989 = vadd.f32 0.0, %v2988
        %v2990 = vpop.f32.mrb[0].mxu0
        %v2991 = vpop.f32.mrb[0].mxu0
        %v2992 = vadd.f32 0.0, %v2991
        %v2993 = vpop.f32.mrb[0].mxu0
        %2994 = vmatprep.mubr.bf16.mxu0 0
        %2995 = vmatmul.mubr.bf16.gmra.mrb[0].mxu0 %v2847
        %v2996 = vpop.f32.mrb[0].mxu0
        %v2997 = vadd.f32 0.0, %v2996
        %v2998 = vpop.f32.mrb[0].mxu0
        %v2999 = vpop.f32.mrb[0].mxu0
        %v3000 = vadd.f32 0.0, %v2999
        %v3001 = vpop.f32.mrb[0].mxu0
        %3002 = vmatprep.mubr.bf16.mxu0 0
        %3003 = vmatmul.mubr.bf16.gmra.mrb[0].mxu0 %v2850
        %v3004 = vpop.f32.mrb[0].mxu0
        %v3005 = vadd.f32 0.0, %v3004
        %v3006 = vpop.f32.mrb[0].mxu0
        %v3007 = vpop.f32.mrb[0].mxu0
        %v3008 = vadd.f32 0.0, %v3007
        %v3009 = vpop.f32.mrb[0].mxu0
        %3010 = vmatprep.mubr.bf16.mxu0 0
        %3011 = vmatmul.mubr.bf16.gmra.mrb[0].mxu0 %v2853
        %v3012 = vpop.f32.mrb[0].mxu0
        %v3013 = vadd.f32 0.0, %v3012
        %v3014 = vpop.f32.mrb[0].mxu0
        %v3015 = vpop.f32.mrb[0].mxu0
        %v3016 = vadd.f32 0.0, %v3015
        %v3017 = vpop.f32.mrb[0].mxu0
        %3018 = vdwg.mxu0
        %v3019 = vadd.f32 %v2656, %v2893
        %v3020 = vadd.f32 %v2657, %v2896
        %v3021 = vadd.f32 %v2658, %v2901
        %v3022 = vadd.f32 %v2659, %v2904
        %v3023 = vadd.f32 %v2660, %v2909
        %v3024 = vadd.f32 %v2661, %v2912
        %v3025 = vadd.f32 %v2662, %v2917
        %v3026 = vadd.f32 %v2663, %v2920
        %v3027 = vadd.f32 %v2664, %v2925
        %v3028 = vadd.f32 %v2665, %v2928
        %v3029 = vadd.f32 %v2666, %v2933
        %v3030 = vadd.f32 %v2667, %v2936
        %v3031 = vadd.f32 %v2668, %v2941
        %v3032 = vadd.f32 %v2669, %v2944
        %v3033 = vadd.f32 %v2670, %v2949
        %v3034 = vadd.f32 %v2671, %v2952
        %v3035 = vadd.f32 %v2672, %v2957
        %v3036 = vadd.f32 %v2673, %v2960
        %v3037 = vadd.f32 %v2674, %v2965
        %v3038 = vadd.f32 %v2675, %v2968
        %v3039 = vadd.f32 %v2676, %v2973
        %v3040 = vadd.f32 %v2677, %v2976
        %v3041 = vadd.f32 %v2678, %v2981
        %v3042 = vadd.f32 %v2679, %v2984
        %v3043 = vadd.f32 %v2680, %v2989
        %v3044 = vadd.f32 %v2681, %v2992
        %v3045 = vadd.f32 %v2682, %v2997
        %v3046 = vadd.f32 %v2683, %v3000
        %v3047 = vadd.f32 %v2684, %v3005
        %v3048 = vadd.f32 %v2685, %v3008
        %v3049 = vadd.f32 %v2686, %v3013
        %v3050 = vadd.f32 %v2687, %v3016
        %v3052 = vsel %vm727, %v2064, 0.0
        %vm3053 = vcmp.le.f32.partialorder %v601, 14.5
        %vm3054 = vcmp.le.f32.partialorder %v602, 14.5
        %vm3055 = vcmp.le.f32.partialorder %v603, 14.5
        %vm3056 = vcmp.le.f32.partialorder %v604, 14.5
        %vm3057 = vcmp.le.f32.partialorder %v605, 14.5
        %vm3058 = vcmp.le.f32.partialorder %v606, 14.5
        %vm3059 = vcmp.le.f32.partialorder %v607, 14.5
        %vm3060 = vcmp.le.f32.partialorder %v608, 14.5
        %vm3061 = vcmp.le.f32.partialorder %v609, 14.5
        %vm3062 = vcmp.le.f32.partialorder %v610, 14.5
        %vm3063 = vcmp.le.f32.partialorder %v611, 14.5
        %vm3064 = vcmp.le.f32.partialorder %v612, 14.5
        %vm3065 = vcmp.le.f32.partialorder %v613, 14.5
        %vm3066 = vcmp.le.f32.partialorder %v614, 14.5
        %vm3067 = vcmp.le.f32.partialorder %v615, 14.5
        %vm3068 = vcmp.le.f32.partialorder %v616, 14.5
        %vm3069 = vcmp.le.f32.partialorder %v617, 14.5
        %vm3070 = vcmp.le.f32.partialorder %v618, 14.5
        %vm3071 = vcmp.le.f32.partialorder %v619, 14.5
        %vm3072 = vcmp.le.f32.partialorder %v620, 14.5
        %vm3073 = vcmp.le.f32.partialorder %v621, 14.5
        %vm3074 = vcmp.le.f32.partialorder %v622, 14.5
        %vm3075 = vcmp.le.f32.partialorder %v623, 14.5
        %vm3076 = vcmp.le.f32.partialorder %v624, 14.5
        %vm3077 = vcmp.le.f32.partialorder %v625, 14.5
        %vm3078 = vcmp.le.f32.partialorder %v626, 14.5
        %vm3079 = vcmp.le.f32.partialorder %v627, 14.5
        %vm3080 = vcmp.le.f32.partialorder %v628, 14.5
        %vm3081 = vcmp.le.f32.partialorder %v629, 14.5
        %vm3082 = vcmp.le.f32.partialorder %v630, 14.5
        %vm3083 = vcmp.le.f32.partialorder %v631, 14.5
        %vm3084 = vmand %vm3053, %vm849
        %vm3085 = vmand %vm3054, %vm850
        %vm3086 = vmand %vm3055, %vm851
        %vm3087 = vmand %vm3056, %vm852
        %vm3088 = vmand %vm3057, %vm853
        %vm3089 = vmand %vm3058, %vm854
        %vm3090 = vmand %vm3059, %vm855
        %vm3091 = vmand %vm3060, %vm856
        %vm3092 = vmand %vm3061, %vm857
        %vm3093 = vmand %vm3062, %vm858
        %vm3094 = vmand %vm3063, %vm859
        %vm3095 = vmand %vm3064, %vm860
        %vm3096 = vmand %vm3065, %vm861
        %vm3097 = vmand %vm3066, %vm862
        %vm3098 = vmand %vm3067, %vm863
        %vm3099 = vmand %vm3068, %vm864
        %vm3100 = vmand %vm3069, %vm865
        %vm3101 = vmand %vm3070, %vm866
        %vm3102 = vmand %vm3071, %vm867
        %vm3103 = vmand %vm3072, %vm868
        %vm3104 = vmand %vm3073, %vm869
        %vm3105 = vmand %vm3074, %vm870
        %vm3106 = vmand %vm3075, %vm871
        %vm3107 = vmand %vm3076, %vm872
        %vm3108 = vmand %vm3077, %vm873
        %vm3109 = vmand %vm3078, %vm874
        %vm3110 = vmand %vm3079, %vm875
        %vm3111 = vmand %vm3080, %vm876
        %vm3112 = vmand %vm3081, %vm877
        %vm3113 = vmand %vm3082, %vm878
        %vm3114 = vmand %vm3083, %vm879
        %v3115 = vsel %vm3084, 1, 0
        %v3116 = vsel %vm3085, 1, 0
        %v3117 = vsel %vm3086, 1, 0
        %v3118 = vsel %vm3087, 1, 0
        %v3119 = vsel %vm3088, 1, 0
        %v3120 = vsel %vm3089, 1, 0
        %v3121 = vsel %vm3090, 1, 0
        %v3122 = vsel %vm3091, 1, 0
        %v3123 = vsel %vm3092, 1, 0
        %v3124 = vsel %vm3093, 1, 0
        %v3125 = vsel %vm3094, 1, 0
        %v3126 = vsel %vm3095, 1, 0
        %v3127 = vsel %vm3096, 1, 0
        %v3128 = vsel %vm3097, 1, 0
        %v3129 = vsel %vm3098, 1, 0
        %v3130 = vsel %vm3099, 1, 0
        %v3131 = vsel %vm3100, 1, 0
        %v3132 = vsel %vm3101, 1, 0
        %v3133 = vsel %vm3102, 1, 0
        %v3134 = vsel %vm3103, 1, 0
        %v3135 = vsel %vm3104, 1, 0
        %v3136 = vsel %vm3105, 1, 0
        %v3137 = vsel %vm3106, 1, 0
        %v3138 = vsel %vm3107, 1, 0
        %v3139 = vsel %vm3108, 1, 0
        %v3140 = vsel %vm3109, 1, 0
        %v3141 = vsel %vm3110, 1, 0
        %v3142 = vsel %vm3111, 1, 0
        %v3143 = vsel %vm3112, 1, 0
        %v3144 = vsel %vm3113, 1, 0
        %v3145 = vsel %vm3114, 1, 0
        %vm3146 = vcmp.eq.s32.totalorder %v3115, 1
        %vm3147 = vcmp.eq.s32.totalorder %v3116, 1
        %vm3148 = vcmp.eq.s32.totalorder %v3117, 1
        %vm3149 = vcmp.eq.s32.totalorder %v3118, 1
        %vm3150 = vcmp.eq.s32.totalorder %v3119, 1
        %vm3151 = vcmp.eq.s32.totalorder %v3120, 1
        %vm3152 = vcmp.eq.s32.totalorder %v3121, 1
        %vm3153 = vcmp.eq.s32.totalorder %v3122, 1
        %vm3154 = vcmp.eq.s32.totalorder %v3123, 1
        %vm3155 = vcmp.eq.s32.totalorder %v3124, 1
        %vm3156 = vcmp.eq.s32.totalorder %v3125, 1
        %vm3157 = vcmp.eq.s32.totalorder %v3126, 1
        %vm3158 = vcmp.eq.s32.totalorder %v3127, 1
        %vm3159 = vcmp.eq.s32.totalorder %v3128, 1
        %vm3160 = vcmp.eq.s32.totalorder %v3129, 1
        %vm3161 = vcmp.eq.s32.totalorder %v3130, 1
        %vm3162 = vcmp.eq.s32.totalorder %v3131, 1
        %vm3163 = vcmp.eq.s32.totalorder %v3132, 1
        %vm3164 = vcmp.eq.s32.totalorder %v3133, 1
        %vm3165 = vcmp.eq.s32.totalorder %v3134, 1
        %vm3166 = vcmp.eq.s32.totalorder %v3135, 1
        %vm3167 = vcmp.eq.s32.totalorder %v3136, 1
        %vm3168 = vcmp.eq.s32.totalorder %v3137, 1
        %vm3169 = vcmp.eq.s32.totalorder %v3138, 1
        %vm3170 = vcmp.eq.s32.totalorder %v3139, 1
        %vm3171 = vcmp.eq.s32.totalorder %v3140, 1
        %vm3172 = vcmp.eq.s32.totalorder %v3141, 1
        %vm3173 = vcmp.eq.s32.totalorder %v3142, 1
        %vm3174 = vcmp.eq.s32.totalorder %v3143, 1
        %vm3175 = vcmp.eq.s32.totalorder %v3144, 1
        %vm3176 = vcmp.eq.s32.totalorder %v3145, 1
        %v3177 = vsel %vm3146, %v732, 0.0
        %v3178 = vsel %vm3147, %v734, 0.0
        %v3179 = vsel %vm3148, %v736, 0.0
        %v3180 = vsel %vm3149, %v738, 0.0
        %v3181 = vsel %vm3150, %v740, 0.0
        %v3182 = vsel %vm3151, %v742, 0.0
        %v3183 = vsel %vm3152, %v744, 0.0
        %v3184 = vsel %vm3153, %v746, 0.0
        %v3185 = vsel %vm3154, %v748, 0.0
        %v3186 = vsel %vm3155, %v750, 0.0
        %v3187 = vsel %vm3156, %v752, 0.0
        %v3188 = vsel %vm3157, %v754, 0.0
        %v3189 = vsel %vm3158, %v756, 0.0
        %v3190 = vsel %vm3159, %v758, 0.0
        %v3191 = vsel %vm3160, %v760, 0.0
        %v3192 = vsel %vm3161, %v762, 0.0
        %v3193 = vsel %vm3162, %v764, 0.0
        %v3194 = vsel %vm3163, %v766, 0.0
        %v3195 = vsel %vm3164, %v768, 0.0
        %v3196 = vsel %vm3165, %v770, 0.0
        %v3197 = vsel %vm3166, %v772, 0.0
        %v3198 = vsel %vm3167, %v774, 0.0
        %v3199 = vsel %vm3168, %v776, 0.0
        %v3200 = vsel %vm3169, %v778, 0.0
        %v3201 = vsel %vm3170, %v780, 0.0
        %v3202 = vsel %vm3171, %v782, 0.0
        %v3203 = vsel %vm3172, %v784, 0.0
        %v3204 = vsel %vm3173, %v786, 0.0
        %v3205 = vsel %vm3174, %v2063, 0.0
        %v3206 = vsel %vm3175, %v2065, 0.0
        %v3207 = vsel %vm3176, %v3052, 0.0
        %v3208 = vpack.c.bf16 %v3178, %v3177
        %v3209 = vpack.c.bf16 %v3180, %v3179
        %v3210 = vpack.c.bf16 %v3182, %v3181
        %v3211 = vpack.c.bf16 %v3184, %v3183
        %v3212 = vpack.c.bf16 %v3186, %v3185
        %v3213 = vpack.c.bf16 %v3188, %v3187
        %v3214 = vpack.c.bf16 %v3190, %v3189
        %v3215 = vpack.c.bf16 %v3192, %v3191
        %v3216 = vpack.c.bf16 %v3194, %v3193
        %v3217 = vpack.c.bf16 %v3196, %v3195
        %v3218 = vpack.c.bf16 %v3198, %v3197
        %v3219 = vpack.c.bf16 %v3200, %v3199
        %v3220 = vpack.c.bf16 %v3202, %v3201
        %v3221 = vpack.c.bf16 %v3204, %v3203
        %v3222 = vpack.c.bf16 %v3206, %v3205
        %v3223 = vpack.c.bf16 0.0, %v3207
        %s3224 = scalar_lea.vmem %s1, 12
        %v3225 = vld [vmem:[%s3224] sm:$0x3]
        %v3227 = vsel %vm1125, %v3208, 0
        %v3230 = vsel %vm1125, %v3209, 0
        %v3233 = vsel %vm1125, %v3210, 0
        %v3236 = vsel %vm1125, %v3211, 0
        %v3239 = vsel %vm1125, %v3212, 0
        %v3242 = vsel %vm1125, %v3213, 0
        %v3245 = vsel %vm1125, %v3214, 0
        %v3248 = vsel %vm1125, %v3215, 0
        %v3251 = vsel %vm1125, %v3216, 0
        %v3254 = vsel %vm1125, %v3217, 0
        %v3257 = vsel %vm1125, %v3218, 0
        %v3260 = vsel %vm1125, %v3219, 0
        %v3263 = vsel %vm1125, %v3220, 0
        %v3266 = vsel %vm1125, %v3221, 0
        %v3269 = vsel %vm1125, %v3222, 0
        %v3272 = vsel %vm1125, %v3223, 0
        %v3275 = vsel %vm1174, %v3225, 0
        %3277 = vmatprep.subr.bf16.mxu0 0
        %3278 = vmatpush1.bf16.msra.mxu0 %v3275
        %3279 = vmatprep.subr.bf16.mxu0 0
        %3280 = vmatpush1.bf16.msra.mxu0 0
        %3281 = vmatprep.subr.bf16.mxu0 0
        %3282 = vmatpush1.bf16.msra.mxu0 0
        %3283 = vmatprep.subr.bf16.mxu0 0
        %3284 = vmatpush1.bf16.msra.mxu0 0
        %3285 = vmatprep.subr.bf16.mxu0 0
        %3286 = vmatpush1.bf16.msra.mxu0 0
        %3287 = vmatprep.subr.bf16.mxu0 0
        %3288 = vmatpush1.bf16.msra.mxu0 0
        %3289 = vmatprep.subr.bf16.mxu0 0
        %3290 = vmatpush1.bf16.msra.mxu0 0
        %3291 = vmatprep.subr.bf16.mxu0 0
        %3292 = vmatpush1.bf16.msra.mxu0 0
        %3293 = vmatprep.subr.bf16.mxu0 0
        %3294 = vmatpush1.bf16.msra.mxu0 0
        %3295 = vmatprep.subr.bf16.mxu0 0
        %3296 = vmatpush1.bf16.msra.mxu0 0
        %3297 = vmatprep.subr.bf16.mxu0 0
        %3298 = vmatpush1.bf16.msra.mxu0 0
        %3299 = vmatprep.subr.bf16.mxu0 0
        %3300 = vmatpush1.bf16.msra.mxu0 0
        %3301 = vmatprep.subr.bf16.mxu0 0
        %3302 = vmatpush1.bf16.msra.mxu0 0
        %3303 = vmatprep.subr.bf16.mxu0 0
        %3304 = vmatpush1.bf16.msra.mxu0 0
        %3305 = vmatprep.subr.bf16.mxu0 0
        %3306 = vmatpush1.bf16.msra.mxu0 0
        %3307 = vmatprep.subr.bf16.mxu0 0
        %3308 = vmatpush1.bf16.msra.mxu0 0
        %3309 = vmatprep.mubr.bf16.mxu0 0
        %3310 = vmatmul.mubr.bf16.gmra.mrb[0].mxu0 %v3227
        %v3311 = vpop.f32.mrb[0].mxu0
        %v3312 = vadd.f32 0.0, %v3311
        %v3313 = vpop.f32.mrb[0].mxu0
        %v3314 = vpop.f32.mrb[0].mxu0
        %v3315 = vadd.f32 0.0, %v3314
        %v3316 = vpop.f32.mrb[0].mxu0
        %3317 = vmatprep.mubr.bf16.mxu0 0
        %3318 = vmatmul.mubr.bf16.gmra.mrb[0].mxu0 %v3230
        %v3319 = vpop.f32.mrb[0].mxu0
        %v3320 = vadd.f32 0.0, %v3319
        %v3321 = vpop.f32.mrb[0].mxu0
        %v3322 = vpop.f32.mrb[0].mxu0
        %v3323 = vadd.f32 0.0, %v3322
        %v3324 = vpop.f32.mrb[0].mxu0
        %3325 = vmatprep.mubr.bf16.mxu0 0
        %3326 = vmatmul.mubr.bf16.gmra.mrb[0].mxu0 %v3233
        %v3327 = vpop.f32.mrb[0].mxu0
        %v3328 = vadd.f32 0.0, %v3327
        %v3329 = vpop.f32.mrb[0].mxu0
        %v3330 = vpop.f32.mrb[0].mxu0
        %v3331 = vadd.f32 0.0, %v3330
        %v3332 = vpop.f32.mrb[0].mxu0
        %3333 = vmatprep.mubr.bf16.mxu0 0
        %3334 = vmatmul.mubr.bf16.gmra.mrb[0].mxu0 %v3236
        %v3335 = vpop.f32.mrb[0].mxu0
        %v3336 = vadd.f32 0.0, %v3335
        %v3337 = vpop.f32.mrb[0].mxu0
        %v3338 = vpop.f32.mrb[0].mxu0
        %v3339 = vadd.f32 0.0, %v3338
        %v3340 = vpop.f32.mrb[0].mxu0
        %3341 = vmatprep.mubr.bf16.mxu0 0
        %3342 = vmatmul.mubr.bf16.gmra.mrb[0].mxu0 %v3239
        %v3343 = vpop.f32.mrb[0].mxu0
        %v3344 = vadd.f32 0.0, %v3343
        %v3345 = vpop.f32.mrb[0].mxu0
        %v3346 = vpop.f32.mrb[0].mxu0
        %v3347 = vadd.f32 0.0, %v3346
        %v3348 = vpop.f32.mrb[0].mxu0
        %3349 = vmatprep.mubr.bf16.mxu0 0
        %3350 = vmatmul.mubr.bf16.gmra.mrb[0].mxu0 %v3242
        %v3351 = vpop.f32.mrb[0].mxu0
        %v3352 = vadd.f32 0.0, %v3351
        %v3353 = vpop.f32.mrb[0].mxu0
        %v3354 = vpop.f32.mrb[0].mxu0
        %v3355 = vadd.f32 0.0, %v3354
        %v3356 = vpop.f32.mrb[0].mxu0
        %3357 = vmatprep.mubr.bf16.mxu0 0
        %3358 = vmatmul.mubr.bf16.gmra.mrb[0].mxu0 %v3245
        %v3359 = vpop.f32.mrb[0].mxu0
        %v3360 = vadd.f32 0.0, %v3359
        %v3361 = vpop.f32.mrb[0].mxu0
        %v3362 = vpop.f32.mrb[0].mxu0
        %v3363 = vadd.f32 0.0, %v3362
        %v3364 = vpop.f32.mrb[0].mxu0
        %3365 = vmatprep.mubr.bf16.mxu0 0
        %3366 = vmatmul.mubr.bf16.gmra.mrb[0].mxu0 %v3248
        %v3367 = vpop.f32.mrb[0].mxu0
        %v3368 = vadd.f32 0.0, %v3367
        %v3369 = vpop.f32.mrb[0].mxu0
        %v3370 = vpop.f32.mrb[0].mxu0
        %v3371 = vadd.f32 0.0, %v3370
        %v3372 = vpop.f32.mrb[0].mxu0
        %3373 = vmatprep.mubr.bf16.mxu0 0
        %3374 = vmatmul.mubr.bf16.gmra.mrb[0].mxu0 %v3251
        %v3375 = vpop.f32.mrb[0].mxu0
        %v3376 = vadd.f32 0.0, %v3375
        %v3377 = vpop.f32.mrb[0].mxu0
        %v3378 = vpop.f32.mrb[0].mxu0
        %v3379 = vadd.f32 0.0, %v3378
        %v3380 = vpop.f32.mrb[0].mxu0
        %3381 = vmatprep.mubr.bf16.mxu0 0
        %3382 = vmatmul.mubr.bf16.gmra.mrb[0].mxu0 %v3254
        %v3383 = vpop.f32.mrb[0].mxu0
        %v3384 = vadd.f32 0.0, %v3383
        %v3385 = vpop.f32.mrb[0].mxu0
        %v3386 = vpop.f32.mrb[0].mxu0
        %v3387 = vadd.f32 0.0, %v3386
        %v3388 = vpop.f32.mrb[0].mxu0
        %3389 = vmatprep.mubr.bf16.mxu0 0
        %3390 = vmatmul.mubr.bf16.gmra.mrb[0].mxu0 %v3257
        %v3391 = vpop.f32.mrb[0].mxu0
        %v3392 = vadd.f32 0.0, %v3391
        %v3393 = vpop.f32.mrb[0].mxu0
        %v3394 = vpop.f32.mrb[0].mxu0
        %v3395 = vadd.f32 0.0, %v3394
        %v3396 = vpop.f32.mrb[0].mxu0
        %3397 = vmatprep.mubr.bf16.mxu0 0
        %3398 = vmatmul.mubr.bf16.gmra.mrb[0].mxu0 %v3260
        %v3399 = vpop.f32.mrb[0].mxu0
        %v3400 = vadd.f32 0.0, %v3399
        %v3401 = vpop.f32.mrb[0].mxu0
        %v3402 = vpop.f32.mrb[0].mxu0
        %v3403 = vadd.f32 0.0, %v3402
        %v3404 = vpop.f32.mrb[0].mxu0
        %3405 = vmatprep.mubr.bf16.mxu0 0
        %3406 = vmatmul.mubr.bf16.gmra.mrb[0].mxu0 %v3263
        %v3407 = vpop.f32.mrb[0].mxu0
        %v3408 = vadd.f32 0.0, %v3407
        %v3409 = vpop.f32.mrb[0].mxu0
        %v3410 = vpop.f32.mrb[0].mxu0
        %v3411 = vadd.f32 0.0, %v3410
        %v3412 = vpop.f32.mrb[0].mxu0
        %3413 = vmatprep.mubr.bf16.mxu0 0
        %3414 = vmatmul.mubr.bf16.gmra.mrb[0].mxu0 %v3266
        %v3415 = vpop.f32.mrb[0].mxu0
        %v3416 = vadd.f32 0.0, %v3415
        %v3417 = vpop.f32.mrb[0].mxu0
        %v3418 = vpop.f32.mrb[0].mxu0
        %v3419 = vadd.f32 0.0, %v3418
        %v3420 = vpop.f32.mrb[0].mxu0
        %3421 = vmatprep.mubr.bf16.mxu0 0
        %3422 = vmatmul.mubr.bf16.gmra.mrb[0].mxu0 %v3269
        %v3423 = vpop.f32.mrb[0].mxu0
        %v3424 = vadd.f32 0.0, %v3423
        %v3425 = vpop.f32.mrb[0].mxu0
        %v3426 = vpop.f32.mrb[0].mxu0
        %v3427 = vadd.f32 0.0, %v3426
        %v3428 = vpop.f32.mrb[0].mxu0
        %3429 = vmatprep.mubr.bf16.mxu0 0
        %3430 = vmatmul.mubr.bf16.gmra.mrb[0].mxu0 %v3272
        %v3431 = vpop.f32.mrb[0].mxu0
        %v3432 = vadd.f32 0.0, %v3431
        %v3433 = vpop.f32.mrb[0].mxu0
        %v3434 = vpop.f32.mrb[0].mxu0
        %v3435 = vadd.f32 0.0, %v3434
        %v3436 = vpop.f32.mrb[0].mxu0
        %3437 = vdwg.mxu0
        %v3438 = vadd.f32 %v3019, %v3312
        %v3439 = vadd.f32 %v3020, %v3315
        %v3440 = vadd.f32 %v3021, %v3320
        %v3441 = vadd.f32 %v3022, %v3323
        %v3442 = vadd.f32 %v3023, %v3328
        %v3443 = vadd.f32 %v3024, %v3331
        %v3444 = vadd.f32 %v3025, %v3336
        %v3445 = vadd.f32 %v3026, %v3339
        %v3446 = vadd.f32 %v3027, %v3344
        %v3447 = vadd.f32 %v3028, %v3347
        %v3448 = vadd.f32 %v3029, %v3352
        %v3449 = vadd.f32 %v3030, %v3355
        %v3450 = vadd.f32 %v3031, %v3360
        %v3451 = vadd.f32 %v3032, %v3363
        %v3452 = vadd.f32 %v3033, %v3368
        %v3453 = vadd.f32 %v3034, %v3371
        %v3454 = vadd.f32 %v3035, %v3376
        %v3455 = vadd.f32 %v3036, %v3379
        %v3456 = vadd.f32 %v3037, %v3384
        %v3457 = vadd.f32 %v3038, %v3387
        %v3458 = vadd.f32 %v3039, %v3392
        %v3459 = vadd.f32 %v3040, %v3395
        %v3460 = vadd.f32 %v3041, %v3400
        %v3461 = vadd.f32 %v3042, %v3403
        %v3462 = vadd.f32 %v3043, %v3408
        %v3463 = vadd.f32 %v3044, %v3411
        %v3464 = vadd.f32 %v3045, %v3416
        %v3465 = vadd.f32 %v3046, %v3419
        %v3466 = vadd.f32 %v3047, %v3424
        %v3467 = vadd.f32 %v3048, %v3427
        %v3468 = vadd.f32 %v3049, %v3432
        %v3469 = vadd.f32 %v3050, %v3435
        %v3470 = vsel %vm3053, 1, 0
        %v3471 = vsel %vm3054, 1, 0
        %v3472 = vsel %vm3055, 1, 0
        %v3473 = vsel %vm3056, 1, 0
        %v3474 = vsel %vm3057, 1, 0
        %v3475 = vsel %vm3058, 1, 0
        %v3476 = vsel %vm3059, 1, 0
        %v3477 = vsel %vm3060, 1, 0
        %v3478 = vsel %vm3061, 1, 0
        %v3479 = vsel %vm3062, 1, 0
        %v3480 = vsel %vm3063, 1, 0
        %v3481 = vsel %vm3064, 1, 0
        %v3482 = vsel %vm3065, 1, 0
        %v3483 = vsel %vm3066, 1, 0
        %v3484 = vsel %vm3067, 1, 0
        %v3485 = vsel %vm3068, 1, 0
        %v3486 = vsel %vm3069, 1, 0
        %v3487 = vsel %vm3070, 1, 0
        %v3488 = vsel %vm3071, 1, 0
        %v3489 = vsel %vm3072, 1, 0
        %v3490 = vsel %vm3073, 1, 0
        %v3491 = vsel %vm3074, 1, 0
        %v3492 = vsel %vm3075, 1, 0
        %v3493 = vsel %vm3076, 1, 0
        %v3494 = vsel %vm3077, 1, 0
        %v3495 = vsel %vm3078, 1, 0
        %v3496 = vsel %vm3079, 1, 0
        %v3497 = vsel %vm3080, 1, 0
        %v3498 = vsel %vm3081, 1, 0
        %v3499 = vsel %vm3082, 1, 0
        %vm3500 = vcmp.eq.s32.totalorder %v3470, 1
        %vm3501 = vcmp.eq.s32.totalorder %v3471, 1
        %vm3502 = vcmp.eq.s32.totalorder %v3472, 1
        %vm3503 = vcmp.eq.s32.totalorder %v3473, 1
        %vm3504 = vcmp.eq.s32.totalorder %v3474, 1
        %vm3505 = vcmp.eq.s32.totalorder %v3475, 1
        %vm3506 = vcmp.eq.s32.totalorder %v3476, 1
        %vm3507 = vcmp.eq.s32.totalorder %v3477, 1
        %vm3508 = vcmp.eq.s32.totalorder %v3478, 1
        %vm3509 = vcmp.eq.s32.totalorder %v3479, 1
        %vm3510 = vcmp.eq.s32.totalorder %v3480, 1
        %vm3511 = vcmp.eq.s32.totalorder %v3481, 1
        %vm3512 = vcmp.eq.s32.totalorder %v3482, 1
        %vm3513 = vcmp.eq.s32.totalorder %v3483, 1
        %vm3514 = vcmp.eq.s32.totalorder %v3484, 1
        %vm3515 = vcmp.eq.s32.totalorder %v3485, 1
        %vm3516 = vcmp.eq.s32.totalorder %v3486, 1
        %vm3517 = vcmp.eq.s32.totalorder %v3487, 1
        %vm3518 = vcmp.eq.s32.totalorder %v3488, 1
        %vm3519 = vcmp.eq.s32.totalorder %v3489, 1
        %vm3520 = vcmp.eq.s32.totalorder %v3490, 1
        %vm3521 = vcmp.eq.s32.totalorder %v3491, 1
        %vm3522 = vcmp.eq.s32.totalorder %v3492, 1
        %vm3523 = vcmp.eq.s32.totalorder %v3493, 1
        %vm3524 = vcmp.eq.s32.totalorder %v3494, 1
        %vm3525 = vcmp.eq.s32.totalorder %v3495, 1
        %vm3526 = vcmp.eq.s32.totalorder %v3496, 1
        %vm3527 = vcmp.eq.s32.totalorder %v3497, 1
        %vm3528 = vcmp.eq.s32.totalorder %v3498, 1
        %vm3529 = vcmp.eq.s32.totalorder %v3499, 1
        %v3530 = vsel %vm3500, %v441, 0.0
        %v3531 = vsel %vm3501, %v442, 0.0
        %v3532 = vsel %vm3502, %v443, 0.0
        %v3533 = vsel %vm3503, %v444, 0.0
        %v3534 = vsel %vm3504, %v445, 0.0
        %v3535 = vsel %vm3505, %v446, 0.0
        %v3536 = vsel %vm3506, %v447, 0.0
        %v3537 = vsel %vm3507, %v448, 0.0
        %v3538 = vsel %vm3508, %v449, 0.0
        %v3539 = vsel %vm3509, %v450, 0.0
        %v3540 = vsel %vm3510, %v451, 0.0
        %v3541 = vsel %vm3511, %v452, 0.0
        %v3542 = vsel %vm3512, %v453, 0.0
        %v3543 = vsel %vm3513, %v454, 0.0
        %v3544 = vsel %vm3514, %v455, 0.0
        %v3545 = vsel %vm3515, %v456, 0.0
        %v3546 = vsel %vm3516, %v457, 0.0
        %v3547 = vsel %vm3517, %v458, 0.0
        %v3548 = vsel %vm3518, %v459, 0.0
        %v3549 = vsel %vm3519, %v460, 0.0
        %v3550 = vsel %vm3520, %v461, 0.0
        %v3551 = vsel %vm3521, %v462, 0.0
        %v3552 = vsel %vm3522, %v463, 0.0
        %v3553 = vsel %vm3523, %v464, 0.0
        %v3554 = vsel %vm3524, %v465, 0.0
        %v3555 = vsel %vm3525, %v466, 0.0
        %v3556 = vsel %vm3526, %v467, 0.0
        %v3557 = vsel %vm3527, %v468, 0.0
        %v3558 = vsel %vm3528, %v469, 0.0
        %v3559 = vsel %vm3529, %v470, 0.0
        %v3560 = vpack.c.bf16 %v3531, %v3530
        %v3561 = vpack.c.bf16 %v3533, %v3532
        %v3562 = vpack.c.bf16 %v3535, %v3534
        %v3563 = vpack.c.bf16 %v3537, %v3536
        %v3564 = vpack.c.bf16 %v3539, %v3538
        %v3565 = vpack.c.bf16 %v3541, %v3540
        %v3566 = vpack.c.bf16 %v3543, %v3542
        %v3567 = vpack.c.bf16 %v3545, %v3544
        %v3568 = vpack.c.bf16 %v3547, %v3546
        %v3569 = vpack.c.bf16 %v3549, %v3548
        %v3570 = vpack.c.bf16 %v3551, %v3550
        %v3571 = vpack.c.bf16 %v3553, %v3552
        %v3572 = vpack.c.bf16 %v3555, %v3554
        %v3573 = vpack.c.bf16 %v3557, %v3556
        %v3574 = vpack.c.bf16 %v3559, %v3558
        %s3575 = scalar_lea.vmem %s1, 14
        %v3576 = vld [vmem:[%s3575] sm:$0x3]
        %v3578 = vsel %vm1125, %v3560, 0
        %v3581 = vsel %vm1125, %v3561, 0
        %v3584 = vsel %vm1125, %v3562, 0
        %v3587 = vsel %vm1125, %v3563, 0
        %v3590 = vsel %vm1125, %v3564, 0
        %v3593 = vsel %vm1125, %v3565, 0
        %v3596 = vsel %vm1125, %v3566, 0
        %v3599 = vsel %vm1125, %v3567, 0
        %v3602 = vsel %vm1125, %v3568, 0
        %v3605 = vsel %vm1125, %v3569, 0
        %v3608 = vsel %vm1125, %v3570, 0
        %v3611 = vsel %vm1125, %v3571, 0
        %v3614 = vsel %vm1125, %v3572, 0
        %v3617 = vsel %vm1125, %v3573, 0
        %v3620 = vsel %vm1125, %v3574, 0
        %v3623 = vsel %vm1174, %v3576, 0
        %3625 = vmatprep.subr.bf16.mxu0 0
        %3626 = vmatpush1.bf16.msra.mxu0 %v3623
        %3627 = vmatprep.subr.bf16.mxu0 0
        %3628 = vmatpush1.bf16.msra.mxu0 0
        %3629 = vmatprep.subr.bf16.mxu0 0
        %3630 = vmatpush1.bf16.msra.mxu0 0
        %3631 = vmatprep.subr.bf16.mxu0 0
        %3632 = vmatpush1.bf16.msra.mxu0 0
        %3633 = vmatprep.subr.bf16.mxu0 0
        %3634 = vmatpush1.bf16.msra.mxu0 0
        %3635 = vmatprep.subr.bf16.mxu0 0
        %3636 = vmatpush1.bf16.msra.mxu0 0
        %3637 = vmatprep.subr.bf16.mxu0 0
        %3638 = vmatpush1.bf16.msra.mxu0 0
        %3639 = vmatprep.subr.bf16.mxu0 0
        %3640 = vmatpush1.bf16.msra.mxu0 0
        %3641 = vmatprep.subr.bf16.mxu0 0
        %3642 = vmatpush1.bf16.msra.mxu0 0
        %3643 = vmatprep.subr.bf16.mxu0 0
        %3644 = vmatpush1.bf16.msra.mxu0 0
        %3645 = vmatprep.subr.bf16.mxu0 0
        %3646 = vmatpush1.bf16.msra.mxu0 0
        %3647 = vmatprep.subr.bf16.mxu0 0
        %3648 = vmatpush1.bf16.msra.mxu0 0
        %3649 = vmatprep.subr.bf16.mxu0 0
        %3650 = vmatpush1.bf16.msra.mxu0 0
        %3651 = vmatprep.subr.bf16.mxu0 0
        %3652 = vmatpush1.bf16.msra.mxu0 0
        %3653 = vmatprep.subr.bf16.mxu0 0
        %3654 = vmatpush1.bf16.msra.mxu0 0
        %3655 = vmatprep.subr.bf16.mxu0 0
        %3656 = vmatpush1.bf16.msra.mxu0 0
        %3657 = vmatprep.mubr.bf16.mxu0 0
        %3658 = vmatmul.mubr.bf16.gmra.mrb[0].mxu0 %v3578
        %v3659 = vpop.f32.mrb[0].mxu0
        %v3660 = vadd.f32 0.0, %v3659
        %v3661 = vpop.f32.mrb[0].mxu0
        %v3662 = vpop.f32.mrb[0].mxu0
        %v3663 = vadd.f32 0.0, %v3662
        %v3664 = vpop.f32.mrb[0].mxu0
        %3665 = vmatprep.mubr.bf16.mxu0 0
        %3666 = vmatmul.mubr.bf16.gmra.mrb[0].mxu0 %v3581
        %v3667 = vpop.f32.mrb[0].mxu0
        %v3668 = vadd.f32 0.0, %v3667
        %v3669 = vpop.f32.mrb[0].mxu0
        %v3670 = vpop.f32.mrb[0].mxu0
        %v3671 = vadd.f32 0.0, %v3670
        %v3672 = vpop.f32.mrb[0].mxu0
        %3673 = vmatprep.mubr.bf16.mxu0 0
        %3674 = vmatmul.mubr.bf16.gmra.mrb[0].mxu0 %v3584
        %v3675 = vpop.f32.mrb[0].mxu0
        %v3676 = vadd.f32 0.0, %v3675
        %v3677 = vpop.f32.mrb[0].mxu0
        %v3678 = vpop.f32.mrb[0].mxu0
        %v3679 = vadd.f32 0.0, %v3678
        %v3680 = vpop.f32.mrb[0].mxu0
        %3681 = vmatprep.mubr.bf16.mxu0 0
        %3682 = vmatmul.mubr.bf16.gmra.mrb[0].mxu0 %v3587
        %v3683 = vpop.f32.mrb[0].mxu0
        %v3684 = vadd.f32 0.0, %v3683
        %v3685 = vpop.f32.mrb[0].mxu0
        %v3686 = vpop.f32.mrb[0].mxu0
        %v3687 = vadd.f32 0.0, %v3686
        %v3688 = vpop.f32.mrb[0].mxu0
        %3689 = vmatprep.mubr.bf16.mxu0 0
        %3690 = vmatmul.mubr.bf16.gmra.mrb[0].mxu0 %v3590
        %v3691 = vpop.f32.mrb[0].mxu0
        %v3692 = vadd.f32 0.0, %v3691
        %v3693 = vpop.f32.mrb[0].mxu0
        %v3694 = vpop.f32.mrb[0].mxu0
        %v3695 = vadd.f32 0.0, %v3694
        %v3696 = vpop.f32.mrb[0].mxu0
        %3697 = vmatprep.mubr.bf16.mxu0 0
        %3698 = vmatmul.mubr.bf16.gmra.mrb[0].mxu0 %v3593
        %v3699 = vpop.f32.mrb[0].mxu0
        %v3700 = vadd.f32 0.0, %v3699
        %v3701 = vpop.f32.mrb[0].mxu0
        %v3702 = vpop.f32.mrb[0].mxu0
        %v3703 = vadd.f32 0.0, %v3702
        %v3704 = vpop.f32.mrb[0].mxu0
        %3705 = vmatprep.mubr.bf16.mxu0 0
        %3706 = vmatmul.mubr.bf16.gmra.mrb[0].mxu0 %v3596
        %v3707 = vpop.f32.mrb[0].mxu0
        %v3708 = vadd.f32 0.0, %v3707
        %v3709 = vpop.f32.mrb[0].mxu0
        %v3710 = vpop.f32.mrb[0].mxu0
        %v3711 = vadd.f32 0.0, %v3710
        %v3712 = vpop.f32.mrb[0].mxu0
        %3713 = vmatprep.mubr.bf16.mxu0 0
        %3714 = vmatmul.mubr.bf16.gmra.mrb[0].mxu0 %v3599
        %v3715 = vpop.f32.mrb[0].mxu0
        %v3716 = vadd.f32 0.0, %v3715
        %v3717 = vpop.f32.mrb[0].mxu0
        %v3718 = vpop.f32.mrb[0].mxu0
        %v3719 = vadd.f32 0.0, %v3718
        %v3720 = vpop.f32.mrb[0].mxu0
        %3721 = vmatprep.mubr.bf16.mxu0 0
        %3722 = vmatmul.mubr.bf16.gmra.mrb[0].mxu0 %v3602
        %v3723 = vpop.f32.mrb[0].mxu0
        %v3724 = vadd.f32 0.0, %v3723
        %v3725 = vpop.f32.mrb[0].mxu0
        %v3726 = vpop.f32.mrb[0].mxu0
        %v3727 = vadd.f32 0.0, %v3726
        %v3728 = vpop.f32.mrb[0].mxu0
        %3729 = vmatprep.mubr.bf16.mxu0 0
        %3730 = vmatmul.mubr.bf16.gmra.mrb[0].mxu0 %v3605
        %v3731 = vpop.f32.mrb[0].mxu0
        %v3732 = vadd.f32 0.0, %v3731
        %v3733 = vpop.f32.mrb[0].mxu0
        %v3734 = vpop.f32.mrb[0].mxu0
        %v3735 = vadd.f32 0.0, %v3734
        %v3736 = vpop.f32.mrb[0].mxu0
        %3737 = vmatprep.mubr.bf16.mxu0 0
        %3738 = vmatmul.mubr.bf16.gmra.mrb[0].mxu0 %v3608
        %v3739 = vpop.f32.mrb[0].mxu0
        %v3740 = vadd.f32 0.0, %v3739
        %v3741 = vpop.f32.mrb[0].mxu0
        %v3742 = vpop.f32.mrb[0].mxu0
        %v3743 = vadd.f32 0.0, %v3742
        %v3744 = vpop.f32.mrb[0].mxu0
        %3745 = vmatprep.mubr.bf16.mxu0 0
        %3746 = vmatmul.mubr.bf16.gmra.mrb[0].mxu0 %v3611
        %v3747 = vpop.f32.mrb[0].mxu0
        %v3748 = vadd.f32 0.0, %v3747
        %v3749 = vpop.f32.mrb[0].mxu0
        %v3750 = vpop.f32.mrb[0].mxu0
        %v3751 = vadd.f32 0.0, %v3750
        %v3752 = vpop.f32.mrb[0].mxu0
        %3753 = vmatprep.mubr.bf16.mxu0 0
        %3754 = vmatmul.mubr.bf16.gmra.mrb[0].mxu0 %v3614
        %v3755 = vpop.f32.mrb[0].mxu0
        %v3756 = vadd.f32 0.0, %v3755
        %v3757 = vpop.f32.mrb[0].mxu0
        %v3758 = vpop.f32.mrb[0].mxu0
        %v3759 = vadd.f32 0.0, %v3758
        %v3760 = vpop.f32.mrb[0].mxu0
        %3761 = vmatprep.mubr.bf16.mxu0 0
        %3762 = vmatmul.mubr.bf16.gmra.mrb[0].mxu0 %v3617
        %v3763 = vpop.f32.mrb[0].mxu0
        %v3764 = vadd.f32 0.0, %v3763
        %v3765 = vpop.f32.mrb[0].mxu0
        %v3766 = vpop.f32.mrb[0].mxu0
        %v3767 = vadd.f32 0.0, %v3766
        %v3768 = vpop.f32.mrb[0].mxu0
        %3769 = vmatprep.mubr.bf16.mxu0 0
        %3770 = vmatmul.mubr.bf16.gmra.mrb[0].mxu0 %v3620
        %v3771 = vpop.f32.mrb[0].mxu0
        %v3772 = vadd.f32 0.0, %v3771
        %v3773 = vpop.f32.mrb[0].mxu0
        %v3774 = vpop.f32.mrb[0].mxu0
        %v3775 = vadd.f32 0.0, %v3774
        %v3776 = vpop.f32.mrb[0].mxu0
        %3777 = vmatprep.mubr.bf16.mxu0 0
        %3778 = vmatmul.mubr.bf16.gmra.mrb[0].mxu0 %v1127
        %v3779 = vpop.f32.mrb[0].mxu0
        %v3780 = vadd.f32 0.0, %v3779
        %v3781 = vpop.f32.mrb[0].mxu0
        %v3782 = vpop.f32.mrb[0].mxu0
        %v3783 = vadd.f32 0.0, %v3782
        %v3784 = vpop.f32.mrb[0].mxu0
        %3785 = vdwg.mxu0
        %v3786 = vadd.f32 %v3438, %v3660
        %v3787 = vadd.f32 %v3439, %v3663
        %v3788 = vadd.f32 %v3440, %v3668
        %v3789 = vadd.f32 %v3441, %v3671
        %v3790 = vadd.f32 %v3442, %v3676
        %v3791 = vadd.f32 %v3443, %v3679
        %v3792 = vadd.f32 %v3444, %v3684
        %v3793 = vadd.f32 %v3445, %v3687
        %v3794 = vadd.f32 %v3446, %v3692
        %v3795 = vadd.f32 %v3447, %v3695
        %v3796 = vadd.f32 %v3448, %v3700
        %v3797 = vadd.f32 %v3449, %v3703
        %v3798 = vadd.f32 %v3450, %v3708
        %v3799 = vadd.f32 %v3451, %v3711
        %v3800 = vadd.f32 %v3452, %v3716
        %v3801 = vadd.f32 %v3453, %v3719
        %v3802 = vadd.f32 %v3454, %v3724
        %v3803 = vadd.f32 %v3455, %v3727
        %v3804 = vadd.f32 %v3456, %v3732
        %v3805 = vadd.f32 %v3457, %v3735
        %v3806 = vadd.f32 %v3458, %v3740
        %v3807 = vadd.f32 %v3459, %v3743
        %v3808 = vadd.f32 %v3460, %v3748
        %v3809 = vadd.f32 %v3461, %v3751
        %v3810 = vadd.f32 %v3462, %v3756
        %v3811 = vadd.f32 %v3463, %v3759
        %v3812 = vadd.f32 %v3464, %v3764
        %v3813 = vadd.f32 %v3465, %v3767
        %v3814 = vadd.f32 %v3466, %v3772
        %v3815 = vadd.f32 %v3467, %v3775
        %v3816 = vadd.f32 %v3468, %v3780
        %v3817 = vadd.f32 %v3469, %v3783
        %vm3818 = vmand %vm3053, %vm1643
        %vm3819 = vmand %vm3054, %vm1644
        %vm3820 = vmand %vm3055, %vm1645
        %vm3821 = vmand %vm3056, %vm1646
        %vm3822 = vmand %vm3057, %vm1647
        %vm3823 = vmand %vm3058, %vm1648
        %vm3824 = vmand %vm3059, %vm1649
        %vm3825 = vmand %vm3060, %vm1650
        %vm3826 = vmand %vm3061, %vm1651
        %vm3827 = vmand %vm3062, %vm1652
        %vm3828 = vmand %vm3063, %vm1653
        %vm3829 = vmand %vm3064, %vm1654
        %vm3830 = vmand %vm3065, %vm1655
        %vm3831 = vmand %vm3066, %vm1656
        %vm3832 = vmand %vm3067, %vm1657
        %vm3833 = vmand %vm3068, %vm1658
        %vm3834 = vmand %vm3069, %vm1659
        %vm3835 = vmand %vm3070, %vm1660
        %vm3836 = vmand %vm3071, %vm1661
        %vm3837 = vmand %vm3072, %vm1662
        %vm3838 = vmand %vm3073, %vm1663
        %vm3839 = vmand %vm3074, %vm1664
        %vm3840 = vmand %vm3075, %vm1665
        %vm3841 = vmand %vm3076, %vm1666
        %vm3842 = vmand %vm3077, %vm1667
        %vm3843 = vmand %vm3078, %vm1668
        %vm3844 = vmand %vm3079, %vm1669
        %vm3845 = vmand %vm3080, %vm1670
        %vm3846 = vmand %vm3081, %vm1671
        %vm3847 = vmand %vm3082, %vm1672
        %v3848 = vsel %vm3818, 1, 0
        %v3849 = vsel %vm3819, 1, 0
        %v3850 = vsel %vm3820, 1, 0
        %v3851 = vsel %vm3821, 1, 0
        %v3852 = vsel %vm3822, 1, 0
        %v3853 = vsel %vm3823, 1, 0
        %v3854 = vsel %vm3824, 1, 0
        %v3855 = vsel %vm3825, 1, 0
        %v3856 = vsel %vm3826, 1, 0
        %v3857 = vsel %vm3827, 1, 0
        %v3858 = vsel %vm3828, 1, 0
        %v3859 = vsel %vm3829, 1, 0
        %v3860 = vsel %vm3830, 1, 0
        %v3861 = vsel %vm3831, 1, 0
        %v3862 = vsel %vm3832, 1, 0
        %v3863 = vsel %vm3833, 1, 0
        %v3864 = vsel %vm3834, 1, 0
        %v3865 = vsel %vm3835, 1, 0
        %v3866 = vsel %vm3836, 1, 0
        %v3867 = vsel %vm3837, 1, 0
        %v3868 = vsel %vm3838, 1, 0
        %v3869 = vsel %vm3839, 1, 0
        %v3870 = vsel %vm3840, 1, 0
        %v3871 = vsel %vm3841, 1, 0
        %v3872 = vsel %vm3842, 1, 0
        %v3873 = vsel %vm3843, 1, 0
        %v3874 = vsel %vm3844, 1, 0
        %v3875 = vsel %vm3845, 1, 0
        %v3876 = vsel %vm3846, 1, 0
        %v3877 = vsel %vm3847, 1, 0
        %vm3878 = vcmp.eq.s32.totalorder %v3848, 1
        %vm3879 = vcmp.eq.s32.totalorder %v3849, 1
        %vm3880 = vcmp.eq.s32.totalorder %v3850, 1
        %vm3881 = vcmp.eq.s32.totalorder %v3851, 1
        %vm3882 = vcmp.eq.s32.totalorder %v3852, 1
        %vm3883 = vcmp.eq.s32.totalorder %v3853, 1
        %vm3884 = vcmp.eq.s32.totalorder %v3854, 1
        %vm3885 = vcmp.eq.s32.totalorder %v3855, 1
        %vm3886 = vcmp.eq.s32.totalorder %v3856, 1
        %vm3887 = vcmp.eq.s32.totalorder %v3857, 1
        %vm3888 = vcmp.eq.s32.totalorder %v3858, 1
        %vm3889 = vcmp.eq.s32.totalorder %v3859, 1
        %vm3890 = vcmp.eq.s32.totalorder %v3860, 1
        %vm3891 = vcmp.eq.s32.totalorder %v3861, 1
        %vm3892 = vcmp.eq.s32.totalorder %v3862, 1
        %vm3893 = vcmp.eq.s32.totalorder %v3863, 1
        %vm3894 = vcmp.eq.s32.totalorder %v3864, 1
        %vm3895 = vcmp.eq.s32.totalorder %v3865, 1
        %vm3896 = vcmp.eq.s32.totalorder %v3866, 1
        %vm3897 = vcmp.eq.s32.totalorder %v3867, 1
        %vm3898 = vcmp.eq.s32.totalorder %v3868, 1
        %vm3899 = vcmp.eq.s32.totalorder %v3869, 1
        %vm3900 = vcmp.eq.s32.totalorder %v3870, 1
        %vm3901 = vcmp.eq.s32.totalorder %v3871, 1
        %vm3902 = vcmp.eq.s32.totalorder %v3872, 1
        %vm3903 = vcmp.eq.s32.totalorder %v3873, 1
        %vm3904 = vcmp.eq.s32.totalorder %v3874, 1
        %vm3905 = vcmp.eq.s32.totalorder %v3875, 1
        %vm3906 = vcmp.eq.s32.totalorder %v3876, 1
        %vm3907 = vcmp.eq.s32.totalorder %v3877, 1
        %v3908 = vsel %vm3878, %v1556, 0.0
        %v3909 = vsel %vm3879, %v1558, 0.0
        %v3910 = vsel %vm3880, %v1560, 0.0
        %v3911 = vsel %vm3881, %v1562, 0.0
        %v3912 = vsel %vm3882, %v1564, 0.0
        %v3913 = vsel %vm3883, %v1566, 0.0
        %v3914 = vsel %vm3884, %v1568, 0.0
        %v3915 = vsel %vm3885, %v1570, 0.0
        %v3916 = vsel %vm3886, %v1572, 0.0
        %v3917 = vsel %vm3887, %v1574, 0.0
        %v3918 = vsel %vm3888, %v1576, 0.0
        %v3919 = vsel %vm3889, %v1578, 0.0
        %v3920 = vsel %vm3890, %v1580, 0.0
        %v3921 = vsel %vm3891, %v1582, 0.0
        %v3922 = vsel %vm3892, %v1584, 0.0
        %v3923 = vsel %vm3893, %v1586, 0.0
        %v3924 = vsel %vm3894, %v1588, 0.0
        %v3925 = vsel %vm3895, %v1590, 0.0
        %v3926 = vsel %vm3896, %v1592, 0.0
        %v3927 = vsel %vm3897, %v1594, 0.0
        %v3928 = vsel %vm3898, %v1596, 0.0
        %v3929 = vsel %vm3899, %v1598, 0.0
        %v3930 = vsel %vm3900, %v1600, 0.0
        %v3931 = vsel %vm3901, %v1602, 0.0
        %v3932 = vsel %vm3902, %v1604, 0.0
        %v3933 = vsel %vm3903, %v1606, 0.0
        %v3934 = vsel %vm3904, %v1608, 0.0
        %v3935 = vsel %vm3905, %v1610, 0.0
        %v3936 = vsel %vm3906, %v2689, 0.0
        %v3937 = vsel %vm3907, %v2692, 0.0
        %v3938 = vpack.c.bf16 %v3909, %v3908
        %v3939 = vpack.c.bf16 %v3911, %v3910
        %v3940 = vpack.c.bf16 %v3913, %v3912
        %v3941 = vpack.c.bf16 %v3915, %v3914
        %v3942 = vpack.c.bf16 %v3917, %v3916
        %v3943 = vpack.c.bf16 %v3919, %v3918
        %v3944 = vpack.c.bf16 %v3921, %v3920
        %v3945 = vpack.c.bf16 %v3923, %v3922
        %v3946 = vpack.c.bf16 %v3925, %v3924
        %v3947 = vpack.c.bf16 %v3927, %v3926
        %v3948 = vpack.c.bf16 %v3929, %v3928
        %v3949 = vpack.c.bf16 %v3931, %v3930
        %v3950 = vpack.c.bf16 %v3933, %v3932
        %v3951 = vpack.c.bf16 %v3935, %v3934
        %v3952 = vpack.c.bf16 %v3937, %v3936
        %s3953 = scalar_lea.vmem %s1, 16
        %v3954 = vld [vmem:[%s3953] sm:$0x3]
        %v3956 = vsel %vm1125, %v3938, 0
        %v3959 = vsel %vm1125, %v3939, 0
        %v3962 = vsel %vm1125, %v3940, 0
        %v3965 = vsel %vm1125, %v3941, 0
        %v3968 = vsel %vm1125, %v3942, 0
        %v3971 = vsel %vm1125, %v3943, 0
        %v3974 = vsel %vm1125, %v3944, 0
        %v3977 = vsel %vm1125, %v3945, 0
        %v3980 = vsel %vm1125, %v3946, 0
        %v3983 = vsel %vm1125, %v3947, 0
        %v3986 = vsel %vm1125, %v3948, 0
        %v3989 = vsel %vm1125, %v3949, 0
        %v3992 = vsel %vm1125, %v3950, 0
        %v3995 = vsel %vm1125, %v3951, 0
        %v3998 = vsel %vm1125, %v3952, 0
        %v4001 = vsel %vm1174, %v3954, 0
        %4003 = vmatprep.subr.bf16.mxu0 0
        %4004 = vmatpush1.bf16.msra.mxu0 %v4001
        %4005 = vmatprep.subr.bf16.mxu0 0
        %4006 = vmatpush1.bf16.msra.mxu0 0
        %4007 = vmatprep.subr.bf16.mxu0 0
        %4008 = vmatpush1.bf16.msra.mxu0 0
        %4009 = vmatprep.subr.bf16.mxu0 0
        %4010 = vmatpush1.bf16.msra.mxu0 0
        %4011 = vmatprep.subr.bf16.mxu0 0
        %4012 = vmatpush1.bf16.msra.mxu0 0
        %4013 = vmatprep.subr.bf16.mxu0 0
        %4014 = vmatpush1.bf16.msra.mxu0 0
        %4015 = vmatprep.subr.bf16.mxu0 0
        %4016 = vmatpush1.bf16.msra.mxu0 0
        %4017 = vmatprep.subr.bf16.mxu0 0
        %4018 = vmatpush1.bf16.msra.mxu0 0
        %4019 = vmatprep.subr.bf16.mxu0 0
        %4020 = vmatpush1.bf16.msra.mxu0 0
        %4021 = vmatprep.subr.bf16.mxu0 0
        %4022 = vmatpush1.bf16.msra.mxu0 0
        %4023 = vmatprep.subr.bf16.mxu0 0
        %4024 = vmatpush1.bf16.msra.mxu0 0
        %4025 = vmatprep.subr.bf16.mxu0 0
        %4026 = vmatpush1.bf16.msra.mxu0 0
        %4027 = vmatprep.subr.bf16.mxu0 0
        %4028 = vmatpush1.bf16.msra.mxu0 0
        %4029 = vmatprep.subr.bf16.mxu0 0
        %4030 = vmatpush1.bf16.msra.mxu0 0
        %4031 = vmatprep.subr.bf16.mxu0 0
        %4032 = vmatpush1.bf16.msra.mxu0 0
        %4033 = vmatprep.subr.bf16.mxu0 0
        %4034 = vmatpush1.bf16.msra.mxu0 0
        %4035 = vmatprep.mubr.bf16.mxu0 0
        %4036 = vmatmul.mubr.bf16.gmra.mrb[0].mxu0 %v3956
        %v4037 = vpop.f32.mrb[0].mxu0
        %v4038 = vadd.f32 0.0, %v4037
        %v4039 = vpop.f32.mrb[0].mxu0
        %v4040 = vpop.f32.mrb[0].mxu0
        %v4041 = vadd.f32 0.0, %v4040
        %v4042 = vpop.f32.mrb[0].mxu0
        %4043 = vmatprep.mubr.bf16.mxu0 0
        %4044 = vmatmul.mubr.bf16.gmra.mrb[0].mxu0 %v3959
        %v4045 = vpop.f32.mrb[0].mxu0
        %v4046 = vadd.f32 0.0, %v4045
        %v4047 = vpop.f32.mrb[0].mxu0
        %v4048 = vpop.f32.mrb[0].mxu0
        %v4049 = vadd.f32 0.0, %v4048
        %v4050 = vpop.f32.mrb[0].mxu0
        %4051 = vmatprep.mubr.bf16.mxu0 0
        %4052 = vmatmul.mubr.bf16.gmra.mrb[0].mxu0 %v3962
        %v4053 = vpop.f32.mrb[0].mxu0
        %v4054 = vadd.f32 0.0, %v4053
        %v4055 = vpop.f32.mrb[0].mxu0
        %v4056 = vpop.f32.mrb[0].mxu0
        %v4057 = vadd.f32 0.0, %v4056
        %v4058 = vpop.f32.mrb[0].mxu0
        %4059 = vmatprep.mubr.bf16.mxu0 0
        %4060 = vmatmul.mubr.bf16.gmra.mrb[0].mxu0 %v3965
        %v4061 = vpop.f32.mrb[0].mxu0
        %v4062 = vadd.f32 0.0, %v4061
        %v4063 = vpop.f32.mrb[0].mxu0
        %v4064 = vpop.f32.mrb[0].mxu0
        %v4065 = vadd.f32 0.0, %v4064
        %v4066 = vpop.f32.mrb[0].mxu0
        %4067 = vmatprep.mubr.bf16.mxu0 0
        %4068 = vmatmul.mubr.bf16.gmra.mrb[0].mxu0 %v3968
        %v4069 = vpop.f32.mrb[0].mxu0
        %v4070 = vadd.f32 0.0, %v4069
        %v4071 = vpop.f32.mrb[0].mxu0
        %v4072 = vpop.f32.mrb[0].mxu0
        %v4073 = vadd.f32 0.0, %v4072
        %v4074 = vpop.f32.mrb[0].mxu0
        %4075 = vmatprep.mubr.bf16.mxu0 0
        %4076 = vmatmul.mubr.bf16.gmra.mrb[0].mxu0 %v3971
        %v4077 = vpop.f32.mrb[0].mxu0
        %v4078 = vadd.f32 0.0, %v4077
        %v4079 = vpop.f32.mrb[0].mxu0
        %v4080 = vpop.f32.mrb[0].mxu0
        %v4081 = vadd.f32 0.0, %v4080
        %v4082 = vpop.f32.mrb[0].mxu0
        %4083 = vmatprep.mubr.bf16.mxu0 0
        %4084 = vmatmul.mubr.bf16.gmra.mrb[0].mxu0 %v3974
        %v4085 = vpop.f32.mrb[0].mxu0
        %v4086 = vadd.f32 0.0, %v4085
        %v4087 = vpop.f32.mrb[0].mxu0
        %v4088 = vpop.f32.mrb[0].mxu0
        %v4089 = vadd.f32 0.0, %v4088
        %v4090 = vpop.f32.mrb[0].mxu0
        %4091 = vmatprep.mubr.bf16.mxu0 0
        %4092 = vmatmul.mubr.bf16.gmra.mrb[0].mxu0 %v3977
        %v4093 = vpop.f32.mrb[0].mxu0
        %v4094 = vadd.f32 0.0, %v4093
        %v4095 = vpop.f32.mrb[0].mxu0
        %v4096 = vpop.f32.mrb[0].mxu0
        %v4097 = vadd.f32 0.0, %v4096
        %v4098 = vpop.f32.mrb[0].mxu0
        %4099 = vmatprep.mubr.bf16.mxu0 0
        %4100 = vmatmul.mubr.bf16.gmra.mrb[0].mxu0 %v3980
        %v4101 = vpop.f32.mrb[0].mxu0
        %v4102 = vadd.f32 0.0, %v4101
        %v4103 = vpop.f32.mrb[0].mxu0
        %v4104 = vpop.f32.mrb[0].mxu0
        %v4105 = vadd.f32 0.0, %v4104
        %v4106 = vpop.f32.mrb[0].mxu0
        %4107 = vmatprep.mubr.bf16.mxu0 0
        %4108 = vmatmul.mubr.bf16.gmra.mrb[0].mxu0 %v3983
        %v4109 = vpop.f32.mrb[0].mxu0
        %v4110 = vadd.f32 0.0, %v4109
        %v4111 = vpop.f32.mrb[0].mxu0
        %v4112 = vpop.f32.mrb[0].mxu0
        %v4113 = vadd.f32 0.0, %v4112
        %v4114 = vpop.f32.mrb[0].mxu0
        %4115 = vmatprep.mubr.bf16.mxu0 0
        %4116 = vmatmul.mubr.bf16.gmra.mrb[0].mxu0 %v3986
        %v4117 = vpop.f32.mrb[0].mxu0
        %v4118 = vadd.f32 0.0, %v4117
        %v4119 = vpop.f32.mrb[0].mxu0
        %v4120 = vpop.f32.mrb[0].mxu0
        %v4121 = vadd.f32 0.0, %v4120
        %v4122 = vpop.f32.mrb[0].mxu0
        %4123 = vmatprep.mubr.bf16.mxu0 0
        %4124 = vmatmul.mubr.bf16.gmra.mrb[0].mxu0 %v3989
        %v4125 = vpop.f32.mrb[0].mxu0
        %v4126 = vadd.f32 0.0, %v4125
        %v4127 = vpop.f32.mrb[0].mxu0
        %v4128 = vpop.f32.mrb[0].mxu0
        %v4129 = vadd.f32 0.0, %v4128
        %v4130 = vpop.f32.mrb[0].mxu0
        %4131 = vmatprep.mubr.bf16.mxu0 0
        %4132 = vmatmul.mubr.bf16.gmra.mrb[0].mxu0 %v3992
        %v4133 = vpop.f32.mrb[0].mxu0
        %v4134 = vadd.f32 0.0, %v4133
        %v4135 = vpop.f32.mrb[0].mxu0
        %v4136 = vpop.f32.mrb[0].mxu0
        %v4137 = vadd.f32 0.0, %v4136
        %v4138 = vpop.f32.mrb[0].mxu0
        %4139 = vmatprep.mubr.bf16.mxu0 0
        %4140 = vmatmul.mubr.bf16.gmra.mrb[0].mxu0 %v3995
        %v4141 = vpop.f32.mrb[0].mxu0
        %v4142 = vadd.f32 0.0, %v4141
        %v4143 = vpop.f32.mrb[0].mxu0
        %v4144 = vpop.f32.mrb[0].mxu0
        %v4145 = vadd.f32 0.0, %v4144
        %v4146 = vpop.f32.mrb[0].mxu0
        %4147 = vmatprep.mubr.bf16.mxu0 0
        %4148 = vmatmul.mubr.bf16.gmra.mrb[0].mxu0 %v3998
        %v4149 = vpop.f32.mrb[0].mxu0
        %v4150 = vadd.f32 0.0, %v4149
        %v4151 = vpop.f32.mrb[0].mxu0
        %v4152 = vpop.f32.mrb[0].mxu0
        %v4153 = vadd.f32 0.0, %v4152
        %v4154 = vpop.f32.mrb[0].mxu0
        %4155 = vmatprep.mubr.bf16.mxu0 0
        %4156 = vmatmul.mubr.bf16.gmra.mrb[0].mxu0 %v1127
        %v4157 = vpop.f32.mrb[0].mxu0
        %v4158 = vadd.f32 0.0, %v4157
        %v4159 = vpop.f32.mrb[0].mxu0
        %v4160 = vpop.f32.mrb[0].mxu0
        %v4161 = vadd.f32 0.0, %v4160
        %v4162 = vpop.f32.mrb[0].mxu0
        %4163 = vdwg.mxu0
        %v4164 = vadd.f32 %v3786, %v4038
        %v4165 = vadd.f32 %v3787, %v4041
        %v4166 = vadd.f32 %v3788, %v4046
        %v4167 = vadd.f32 %v3789, %v4049
        %v4168 = vadd.f32 %v3790, %v4054
        %v4169 = vadd.f32 %v3791, %v4057
        %v4170 = vadd.f32 %v3792, %v4062
        %v4171 = vadd.f32 %v3793, %v4065
        %v4172 = vadd.f32 %v3794, %v4070
        %v4173 = vadd.f32 %v3795, %v4073
        %v4174 = vadd.f32 %v3796, %v4078
        %v4175 = vadd.f32 %v3797, %v4081
        %v4176 = vadd.f32 %v3798, %v4086
        %v4177 = vadd.f32 %v3799, %v4089
        %v4178 = vadd.f32 %v3800, %v4094
        %v4179 = vadd.f32 %v3801, %v4097
        %v4180 = vadd.f32 %v3802, %v4102
        %v4181 = vadd.f32 %v3803, %v4105
        %v4182 = vadd.f32 %v3804, %v4110
        %v4183 = vadd.f32 %v3805, %v4113
        %v4184 = vadd.f32 %v3806, %v4118
        %v4185 = vadd.f32 %v3807, %v4121
        %v4186 = vadd.f32 %v3808, %v4126
        %v4187 = vadd.f32 %v3809, %v4129
        %v4188 = vadd.f32 %v3810, %v4134
        %v4189 = vadd.f32 %v3811, %v4137
        %v4190 = vadd.f32 %v3812, %v4142
        %v4191 = vadd.f32 %v3813, %v4145
        %v4192 = vadd.f32 %v3814, %v4150
        %v4193 = vadd.f32 %v3815, %v4153
        %v4194 = vadd.f32 %v3816, %v4158
        %v4195 = vadd.f32 %v3817, %v4161
        %v4196 = vld [vmem:[%s2] sm:$0x1]
        %v4198 = vlaneseq
        %v4199 = vshrl.u32 %v4198, 7
        %v4200 = vsub.s32 0, %v4199
        %v4201 = vrot.slane %v4196, %v4200
        %v4203 = vadd.f32 %v4164, %v4201
        %v4204 = vadd.f32 %v4165, %v4201
        %v4205 = vadd.f32 %v4166, %v4201
        %v4206 = vadd.f32 %v4167, %v4201
        %v4207 = vadd.f32 %v4168, %v4201
        %v4208 = vadd.f32 %v4169, %v4201
        %v4209 = vadd.f32 %v4170, %v4201
        %v4210 = vadd.f32 %v4171, %v4201
        %v4211 = vadd.f32 %v4172, %v4201
        %v4212 = vadd.f32 %v4173, %v4201
        %v4213 = vadd.f32 %v4174, %v4201
        %v4214 = vadd.f32 %v4175, %v4201
        %v4215 = vadd.f32 %v4176, %v4201
        %v4216 = vadd.f32 %v4177, %v4201
        %v4217 = vadd.f32 %v4178, %v4201
        %v4218 = vadd.f32 %v4179, %v4201
        %v4219 = vadd.f32 %v4180, %v4201
        %v4220 = vadd.f32 %v4181, %v4201
        %v4221 = vadd.f32 %v4182, %v4201
        %v4222 = vadd.f32 %v4183, %v4201
        %v4223 = vadd.f32 %v4184, %v4201
        %v4224 = vadd.f32 %v4185, %v4201
        %v4225 = vadd.f32 %v4186, %v4201
        %v4226 = vadd.f32 %v4187, %v4201
        %v4227 = vadd.f32 %v4188, %v4201
        %v4228 = vadd.f32 %v4189, %v4201
        %v4229 = vadd.f32 %v4190, %v4201
        %v4230 = vadd.f32 %v4191, %v4201
        %v4231 = vadd.f32 %v4192, %v4201
        %v4232 = vadd.f32 %v4193, %v4201
        %v4233 = vadd.f32 %v4194, %v4201
        %v4234 = vadd.f32 %v4195, %v4201
        %v4235 = vmax.f32 %v4203, 0.0
        %v4236 = vmax.f32 %v4204, 0.0
        %v4237 = vmax.f32 %v4205, 0.0
        %v4238 = vmax.f32 %v4206, 0.0
        %v4239 = vmax.f32 %v4207, 0.0
        %v4240 = vmax.f32 %v4208, 0.0
        %v4241 = vmax.f32 %v4209, 0.0
        %v4242 = vmax.f32 %v4210, 0.0
        %v4243 = vmax.f32 %v4211, 0.0
        %v4244 = vmax.f32 %v4212, 0.0
        %v4245 = vmax.f32 %v4213, 0.0
        %v4246 = vmax.f32 %v4214, 0.0
        %v4247 = vmax.f32 %v4215, 0.0
        %v4248 = vmax.f32 %v4216, 0.0
        %v4249 = vmax.f32 %v4217, 0.0
        %v4250 = vmax.f32 %v4218, 0.0
        %v4251 = vmax.f32 %v4219, 0.0
        %v4252 = vmax.f32 %v4220, 0.0
        %v4253 = vmax.f32 %v4221, 0.0
        %v4254 = vmax.f32 %v4222, 0.0
        %v4255 = vmax.f32 %v4223, 0.0
        %v4256 = vmax.f32 %v4224, 0.0
        %v4257 = vmax.f32 %v4225, 0.0
        %v4258 = vmax.f32 %v4226, 0.0
        %v4259 = vmax.f32 %v4227, 0.0
        %v4260 = vmax.f32 %v4228, 0.0
        %v4261 = vmax.f32 %v4229, 0.0
        %v4262 = vmax.f32 %v4230, 0.0
        %v4263 = vmax.f32 %v4231, 0.0
        %v4264 = vmax.f32 %v4232, 0.0
        %v4265 = vmax.f32 %v4233, 0.0
        %v4266 = vmax.f32 %v4234, 0.0
        %v4297 = vrot.slane %v4235, 7
        %v4298 = vrot.slane %v4236, 7
        %v4299 = vsel %vm727, %v4297, %v4298
        %v4300 = vrot.slane %v4237, 7
        %v4301 = vsel %vm727, %v4298, %v4300
        %v4302 = vrot.slane %v4238, 7
        %v4303 = vsel %vm727, %v4300, %v4302
        %v4304 = vrot.slane %v4239, 7
        %v4305 = vsel %vm727, %v4302, %v4304
        %v4306 = vrot.slane %v4240, 7
        %v4307 = vsel %vm727, %v4304, %v4306
        %v4308 = vrot.slane %v4241, 7
        %v4309 = vsel %vm727, %v4306, %v4308
        %v4310 = vrot.slane %v4242, 7
        %v4311 = vsel %vm727, %v4308, %v4310
        %v4312 = vrot.slane %v4243, 7
        %v4313 = vsel %vm727, %v4310, %v4312
        %v4314 = vrot.slane %v4244, 7
        %v4315 = vsel %vm727, %v4312, %v4314
        %v4316 = vrot.slane %v4245, 7
        %v4317 = vsel %vm727, %v4314, %v4316
        %v4318 = vrot.slane %v4246, 7
        %v4319 = vsel %vm727, %v4316, %v4318
        %v4320 = vrot.slane %v4247, 7
        %v4321 = vsel %vm727, %v4318, %v4320
        %v4322 = vrot.slane %v4248, 7
        %v4323 = vsel %vm727, %v4320, %v4322
        %v4324 = vrot.slane %v4249, 7
        %v4325 = vsel %vm727, %v4322, %v4324
        %v4326 = vrot.slane %v4250, 7
        %v4327 = vsel %vm727, %v4324, %v4326
        %v4328 = vrot.slane %v4251, 7
        %v4329 = vsel %vm727, %v4326, %v4328
        %v4330 = vrot.slane %v4252, 7
        %v4331 = vsel %vm727, %v4328, %v4330
        %v4332 = vrot.slane %v4253, 7
        %v4333 = vsel %vm727, %v4330, %v4332
        %v4334 = vrot.slane %v4254, 7
        %v4335 = vsel %vm727, %v4332, %v4334
        %v4336 = vrot.slane %v4255, 7
        %v4337 = vsel %vm727, %v4334, %v4336
        %v4338 = vrot.slane %v4256, 7
        %v4339 = vsel %vm727, %v4336, %v4338
        %v4340 = vrot.slane %v4257, 7
        %v4341 = vsel %vm727, %v4338, %v4340
        %v4342 = vrot.slane %v4258, 7
        %v4343 = vsel %vm727, %v4340, %v4342
        %v4344 = vrot.slane %v4259, 7
        %v4345 = vsel %vm727, %v4342, %v4344
        %v4346 = vrot.slane %v4260, 7
        %v4347 = vsel %vm727, %v4344, %v4346
        %v4348 = vrot.slane %v4261, 7
        %v4349 = vsel %vm727, %v4346, %v4348
        %v4350 = vrot.slane %v4262, 7
        %v4351 = vsel %vm727, %v4348, %v4350
        %v4352 = vrot.slane %v4263, 7
        %v4353 = vsel %vm727, %v4350, %v4352
        %v4354 = vrot.slane %v4264, 7
        %v4355 = vsel %vm727, %v4352, %v4354
        %v4386 = vsel %vm727, 0.0, %v4297
        %v4387 = vsel %vm941, %v4386, 0.0
        %v4388 = vsel %vm942, %v4299, 0.0
        %v4389 = vsel %vm943, %v4301, 0.0
        %v4390 = vsel %vm944, %v4303, 0.0
        %v4391 = vsel %vm945, %v4305, 0.0
        %v4392 = vsel %vm946, %v4307, 0.0
        %v4393 = vsel %vm947, %v4309, 0.0
        %v4394 = vsel %vm948, %v4311, 0.0
        %v4395 = vsel %vm949, %v4313, 0.0
        %v4396 = vsel %vm950, %v4315, 0.0
        %v4397 = vsel %vm951, %v4317, 0.0
        %v4398 = vsel %vm952, %v4319, 0.0
        %v4399 = vsel %vm953, %v4321, 0.0
        %v4400 = vsel %vm954, %v4323, 0.0
        %v4401 = vsel %vm955, %v4325, 0.0
        %v4402 = vsel %vm956, %v4327, 0.0
        %v4403 = vsel %vm957, %v4329, 0.0
        %v4404 = vsel %vm958, %v4331, 0.0
        %v4405 = vsel %vm959, %v4333, 0.0
        %v4406 = vsel %vm960, %v4335, 0.0
        %v4407 = vsel %vm961, %v4337, 0.0
        %v4408 = vsel %vm962, %v4339, 0.0
        %v4409 = vsel %vm963, %v4341, 0.0
        %v4410 = vsel %vm964, %v4343, 0.0
        %v4411 = vsel %vm965, %v4345, 0.0
        %v4412 = vsel %vm966, %v4347, 0.0
        %v4413 = vsel %vm967, %v4349, 0.0
        %v4414 = vsel %vm968, %v4351, 0.0
        %v4415 = vsel %vm969, %v4353, 0.0
        %v4416 = vsel %vm970, %v4355, 0.0
        %v4417 = vpack.c.bf16 %v4388, %v4387
        %v4418 = vpack.c.bf16 %v4390, %v4389
        %v4419 = vpack.c.bf16 %v4392, %v4391
        %v4420 = vpack.c.bf16 %v4394, %v4393
        %v4421 = vpack.c.bf16 %v4396, %v4395
        %v4422 = vpack.c.bf16 %v4398, %v4397
        %v4423 = vpack.c.bf16 %v4400, %v4399
        %v4424 = vpack.c.bf16 %v4402, %v4401
        %v4425 = vpack.c.bf16 %v4404, %v4403
        %v4426 = vpack.c.bf16 %v4406, %v4405
        %v4427 = vpack.c.bf16 %v4408, %v4407
        %v4428 = vpack.c.bf16 %v4410, %v4409
        %v4429 = vpack.c.bf16 %v4412, %v4411
        %v4430 = vpack.c.bf16 %v4414, %v4413
        %v4431 = vpack.c.bf16 %v4416, %v4415
        %v4432 = vld [vmem:[%s3] sm:$0xf]
        %v4433 = vld [vmem:[%s3 + $0x4] sm:$0xf]
        %v4434 = vld [vmem:[%s3 + $0x8] sm:$0xf]
        %v4435 = vld [vmem:[%s3 + $0xc] sm:$0xf]
        %v4436 = vld [vmem:[%s3 + $0x10] sm:$0xf]
        %v4437 = vld [vmem:[%s3 + $0x14] sm:$0xf]
        %v4438 = vld [vmem:[%s3 + $0x18] sm:$0xf]
        %v4439 = vld [vmem:[%s3 + $0x1c] sm:$0xf]
        %v4440 = vld [vmem:[%s3 + $0x20] sm:$0xf]
        %v4441 = vld [vmem:[%s3 + $0x24] sm:$0xf]
        %v4442 = vld [vmem:[%s3 + $0x28] sm:$0xf]
        %v4443 = vld [vmem:[%s3 + $0x2c] sm:$0xf]
        %v4444 = vld [vmem:[%s3 + $0x30] sm:$0xf]
        %v4445 = vld [vmem:[%s3 + $0x34] sm:$0xf]
        %v4446 = vld [vmem:[%s3 + $0x38] sm:$0xf]
        %v4447 = vld [vmem:[%s3 + $0x3c] sm:$0xf]
        %v4448 = vsel %vm1048, %v4235, 0.0
        %v4449 = vsel %vm1049, %v4236, 0.0
        %v4450 = vsel %vm1050, %v4237, 0.0
        %v4451 = vsel %vm1051, %v4238, 0.0
        %v4452 = vsel %vm1052, %v4239, 0.0
        %v4453 = vsel %vm1053, %v4240, 0.0
        %v4454 = vsel %vm1054, %v4241, 0.0
        %v4455 = vsel %vm1055, %v4242, 0.0
        %v4456 = vsel %vm1056, %v4243, 0.0
        %v4457 = vsel %vm1057, %v4244, 0.0
        %v4458 = vsel %vm1058, %v4245, 0.0
        %v4459 = vsel %vm1059, %v4246, 0.0
        %v4460 = vsel %vm1060, %v4247, 0.0
        %v4461 = vsel %vm1061, %v4248, 0.0
        %v4462 = vsel %vm1062, %v4249, 0.0
        %v4463 = vsel %vm1063, %v4250, 0.0
        %v4464 = vsel %vm1064, %v4251, 0.0
        %v4465 = vsel %vm1065, %v4252, 0.0
        %v4466 = vsel %vm1066, %v4253, 0.0
        %v4467 = vsel %vm1067, %v4254, 0.0
        %v4468 = vsel %vm1068, %v4255, 0.0
        %v4469 = vsel %vm1069, %v4256, 0.0
        %v4470 = vsel %vm1070, %v4257, 0.0
        %v4471 = vsel %vm1071, %v4258, 0.0
        %v4472 = vsel %vm1072, %v4259, 0.0
        %v4473 = vsel %vm1073, %v4260, 0.0
        %v4474 = vsel %vm1074, %v4261, 0.0
        %v4475 = vsel %vm1075, %v4262, 0.0
        %v4476 = vsel %vm1076, %v4263, 0.0
        %v4477 = vsel %vm1077, %v4264, 0.0
        %v4478 = vpack.c.bf16 %v4449, %v4448
        %v4479 = vpack.c.bf16 %v4451, %v4450
        %v4480 = vpack.c.bf16 %v4453, %v4452
        %v4481 = vpack.c.bf16 %v4455, %v4454
        %v4482 = vpack.c.bf16 %v4457, %v4456
        %v4483 = vpack.c.bf16 %v4459, %v4458
        %v4484 = vpack.c.bf16 %v4461, %v4460
        %v4485 = vpack.c.bf16 %v4463, %v4462
        %v4486 = vpack.c.bf16 %v4465, %v4464
        %v4487 = vpack.c.bf16 %v4467, %v4466
        %v4488 = vpack.c.bf16 %v4469, %v4468
        %v4489 = vpack.c.bf16 %v4471, %v4470
        %v4490 = vpack.c.bf16 %v4473, %v4472
        %v4491 = vpack.c.bf16 %v4475, %v4474
        %v4492 = vpack.c.bf16 %v4477, %v4476
        %s4493 = scalar_lea.vmem %s3, 64
        %v4494 = vld [vmem:[%s4493] sm:$0xf]
        %v4495 = vld [vmem:[%s4493 + $0x4] sm:$0xf]
        %v4496 = vld [vmem:[%s4493 + $0x8] sm:$0xf]
        %v4497 = vld [vmem:[%s4493 + $0xc] sm:$0xf]
        %v4498 = vld [vmem:[%s4493 + $0x10] sm:$0xf]
        %v4499 = vld [vmem:[%s4493 + $0x14] sm:$0xf]
        %v4500 = vld [vmem:[%s4493 + $0x18] sm:$0xf]
        %v4501 = vld [vmem:[%s4493 + $0x1c] sm:$0xf]
        %v4502 = vld [vmem:[%s4493 + $0x20] sm:$0xf]
        %v4503 = vld [vmem:[%s4493 + $0x24] sm:$0xf]
        %v4504 = vld [vmem:[%s4493 + $0x28] sm:$0xf]
        %v4505 = vld [vmem:[%s4493 + $0x2c] sm:$0xf]
        %v4506 = vld [vmem:[%s4493 + $0x30] sm:$0xf]
        %v4507 = vld [vmem:[%s4493 + $0x34] sm:$0xf]
        %v4508 = vld [vmem:[%s4493 + $0x38] sm:$0xf]
        %v4509 = vld [vmem:[%s4493 + $0x3c] sm:$0xf]
        %v4526 = vunpack.c.l.b16 %v4494
        %v4527 = vunpack.c.l.b16 %v4495
        %v4528 = vunpack.c.l.b16 %v4496
        %v4529 = vunpack.c.l.b16 %v4497
        %v4530 = vunpack.c.l.b16 %v4498
        %v4531 = vunpack.c.l.b16 %v4499
        %v4532 = vunpack.c.l.b16 %v4500
        %v4533 = vunpack.c.l.b16 %v4501
        %v4534 = vunpack.c.l.b16 %v4502
        %v4535 = vunpack.c.l.b16 %v4503
        %v4536 = vunpack.c.l.b16 %v4504
        %v4537 = vunpack.c.l.b16 %v4505
        %v4538 = vunpack.c.l.b16 %v4506
        %v4539 = vunpack.c.l.b16 %v4507
        %v4540 = vunpack.c.l.b16 %v4508
        %v4541 = vunpack.c.l.b16 %v4509
        %v4542 = vpack.c.b16 %v4527, %v4526
        %v4543 = vpack.c.b16 %v4529, %v4528
        %v4544 = vpack.c.b16 %v4531, %v4530
        %v4545 = vpack.c.b16 %v4533, %v4532
        %v4546 = vpack.c.b16 %v4535, %v4534
        %v4547 = vpack.c.b16 %v4537, %v4536
        %v4548 = vpack.c.b16 %v4539, %v4538
        %v4549 = vpack.c.b16 %v4541, %v4540
        %4558 = vmatprep.subr.bf16.mxu0 0
        %4559 = vmatpush1.bf16.msra.mxu0 %v4542
        %4560 = vmatprep.subr.bf16.mxu0 0
        %4561 = vmatpush1.bf16.msra.mxu0 %v4543
        %4562 = vmatprep.subr.bf16.mxu0 0
        %4563 = vmatpush1.bf16.msra.mxu0 %v4544
        %4564 = vmatprep.subr.bf16.mxu0 0
        %4565 = vmatpush1.bf16.msra.mxu0 %v4545
        %4566 = vmatprep.subr.bf16.mxu0 0
        %4567 = vmatpush1.bf16.msra.mxu0 %v4546
        %4568 = vmatprep.subr.bf16.mxu0 0
        %4569 = vmatpush1.bf16.msra.mxu0 %v4547
        %4570 = vmatprep.subr.bf16.mxu0 0
        %4571 = vmatpush1.bf16.msra.mxu0 %v4548
        %4572 = vmatprep.subr.bf16.mxu0 0
        %4573 = vmatpush1.bf16.msra.mxu0 %v4549
        %4574 = vmatprep.subr.bf16.mxu0 0
        %4575 = vmatpush1.bf16.msra.mxu0 0
        %4576 = vmatprep.subr.bf16.mxu0 0
        %4577 = vmatpush1.bf16.msra.mxu0 0
        %4578 = vmatprep.subr.bf16.mxu0 0
        %4579 = vmatpush1.bf16.msra.mxu0 0
        %4580 = vmatprep.subr.bf16.mxu0 0
        %4581 = vmatpush1.bf16.msra.mxu0 0
        %4582 = vmatprep.subr.bf16.mxu0 0
        %4583 = vmatpush1.bf16.msra.mxu0 0
        %4584 = vmatprep.subr.bf16.mxu0 0
        %4585 = vmatpush1.bf16.msra.mxu0 0
        %4586 = vmatprep.subr.bf16.mxu0 0
        %4587 = vmatpush1.bf16.msra.mxu0 0
        %4588 = vmatprep.subr.bf16.mxu0 0
        %4589 = vmatpush1.bf16.msra.mxu0 0
        %4590 = vmatprep.mubr.bf16.mxu0 0
        %4591 = vmatmul.mubr.bf16.gmra.mrb[0].mxu0 %v1001
        %v4592 = vpop.f32.mrb[0].mxu0
        %v4593 = vadd.f32 0.0, %v4592
        %v4594 = vpop.f32.mrb[0].mxu0
        %v4595 = vpop.f32.mrb[0].mxu0
        %v4596 = vadd.f32 0.0, %v4595
        %v4597 = vpop.f32.mrb[0].mxu0
        %4598 = vmatprep.mubr.bf16.mxu0 0
        %4599 = vmatmul.mubr.bf16.gmra.mrb[0].mxu0 %v4478
        %v4600 = vpop.f32.mrb[0].mxu0
        %v4601 = vadd.f32 0.0, %v4600
        %v4602 = vpop.f32.mrb[0].mxu0
        %v4603 = vpop.f32.mrb[0].mxu0
        %v4604 = vadd.f32 0.0, %v4603
        %v4605 = vpop.f32.mrb[0].mxu0
        %4606 = vmatprep.mubr.bf16.mxu0 0
        %4607 = vmatmul.mubr.bf16.gmra.mrb[0].mxu0 %v4479
        %v4608 = vpop.f32.mrb[0].mxu0
        %v4609 = vadd.f32 0.0, %v4608
        %v4610 = vpop.f32.mrb[0].mxu0
        %v4611 = vpop.f32.mrb[0].mxu0
        %v4612 = vadd.f32 0.0, %v4611
        %v4613 = vpop.f32.mrb[0].mxu0
        %4614 = vmatprep.mubr.bf16.mxu0 0
        %4615 = vmatmul.mubr.bf16.gmra.mrb[0].mxu0 %v4480
        %v4616 = vpop.f32.mrb[0].mxu0
        %v4617 = vadd.f32 0.0, %v4616
        %v4618 = vpop.f32.mrb[0].mxu0
        %v4619 = vpop.f32.mrb[0].mxu0
        %v4620 = vadd.f32 0.0, %v4619
        %v4621 = vpop.f32.mrb[0].mxu0
        %4622 = vmatprep.mubr.bf16.mxu0 0
        %4623 = vmatmul.mubr.bf16.gmra.mrb[0].mxu0 %v4481
        %v4624 = vpop.f32.mrb[0].mxu0
        %v4625 = vadd.f32 0.0, %v4624
        %v4626 = vpop.f32.mrb[0].mxu0
        %v4627 = vpop.f32.mrb[0].mxu0
        %v4628 = vadd.f32 0.0, %v4627
        %v4629 = vpop.f32.mrb[0].mxu0
        %4630 = vmatprep.mubr.bf16.mxu0 0
        %4631 = vmatmul.mubr.bf16.gmra.mrb[0].mxu0 %v4482
        %v4632 = vpop.f32.mrb[0].mxu0
        %v4633 = vadd.f32 0.0, %v4632
        %v4634 = vpop.f32.mrb[0].mxu0
        %v4635 = vpop.f32.mrb[0].mxu0
        %v4636 = vadd.f32 0.0, %v4635
        %v4637 = vpop.f32.mrb[0].mxu0
        %4638 = vmatprep.mubr.bf16.mxu0 0
        %4639 = vmatmul.mubr.bf16.gmra.mrb[0].mxu0 %v4483
        %v4640 = vpop.f32.mrb[0].mxu0
        %v4641 = vadd.f32 0.0, %v4640
        %v4642 = vpop.f32.mrb[0].mxu0
        %v4643 = vpop.f32.mrb[0].mxu0
        %v4644 = vadd.f32 0.0, %v4643
        %v4645 = vpop.f32.mrb[0].mxu0
        %4646 = vmatprep.mubr.bf16.mxu0 0
        %4647 = vmatmul.mubr.bf16.gmra.mrb[0].mxu0 %v4484
        %v4648 = vpop.f32.mrb[0].mxu0
        %v4649 = vadd.f32 0.0, %v4648
        %v4650 = vpop.f32.mrb[0].mxu0
        %v4651 = vpop.f32.mrb[0].mxu0
        %v4652 = vadd.f32 0.0, %v4651
        %v4653 = vpop.f32.mrb[0].mxu0
        %4654 = vmatprep.mubr.bf16.mxu0 0
        %4655 = vmatmul.mubr.bf16.gmra.mrb[0].mxu0 %v4485
        %v4656 = vpop.f32.mrb[0].mxu0
        %v4657 = vadd.f32 0.0, %v4656
        %v4658 = vpop.f32.mrb[0].mxu0
        %v4659 = vpop.f32.mrb[0].mxu0
        %v4660 = vadd.f32 0.0, %v4659
        %v4661 = vpop.f32.mrb[0].mxu0
        %4662 = vmatprep.mubr.bf16.mxu0 0
        %4663 = vmatmul.mubr.bf16.gmra.mrb[0].mxu0 %v4486
        %v4664 = vpop.f32.mrb[0].mxu0
        %v4665 = vadd.f32 0.0, %v4664
        %v4666 = vpop.f32.mrb[0].mxu0
        %v4667 = vpop.f32.mrb[0].mxu0
        %v4668 = vadd.f32 0.0, %v4667
        %v4669 = vpop.f32.mrb[0].mxu0
        %4670 = vmatprep.mubr.bf16.mxu0 0
        %4671 = vmatmul.mubr.bf16.gmra.mrb[0].mxu0 %v4487
        %v4672 = vpop.f32.mrb[0].mxu0
        %v4673 = vadd.f32 0.0, %v4672
        %v4674 = vpop.f32.mrb[0].mxu0
        %v4675 = vpop.f32.mrb[0].mxu0
        %v4676 = vadd.f32 0.0, %v4675
        %v4677 = vpop.f32.mrb[0].mxu0
        %4678 = vmatprep.mubr.bf16.mxu0 0
        %4679 = vmatmul.mubr.bf16.gmra.mrb[0].mxu0 %v4488
        %v4680 = vpop.f32.mrb[0].mxu0
        %v4681 = vadd.f32 0.0, %v4680
        %v4682 = vpop.f32.mrb[0].mxu0
        %v4683 = vpop.f32.mrb[0].mxu0
        %v4684 = vadd.f32 0.0, %v4683
        %v4685 = vpop.f32.mrb[0].mxu0
        %4686 = vmatprep.mubr.bf16.mxu0 0
        %4687 = vmatmul.mubr.bf16.gmra.mrb[0].mxu0 %v4489
        %v4688 = vpop.f32.mrb[0].mxu0
        %v4689 = vadd.f32 0.0, %v4688
        %v4690 = vpop.f32.mrb[0].mxu0
        %v4691 = vpop.f32.mrb[0].mxu0
        %v4692 = vadd.f32 0.0, %v4691
        %v4693 = vpop.f32.mrb[0].mxu0
        %4694 = vmatprep.mubr.bf16.mxu0 0
        %4695 = vmatmul.mubr.bf16.gmra.mrb[0].mxu0 %v4490
        %v4696 = vpop.f32.mrb[0].mxu0
        %v4697 = vadd.f32 0.0, %v4696
        %v4698 = vpop.f32.mrb[0].mxu0
        %v4699 = vpop.f32.mrb[0].mxu0
        %v4700 = vadd.f32 0.0, %v4699
        %v4701 = vpop.f32.mrb[0].mxu0
        %4702 = vmatprep.mubr.bf16.mxu0 0
        %4703 = vmatmul.mubr.bf16.gmra.mrb[0].mxu0 %v4491
        %v4704 = vpop.f32.mrb[0].mxu0
        %v4705 = vadd.f32 0.0, %v4704
        %v4706 = vpop.f32.mrb[0].mxu0
        %v4707 = vpop.f32.mrb[0].mxu0
        %v4708 = vadd.f32 0.0, %v4707
        %v4709 = vpop.f32.mrb[0].mxu0
        %4710 = vmatprep.mubr.bf16.mxu0 0
        %4711 = vmatmul.mubr.bf16.gmra.mrb[0].mxu0 %v4492
        %v4712 = vpop.f32.mrb[0].mxu0
        %v4713 = vadd.f32 0.0, %v4712
        %v4714 = vpop.f32.mrb[0].mxu0
        %v4715 = vpop.f32.mrb[0].mxu0
        %v4716 = vadd.f32 0.0, %v4715
        %v4717 = vpop.f32.mrb[0].mxu0
        %4718 = vdwg.mxu0
        %v4735 = vunpack.c.l.b16 %v4432
        %v4736 = vunpack.c.l.b16 %v4433
        %v4737 = vunpack.c.l.b16 %v4434
        %v4738 = vunpack.c.l.b16 %v4435
        %v4739 = vunpack.c.l.b16 %v4436
        %v4740 = vunpack.c.l.b16 %v4437
        %v4741 = vunpack.c.l.b16 %v4438
        %v4742 = vunpack.c.l.b16 %v4439
        %v4743 = vunpack.c.l.b16 %v4440
        %v4744 = vunpack.c.l.b16 %v4441
        %v4745 = vunpack.c.l.b16 %v4442
        %v4746 = vunpack.c.l.b16 %v4443
        %v4747 = vunpack.c.l.b16 %v4444
        %v4748 = vunpack.c.l.b16 %v4445
        %v4749 = vunpack.c.l.b16 %v4446
        %v4750 = vunpack.c.l.b16 %v4447
        %v4751 = vpack.c.b16 %v4736, %v4735
        %v4752 = vpack.c.b16 %v4738, %v4737
        %v4753 = vpack.c.b16 %v4740, %v4739
        %v4754 = vpack.c.b16 %v4742, %v4741
        %v4755 = vpack.c.b16 %v4744, %v4743
        %v4756 = vpack.c.b16 %v4746, %v4745
        %v4757 = vpack.c.b16 %v4748, %v4747
        %v4758 = vpack.c.b16 %v4750, %v4749
        %4767 = vmatprep.subr.bf16.mxu0 0
        %4768 = vmatpush1.bf16.msra.mxu0 %v4751
        %4769 = vmatprep.subr.bf16.mxu0 0
        %4770 = vmatpush1.bf16.msra.mxu0 %v4752
        %4771 = vmatprep.subr.bf16.mxu0 0
        %4772 = vmatpush1.bf16.msra.mxu0 %v4753
        %4773 = vmatprep.subr.bf16.mxu0 0
        %4774 = vmatpush1.bf16.msra.mxu0 %v4754
        %4775 = vmatprep.subr.bf16.mxu0 0
        %4776 = vmatpush1.bf16.msra.mxu0 %v4755
        %4777 = vmatprep.subr.bf16.mxu0 0
        %4778 = vmatpush1.bf16.msra.mxu0 %v4756
        %4779 = vmatprep.subr.bf16.mxu0 0
        %4780 = vmatpush1.bf16.msra.mxu0 %v4757
        %4781 = vmatprep.subr.bf16.mxu0 0
        %4782 = vmatpush1.bf16.msra.mxu0 %v4758
        %4783 = vmatprep.subr.bf16.mxu0 0
        %4784 = vmatpush1.bf16.msra.mxu0 0
        %4785 = vmatprep.subr.bf16.mxu0 0
        %4786 = vmatpush1.bf16.msra.mxu0 0
        %4787 = vmatprep.subr.bf16.mxu0 0
        %4788 = vmatpush1.bf16.msra.mxu0 0
        %4789 = vmatprep.subr.bf16.mxu0 0
        %4790 = vmatpush1.bf16.msra.mxu0 0
        %4791 = vmatprep.subr.bf16.mxu0 0
        %4792 = vmatpush1.bf16.msra.mxu0 0
        %4793 = vmatprep.subr.bf16.mxu0 0
        %4794 = vmatpush1.bf16.msra.mxu0 0
        %4795 = vmatprep.subr.bf16.mxu0 0
        %4796 = vmatpush1.bf16.msra.mxu0 0
        %4797 = vmatprep.subr.bf16.mxu0 0
        %4798 = vmatpush1.bf16.msra.mxu0 0
        %4799 = vmatprep.mubr.bf16.mxu0 0
        %4800 = vmatmul.mubr.bf16.gmra.mrb[0].mxu0 %v1001
        %v4801 = vpop.f32.mrb[0].mxu0
        %v4802 = vadd.f32 %v4593, %v4801
        %v4803 = vpop.f32.mrb[0].mxu0
        %v4804 = vpop.f32.mrb[0].mxu0
        %v4805 = vadd.f32 %v4596, %v4804
        %v4806 = vpop.f32.mrb[0].mxu0
        %4807 = vmatprep.mubr.bf16.mxu0 0
        %4808 = vmatmul.mubr.bf16.gmra.mrb[0].mxu0 %v4417
        %v4809 = vpop.f32.mrb[0].mxu0
        %v4810 = vadd.f32 %v4601, %v4809
        %v4811 = vpop.f32.mrb[0].mxu0
        %v4812 = vpop.f32.mrb[0].mxu0
        %v4813 = vadd.f32 %v4604, %v4812
        %v4814 = vpop.f32.mrb[0].mxu0
        %4815 = vmatprep.mubr.bf16.mxu0 0
        %4816 = vmatmul.mubr.bf16.gmra.mrb[0].mxu0 %v4418
        %v4817 = vpop.f32.mrb[0].mxu0
        %v4818 = vadd.f32 %v4609, %v4817
        %v4819 = vpop.f32.mrb[0].mxu0
        %v4820 = vpop.f32.mrb[0].mxu0
        %v4821 = vadd.f32 %v4612, %v4820
        %v4822 = vpop.f32.mrb[0].mxu0
        %4823 = vmatprep.mubr.bf16.mxu0 0
        %4824 = vmatmul.mubr.bf16.gmra.mrb[0].mxu0 %v4419
        %v4825 = vpop.f32.mrb[0].mxu0
        %v4826 = vadd.f32 %v4617, %v4825
        %v4827 = vpop.f32.mrb[0].mxu0
        %v4828 = vpop.f32.mrb[0].mxu0
        %v4829 = vadd.f32 %v4620, %v4828
        %v4830 = vpop.f32.mrb[0].mxu0
        %4831 = vmatprep.mubr.bf16.mxu0 0
        %4832 = vmatmul.mubr.bf16.gmra.mrb[0].mxu0 %v4420
        %v4833 = vpop.f32.mrb[0].mxu0
        %v4834 = vadd.f32 %v4625, %v4833
        %v4835 = vpop.f32.mrb[0].mxu0
        %v4836 = vpop.f32.mrb[0].mxu0
        %v4837 = vadd.f32 %v4628, %v4836
        %v4838 = vpop.f32.mrb[0].mxu0
        %4839 = vmatprep.mubr.bf16.mxu0 0
        %4840 = vmatmul.mubr.bf16.gmra.mrb[0].mxu0 %v4421
        %v4841 = vpop.f32.mrb[0].mxu0
        %v4842 = vadd.f32 %v4633, %v4841
        %v4843 = vpop.f32.mrb[0].mxu0
        %v4844 = vpop.f32.mrb[0].mxu0
        %v4845 = vadd.f32 %v4636, %v4844
        %v4846 = vpop.f32.mrb[0].mxu0
        %4847 = vmatprep.mubr.bf16.mxu0 0
        %4848 = vmatmul.mubr.bf16.gmra.mrb[0].mxu0 %v4422
        %v4849 = vpop.f32.mrb[0].mxu0
        %v4850 = vadd.f32 %v4641, %v4849
        %v4851 = vpop.f32.mrb[0].mxu0
        %v4852 = vpop.f32.mrb[0].mxu0
        %v4853 = vadd.f32 %v4644, %v4852
        %v4854 = vpop.f32.mrb[0].mxu0
        %4855 = vmatprep.mubr.bf16.mxu0 0
        %4856 = vmatmul.mubr.bf16.gmra.mrb[0].mxu0 %v4423
        %v4857 = vpop.f32.mrb[0].mxu0
        %v4858 = vadd.f32 %v4649, %v4857
        %v4859 = vpop.f32.mrb[0].mxu0
        %v4860 = vpop.f32.mrb[0].mxu0
        %v4861 = vadd.f32 %v4652, %v4860
        %v4862 = vpop.f32.mrb[0].mxu0
        %4863 = vmatprep.mubr.bf16.mxu0 0
        %4864 = vmatmul.mubr.bf16.gmra.mrb[0].mxu0 %v4424
        %v4865 = vpop.f32.mrb[0].mxu0
        %v4866 = vadd.f32 %v4657, %v4865
        %v4867 = vpop.f32.mrb[0].mxu0
        %v4868 = vpop.f32.mrb[0].mxu0
        %v4869 = vadd.f32 %v4660, %v4868
        %v4870 = vpop.f32.mrb[0].mxu0
        %4871 = vmatprep.mubr.bf16.mxu0 0
        %4872 = vmatmul.mubr.bf16.gmra.mrb[0].mxu0 %v4425
        %v4873 = vpop.f32.mrb[0].mxu0
        %v4874 = vadd.f32 %v4665, %v4873
        %v4875 = vpop.f32.mrb[0].mxu0
        %v4876 = vpop.f32.mrb[0].mxu0
        %v4877 = vadd.f32 %v4668, %v4876
        %v4878 = vpop.f32.mrb[0].mxu0
        %4879 = vmatprep.mubr.bf16.mxu0 0
        %4880 = vmatmul.mubr.bf16.gmra.mrb[0].mxu0 %v4426
        %v4881 = vpop.f32.mrb[0].mxu0
        %v4882 = vadd.f32 %v4673, %v4881
        %v4883 = vpop.f32.mrb[0].mxu0
        %v4884 = vpop.f32.mrb[0].mxu0
        %v4885 = vadd.f32 %v4676, %v4884
        %v4886 = vpop.f32.mrb[0].mxu0
        %4887 = vmatprep.mubr.bf16.mxu0 0
        %4888 = vmatmul.mubr.bf16.gmra.mrb[0].mxu0 %v4427
        %v4889 = vpop.f32.mrb[0].mxu0
        %v4890 = vadd.f32 %v4681, %v4889
        %v4891 = vpop.f32.mrb[0].mxu0
        %v4892 = vpop.f32.mrb[0].mxu0
        %v4893 = vadd.f32 %v4684, %v4892
        %v4894 = vpop.f32.mrb[0].mxu0
        %4895 = vmatprep.mubr.bf16.mxu0 0
        %4896 = vmatmul.mubr.bf16.gmra.mrb[0].mxu0 %v4428
        %v4897 = vpop.f32.mrb[0].mxu0
        %v4898 = vadd.f32 %v4689, %v4897
        %v4899 = vpop.f32.mrb[0].mxu0
        %v4900 = vpop.f32.mrb[0].mxu0
        %v4901 = vadd.f32 %v4692, %v4900
        %v4902 = vpop.f32.mrb[0].mxu0
        %4903 = vmatprep.mubr.bf16.mxu0 0
        %4904 = vmatmul.mubr.bf16.gmra.mrb[0].mxu0 %v4429
        %v4905 = vpop.f32.mrb[0].mxu0
        %v4906 = vadd.f32 %v4697, %v4905
        %v4907 = vpop.f32.mrb[0].mxu0
        %v4908 = vpop.f32.mrb[0].mxu0
        %v4909 = vadd.f32 %v4700, %v4908
        %v4910 = vpop.f32.mrb[0].mxu0
        %4911 = vmatprep.mubr.bf16.mxu0 0
        %4912 = vmatmul.mubr.bf16.gmra.mrb[0].mxu0 %v4430
        %v4913 = vpop.f32.mrb[0].mxu0
        %v4914 = vadd.f32 %v4705, %v4913
        %v4915 = vpop.f32.mrb[0].mxu0
        %v4916 = vpop.f32.mrb[0].mxu0
        %v4917 = vadd.f32 %v4708, %v4916
        %v4918 = vpop.f32.mrb[0].mxu0
        %4919 = vmatprep.mubr.bf16.mxu0 0
        %4920 = vmatmul.mubr.bf16.gmra.mrb[0].mxu0 %v4431
        %v4921 = vpop.f32.mrb[0].mxu0
        %v4922 = vadd.f32 %v4713, %v4921
        %v4923 = vpop.f32.mrb[0].mxu0
        %v4924 = vpop.f32.mrb[0].mxu0
        %v4925 = vadd.f32 %v4716, %v4924
        %v4926 = vpop.f32.mrb[0].mxu0
        %4927 = vdwg.mxu0
        %v4929 = vrot.slane %v4235, 1
        %v4930 = vrot.slane %v4236, 1
        %v4931 = vsel %vm1549, %v4929, %v4930
        %v4932 = vrot.slane %v4237, 1
        %v4933 = vsel %vm1549, %v4930, %v4932
        %v4934 = vrot.slane %v4238, 1
        %v4935 = vsel %vm1549, %v4932, %v4934
        %v4936 = vrot.slane %v4239, 1
        %v4937 = vsel %vm1549, %v4934, %v4936
        %v4938 = vrot.slane %v4240, 1
        %v4939 = vsel %vm1549, %v4936, %v4938
        %v4940 = vrot.slane %v4241, 1
        %v4941 = vsel %vm1549, %v4938, %v4940
        %v4942 = vrot.slane %v4242, 1
        %v4943 = vsel %vm1549, %v4940, %v4942
        %v4944 = vrot.slane %v4243, 1
        %v4945 = vsel %vm1549, %v4942, %v4944
        %v4946 = vrot.slane %v4244, 1
        %v4947 = vsel %vm1549, %v4944, %v4946
        %v4948 = vrot.slane %v4245, 1
        %v4949 = vsel %vm1549, %v4946, %v4948
        %v4950 = vrot.slane %v4246, 1
        %v4951 = vsel %vm1549, %v4948, %v4950
        %v4952 = vrot.slane %v4247, 1
        %v4953 = vsel %vm1549, %v4950, %v4952
        %v4954 = vrot.slane %v4248, 1
        %v4955 = vsel %vm1549, %v4952, %v4954
        %v4956 = vrot.slane %v4249, 1
        %v4957 = vsel %vm1549, %v4954, %v4956
        %v4958 = vrot.slane %v4250, 1
        %v4959 = vsel %vm1549, %v4956, %v4958
        %v4960 = vrot.slane %v4251, 1
        %v4961 = vsel %vm1549, %v4958, %v4960
        %v4962 = vrot.slane %v4252, 1
        %v4963 = vsel %vm1549, %v4960, %v4962
        %v4964 = vrot.slane %v4253, 1
        %v4965 = vsel %vm1549, %v4962, %v4964
        %v4966 = vrot.slane %v4254, 1
        %v4967 = vsel %vm1549, %v4964, %v4966
        %v4968 = vrot.slane %v4255, 1
        %v4969 = vsel %vm1549, %v4966, %v4968
        %v4970 = vrot.slane %v4256, 1
        %v4971 = vsel %vm1549, %v4968, %v4970
        %v4972 = vrot.slane %v4257, 1
        %v4973 = vsel %vm1549, %v4970, %v4972
        %v4974 = vrot.slane %v4258, 1
        %v4975 = vsel %vm1549, %v4972, %v4974
        %v4976 = vrot.slane %v4259, 1
        %v4977 = vsel %vm1549, %v4974, %v4976
        %v4978 = vrot.slane %v4260, 1
        %v4979 = vsel %vm1549, %v4976, %v4978
        %v4980 = vrot.slane %v4261, 1
        %v4981 = vsel %vm1549, %v4978, %v4980
        %v4982 = vrot.slane %v4262, 1
        %v4983 = vsel %vm1549, %v4980, %v4982
        %v4984 = vrot.slane %v4263, 1
        %v4985 = vsel %vm1549, %v4982, %v4984
        %v4986 = vrot.slane %v4264, 1
        %v4987 = vsel %vm1549, %v4984, %v4986
        %v4988 = vrot.slane %v4265, 1
        %v4989 = vsel %vm1549, %v4986, %v4988
        %v5021 = vsel %vm1549, 0.0, %v4929
        %v5022 = vsel %vm1737, %v5021, 0.0
        %v5023 = vsel %vm1738, %v4931, 0.0
        %v5024 = vsel %vm1739, %v4933, 0.0
        %v5025 = vsel %vm1740, %v4935, 0.0
        %v5026 = vsel %vm1741, %v4937, 0.0
        %v5027 = vsel %vm1742, %v4939, 0.0
        %v5028 = vsel %vm1743, %v4941, 0.0
        %v5029 = vsel %vm1744, %v4943, 0.0
        %v5030 = vsel %vm1745, %v4945, 0.0
        %v5031 = vsel %vm1746, %v4947, 0.0
        %v5032 = vsel %vm1747, %v4949, 0.0
        %v5033 = vsel %vm1748, %v4951, 0.0
        %v5034 = vsel %vm1749, %v4953, 0.0
        %v5035 = vsel %vm1750, %v4955, 0.0
        %v5036 = vsel %vm1751, %v4957, 0.0
        %v5037 = vsel %vm1752, %v4959, 0.0
        %v5038 = vsel %vm1753, %v4961, 0.0
        %v5039 = vsel %vm1754, %v4963, 0.0
        %v5040 = vsel %vm1755, %v4965, 0.0
        %v5041 = vsel %vm1756, %v4967, 0.0
        %v5042 = vsel %vm1757, %v4969, 0.0
        %v5043 = vsel %vm1758, %v4971, 0.0
        %v5044 = vsel %vm1759, %v4973, 0.0
        %v5045 = vsel %vm1760, %v4975, 0.0
        %v5046 = vsel %vm1761, %v4977, 0.0
        %v5047 = vsel %vm1762, %v4979, 0.0
        %v5048 = vsel %vm1763, %v4981, 0.0
        %v5049 = vsel %vm1764, %v4983, 0.0
        %v5050 = vsel %vm1765, %v4985, 0.0
        %v5051 = vsel %vm1766, %v4987, 0.0
        %v5052 = vsel %vm1767, %v4989, 0.0
        %v5053 = vpack.c.bf16 %v5022, 0.0
        %v5054 = vpack.c.bf16 %v5024, %v5023
        %v5055 = vpack.c.bf16 %v5026, %v5025
        %v5056 = vpack.c.bf16 %v5028, %v5027
        %v5057 = vpack.c.bf16 %v5030, %v5029
        %v5058 = vpack.c.bf16 %v5032, %v5031
        %v5059 = vpack.c.bf16 %v5034, %v5033
        %v5060 = vpack.c.bf16 %v5036, %v5035
        %v5061 = vpack.c.bf16 %v5038, %v5037
        %v5062 = vpack.c.bf16 %v5040, %v5039
        %v5063 = vpack.c.bf16 %v5042, %v5041
        %v5064 = vpack.c.bf16 %v5044, %v5043
        %v5065 = vpack.c.bf16 %v5046, %v5045
        %v5066 = vpack.c.bf16 %v5048, %v5047
        %v5067 = vpack.c.bf16 %v5050, %v5049
        %v5068 = vpack.c.bf16 %v5052, %v5051
        %s5069 = scalar_lea.vmem %s3, 128
        %v5070 = vld [vmem:[%s5069] sm:$0xf]
        %v5071 = vld [vmem:[%s5069 + $0x4] sm:$0xf]
        %v5072 = vld [vmem:[%s5069 + $0x8] sm:$0xf]
        %v5073 = vld [vmem:[%s5069 + $0xc] sm:$0xf]
        %v5074 = vld [vmem:[%s5069 + $0x10] sm:$0xf]
        %v5075 = vld [vmem:[%s5069 + $0x14] sm:$0xf]
        %v5076 = vld [vmem:[%s5069 + $0x18] sm:$0xf]
        %v5077 = vld [vmem:[%s5069 + $0x1c] sm:$0xf]
        %v5078 = vld [vmem:[%s5069 + $0x20] sm:$0xf]
        %v5079 = vld [vmem:[%s5069 + $0x24] sm:$0xf]
        %v5080 = vld [vmem:[%s5069 + $0x28] sm:$0xf]
        %v5081 = vld [vmem:[%s5069 + $0x2c] sm:$0xf]
        %v5082 = vld [vmem:[%s5069 + $0x30] sm:$0xf]
        %v5083 = vld [vmem:[%s5069 + $0x34] sm:$0xf]
        %v5084 = vld [vmem:[%s5069 + $0x38] sm:$0xf]
        %v5085 = vld [vmem:[%s5069 + $0x3c] sm:$0xf]
        %v5102 = vunpack.c.l.b16 %v5070
        %v5103 = vunpack.c.l.b16 %v5071
        %v5104 = vunpack.c.l.b16 %v5072
        %v5105 = vunpack.c.l.b16 %v5073
        %v5106 = vunpack.c.l.b16 %v5074
        %v5107 = vunpack.c.l.b16 %v5075
        %v5108 = vunpack.c.l.b16 %v5076
        %v5109 = vunpack.c.l.b16 %v5077
        %v5110 = vunpack.c.l.b16 %v5078
        %v5111 = vunpack.c.l.b16 %v5079
        %v5112 = vunpack.c.l.b16 %v5080
        %v5113 = vunpack.c.l.b16 %v5081
        %v5114 = vunpack.c.l.b16 %v5082
        %v5115 = vunpack.c.l.b16 %v5083
        %v5116 = vunpack.c.l.b16 %v5084
        %v5117 = vunpack.c.l.b16 %v5085
        %v5118 = vpack.c.b16 %v5103, %v5102
        %v5119 = vpack.c.b16 %v5105, %v5104
        %v5120 = vpack.c.b16 %v5107, %v5106
        %v5121 = vpack.c.b16 %v5109, %v5108
        %v5122 = vpack.c.b16 %v5111, %v5110
        %v5123 = vpack.c.b16 %v5113, %v5112
        %v5124 = vpack.c.b16 %v5115, %v5114
        %v5125 = vpack.c.b16 %v5117, %v5116
        %5134 = vmatprep.subr.bf16.mxu0 0
        %5135 = vmatpush1.bf16.msra.mxu0 %v5118
        %5136 = vmatprep.subr.bf16.mxu0 0
        %5137 = vmatpush1.bf16.msra.mxu0 %v5119
        %5138 = vmatprep.subr.bf16.mxu0 0
        %5139 = vmatpush1.bf16.msra.mxu0 %v5120
        %5140 = vmatprep.subr.bf16.mxu0 0
        %5141 = vmatpush1.bf16.msra.mxu0 %v5121
        %5142 = vmatprep.subr.bf16.mxu0 0
        %5143 = vmatpush1.bf16.msra.mxu0 %v5122
        %5144 = vmatprep.subr.bf16.mxu0 0
        %5145 = vmatpush1.bf16.msra.mxu0 %v5123
        %5146 = vmatprep.subr.bf16.mxu0 0
        %5147 = vmatpush1.bf16.msra.mxu0 %v5124
        %5148 = vmatprep.subr.bf16.mxu0 0
        %5149 = vmatpush1.bf16.msra.mxu0 %v5125
        %5150 = vmatprep.subr.bf16.mxu0 0
        %5151 = vmatpush1.bf16.msra.mxu0 0
        %5152 = vmatprep.subr.bf16.mxu0 0
        %5153 = vmatpush1.bf16.msra.mxu0 0
        %5154 = vmatprep.subr.bf16.mxu0 0
        %5155 = vmatpush1.bf16.msra.mxu0 0
        %5156 = vmatprep.subr.bf16.mxu0 0
        %5157 = vmatpush1.bf16.msra.mxu0 0
        %5158 = vmatprep.subr.bf16.mxu0 0
        %5159 = vmatpush1.bf16.msra.mxu0 0
        %5160 = vmatprep.subr.bf16.mxu0 0
        %5161 = vmatpush1.bf16.msra.mxu0 0
        %5162 = vmatprep.subr.bf16.mxu0 0
        %5163 = vmatpush1.bf16.msra.mxu0 0
        %5164 = vmatprep.subr.bf16.mxu0 0
        %5165 = vmatpush1.bf16.msra.mxu0 0
        %5166 = vmatprep.mubr.bf16.mxu0 0
        %5167 = vmatmul.mubr.bf16.gmra.mrb[0].mxu0 %v5053
        %v5168 = vpop.f32.mrb[0].mxu0
        %v5169 = vadd.f32 0.0, %v5168
        %v5170 = vpop.f32.mrb[0].mxu0
        %v5171 = vpop.f32.mrb[0].mxu0
        %v5172 = vadd.f32 0.0, %v5171
        %v5173 = vpop.f32.mrb[0].mxu0
        %5174 = vmatprep.mubr.bf16.mxu0 0
        %5175 = vmatmul.mubr.bf16.gmra.mrb[0].mxu0 %v5054
        %v5176 = vpop.f32.mrb[0].mxu0
        %v5177 = vadd.f32 0.0, %v5176
        %v5178 = vpop.f32.mrb[0].mxu0
        %v5179 = vpop.f32.mrb[0].mxu0
        %v5180 = vadd.f32 0.0, %v5179
        %v5181 = vpop.f32.mrb[0].mxu0
        %5182 = vmatprep.mubr.bf16.mxu0 0
        %5183 = vmatmul.mubr.bf16.gmra.mrb[0].mxu0 %v5055
        %v5184 = vpop.f32.mrb[0].mxu0
        %v5185 = vadd.f32 0.0, %v5184
        %v5186 = vpop.f32.mrb[0].mxu0
        %v5187 = vpop.f32.mrb[0].mxu0
        %v5188 = vadd.f32 0.0, %v5187
        %v5189 = vpop.f32.mrb[0].mxu0
        %5190 = vmatprep.mubr.bf16.mxu0 0
        %5191 = vmatmul.mubr.bf16.gmra.mrb[0].mxu0 %v5056
        %v5192 = vpop.f32.mrb[0].mxu0
        %v5193 = vadd.f32 0.0, %v5192
        %v5194 = vpop.f32.mrb[0].mxu0
        %v5195 = vpop.f32.mrb[0].mxu0
        %v5196 = vadd.f32 0.0, %v5195
        %v5197 = vpop.f32.mrb[0].mxu0
        %5198 = vmatprep.mubr.bf16.mxu0 0
        %5199 = vmatmul.mubr.bf16.gmra.mrb[0].mxu0 %v5057
        %v5200 = vpop.f32.mrb[0].mxu0
        %v5201 = vadd.f32 0.0, %v5200
        %v5202 = vpop.f32.mrb[0].mxu0
        %v5203 = vpop.f32.mrb[0].mxu0
        %v5204 = vadd.f32 0.0, %v5203
        %v5205 = vpop.f32.mrb[0].mxu0
        %5206 = vmatprep.mubr.bf16.mxu0 0
        %5207 = vmatmul.mubr.bf16.gmra.mrb[0].mxu0 %v5058
        %v5208 = vpop.f32.mrb[0].mxu0
        %v5209 = vadd.f32 0.0, %v5208
        %v5210 = vpop.f32.mrb[0].mxu0
        %v5211 = vpop.f32.mrb[0].mxu0
        %v5212 = vadd.f32 0.0, %v5211
        %v5213 = vpop.f32.mrb[0].mxu0
        %5214 = vmatprep.mubr.bf16.mxu0 0
        %5215 = vmatmul.mubr.bf16.gmra.mrb[0].mxu0 %v5059
        %v5216 = vpop.f32.mrb[0].mxu0
        %v5217 = vadd.f32 0.0, %v5216
        %v5218 = vpop.f32.mrb[0].mxu0
        %v5219 = vpop.f32.mrb[0].mxu0
        %v5220 = vadd.f32 0.0, %v5219
        %v5221 = vpop.f32.mrb[0].mxu0
        %5222 = vmatprep.mubr.bf16.mxu0 0
        %5223 = vmatmul.mubr.bf16.gmra.mrb[0].mxu0 %v5060
        %v5224 = vpop.f32.mrb[0].mxu0
        %v5225 = vadd.f32 0.0, %v5224
        %v5226 = vpop.f32.mrb[0].mxu0
        %v5227 = vpop.f32.mrb[0].mxu0
        %v5228 = vadd.f32 0.0, %v5227
        %v5229 = vpop.f32.mrb[0].mxu0
        %5230 = vmatprep.mubr.bf16.mxu0 0
        %5231 = vmatmul.mubr.bf16.gmra.mrb[0].mxu0 %v5061
        %v5232 = vpop.f32.mrb[0].mxu0
        %v5233 = vadd.f32 0.0, %v5232
        %v5234 = vpop.f32.mrb[0].mxu0
        %v5235 = vpop.f32.mrb[0].mxu0
        %v5236 = vadd.f32 0.0, %v5235
        %v5237 = vpop.f32.mrb[0].mxu0
        %5238 = vmatprep.mubr.bf16.mxu0 0
        %5239 = vmatmul.mubr.bf16.gmra.mrb[0].mxu0 %v5062
        %v5240 = vpop.f32.mrb[0].mxu0
        %v5241 = vadd.f32 0.0, %v5240
        %v5242 = vpop.f32.mrb[0].mxu0
        %v5243 = vpop.f32.mrb[0].mxu0
        %v5244 = vadd.f32 0.0, %v5243
        %v5245 = vpop.f32.mrb[0].mxu0
        %5246 = vmatprep.mubr.bf16.mxu0 0
        %5247 = vmatmul.mubr.bf16.gmra.mrb[0].mxu0 %v5063
        %v5248 = vpop.f32.mrb[0].mxu0
        %v5249 = vadd.f32 0.0, %v5248
        %v5250 = vpop.f32.mrb[0].mxu0
        %v5251 = vpop.f32.mrb[0].mxu0
        %v5252 = vadd.f32 0.0, %v5251
        %v5253 = vpop.f32.mrb[0].mxu0
        %5254 = vmatprep.mubr.bf16.mxu0 0
        %5255 = vmatmul.mubr.bf16.gmra.mrb[0].mxu0 %v5064
        %v5256 = vpop.f32.mrb[0].mxu0
        %v5257 = vadd.f32 0.0, %v5256
        %v5258 = vpop.f32.mrb[0].mxu0
        %v5259 = vpop.f32.mrb[0].mxu0
        %v5260 = vadd.f32 0.0, %v5259
        %v5261 = vpop.f32.mrb[0].mxu0
        %5262 = vmatprep.mubr.bf16.mxu0 0
        %5263 = vmatmul.mubr.bf16.gmra.mrb[0].mxu0 %v5065
        %v5264 = vpop.f32.mrb[0].mxu0
        %v5265 = vadd.f32 0.0, %v5264
        %v5266 = vpop.f32.mrb[0].mxu0
        %v5267 = vpop.f32.mrb[0].mxu0
        %v5268 = vadd.f32 0.0, %v5267
        %v5269 = vpop.f32.mrb[0].mxu0
        %5270 = vmatprep.mubr.bf16.mxu0 0
        %5271 = vmatmul.mubr.bf16.gmra.mrb[0].mxu0 %v5066
        %v5272 = vpop.f32.mrb[0].mxu0
        %v5273 = vadd.f32 0.0, %v5272
        %v5274 = vpop.f32.mrb[0].mxu0
        %v5275 = vpop.f32.mrb[0].mxu0
        %v5276 = vadd.f32 0.0, %v5275
        %v5277 = vpop.f32.mrb[0].mxu0
        %5278 = vmatprep.mubr.bf16.mxu0 0
        %5279 = vmatmul.mubr.bf16.gmra.mrb[0].mxu0 %v5067
        %v5280 = vpop.f32.mrb[0].mxu0
        %v5281 = vadd.f32 0.0, %v5280
        %v5282 = vpop.f32.mrb[0].mxu0
        %v5283 = vpop.f32.mrb[0].mxu0
        %v5284 = vadd.f32 0.0, %v5283
        %v5285 = vpop.f32.mrb[0].mxu0
        %5286 = vmatprep.mubr.bf16.mxu0 0
        %5287 = vmatmul.mubr.bf16.gmra.mrb[0].mxu0 %v5068
        %v5288 = vpop.f32.mrb[0].mxu0
        %v5289 = vadd.f32 0.0, %v5288
        %v5290 = vpop.f32.mrb[0].mxu0
        %v5291 = vpop.f32.mrb[0].mxu0
        %v5292 = vadd.f32 0.0, %v5291
        %v5293 = vpop.f32.mrb[0].mxu0
        %5294 = vdwg.mxu0
        %v5295 = vadd.f32 %v4802, %v5169
        %v5296 = vadd.f32 %v4805, %v5172
        %v5297 = vadd.f32 %v4810, %v5177
        %v5298 = vadd.f32 %v4813, %v5180
        %v5299 = vadd.f32 %v4818, %v5185
        %v5300 = vadd.f32 %v4821, %v5188
        %v5301 = vadd.f32 %v4826, %v5193
        %v5302 = vadd.f32 %v4829, %v5196
        %v5303 = vadd.f32 %v4834, %v5201
        %v5304 = vadd.f32 %v4837, %v5204
        %v5305 = vadd.f32 %v4842, %v5209
        %v5306 = vadd.f32 %v4845, %v5212
        %v5307 = vadd.f32 %v4850, %v5217
        %v5308 = vadd.f32 %v4853, %v5220
        %v5309 = vadd.f32 %v4858, %v5225
        %v5310 = vadd.f32 %v4861, %v5228
        %v5311 = vadd.f32 %v4866, %v5233
        %v5312 = vadd.f32 %v4869, %v5236
        %v5313 = vadd.f32 %v4874, %v5241
        %v5314 = vadd.f32 %v4877, %v5244
        %v5315 = vadd.f32 %v4882, %v5249
        %v5316 = vadd.f32 %v4885, %v5252
        %v5317 = vadd.f32 %v4890, %v5257
        %v5318 = vadd.f32 %v4893, %v5260
        %v5319 = vadd.f32 %v4898, %v5265
        %v5320 = vadd.f32 %v4901, %v5268
        %v5321 = vadd.f32 %v4906, %v5273
        %v5322 = vadd.f32 %v4909, %v5276
        %v5323 = vadd.f32 %v4914, %v5281
        %v5324 = vadd.f32 %v4917, %v5284
        %v5325 = vadd.f32 %v4922, %v5289
        %v5326 = vadd.f32 %v4925, %v5292
        %v5328 = vrot.slane %v4265, 7
        %v5329 = vsel %vm727, %v4354, %v5328
        %v5330 = vrot.slane %v4266, 7
        %v5331 = vsel %vm727, %v5328, %v5330
        %v5334 = vsel %vm2100, %v4386, 0.0
        %v5335 = vsel %vm2101, %v4299, 0.0
        %v5336 = vsel %vm2102, %v4301, 0.0
        %v5337 = vsel %vm2103, %v4303, 0.0
        %v5338 = vsel %vm2104, %v4305, 0.0
        %v5339 = vsel %vm2105, %v4307, 0.0
        %v5340 = vsel %vm2106, %v4309, 0.0
        %v5341 = vsel %vm2107, %v4311, 0.0
        %v5342 = vsel %vm2108, %v4313, 0.0
        %v5343 = vsel %vm2109, %v4315, 0.0
        %v5344 = vsel %vm2110, %v4317, 0.0
        %v5345 = vsel %vm2111, %v4319, 0.0
        %v5346 = vsel %vm2112, %v4321, 0.0
        %v5347 = vsel %vm2113, %v4323, 0.0
        %v5348 = vsel %vm2114, %v4325, 0.0
        %v5349 = vsel %vm2115, %v4327, 0.0
        %v5350 = vsel %vm2116, %v4329, 0.0
        %v5351 = vsel %vm2117, %v4331, 0.0
        %v5352 = vsel %vm2118, %v4333, 0.0
        %v5353 = vsel %vm2119, %v4335, 0.0
        %v5354 = vsel %vm2120, %v4337, 0.0
        %v5355 = vsel %vm2121, %v4339, 0.0
        %v5356 = vsel %vm2122, %v4341, 0.0
        %v5357 = vsel %vm2123, %v4343, 0.0
        %v5358 = vsel %vm2124, %v4345, 0.0
        %v5359 = vsel %vm2125, %v4347, 0.0
        %v5360 = vsel %vm2126, %v4349, 0.0
        %v5361 = vsel %vm2127, %v4351, 0.0
        %v5362 = vsel %vm2128, %v4353, 0.0
        %v5363 = vsel %vm2129, %v4355, 0.0
        %v5364 = vsel %vm2130, %v5329, 0.0
        %v5365 = vsel %vm2131, %v5331, 0.0
        %v5366 = vpack.c.bf16 %v5335, %v5334
        %v5367 = vpack.c.bf16 %v5337, %v5336
        %v5368 = vpack.c.bf16 %v5339, %v5338
        %v5369 = vpack.c.bf16 %v5341, %v5340
        %v5370 = vpack.c.bf16 %v5343, %v5342
        %v5371 = vpack.c.bf16 %v5345, %v5344
        %v5372 = vpack.c.bf16 %v5347, %v5346
        %v5373 = vpack.c.bf16 %v5349, %v5348
        %v5374 = vpack.c.bf16 %v5351, %v5350
        %v5375 = vpack.c.bf16 %v5353, %v5352
        %v5376 = vpack.c.bf16 %v5355, %v5354
        %v5377 = vpack.c.bf16 %v5357, %v5356
        %v5378 = vpack.c.bf16 %v5359, %v5358
        %v5379 = vpack.c.bf16 %v5361, %v5360
        %v5380 = vpack.c.bf16 %v5363, %v5362
        %v5381 = vpack.c.bf16 %v5365, %v5364
        %s5382 = scalar_lea.vmem %s3, 192
        %v5383 = vld [vmem:[%s5382] sm:$0xf]
        %v5384 = vld [vmem:[%s5382 + $0x4] sm:$0xf]
        %v5385 = vld [vmem:[%s5382 + $0x8] sm:$0xf]
        %v5386 = vld [vmem:[%s5382 + $0xc] sm:$0xf]
        %v5387 = vld [vmem:[%s5382 + $0x10] sm:$0xf]
        %v5388 = vld [vmem:[%s5382 + $0x14] sm:$0xf]
        %v5389 = vld [vmem:[%s5382 + $0x18] sm:$0xf]
        %v5390 = vld [vmem:[%s5382 + $0x1c] sm:$0xf]
        %v5391 = vld [vmem:[%s5382 + $0x20] sm:$0xf]
        %v5392 = vld [vmem:[%s5382 + $0x24] sm:$0xf]
        %v5393 = vld [vmem:[%s5382 + $0x28] sm:$0xf]
        %v5394 = vld [vmem:[%s5382 + $0x2c] sm:$0xf]
        %v5395 = vld [vmem:[%s5382 + $0x30] sm:$0xf]
        %v5396 = vld [vmem:[%s5382 + $0x34] sm:$0xf]
        %v5397 = vld [vmem:[%s5382 + $0x38] sm:$0xf]
        %v5398 = vld [vmem:[%s5382 + $0x3c] sm:$0xf]
        %v5415 = vunpack.c.l.b16 %v5383
        %v5416 = vunpack.c.l.b16 %v5384
        %v5417 = vunpack.c.l.b16 %v5385
        %v5418 = vunpack.c.l.b16 %v5386
        %v5419 = vunpack.c.l.b16 %v5387
        %v5420 = vunpack.c.l.b16 %v5388
        %v5421 = vunpack.c.l.b16 %v5389
        %v5422 = vunpack.c.l.b16 %v5390
        %v5423 = vunpack.c.l.b16 %v5391
        %v5424 = vunpack.c.l.b16 %v5392
        %v5425 = vunpack.c.l.b16 %v5393
        %v5426 = vunpack.c.l.b16 %v5394
        %v5427 = vunpack.c.l.b16 %v5395
        %v5428 = vunpack.c.l.b16 %v5396
        %v5429 = vunpack.c.l.b16 %v5397
        %v5430 = vunpack.c.l.b16 %v5398
        %v5431 = vpack.c.b16 %v5416, %v5415
        %v5432 = vpack.c.b16 %v5418, %v5417
        %v5433 = vpack.c.b16 %v5420, %v5419
        %v5434 = vpack.c.b16 %v5422, %v5421
        %v5435 = vpack.c.b16 %v5424, %v5423
        %v5436 = vpack.c.b16 %v5426, %v5425
        %v5437 = vpack.c.b16 %v5428, %v5427
        %v5438 = vpack.c.b16 %v5430, %v5429
        %5447 = vmatprep.subr.bf16.mxu0 0
        %5448 = vmatpush1.bf16.msra.mxu0 %v5431
        %5449 = vmatprep.subr.bf16.mxu0 0
        %5450 = vmatpush1.bf16.msra.mxu0 %v5432
        %5451 = vmatprep.subr.bf16.mxu0 0
        %5452 = vmatpush1.bf16.msra.mxu0 %v5433
        %5453 = vmatprep.subr.bf16.mxu0 0
        %5454 = vmatpush1.bf16.msra.mxu0 %v5434
        %5455 = vmatprep.subr.bf16.mxu0 0
        %5456 = vmatpush1.bf16.msra.mxu0 %v5435
        %5457 = vmatprep.subr.bf16.mxu0 0
        %5458 = vmatpush1.bf16.msra.mxu0 %v5436
        %5459 = vmatprep.subr.bf16.mxu0 0
        %5460 = vmatpush1.bf16.msra.mxu0 %v5437
        %5461 = vmatprep.subr.bf16.mxu0 0
        %5462 = vmatpush1.bf16.msra.mxu0 %v5438
        %5463 = vmatprep.subr.bf16.mxu0 0
        %5464 = vmatpush1.bf16.msra.mxu0 0
        %5465 = vmatprep.subr.bf16.mxu0 0
        %5466 = vmatpush1.bf16.msra.mxu0 0
        %5467 = vmatprep.subr.bf16.mxu0 0
        %5468 = vmatpush1.bf16.msra.mxu0 0
        %5469 = vmatprep.subr.bf16.mxu0 0
        %5470 = vmatpush1.bf16.msra.mxu0 0
        %5471 = vmatprep.subr.bf16.mxu0 0
        %5472 = vmatpush1.bf16.msra.mxu0 0
        %5473 = vmatprep.subr.bf16.mxu0 0
        %5474 = vmatpush1.bf16.msra.mxu0 0
        %5475 = vmatprep.subr.bf16.mxu0 0
        %5476 = vmatpush1.bf16.msra.mxu0 0
        %5477 = vmatprep.subr.bf16.mxu0 0
        %5478 = vmatpush1.bf16.msra.mxu0 0
        %5479 = vmatprep.mubr.bf16.mxu0 0
        %5480 = vmatmul.mubr.bf16.gmra.mrb[0].mxu0 %v5366
        %v5481 = vpop.f32.mrb[0].mxu0
        %v5482 = vadd.f32 0.0, %v5481
        %v5483 = vpop.f32.mrb[0].mxu0
        %v5484 = vpop.f32.mrb[0].mxu0
        %v5485 = vadd.f32 0.0, %v5484
        %v5486 = vpop.f32.mrb[0].mxu0
        %5487 = vmatprep.mubr.bf16.mxu0 0
        %5488 = vmatmul.mubr.bf16.gmra.mrb[0].mxu0 %v5367
        %v5489 = vpop.f32.mrb[0].mxu0
        %v5490 = vadd.f32 0.0, %v5489
        %v5491 = vpop.f32.mrb[0].mxu0
        %v5492 = vpop.f32.mrb[0].mxu0
        %v5493 = vadd.f32 0.0, %v5492
        %v5494 = vpop.f32.mrb[0].mxu0
        %5495 = vmatprep.mubr.bf16.mxu0 0
        %5496 = vmatmul.mubr.bf16.gmra.mrb[0].mxu0 %v5368
        %v5497 = vpop.f32.mrb[0].mxu0
        %v5498 = vadd.f32 0.0, %v5497
        %v5499 = vpop.f32.mrb[0].mxu0
        %v5500 = vpop.f32.mrb[0].mxu0
        %v5501 = vadd.f32 0.0, %v5500
        %v5502 = vpop.f32.mrb[0].mxu0
        %5503 = vmatprep.mubr.bf16.mxu0 0
        %5504 = vmatmul.mubr.bf16.gmra.mrb[0].mxu0 %v5369
        %v5505 = vpop.f32.mrb[0].mxu0
        %v5506 = vadd.f32 0.0, %v5505
        %v5507 = vpop.f32.mrb[0].mxu0
        %v5508 = vpop.f32.mrb[0].mxu0
        %v5509 = vadd.f32 0.0, %v5508
        %v5510 = vpop.f32.mrb[0].mxu0
        %5511 = vmatprep.mubr.bf16.mxu0 0
        %5512 = vmatmul.mubr.bf16.gmra.mrb[0].mxu0 %v5370
        %v5513 = vpop.f32.mrb[0].mxu0
        %v5514 = vadd.f32 0.0, %v5513
        %v5515 = vpop.f32.mrb[0].mxu0
        %v5516 = vpop.f32.mrb[0].mxu0
        %v5517 = vadd.f32 0.0, %v5516
        %v5518 = vpop.f32.mrb[0].mxu0
        %5519 = vmatprep.mubr.bf16.mxu0 0
        %5520 = vmatmul.mubr.bf16.gmra.mrb[0].mxu0 %v5371
        %v5521 = vpop.f32.mrb[0].mxu0
        %v5522 = vadd.f32 0.0, %v5521
        %v5523 = vpop.f32.mrb[0].mxu0
        %v5524 = vpop.f32.mrb[0].mxu0
        %v5525 = vadd.f32 0.0, %v5524
        %v5526 = vpop.f32.mrb[0].mxu0
        %5527 = vmatprep.mubr.bf16.mxu0 0
        %5528 = vmatmul.mubr.bf16.gmra.mrb[0].mxu0 %v5372
        %v5529 = vpop.f32.mrb[0].mxu0
        %v5530 = vadd.f32 0.0, %v5529
        %v5531 = vpop.f32.mrb[0].mxu0
        %v5532 = vpop.f32.mrb[0].mxu0
        %v5533 = vadd.f32 0.0, %v5532
        %v5534 = vpop.f32.mrb[0].mxu0
        %5535 = vmatprep.mubr.bf16.mxu0 0
        %5536 = vmatmul.mubr.bf16.gmra.mrb[0].mxu0 %v5373
        %v5537 = vpop.f32.mrb[0].mxu0
        %v5538 = vadd.f32 0.0, %v5537
        %v5539 = vpop.f32.mrb[0].mxu0
        %v5540 = vpop.f32.mrb[0].mxu0
        %v5541 = vadd.f32 0.0, %v5540
        %v5542 = vpop.f32.mrb[0].mxu0
        %5543 = vmatprep.mubr.bf16.mxu0 0
        %5544 = vmatmul.mubr.bf16.gmra.mrb[0].mxu0 %v5374
        %v5545 = vpop.f32.mrb[0].mxu0
        %v5546 = vadd.f32 0.0, %v5545
        %v5547 = vpop.f32.mrb[0].mxu0
        %v5548 = vpop.f32.mrb[0].mxu0
        %v5549 = vadd.f32 0.0, %v5548
        %v5550 = vpop.f32.mrb[0].mxu0
        %5551 = vmatprep.mubr.bf16.mxu0 0
        %5552 = vmatmul.mubr.bf16.gmra.mrb[0].mxu0 %v5375
        %v5553 = vpop.f32.mrb[0].mxu0
        %v5554 = vadd.f32 0.0, %v5553
        %v5555 = vpop.f32.mrb[0].mxu0
        %v5556 = vpop.f32.mrb[0].mxu0
        %v5557 = vadd.f32 0.0, %v5556
        %v5558 = vpop.f32.mrb[0].mxu0
        %5559 = vmatprep.mubr.bf16.mxu0 0
        %5560 = vmatmul.mubr.bf16.gmra.mrb[0].mxu0 %v5376
        %v5561 = vpop.f32.mrb[0].mxu0
        %v5562 = vadd.f32 0.0, %v5561
        %v5563 = vpop.f32.mrb[0].mxu0
        %v5564 = vpop.f32.mrb[0].mxu0
        %v5565 = vadd.f32 0.0, %v5564
        %v5566 = vpop.f32.mrb[0].mxu0
        %5567 = vmatprep.mubr.bf16.mxu0 0
        %5568 = vmatmul.mubr.bf16.gmra.mrb[0].mxu0 %v5377
        %v5569 = vpop.f32.mrb[0].mxu0
        %v5570 = vadd.f32 0.0, %v5569
        %v5571 = vpop.f32.mrb[0].mxu0
        %v5572 = vpop.f32.mrb[0].mxu0
        %v5573 = vadd.f32 0.0, %v5572
        %v5574 = vpop.f32.mrb[0].mxu0
        %5575 = vmatprep.mubr.bf16.mxu0 0
        %5576 = vmatmul.mubr.bf16.gmra.mrb[0].mxu0 %v5378
        %v5577 = vpop.f32.mrb[0].mxu0
        %v5578 = vadd.f32 0.0, %v5577
        %v5579 = vpop.f32.mrb[0].mxu0
        %v5580 = vpop.f32.mrb[0].mxu0
        %v5581 = vadd.f32 0.0, %v5580
        %v5582 = vpop.f32.mrb[0].mxu0
        %5583 = vmatprep.mubr.bf16.mxu0 0
        %5584 = vmatmul.mubr.bf16.gmra.mrb[0].mxu0 %v5379
        %v5585 = vpop.f32.mrb[0].mxu0
        %v5586 = vadd.f32 0.0, %v5585
        %v5587 = vpop.f32.mrb[0].mxu0
        %v5588 = vpop.f32.mrb[0].mxu0
        %v5589 = vadd.f32 0.0, %v5588
        %v5590 = vpop.f32.mrb[0].mxu0
        %5591 = vmatprep.mubr.bf16.mxu0 0
        %5592 = vmatmul.mubr.bf16.gmra.mrb[0].mxu0 %v5380
        %v5593 = vpop.f32.mrb[0].mxu0
        %v5594 = vadd.f32 0.0, %v5593
        %v5595 = vpop.f32.mrb[0].mxu0
        %v5596 = vpop.f32.mrb[0].mxu0
        %v5597 = vadd.f32 0.0, %v5596
        %v5598 = vpop.f32.mrb[0].mxu0
        %5599 = vmatprep.mubr.bf16.mxu0 0
        %5600 = vmatmul.mubr.bf16.gmra.mrb[0].mxu0 %v5381
        %v5601 = vpop.f32.mrb[0].mxu0
        %v5602 = vadd.f32 0.0, %v5601
        %v5603 = vpop.f32.mrb[0].mxu0
        %v5604 = vpop.f32.mrb[0].mxu0
        %v5605 = vadd.f32 0.0, %v5604
        %v5606 = vpop.f32.mrb[0].mxu0
        %5607 = vdwg.mxu0
        %v5608 = vadd.f32 %v5295, %v5482
        %v5609 = vadd.f32 %v5296, %v5485
        %v5610 = vadd.f32 %v5297, %v5490
        %v5611 = vadd.f32 %v5298, %v5493
        %v5612 = vadd.f32 %v5299, %v5498
        %v5613 = vadd.f32 %v5300, %v5501
        %v5614 = vadd.f32 %v5301, %v5506
        %v5615 = vadd.f32 %v5302, %v5509
        %v5616 = vadd.f32 %v5303, %v5514
        %v5617 = vadd.f32 %v5304, %v5517
        %v5618 = vadd.f32 %v5305, %v5522
        %v5619 = vadd.f32 %v5306, %v5525
        %v5620 = vadd.f32 %v5307, %v5530
        %v5621 = vadd.f32 %v5308, %v5533
        %v5622 = vadd.f32 %v5309, %v5538
        %v5623 = vadd.f32 %v5310, %v5541
        %v5624 = vadd.f32 %v5311, %v5546
        %v5625 = vadd.f32 %v5312, %v5549
        %v5626 = vadd.f32 %v5313, %v5554
        %v5627 = vadd.f32 %v5314, %v5557
        %v5628 = vadd.f32 %v5315, %v5562
        %v5629 = vadd.f32 %v5316, %v5565
        %v5630 = vadd.f32 %v5317, %v5570
        %v5631 = vadd.f32 %v5318, %v5573
        %v5632 = vadd.f32 %v5319, %v5578
        %v5633 = vadd.f32 %v5320, %v5581
        %v5634 = vadd.f32 %v5321, %v5586
        %v5635 = vadd.f32 %v5322, %v5589
        %v5636 = vadd.f32 %v5323, %v5594
        %v5637 = vadd.f32 %v5324, %v5597
        %v5638 = vadd.f32 %v5325, %v5602
        %v5639 = vadd.f32 %v5326, %v5605
        %v5640 = vpack.c.bf16 %v4236, %v4235
        %v5641 = vpack.c.bf16 %v4238, %v4237
        %v5642 = vpack.c.bf16 %v4240, %v4239
        %v5643 = vpack.c.bf16 %v4242, %v4241
        %v5644 = vpack.c.bf16 %v4244, %v4243
        %v5645 = vpack.c.bf16 %v4246, %v4245
        %v5646 = vpack.c.bf16 %v4248, %v4247
        %v5647 = vpack.c.bf16 %v4250, %v4249
        %v5648 = vpack.c.bf16 %v4252, %v4251
        %v5649 = vpack.c.bf16 %v4254, %v4253
        %v5650 = vpack.c.bf16 %v4256, %v4255
        %v5651 = vpack.c.bf16 %v4258, %v4257
        %v5652 = vpack.c.bf16 %v4260, %v4259
        %v5653 = vpack.c.bf16 %v4262, %v4261
        %v5654 = vpack.c.bf16 %v4264, %v4263
        %v5655 = vpack.c.bf16 %v4266, %v4265
        %s5656 = scalar_lea.vmem %s3, 256
        %v5657 = vld [vmem:[%s5656] sm:$0xf]
        %v5658 = vld [vmem:[%s5656 + $0x4] sm:$0xf]
        %v5659 = vld [vmem:[%s5656 + $0x8] sm:$0xf]
        %v5660 = vld [vmem:[%s5656 + $0xc] sm:$0xf]
        %v5661 = vld [vmem:[%s5656 + $0x10] sm:$0xf]
        %v5662 = vld [vmem:[%s5656 + $0x14] sm:$0xf]
        %v5663 = vld [vmem:[%s5656 + $0x18] sm:$0xf]
        %v5664 = vld [vmem:[%s5656 + $0x1c] sm:$0xf]
        %v5665 = vld [vmem:[%s5656 + $0x20] sm:$0xf]
        %v5666 = vld [vmem:[%s5656 + $0x24] sm:$0xf]
        %v5667 = vld [vmem:[%s5656 + $0x28] sm:$0xf]
        %v5668 = vld [vmem:[%s5656 + $0x2c] sm:$0xf]
        %v5669 = vld [vmem:[%s5656 + $0x30] sm:$0xf]
        %v5670 = vld [vmem:[%s5656 + $0x34] sm:$0xf]
        %v5671 = vld [vmem:[%s5656 + $0x38] sm:$0xf]
        %v5672 = vld [vmem:[%s5656 + $0x3c] sm:$0xf]
        %v5689 = vunpack.c.l.b16 %v5657
        %v5690 = vunpack.c.l.b16 %v5658
        %v5691 = vunpack.c.l.b16 %v5659
        %v5692 = vunpack.c.l.b16 %v5660
        %v5693 = vunpack.c.l.b16 %v5661
        %v5694 = vunpack.c.l.b16 %v5662
        %v5695 = vunpack.c.l.b16 %v5663
        %v5696 = vunpack.c.l.b16 %v5664
        %v5697 = vunpack.c.l.b16 %v5665
        %v5698 = vunpack.c.l.b16 %v5666
        %v5699 = vunpack.c.l.b16 %v5667
        %v5700 = vunpack.c.l.b16 %v5668
        %v5701 = vunpack.c.l.b16 %v5669
        %v5702 = vunpack.c.l.b16 %v5670
        %v5703 = vunpack.c.l.b16 %v5671
        %v5704 = vunpack.c.l.b16 %v5672
        %v5705 = vpack.c.b16 %v5690, %v5689
        %v5706 = vpack.c.b16 %v5692, %v5691
        %v5707 = vpack.c.b16 %v5694, %v5693
        %v5708 = vpack.c.b16 %v5696, %v5695
        %v5709 = vpack.c.b16 %v5698, %v5697
        %v5710 = vpack.c.b16 %v5700, %v5699
        %v5711 = vpack.c.b16 %v5702, %v5701
        %v5712 = vpack.c.b16 %v5704, %v5703
        %5721 = vmatprep.subr.bf16.mxu0 0
        %5722 = vmatpush1.bf16.msra.mxu0 %v5705
        %5723 = vmatprep.subr.bf16.mxu0 0
        %5724 = vmatpush1.bf16.msra.mxu0 %v5706
        %5725 = vmatprep.subr.bf16.mxu0 0
        %5726 = vmatpush1.bf16.msra.mxu0 %v5707
        %5727 = vmatprep.subr.bf16.mxu0 0
        %5728 = vmatpush1.bf16.msra.mxu0 %v5708
        %5729 = vmatprep.subr.bf16.mxu0 0
        %5730 = vmatpush1.bf16.msra.mxu0 %v5709
        %5731 = vmatprep.subr.bf16.mxu0 0
        %5732 = vmatpush1.bf16.msra.mxu0 %v5710
        %5733 = vmatprep.subr.bf16.mxu0 0
        %5734 = vmatpush1.bf16.msra.mxu0 %v5711
        %5735 = vmatprep.subr.bf16.mxu0 0
        %5736 = vmatpush1.bf16.msra.mxu0 %v5712
        %5737 = vmatprep.subr.bf16.mxu0 0
        %5738 = vmatpush1.bf16.msra.mxu0 0
        %5739 = vmatprep.subr.bf16.mxu0 0
        %5740 = vmatpush1.bf16.msra.mxu0 0
        %5741 = vmatprep.subr.bf16.mxu0 0
        %5742 = vmatpush1.bf16.msra.mxu0 0
        %5743 = vmatprep.subr.bf16.mxu0 0
        %5744 = vmatpush1.bf16.msra.mxu0 0
        %5745 = vmatprep.subr.bf16.mxu0 0
        %5746 = vmatpush1.bf16.msra.mxu0 0
        %5747 = vmatprep.subr.bf16.mxu0 0
        %5748 = vmatpush1.bf16.msra.mxu0 0
        %5749 = vmatprep.subr.bf16.mxu0 0
        %5750 = vmatpush1.bf16.msra.mxu0 0
        %5751 = vmatprep.subr.bf16.mxu0 0
        %5752 = vmatpush1.bf16.msra.mxu0 0
        %5753 = vmatprep.mubr.bf16.mxu0 0
        %5754 = vmatmul.mubr.bf16.gmra.mrb[0].mxu0 %v5640
        %v5755 = vpop.f32.mrb[0].mxu0
        %v5756 = vadd.f32 0.0, %v5755
        %v5757 = vpop.f32.mrb[0].mxu0
        %v5758 = vpop.f32.mrb[0].mxu0
        %v5759 = vadd.f32 0.0, %v5758
        %v5760 = vpop.f32.mrb[0].mxu0
        %5761 = vmatprep.mubr.bf16.mxu0 0
        %5762 = vmatmul.mubr.bf16.gmra.mrb[0].mxu0 %v5641
        %v5763 = vpop.f32.mrb[0].mxu0
        %v5764 = vadd.f32 0.0, %v5763
        %v5765 = vpop.f32.mrb[0].mxu0
        %v5766 = vpop.f32.mrb[0].mxu0
        %v5767 = vadd.f32 0.0, %v5766
        %v5768 = vpop.f32.mrb[0].mxu0
        %5769 = vmatprep.mubr.bf16.mxu0 0
        %5770 = vmatmul.mubr.bf16.gmra.mrb[0].mxu0 %v5642
        %v5771 = vpop.f32.mrb[0].mxu0
        %v5772 = vadd.f32 0.0, %v5771
        %v5773 = vpop.f32.mrb[0].mxu0
        %v5774 = vpop.f32.mrb[0].mxu0
        %v5775 = vadd.f32 0.0, %v5774
        %v5776 = vpop.f32.mrb[0].mxu0
        %5777 = vmatprep.mubr.bf16.mxu0 0
        %5778 = vmatmul.mubr.bf16.gmra.mrb[0].mxu0 %v5643
        %v5779 = vpop.f32.mrb[0].mxu0
        %v5780 = vadd.f32 0.0, %v5779
        %v5781 = vpop.f32.mrb[0].mxu0
        %v5782 = vpop.f32.mrb[0].mxu0
        %v5783 = vadd.f32 0.0, %v5782
        %v5784 = vpop.f32.mrb[0].mxu0
        %5785 = vmatprep.mubr.bf16.mxu0 0
        %5786 = vmatmul.mubr.bf16.gmra.mrb[0].mxu0 %v5644
        %v5787 = vpop.f32.mrb[0].mxu0
        %v5788 = vadd.f32 0.0, %v5787
        %v5789 = vpop.f32.mrb[0].mxu0
        %v5790 = vpop.f32.mrb[0].mxu0
        %v5791 = vadd.f32 0.0, %v5790
        %v5792 = vpop.f32.mrb[0].mxu0
        %5793 = vmatprep.mubr.bf16.mxu0 0
        %5794 = vmatmul.mubr.bf16.gmra.mrb[0].mxu0 %v5645
        %v5795 = vpop.f32.mrb[0].mxu0
        %v5796 = vadd.f32 0.0, %v5795
        %v5797 = vpop.f32.mrb[0].mxu0
        %v5798 = vpop.f32.mrb[0].mxu0
        %v5799 = vadd.f32 0.0, %v5798
        %v5800 = vpop.f32.mrb[0].mxu0
        %5801 = vmatprep.mubr.bf16.mxu0 0
        %5802 = vmatmul.mubr.bf16.gmra.mrb[0].mxu0 %v5646
        %v5803 = vpop.f32.mrb[0].mxu0
        %v5804 = vadd.f32 0.0, %v5803
        %v5805 = vpop.f32.mrb[0].mxu0
        %v5806 = vpop.f32.mrb[0].mxu0
        %v5807 = vadd.f32 0.0, %v5806
        %v5808 = vpop.f32.mrb[0].mxu0
        %5809 = vmatprep.mubr.bf16.mxu0 0
        %5810 = vmatmul.mubr.bf16.gmra.mrb[0].mxu0 %v5647
        %v5811 = vpop.f32.mrb[0].mxu0
        %v5812 = vadd.f32 0.0, %v5811
        %v5813 = vpop.f32.mrb[0].mxu0
        %v5814 = vpop.f32.mrb[0].mxu0
        %v5815 = vadd.f32 0.0, %v5814
        %v5816 = vpop.f32.mrb[0].mxu0
        %5817 = vmatprep.mubr.bf16.mxu0 0
        %5818 = vmatmul.mubr.bf16.gmra.mrb[0].mxu0 %v5648
        %v5819 = vpop.f32.mrb[0].mxu0
        %v5820 = vadd.f32 0.0, %v5819
        %v5821 = vpop.f32.mrb[0].mxu0
        %v5822 = vpop.f32.mrb[0].mxu0
        %v5823 = vadd.f32 0.0, %v5822
        %v5824 = vpop.f32.mrb[0].mxu0
        %5825 = vmatprep.mubr.bf16.mxu0 0
        %5826 = vmatmul.mubr.bf16.gmra.mrb[0].mxu0 %v5649
        %v5827 = vpop.f32.mrb[0].mxu0
        %v5828 = vadd.f32 0.0, %v5827
        %v5829 = vpop.f32.mrb[0].mxu0
        %v5830 = vpop.f32.mrb[0].mxu0
        %v5831 = vadd.f32 0.0, %v5830
        %v5832 = vpop.f32.mrb[0].mxu0
        %5833 = vmatprep.mubr.bf16.mxu0 0
        %5834 = vmatmul.mubr.bf16.gmra.mrb[0].mxu0 %v5650
        %v5835 = vpop.f32.mrb[0].mxu0
        %v5836 = vadd.f32 0.0, %v5835
        %v5837 = vpop.f32.mrb[0].mxu0
        %v5838 = vpop.f32.mrb[0].mxu0
        %v5839 = vadd.f32 0.0, %v5838
        %v5840 = vpop.f32.mrb[0].mxu0
        %5841 = vmatprep.mubr.bf16.mxu0 0
        %5842 = vmatmul.mubr.bf16.gmra.mrb[0].mxu0 %v5651
        %v5843 = vpop.f32.mrb[0].mxu0
        %v5844 = vadd.f32 0.0, %v5843
        %v5845 = vpop.f32.mrb[0].mxu0
        %v5846 = vpop.f32.mrb[0].mxu0
        %v5847 = vadd.f32 0.0, %v5846
        %v5848 = vpop.f32.mrb[0].mxu0
        %5849 = vmatprep.mubr.bf16.mxu0 0
        %5850 = vmatmul.mubr.bf16.gmra.mrb[0].mxu0 %v5652
        %v5851 = vpop.f32.mrb[0].mxu0
        %v5852 = vadd.f32 0.0, %v5851
        %v5853 = vpop.f32.mrb[0].mxu0
        %v5854 = vpop.f32.mrb[0].mxu0
        %v5855 = vadd.f32 0.0, %v5854
        %v5856 = vpop.f32.mrb[0].mxu0
        %5857 = vmatprep.mubr.bf16.mxu0 0
        %5858 = vmatmul.mubr.bf16.gmra.mrb[0].mxu0 %v5653
        %v5859 = vpop.f32.mrb[0].mxu0
        %v5860 = vadd.f32 0.0, %v5859
        %v5861 = vpop.f32.mrb[0].mxu0
        %v5862 = vpop.f32.mrb[0].mxu0
        %v5863 = vadd.f32 0.0, %v5862
        %v5864 = vpop.f32.mrb[0].mxu0
        %5865 = vmatprep.mubr.bf16.mxu0 0
        %5866 = vmatmul.mubr.bf16.gmra.mrb[0].mxu0 %v5654
        %v5867 = vpop.f32.mrb[0].mxu0
        %v5868 = vadd.f32 0.0, %v5867
        %v5869 = vpop.f32.mrb[0].mxu0
        %v5870 = vpop.f32.mrb[0].mxu0
        %v5871 = vadd.f32 0.0, %v5870
        %v5872 = vpop.f32.mrb[0].mxu0
        %5873 = vmatprep.mubr.bf16.mxu0 0
        %5874 = vmatmul.mubr.bf16.gmra.mrb[0].mxu0 %v5655
        %v5875 = vpop.f32.mrb[0].mxu0
        %v5876 = vadd.f32 0.0, %v5875
        %v5877 = vpop.f32.mrb[0].mxu0
        %v5878 = vpop.f32.mrb[0].mxu0
        %v5879 = vadd.f32 0.0, %v5878
        %v5880 = vpop.f32.mrb[0].mxu0
        %5881 = vdwg.mxu0
        %v5882 = vadd.f32 %v5608, %v5756
        %v5883 = vadd.f32 %v5609, %v5759
        %v5884 = vadd.f32 %v5610, %v5764
        %v5885 = vadd.f32 %v5611, %v5767
        %v5886 = vadd.f32 %v5612, %v5772
        %v5887 = vadd.f32 %v5613, %v5775
        %v5888 = vadd.f32 %v5614, %v5780
        %v5889 = vadd.f32 %v5615, %v5783
        %v5890 = vadd.f32 %v5616, %v5788
        %v5891 = vadd.f32 %v5617, %v5791
        %v5892 = vadd.f32 %v5618, %v5796
        %v5893 = vadd.f32 %v5619, %v5799
        %v5894 = vadd.f32 %v5620, %v5804
        %v5895 = vadd.f32 %v5621, %v5807
        %v5896 = vadd.f32 %v5622, %v5812
        %v5897 = vadd.f32 %v5623, %v5815
        %v5898 = vadd.f32 %v5624, %v5820
        %v5899 = vadd.f32 %v5625, %v5823
        %v5900 = vadd.f32 %v5626, %v5828
        %v5901 = vadd.f32 %v5627, %v5831
        %v5902 = vadd.f32 %v5628, %v5836
        %v5903 = vadd.f32 %v5629, %v5839
        %v5904 = vadd.f32 %v5630, %v5844
        %v5905 = vadd.f32 %v5631, %v5847
        %v5906 = vadd.f32 %v5632, %v5852
        %v5907 = vadd.f32 %v5633, %v5855
        %v5908 = vadd.f32 %v5634, %v5860
        %v5909 = vadd.f32 %v5635, %v5863
        %v5910 = vadd.f32 %v5636, %v5868
        %v5911 = vadd.f32 %v5637, %v5871
        %v5912 = vadd.f32 %v5638, %v5876
        %v5913 = vadd.f32 %v5639, %v5879
        %v5914 = vrot.slane %v4266, 1
        %v5915 = vsel %vm1549, %v4988, %v5914
        %v5918 = vsel %vm1549, %v5914, 0.0
        %v5919 = vsel %vm2725, %v4931, 0.0
        %v5920 = vsel %vm2726, %v4933, 0.0
        %v5921 = vsel %vm2727, %v4935, 0.0
        %v5922 = vsel %vm2728, %v4937, 0.0
        %v5923 = vsel %vm2729, %v4939, 0.0
        %v5924 = vsel %vm2730, %v4941, 0.0
        %v5925 = vsel %vm2731, %v4943, 0.0
        %v5926 = vsel %vm2732, %v4945, 0.0
        %v5927 = vsel %vm2733, %v4947, 0.0
        %v5928 = vsel %vm2734, %v4949, 0.0
        %v5929 = vsel %vm2735, %v4951, 0.0
        %v5930 = vsel %vm2736, %v4953, 0.0
        %v5931 = vsel %vm2737, %v4955, 0.0
        %v5932 = vsel %vm2738, %v4957, 0.0
        %v5933 = vsel %vm2739, %v4959, 0.0
        %v5934 = vsel %vm2740, %v4961, 0.0
        %v5935 = vsel %vm2741, %v4963, 0.0
        %v5936 = vsel %vm2742, %v4965, 0.0
        %v5937 = vsel %vm2743, %v4967, 0.0
        %v5938 = vsel %vm2744, %v4969, 0.0
        %v5939 = vsel %vm2745, %v4971, 0.0
        %v5940 = vsel %vm2746, %v4973, 0.0
        %v5941 = vsel %vm2747, %v4975, 0.0
        %v5942 = vsel %vm2748, %v4977, 0.0
        %v5943 = vsel %vm2749, %v4979, 0.0
        %v5944 = vsel %vm2750, %v4981, 0.0
        %v5945 = vsel %vm2751, %v4983, 0.0
        %v5946 = vsel %vm2752, %v4985, 0.0
        %v5947 = vsel %vm2753, %v4987, 0.0
        %v5948 = vsel %vm2754, %v4989, 0.0
        %v5949 = vsel %vm2755, %v5915, 0.0
        %v5950 = vsel %vm2756, %v5918, 0.0
        %v5951 = vpack.c.bf16 %v5920, %v5919
        %v5952 = vpack.c.bf16 %v5922, %v5921
        %v5953 = vpack.c.bf16 %v5924, %v5923
        %v5954 = vpack.c.bf16 %v5926, %v5925
        %v5955 = vpack.c.bf16 %v5928, %v5927
        %v5956 = vpack.c.bf16 %v5930, %v5929
        %v5957 = vpack.c.bf16 %v5932, %v5931
        %v5958 = vpack.c.bf16 %v5934, %v5933
        %v5959 = vpack.c.bf16 %v5936, %v5935
        %v5960 = vpack.c.bf16 %v5938, %v5937
        %v5961 = vpack.c.bf16 %v5940, %v5939
        %v5962 = vpack.c.bf16 %v5942, %v5941
        %v5963 = vpack.c.bf16 %v5944, %v5943
        %v5964 = vpack.c.bf16 %v5946, %v5945
        %v5965 = vpack.c.bf16 %v5948, %v5947
        %v5966 = vpack.c.bf16 %v5950, %v5949
        %s5967 = scalar_lea.vmem %s3, 320
        %v5968 = vld [vmem:[%s5967] sm:$0xf]
        %v5969 = vld [vmem:[%s5967 + $0x4] sm:$0xf]
        %v5970 = vld [vmem:[%s5967 + $0x8] sm:$0xf]
        %v5971 = vld [vmem:[%s5967 + $0xc] sm:$0xf]
        %v5972 = vld [vmem:[%s5967 + $0x10] sm:$0xf]
        %v5973 = vld [vmem:[%s5967 + $0x14] sm:$0xf]
        %v5974 = vld [vmem:[%s5967 + $0x18] sm:$0xf]
        %v5975 = vld [vmem:[%s5967 + $0x1c] sm:$0xf]
        %v5976 = vld [vmem:[%s5967 + $0x20] sm:$0xf]
        %v5977 = vld [vmem:[%s5967 + $0x24] sm:$0xf]
        %v5978 = vld [vmem:[%s5967 + $0x28] sm:$0xf]
        %v5979 = vld [vmem:[%s5967 + $0x2c] sm:$0xf]
        %v5980 = vld [vmem:[%s5967 + $0x30] sm:$0xf]
        %v5981 = vld [vmem:[%s5967 + $0x34] sm:$0xf]
        %v5982 = vld [vmem:[%s5967 + $0x38] sm:$0xf]
        %v5983 = vld [vmem:[%s5967 + $0x3c] sm:$0xf]
        %v6000 = vunpack.c.l.b16 %v5968
        %v6001 = vunpack.c.l.b16 %v5969
        %v6002 = vunpack.c.l.b16 %v5970
        %v6003 = vunpack.c.l.b16 %v5971
        %v6004 = vunpack.c.l.b16 %v5972
        %v6005 = vunpack.c.l.b16 %v5973
        %v6006 = vunpack.c.l.b16 %v5974
        %v6007 = vunpack.c.l.b16 %v5975
        %v6008 = vunpack.c.l.b16 %v5976
        %v6009 = vunpack.c.l.b16 %v5977
        %v6010 = vunpack.c.l.b16 %v5978
        %v6011 = vunpack.c.l.b16 %v5979
        %v6012 = vunpack.c.l.b16 %v5980
        %v6013 = vunpack.c.l.b16 %v5981
        %v6014 = vunpack.c.l.b16 %v5982
        %v6015 = vunpack.c.l.b16 %v5983
        %v6016 = vpack.c.b16 %v6001, %v6000
        %v6017 = vpack.c.b16 %v6003, %v6002
        %v6018 = vpack.c.b16 %v6005, %v6004
        %v6019 = vpack.c.b16 %v6007, %v6006
        %v6020 = vpack.c.b16 %v6009, %v6008
        %v6021 = vpack.c.b16 %v6011, %v6010
        %v6022 = vpack.c.b16 %v6013, %v6012
        %v6023 = vpack.c.b16 %v6015, %v6014
        %6032 = vmatprep.subr.bf16.mxu0 0
        %6033 = vmatpush1.bf16.msra.mxu0 %v6016
        %6034 = vmatprep.subr.bf16.mxu0 0
        %6035 = vmatpush1.bf16.msra.mxu0 %v6017
        %6036 = vmatprep.subr.bf16.mxu0 0
        %6037 = vmatpush1.bf16.msra.mxu0 %v6018
        %6038 = vmatprep.subr.bf16.mxu0 0
        %6039 = vmatpush1.bf16.msra.mxu0 %v6019
        %6040 = vmatprep.subr.bf16.mxu0 0
        %6041 = vmatpush1.bf16.msra.mxu0 %v6020
        %6042 = vmatprep.subr.bf16.mxu0 0
        %6043 = vmatpush1.bf16.msra.mxu0 %v6021
        %6044 = vmatprep.subr.bf16.mxu0 0
        %6045 = vmatpush1.bf16.msra.mxu0 %v6022
        %6046 = vmatprep.subr.bf16.mxu0 0
        %6047 = vmatpush1.bf16.msra.mxu0 %v6023
        %6048 = vmatprep.subr.bf16.mxu0 0
        %6049 = vmatpush1.bf16.msra.mxu0 0
        %6050 = vmatprep.subr.bf16.mxu0 0
        %6051 = vmatpush1.bf16.msra.mxu0 0
        %6052 = vmatprep.subr.bf16.mxu0 0
        %6053 = vmatpush1.bf16.msra.mxu0 0
        %6054 = vmatprep.subr.bf16.mxu0 0
        %6055 = vmatpush1.bf16.msra.mxu0 0
        %6056 = vmatprep.subr.bf16.mxu0 0
        %6057 = vmatpush1.bf16.msra.mxu0 0
        %6058 = vmatprep.subr.bf16.mxu0 0
        %6059 = vmatpush1.bf16.msra.mxu0 0
        %6060 = vmatprep.subr.bf16.mxu0 0
        %6061 = vmatpush1.bf16.msra.mxu0 0
        %6062 = vmatprep.subr.bf16.mxu0 0
        %6063 = vmatpush1.bf16.msra.mxu0 0
        %6064 = vmatprep.mubr.bf16.mxu0 0
        %6065 = vmatmul.mubr.bf16.gmra.mrb[0].mxu0 %v5951
        %v6066 = vpop.f32.mrb[0].mxu0
        %v6067 = vadd.f32 0.0, %v6066
        %v6068 = vpop.f32.mrb[0].mxu0
        %v6069 = vpop.f32.mrb[0].mxu0
        %v6070 = vadd.f32 0.0, %v6069
        %v6071 = vpop.f32.mrb[0].mxu0
        %6072 = vmatprep.mubr.bf16.mxu0 0
        %6073 = vmatmul.mubr.bf16.gmra.mrb[0].mxu0 %v5952
        %v6074 = vpop.f32.mrb[0].mxu0
        %v6075 = vadd.f32 0.0, %v6074
        %v6076 = vpop.f32.mrb[0].mxu0
        %v6077 = vpop.f32.mrb[0].mxu0
        %v6078 = vadd.f32 0.0, %v6077
        %v6079 = vpop.f32.mrb[0].mxu0
        %6080 = vmatprep.mubr.bf16.mxu0 0
        %6081 = vmatmul.mubr.bf16.gmra.mrb[0].mxu0 %v5953
        %v6082 = vpop.f32.mrb[0].mxu0
        %v6083 = vadd.f32 0.0, %v6082
        %v6084 = vpop.f32.mrb[0].mxu0
        %v6085 = vpop.f32.mrb[0].mxu0
        %v6086 = vadd.f32 0.0, %v6085
        %v6087 = vpop.f32.mrb[0].mxu0
        %6088 = vmatprep.mubr.bf16.mxu0 0
        %6089 = vmatmul.mubr.bf16.gmra.mrb[0].mxu0 %v5954
        %v6090 = vpop.f32.mrb[0].mxu0
        %v6091 = vadd.f32 0.0, %v6090
        %v6092 = vpop.f32.mrb[0].mxu0
        %v6093 = vpop.f32.mrb[0].mxu0
        %v6094 = vadd.f32 0.0, %v6093
        %v6095 = vpop.f32.mrb[0].mxu0
        %6096 = vmatprep.mubr.bf16.mxu0 0
        %6097 = vmatmul.mubr.bf16.gmra.mrb[0].mxu0 %v5955
        %v6098 = vpop.f32.mrb[0].mxu0
        %v6099 = vadd.f32 0.0, %v6098
        %v6100 = vpop.f32.mrb[0].mxu0
        %v6101 = vpop.f32.mrb[0].mxu0
        %v6102 = vadd.f32 0.0, %v6101
        %v6103 = vpop.f32.mrb[0].mxu0
        %6104 = vmatprep.mubr.bf16.mxu0 0
        %6105 = vmatmul.mubr.bf16.gmra.mrb[0].mxu0 %v5956
        %v6106 = vpop.f32.mrb[0].mxu0
        %v6107 = vadd.f32 0.0, %v6106
        %v6108 = vpop.f32.mrb[0].mxu0
        %v6109 = vpop.f32.mrb[0].mxu0
        %v6110 = vadd.f32 0.0, %v6109
        %v6111 = vpop.f32.mrb[0].mxu0
        %6112 = vmatprep.mubr.bf16.mxu0 0
        %6113 = vmatmul.mubr.bf16.gmra.mrb[0].mxu0 %v5957
        %v6114 = vpop.f32.mrb[0].mxu0
        %v6115 = vadd.f32 0.0, %v6114
        %v6116 = vpop.f32.mrb[0].mxu0
        %v6117 = vpop.f32.mrb[0].mxu0
        %v6118 = vadd.f32 0.0, %v6117
        %v6119 = vpop.f32.mrb[0].mxu0
        %6120 = vmatprep.mubr.bf16.mxu0 0
        %6121 = vmatmul.mubr.bf16.gmra.mrb[0].mxu0 %v5958
        %v6122 = vpop.f32.mrb[0].mxu0
        %v6123 = vadd.f32 0.0, %v6122
        %v6124 = vpop.f32.mrb[0].mxu0
        %v6125 = vpop.f32.mrb[0].mxu0
        %v6126 = vadd.f32 0.0, %v6125
        %v6127 = vpop.f32.mrb[0].mxu0
        %6128 = vmatprep.mubr.bf16.mxu0 0
        %6129 = vmatmul.mubr.bf16.gmra.mrb[0].mxu0 %v5959
        %v6130 = vpop.f32.mrb[0].mxu0
        %v6131 = vadd.f32 0.0, %v6130
        %v6132 = vpop.f32.mrb[0].mxu0
        %v6133 = vpop.f32.mrb[0].mxu0
        %v6134 = vadd.f32 0.0, %v6133
        %v6135 = vpop.f32.mrb[0].mxu0
        %6136 = vmatprep.mubr.bf16.mxu0 0
        %6137 = vmatmul.mubr.bf16.gmra.mrb[0].mxu0 %v5960
        %v6138 = vpop.f32.mrb[0].mxu0
        %v6139 = vadd.f32 0.0, %v6138
        %v6140 = vpop.f32.mrb[0].mxu0
        %v6141 = vpop.f32.mrb[0].mxu0
        %v6142 = vadd.f32 0.0, %v6141
        %v6143 = vpop.f32.mrb[0].mxu0
        %6144 = vmatprep.mubr.bf16.mxu0 0
        %6145 = vmatmul.mubr.bf16.gmra.mrb[0].mxu0 %v5961
        %v6146 = vpop.f32.mrb[0].mxu0
        %v6147 = vadd.f32 0.0, %v6146
        %v6148 = vpop.f32.mrb[0].mxu0
        %v6149 = vpop.f32.mrb[0].mxu0
        %v6150 = vadd.f32 0.0, %v6149
        %v6151 = vpop.f32.mrb[0].mxu0
        %6152 = vmatprep.mubr.bf16.mxu0 0
        %6153 = vmatmul.mubr.bf16.gmra.mrb[0].mxu0 %v5962
        %v6154 = vpop.f32.mrb[0].mxu0
        %v6155 = vadd.f32 0.0, %v6154
        %v6156 = vpop.f32.mrb[0].mxu0
        %v6157 = vpop.f32.mrb[0].mxu0
        %v6158 = vadd.f32 0.0, %v6157
        %v6159 = vpop.f32.mrb[0].mxu0
        %6160 = vmatprep.mubr.bf16.mxu0 0
        %6161 = vmatmul.mubr.bf16.gmra.mrb[0].mxu0 %v5963
        %v6162 = vpop.f32.mrb[0].mxu0
        %v6163 = vadd.f32 0.0, %v6162
        %v6164 = vpop.f32.mrb[0].mxu0
        %v6165 = vpop.f32.mrb[0].mxu0
        %v6166 = vadd.f32 0.0, %v6165
        %v6167 = vpop.f32.mrb[0].mxu0
        %6168 = vmatprep.mubr.bf16.mxu0 0
        %6169 = vmatmul.mubr.bf16.gmra.mrb[0].mxu0 %v5964
        %v6170 = vpop.f32.mrb[0].mxu0
        %v6171 = vadd.f32 0.0, %v6170
        %v6172 = vpop.f32.mrb[0].mxu0
        %v6173 = vpop.f32.mrb[0].mxu0
        %v6174 = vadd.f32 0.0, %v6173
        %v6175 = vpop.f32.mrb[0].mxu0
        %6176 = vmatprep.mubr.bf16.mxu0 0
        %6177 = vmatmul.mubr.bf16.gmra.mrb[0].mxu0 %v5965
        %v6178 = vpop.f32.mrb[0].mxu0
        %v6179 = vadd.f32 0.0, %v6178
        %v6180 = vpop.f32.mrb[0].mxu0
        %v6181 = vpop.f32.mrb[0].mxu0
        %v6182 = vadd.f32 0.0, %v6181
        %v6183 = vpop.f32.mrb[0].mxu0
        %6184 = vmatprep.mubr.bf16.mxu0 0
        %6185 = vmatmul.mubr.bf16.gmra.mrb[0].mxu0 %v5966
        %v6186 = vpop.f32.mrb[0].mxu0
        %v6187 = vadd.f32 0.0, %v6186
        %v6188 = vpop.f32.mrb[0].mxu0
        %v6189 = vpop.f32.mrb[0].mxu0
        %v6190 = vadd.f32 0.0, %v6189
        %v6191 = vpop.f32.mrb[0].mxu0
        %6192 = vdwg.mxu0
        %v6193 = vadd.f32 %v5882, %v6067
        %v6194 = vadd.f32 %v5883, %v6070
        %v6195 = vadd.f32 %v5884, %v6075
        %v6196 = vadd.f32 %v5885, %v6078
        %v6197 = vadd.f32 %v5886, %v6083
        %v6198 = vadd.f32 %v5887, %v6086
        %v6199 = vadd.f32 %v5888, %v6091
        %v6200 = vadd.f32 %v5889, %v6094
        %v6201 = vadd.f32 %v5890, %v6099
        %v6202 = vadd.f32 %v5891, %v6102
        %v6203 = vadd.f32 %v5892, %v6107
        %v6204 = vadd.f32 %v5893, %v6110
        %v6205 = vadd.f32 %v5894, %v6115
        %v6206 = vadd.f32 %v5895, %v6118
        %v6207 = vadd.f32 %v5896, %v6123
        %v6208 = vadd.f32 %v5897, %v6126
        %v6209 = vadd.f32 %v5898, %v6131
        %v6210 = vadd.f32 %v5899, %v6134
        %v6211 = vadd.f32 %v5900, %v6139
        %v6212 = vadd.f32 %v5901, %v6142
        %v6213 = vadd.f32 %v5902, %v6147
        %v6214 = vadd.f32 %v5903, %v6150
        %v6215 = vadd.f32 %v5904, %v6155
        %v6216 = vadd.f32 %v5905, %v6158
        %v6217 = vadd.f32 %v5906, %v6163
        %v6218 = vadd.f32 %v5907, %v6166
        %v6219 = vadd.f32 %v5908, %v6171
        %v6220 = vadd.f32 %v5909, %v6174
        %v6221 = vadd.f32 %v5910, %v6179
        %v6222 = vadd.f32 %v5911, %v6182
        %v6223 = vadd.f32 %v5912, %v6187
        %v6224 = vadd.f32 %v5913, %v6190
        %v6226 = vsel %vm727, %v5330, 0.0
        %v6227 = vsel %vm3146, %v4301, 0.0
        %v6228 = vsel %vm3147, %v4303, 0.0
        %v6229 = vsel %vm3148, %v4305, 0.0
        %v6230 = vsel %vm3149, %v4307, 0.0
        %v6231 = vsel %vm3150, %v4309, 0.0
        %v6232 = vsel %vm3151, %v4311, 0.0
        %v6233 = vsel %vm3152, %v4313, 0.0
        %v6234 = vsel %vm3153, %v4315, 0.0
        %v6235 = vsel %vm3154, %v4317, 0.0
        %v6236 = vsel %vm3155, %v4319, 0.0
        %v6237 = vsel %vm3156, %v4321, 0.0
        %v6238 = vsel %vm3157, %v4323, 0.0
        %v6239 = vsel %vm3158, %v4325, 0.0
        %v6240 = vsel %vm3159, %v4327, 0.0
        %v6241 = vsel %vm3160, %v4329, 0.0
        %v6242 = vsel %vm3161, %v4331, 0.0
        %v6243 = vsel %vm3162, %v4333, 0.0
        %v6244 = vsel %vm3163, %v4335, 0.0
        %v6245 = vsel %vm3164, %v4337, 0.0
        %v6246 = vsel %vm3165, %v4339, 0.0
        %v6247 = vsel %vm3166, %v4341, 0.0
        %v6248 = vsel %vm3167, %v4343, 0.0
        %v6249 = vsel %vm3168, %v4345, 0.0
        %v6250 = vsel %vm3169, %v4347, 0.0
        %v6251 = vsel %vm3170, %v4349, 0.0
        %v6252 = vsel %vm3171, %v4351, 0.0
        %v6253 = vsel %vm3172, %v4353, 0.0
        %v6254 = vsel %vm3173, %v4355, 0.0
        %v6255 = vsel %vm3174, %v5329, 0.0
        %v6256 = vsel %vm3175, %v5331, 0.0
        %v6257 = vsel %vm3176, %v6226, 0.0
        %v6258 = vpack.c.bf16 %v6228, %v6227
        %v6259 = vpack.c.bf16 %v6230, %v6229
        %v6260 = vpack.c.bf16 %v6232, %v6231
        %v6261 = vpack.c.bf16 %v6234, %v6233
        %v6262 = vpack.c.bf16 %v6236, %v6235
        %v6263 = vpack.c.bf16 %v6238, %v6237
        %v6264 = vpack.c.bf16 %v6240, %v6239
        %v6265 = vpack.c.bf16 %v6242, %v6241
        %v6266 = vpack.c.bf16 %v6244, %v6243
        %v6267 = vpack.c.bf16 %v6246, %v6245
        %v6268 = vpack.c.bf16 %v6248, %v6247
        %v6269 = vpack.c.bf16 %v6250, %v6249
        %v6270 = vpack.c.bf16 %v6252, %v6251
        %v6271 = vpack.c.bf16 %v6254, %v6253
        %v6272 = vpack.c.bf16 %v6256, %v6255
        %v6273 = vpack.c.bf16 0.0, %v6257
        %s6274 = scalar_lea.vmem %s3, 384
        %v6275 = vld [vmem:[%s6274] sm:$0xf]
        %v6276 = vld [vmem:[%s6274 + $0x4] sm:$0xf]
        %v6277 = vld [vmem:[%s6274 + $0x8] sm:$0xf]
        %v6278 = vld [vmem:[%s6274 + $0xc] sm:$0xf]
        %v6279 = vld [vmem:[%s6274 + $0x10] sm:$0xf]
        %v6280 = vld [vmem:[%s6274 + $0x14] sm:$0xf]
        %v6281 = vld [vmem:[%s6274 + $0x18] sm:$0xf]
        %v6282 = vld [vmem:[%s6274 + $0x1c] sm:$0xf]
        %v6283 = vld [vmem:[%s6274 + $0x20] sm:$0xf]
        %v6284 = vld [vmem:[%s6274 + $0x24] sm:$0xf]
        %v6285 = vld [vmem:[%s6274 + $0x28] sm:$0xf]
        %v6286 = vld [vmem:[%s6274 + $0x2c] sm:$0xf]
        %v6287 = vld [vmem:[%s6274 + $0x30] sm:$0xf]
        %v6288 = vld [vmem:[%s6274 + $0x34] sm:$0xf]
        %v6289 = vld [vmem:[%s6274 + $0x38] sm:$0xf]
        %v6290 = vld [vmem:[%s6274 + $0x3c] sm:$0xf]
        %v6307 = vunpack.c.l.b16 %v6275
        %v6308 = vunpack.c.l.b16 %v6276
        %v6309 = vunpack.c.l.b16 %v6277
        %v6310 = vunpack.c.l.b16 %v6278
        %v6311 = vunpack.c.l.b16 %v6279
        %v6312 = vunpack.c.l.b16 %v6280
        %v6313 = vunpack.c.l.b16 %v6281
        %v6314 = vunpack.c.l.b16 %v6282
        %v6315 = vunpack.c.l.b16 %v6283
        %v6316 = vunpack.c.l.b16 %v6284
        %v6317 = vunpack.c.l.b16 %v6285
        %v6318 = vunpack.c.l.b16 %v6286
        %v6319 = vunpack.c.l.b16 %v6287
        %v6320 = vunpack.c.l.b16 %v6288
        %v6321 = vunpack.c.l.b16 %v6289
        %v6322 = vunpack.c.l.b16 %v6290
        %v6323 = vpack.c.b16 %v6308, %v6307
        %v6324 = vpack.c.b16 %v6310, %v6309
        %v6325 = vpack.c.b16 %v6312, %v6311
        %v6326 = vpack.c.b16 %v6314, %v6313
        %v6327 = vpack.c.b16 %v6316, %v6315
        %v6328 = vpack.c.b16 %v6318, %v6317
        %v6329 = vpack.c.b16 %v6320, %v6319
        %v6330 = vpack.c.b16 %v6322, %v6321
        %6339 = vmatprep.subr.bf16.mxu0 0
        %6340 = vmatpush1.bf16.msra.mxu0 %v6323
        %6341 = vmatprep.subr.bf16.mxu0 0
        %6342 = vmatpush1.bf16.msra.mxu0 %v6324
        %6343 = vmatprep.subr.bf16.mxu0 0
        %6344 = vmatpush1.bf16.msra.mxu0 %v6325
        %6345 = vmatprep.subr.bf16.mxu0 0
        %6346 = vmatpush1.bf16.msra.mxu0 %v6326
        %6347 = vmatprep.subr.bf16.mxu0 0
        %6348 = vmatpush1.bf16.msra.mxu0 %v6327
        %6349 = vmatprep.subr.bf16.mxu0 0
        %6350 = vmatpush1.bf16.msra.mxu0 %v6328
        %6351 = vmatprep.subr.bf16.mxu0 0
        %6352 = vmatpush1.bf16.msra.mxu0 %v6329
        %6353 = vmatprep.subr.bf16.mxu0 0
        %6354 = vmatpush1.bf16.msra.mxu0 %v6330
        %6355 = vmatprep.subr.bf16.mxu0 0
        %6356 = vmatpush1.bf16.msra.mxu0 0
        %6357 = vmatprep.subr.bf16.mxu0 0
        %6358 = vmatpush1.bf16.msra.mxu0 0
        %6359 = vmatprep.subr.bf16.mxu0 0
        %6360 = vmatpush1.bf16.msra.mxu0 0
        %6361 = vmatprep.subr.bf16.mxu0 0
        %6362 = vmatpush1.bf16.msra.mxu0 0
        %6363 = vmatprep.subr.bf16.mxu0 0
        %6364 = vmatpush1.bf16.msra.mxu0 0
        %6365 = vmatprep.subr.bf16.mxu0 0
        %6366 = vmatpush1.bf16.msra.mxu0 0
        %6367 = vmatprep.subr.bf16.mxu0 0
        %6368 = vmatpush1.bf16.msra.mxu0 0
        %6369 = vmatprep.subr.bf16.mxu0 0
        %6370 = vmatpush1.bf16.msra.mxu0 0
        %6371 = vmatprep.mubr.bf16.mxu0 0
        %6372 = vmatmul.mubr.bf16.gmra.mrb[0].mxu0 %v6258
        %v6373 = vpop.f32.mrb[0].mxu0
        %v6374 = vadd.f32 0.0, %v6373
        %v6375 = vpop.f32.mrb[0].mxu0
        %v6376 = vpop.f32.mrb[0].mxu0
        %v6377 = vadd.f32 0.0, %v6376
        %v6378 = vpop.f32.mrb[0].mxu0
        %6379 = vmatprep.mubr.bf16.mxu0 0
        %6380 = vmatmul.mubr.bf16.gmra.mrb[0].mxu0 %v6259
        %v6381 = vpop.f32.mrb[0].mxu0
        %v6382 = vadd.f32 0.0, %v6381
        %v6383 = vpop.f32.mrb[0].mxu0
        %v6384 = vpop.f32.mrb[0].mxu0
        %v6385 = vadd.f32 0.0, %v6384
        %v6386 = vpop.f32.mrb[0].mxu0
        %6387 = vmatprep.mubr.bf16.mxu0 0
        %6388 = vmatmul.mubr.bf16.gmra.mrb[0].mxu0 %v6260
        %v6389 = vpop.f32.mrb[0].mxu0
        %v6390 = vadd.f32 0.0, %v6389
        %v6391 = vpop.f32.mrb[0].mxu0
        %v6392 = vpop.f32.mrb[0].mxu0
        %v6393 = vadd.f32 0.0, %v6392
        %v6394 = vpop.f32.mrb[0].mxu0
        %6395 = vmatprep.mubr.bf16.mxu0 0
        %6396 = vmatmul.mubr.bf16.gmra.mrb[0].mxu0 %v6261
        %v6397 = vpop.f32.mrb[0].mxu0
        %v6398 = vadd.f32 0.0, %v6397
        %v6399 = vpop.f32.mrb[0].mxu0
        %v6400 = vpop.f32.mrb[0].mxu0
        %v6401 = vadd.f32 0.0, %v6400
        %v6402 = vpop.f32.mrb[0].mxu0
        %6403 = vmatprep.mubr.bf16.mxu0 0
        %6404 = vmatmul.mubr.bf16.gmra.mrb[0].mxu0 %v6262
        %v6405 = vpop.f32.mrb[0].mxu0
        %v6406 = vadd.f32 0.0, %v6405
        %v6407 = vpop.f32.mrb[0].mxu0
        %v6408 = vpop.f32.mrb[0].mxu0
        %v6409 = vadd.f32 0.0, %v6408
        %v6410 = vpop.f32.mrb[0].mxu0
        %6411 = vmatprep.mubr.bf16.mxu0 0
        %6412 = vmatmul.mubr.bf16.gmra.mrb[0].mxu0 %v6263
        %v6413 = vpop.f32.mrb[0].mxu0
        %v6414 = vadd.f32 0.0, %v6413
        %v6415 = vpop.f32.mrb[0].mxu0
        %v6416 = vpop.f32.mrb[0].mxu0
        %v6417 = vadd.f32 0.0, %v6416
        %v6418 = vpop.f32.mrb[0].mxu0
        %6419 = vmatprep.mubr.bf16.mxu0 0
        %6420 = vmatmul.mubr.bf16.gmra.mrb[0].mxu0 %v6264
        %v6421 = vpop.f32.mrb[0].mxu0
        %v6422 = vadd.f32 0.0, %v6421
        %v6423 = vpop.f32.mrb[0].mxu0
        %v6424 = vpop.f32.mrb[0].mxu0
        %v6425 = vadd.f32 0.0, %v6424
        %v6426 = vpop.f32.mrb[0].mxu0
        %6427 = vmatprep.mubr.bf16.mxu0 0
        %6428 = vmatmul.mubr.bf16.gmra.mrb[0].mxu0 %v6265
        %v6429 = vpop.f32.mrb[0].mxu0
        %v6430 = vadd.f32 0.0, %v6429
        %v6431 = vpop.f32.mrb[0].mxu0
        %v6432 = vpop.f32.mrb[0].mxu0
        %v6433 = vadd.f32 0.0, %v6432
        %v6434 = vpop.f32.mrb[0].mxu0
        %6435 = vmatprep.mubr.bf16.mxu0 0
        %6436 = vmatmul.mubr.bf16.gmra.mrb[0].mxu0 %v6266
        %v6437 = vpop.f32.mrb[0].mxu0
        %v6438 = vadd.f32 0.0, %v6437
        %v6439 = vpop.f32.mrb[0].mxu0
        %v6440 = vpop.f32.mrb[0].mxu0
        %v6441 = vadd.f32 0.0, %v6440
        %v6442 = vpop.f32.mrb[0].mxu0
        %6443 = vmatprep.mubr.bf16.mxu0 0
        %6444 = vmatmul.mubr.bf16.gmra.mrb[0].mxu0 %v6267
        %v6445 = vpop.f32.mrb[0].mxu0
        %v6446 = vadd.f32 0.0, %v6445
        %v6447 = vpop.f32.mrb[0].mxu0
        %v6448 = vpop.f32.mrb[0].mxu0
        %v6449 = vadd.f32 0.0, %v6448
        %v6450 = vpop.f32.mrb[0].mxu0
        %6451 = vmatprep.mubr.bf16.mxu0 0
        %6452 = vmatmul.mubr.bf16.gmra.mrb[0].mxu0 %v6268
        %v6453 = vpop.f32.mrb[0].mxu0
        %v6454 = vadd.f32 0.0, %v6453
        %v6455 = vpop.f32.mrb[0].mxu0
        %v6456 = vpop.f32.mrb[0].mxu0
        %v6457 = vadd.f32 0.0, %v6456
        %v6458 = vpop.f32.mrb[0].mxu0
        %6459 = vmatprep.mubr.bf16.mxu0 0
        %6460 = vmatmul.mubr.bf16.gmra.mrb[0].mxu0 %v6269
        %v6461 = vpop.f32.mrb[0].mxu0
        %v6462 = vadd.f32 0.0, %v6461
        %v6463 = vpop.f32.mrb[0].mxu0
        %v6464 = vpop.f32.mrb[0].mxu0
        %v6465 = vadd.f32 0.0, %v6464
        %v6466 = vpop.f32.mrb[0].mxu0
        %6467 = vmatprep.mubr.bf16.mxu0 0
        %6468 = vmatmul.mubr.bf16.gmra.mrb[0].mxu0 %v6270
        %v6469 = vpop.f32.mrb[0].mxu0
        %v6470 = vadd.f32 0.0, %v6469
        %v6471 = vpop.f32.mrb[0].mxu0
        %v6472 = vpop.f32.mrb[0].mxu0
        %v6473 = vadd.f32 0.0, %v6472
        %v6474 = vpop.f32.mrb[0].mxu0
        %6475 = vmatprep.mubr.bf16.mxu0 0
        %6476 = vmatmul.mubr.bf16.gmra.mrb[0].mxu0 %v6271
        %v6477 = vpop.f32.mrb[0].mxu0
        %v6478 = vadd.f32 0.0, %v6477
        %v6479 = vpop.f32.mrb[0].mxu0
        %v6480 = vpop.f32.mrb[0].mxu0
        %v6481 = vadd.f32 0.0, %v6480
        %v6482 = vpop.f32.mrb[0].mxu0
        %6483 = vmatprep.mubr.bf16.mxu0 0
        %6484 = vmatmul.mubr.bf16.gmra.mrb[0].mxu0 %v6272
        %v6485 = vpop.f32.mrb[0].mxu0
        %v6486 = vadd.f32 0.0, %v6485
        %v6487 = vpop.f32.mrb[0].mxu0
        %v6488 = vpop.f32.mrb[0].mxu0
        %v6489 = vadd.f32 0.0, %v6488
        %v6490 = vpop.f32.mrb[0].mxu0
        %6491 = vmatprep.mubr.bf16.mxu0 0
        %6492 = vmatmul.mubr.bf16.gmra.mrb[0].mxu0 %v6273
        %v6493 = vpop.f32.mrb[0].mxu0
        %v6494 = vadd.f32 0.0, %v6493
        %v6495 = vpop.f32.mrb[0].mxu0
        %v6496 = vpop.f32.mrb[0].mxu0
        %v6497 = vadd.f32 0.0, %v6496
        %v6498 = vpop.f32.mrb[0].mxu0
        %6499 = vdwg.mxu0
        %v6500 = vadd.f32 %v6193, %v6374
        %v6501 = vadd.f32 %v6194, %v6377
        %v6502 = vadd.f32 %v6195, %v6382
        %v6503 = vadd.f32 %v6196, %v6385
        %v6504 = vadd.f32 %v6197, %v6390
        %v6505 = vadd.f32 %v6198, %v6393
        %v6506 = vadd.f32 %v6199, %v6398
        %v6507 = vadd.f32 %v6200, %v6401
        %v6508 = vadd.f32 %v6201, %v6406
        %v6509 = vadd.f32 %v6202, %v6409
        %v6510 = vadd.f32 %v6203, %v6414
        %v6511 = vadd.f32 %v6204, %v6417
        %v6512 = vadd.f32 %v6205, %v6422
        %v6513 = vadd.f32 %v6206, %v6425
        %v6514 = vadd.f32 %v6207, %v6430
        %v6515 = vadd.f32 %v6208, %v6433
        %v6516 = vadd.f32 %v6209, %v6438
        %v6517 = vadd.f32 %v6210, %v6441
        %v6518 = vadd.f32 %v6211, %v6446
        %v6519 = vadd.f32 %v6212, %v6449
        %v6520 = vadd.f32 %v6213, %v6454
        %v6521 = vadd.f32 %v6214, %v6457
        %v6522 = vadd.f32 %v6215, %v6462
        %v6523 = vadd.f32 %v6216, %v6465
        %v6524 = vadd.f32 %v6217, %v6470
        %v6525 = vadd.f32 %v6218, %v6473
        %v6526 = vadd.f32 %v6219, %v6478
        %v6527 = vadd.f32 %v6220, %v6481
        %v6528 = vadd.f32 %v6221, %v6486
        %v6529 = vadd.f32 %v6222, %v6489
        %v6530 = vadd.f32 %v6223, %v6494
        %v6531 = vadd.f32 %v6224, %v6497
        %v6532 = vsel %vm3500, %v4237, 0.0
        %v6533 = vsel %vm3501, %v4238, 0.0
        %v6534 = vsel %vm3502, %v4239, 0.0
        %v6535 = vsel %vm3503, %v4240, 0.0
        %v6536 = vsel %vm3504, %v4241, 0.0
        %v6537 = vsel %vm3505, %v4242, 0.0
        %v6538 = vsel %vm3506, %v4243, 0.0
        %v6539 = vsel %vm3507, %v4244, 0.0
        %v6540 = vsel %vm3508, %v4245, 0.0
        %v6541 = vsel %vm3509, %v4246, 0.0
        %v6542 = vsel %vm3510, %v4247, 0.0
        %v6543 = vsel %vm3511, %v4248, 0.0
        %v6544 = vsel %vm3512, %v4249, 0.0
        %v6545 = vsel %vm3513, %v4250, 0.0
        %v6546 = vsel %vm3514, %v4251, 0.0
        %v6547 = vsel %vm3515, %v4252, 0.0
        %v6548 = vsel %vm3516, %v4253, 0.0
        %v6549 = vsel %vm3517, %v4254, 0.0
        %v6550 = vsel %vm3518, %v4255, 0.0
        %v6551 = vsel %vm3519, %v4256, 0.0
        %v6552 = vsel %vm3520, %v4257, 0.0
        %v6553 = vsel %vm3521, %v4258, 0.0
        %v6554 = vsel %vm3522, %v4259, 0.0
        %v6555 = vsel %vm3523, %v4260, 0.0
        %v6556 = vsel %vm3524, %v4261, 0.0
        %v6557 = vsel %vm3525, %v4262, 0.0
        %v6558 = vsel %vm3526, %v4263, 0.0
        %v6559 = vsel %vm3527, %v4264, 0.0
        %v6560 = vsel %vm3528, %v4265, 0.0
        %v6561 = vsel %vm3529, %v4266, 0.0
        %v6562 = vpack.c.bf16 %v6533, %v6532
        %v6563 = vpack.c.bf16 %v6535, %v6534
        %v6564 = vpack.c.bf16 %v6537, %v6536
        %v6565 = vpack.c.bf16 %v6539, %v6538
        %v6566 = vpack.c.bf16 %v6541, %v6540
        %v6567 = vpack.c.bf16 %v6543, %v6542
        %v6568 = vpack.c.bf16 %v6545, %v6544
        %v6569 = vpack.c.bf16 %v6547, %v6546
        %v6570 = vpack.c.bf16 %v6549, %v6548
        %v6571 = vpack.c.bf16 %v6551, %v6550
        %v6572 = vpack.c.bf16 %v6553, %v6552
        %v6573 = vpack.c.bf16 %v6555, %v6554
        %v6574 = vpack.c.bf16 %v6557, %v6556
        %v6575 = vpack.c.bf16 %v6559, %v6558
        %v6576 = vpack.c.bf16 %v6561, %v6560
        %s6577 = scalar_lea.vmem %s3, 448
        %v6578 = vld [vmem:[%s6577] sm:$0xf]
        %v6579 = vld [vmem:[%s6577 + $0x4] sm:$0xf]
        %v6580 = vld [vmem:[%s6577 + $0x8] sm:$0xf]
        %v6581 = vld [vmem:[%s6577 + $0xc] sm:$0xf]
        %v6582 = vld [vmem:[%s6577 + $0x10] sm:$0xf]
        %v6583 = vld [vmem:[%s6577 + $0x14] sm:$0xf]
        %v6584 = vld [vmem:[%s6577 + $0x18] sm:$0xf]
        %v6585 = vld [vmem:[%s6577 + $0x1c] sm:$0xf]
        %v6586 = vld [vmem:[%s6577 + $0x20] sm:$0xf]
        %v6587 = vld [vmem:[%s6577 + $0x24] sm:$0xf]
        %v6588 = vld [vmem:[%s6577 + $0x28] sm:$0xf]
        %v6589 = vld [vmem:[%s6577 + $0x2c] sm:$0xf]
        %v6590 = vld [vmem:[%s6577 + $0x30] sm:$0xf]
        %v6591 = vld [vmem:[%s6577 + $0x34] sm:$0xf]
        %v6592 = vld [vmem:[%s6577 + $0x38] sm:$0xf]
        %v6593 = vld [vmem:[%s6577 + $0x3c] sm:$0xf]
        %v6610 = vunpack.c.l.b16 %v6578
        %v6611 = vunpack.c.l.b16 %v6579
        %v6612 = vunpack.c.l.b16 %v6580
        %v6613 = vunpack.c.l.b16 %v6581
        %v6614 = vunpack.c.l.b16 %v6582
        %v6615 = vunpack.c.l.b16 %v6583
        %v6616 = vunpack.c.l.b16 %v6584
        %v6617 = vunpack.c.l.b16 %v6585
        %v6618 = vunpack.c.l.b16 %v6586
        %v6619 = vunpack.c.l.b16 %v6587
        %v6620 = vunpack.c.l.b16 %v6588
        %v6621 = vunpack.c.l.b16 %v6589
        %v6622 = vunpack.c.l.b16 %v6590
        %v6623 = vunpack.c.l.b16 %v6591
        %v6624 = vunpack.c.l.b16 %v6592
        %v6625 = vunpack.c.l.b16 %v6593
        %v6626 = vpack.c.b16 %v6611, %v6610
        %v6627 = vpack.c.b16 %v6613, %v6612
        %v6628 = vpack.c.b16 %v6615, %v6614
        %v6629 = vpack.c.b16 %v6617, %v6616
        %v6630 = vpack.c.b16 %v6619, %v6618
        %v6631 = vpack.c.b16 %v6621, %v6620
        %v6632 = vpack.c.b16 %v6623, %v6622
        %v6633 = vpack.c.b16 %v6625, %v6624
        %6642 = vmatprep.subr.bf16.mxu0 0
        %6643 = vmatpush1.bf16.msra.mxu0 %v6626
        %6644 = vmatprep.subr.bf16.mxu0 0
        %6645 = vmatpush1.bf16.msra.mxu0 %v6627
        %6646 = vmatprep.subr.bf16.mxu0 0
        %6647 = vmatpush1.bf16.msra.mxu0 %v6628
        %6648 = vmatprep.subr.bf16.mxu0 0
        %6649 = vmatpush1.bf16.msra.mxu0 %v6629
        %6650 = vmatprep.subr.bf16.mxu0 0
        %6651 = vmatpush1.bf16.msra.mxu0 %v6630
        %6652 = vmatprep.subr.bf16.mxu0 0
        %6653 = vmatpush1.bf16.msra.mxu0 %v6631
        %6654 = vmatprep.subr.bf16.mxu0 0
        %6655 = vmatpush1.bf16.msra.mxu0 %v6632
        %6656 = vmatprep.subr.bf16.mxu0 0
        %6657 = vmatpush1.bf16.msra.mxu0 %v6633
        %6658 = vmatprep.subr.bf16.mxu0 0
        %6659 = vmatpush1.bf16.msra.mxu0 0
        %6660 = vmatprep.subr.bf16.mxu0 0
        %6661 = vmatpush1.bf16.msra.mxu0 0
        %6662 = vmatprep.subr.bf16.mxu0 0
        %6663 = vmatpush1.bf16.msra.mxu0 0
        %6664 = vmatprep.subr.bf16.mxu0 0
        %6665 = vmatpush1.bf16.msra.mxu0 0
        %6666 = vmatprep.subr.bf16.mxu0 0
        %6667 = vmatpush1.bf16.msra.mxu0 0
        %6668 = vmatprep.subr.bf16.mxu0 0
        %6669 = vmatpush1.bf16.msra.mxu0 0
        %6670 = vmatprep.subr.bf16.mxu0 0
        %6671 = vmatpush1.bf16.msra.mxu0 0
        %6672 = vmatprep.subr.bf16.mxu0 0
        %6673 = vmatpush1.bf16.msra.mxu0 0
        %6674 = vmatprep.mubr.bf16.mxu0 0
        %6675 = vmatmul.mubr.bf16.gmra.mrb[0].mxu0 %v6562
        %v6676 = vpop.f32.mrb[0].mxu0
        %v6677 = vadd.f32 0.0, %v6676
        %v6678 = vpop.f32.mrb[0].mxu0
        %v6679 = vpop.f32.mrb[0].mxu0
        %v6680 = vadd.f32 0.0, %v6679
        %v6681 = vpop.f32.mrb[0].mxu0
        %6682 = vmatprep.mubr.bf16.mxu0 0
        %6683 = vmatmul.mubr.bf16.gmra.mrb[0].mxu0 %v6563
        %v6684 = vpop.f32.mrb[0].mxu0
        %v6685 = vadd.f32 0.0, %v6684
        %v6686 = vpop.f32.mrb[0].mxu0
        %v6687 = vpop.f32.mrb[0].mxu0
        %v6688 = vadd.f32 0.0, %v6687
        %v6689 = vpop.f32.mrb[0].mxu0
        %6690 = vmatprep.mubr.bf16.mxu0 0
        %6691 = vmatmul.mubr.bf16.gmra.mrb[0].mxu0 %v6564
        %v6692 = vpop.f32.mrb[0].mxu0
        %v6693 = vadd.f32 0.0, %v6692
        %v6694 = vpop.f32.mrb[0].mxu0
        %v6695 = vpop.f32.mrb[0].mxu0
        %v6696 = vadd.f32 0.0, %v6695
        %v6697 = vpop.f32.mrb[0].mxu0
        %6698 = vmatprep.mubr.bf16.mxu0 0
        %6699 = vmatmul.mubr.bf16.gmra.mrb[0].mxu0 %v6565
        %v6700 = vpop.f32.mrb[0].mxu0
        %v6701 = vadd.f32 0.0, %v6700
        %v6702 = vpop.f32.mrb[0].mxu0
        %v6703 = vpop.f32.mrb[0].mxu0
        %v6704 = vadd.f32 0.0, %v6703
        %v6705 = vpop.f32.mrb[0].mxu0
        %6706 = vmatprep.mubr.bf16.mxu0 0
        %6707 = vmatmul.mubr.bf16.gmra.mrb[0].mxu0 %v6566
        %v6708 = vpop.f32.mrb[0].mxu0
        %v6709 = vadd.f32 0.0, %v6708
        %v6710 = vpop.f32.mrb[0].mxu0
        %v6711 = vpop.f32.mrb[0].mxu0
        %v6712 = vadd.f32 0.0, %v6711
        %v6713 = vpop.f32.mrb[0].mxu0
        %6714 = vmatprep.mubr.bf16.mxu0 0
        %6715 = vmatmul.mubr.bf16.gmra.mrb[0].mxu0 %v6567
        %v6716 = vpop.f32.mrb[0].mxu0
        %v6717 = vadd.f32 0.0, %v6716
        %v6718 = vpop.f32.mrb[0].mxu0
        %v6719 = vpop.f32.mrb[0].mxu0
        %v6720 = vadd.f32 0.0, %v6719
        %v6721 = vpop.f32.mrb[0].mxu0
        %6722 = vmatprep.mubr.bf16.mxu0 0
        %6723 = vmatmul.mubr.bf16.gmra.mrb[0].mxu0 %v6568
        %v6724 = vpop.f32.mrb[0].mxu0
        %v6725 = vadd.f32 0.0, %v6724
        %v6726 = vpop.f32.mrb[0].mxu0
        %v6727 = vpop.f32.mrb[0].mxu0
        %v6728 = vadd.f32 0.0, %v6727
        %v6729 = vpop.f32.mrb[0].mxu0
        %6730 = vmatprep.mubr.bf16.mxu0 0
        %6731 = vmatmul.mubr.bf16.gmra.mrb[0].mxu0 %v6569
        %v6732 = vpop.f32.mrb[0].mxu0
        %v6733 = vadd.f32 0.0, %v6732
        %v6734 = vpop.f32.mrb[0].mxu0
        %v6735 = vpop.f32.mrb[0].mxu0
        %v6736 = vadd.f32 0.0, %v6735
        %v6737 = vpop.f32.mrb[0].mxu0
        %6738 = vmatprep.mubr.bf16.mxu0 0
        %6739 = vmatmul.mubr.bf16.gmra.mrb[0].mxu0 %v6570
        %v6740 = vpop.f32.mrb[0].mxu0
        %v6741 = vadd.f32 0.0, %v6740
        %v6742 = vpop.f32.mrb[0].mxu0
        %v6743 = vpop.f32.mrb[0].mxu0
        %v6744 = vadd.f32 0.0, %v6743
        %v6745 = vpop.f32.mrb[0].mxu0
        %6746 = vmatprep.mubr.bf16.mxu0 0
        %6747 = vmatmul.mubr.bf16.gmra.mrb[0].mxu0 %v6571
        %v6748 = vpop.f32.mrb[0].mxu0
        %v6749 = vadd.f32 0.0, %v6748
        %v6750 = vpop.f32.mrb[0].mxu0
        %v6751 = vpop.f32.mrb[0].mxu0
        %v6752 = vadd.f32 0.0, %v6751
        %v6753 = vpop.f32.mrb[0].mxu0
        %6754 = vmatprep.mubr.bf16.mxu0 0
        %6755 = vmatmul.mubr.bf16.gmra.mrb[0].mxu0 %v6572
        %v6756 = vpop.f32.mrb[0].mxu0
        %v6757 = vadd.f32 0.0, %v6756
        %v6758 = vpop.f32.mrb[0].mxu0
        %v6759 = vpop.f32.mrb[0].mxu0
        %v6760 = vadd.f32 0.0, %v6759
        %v6761 = vpop.f32.mrb[0].mxu0
        %6762 = vmatprep.mubr.bf16.mxu0 0
        %6763 = vmatmul.mubr.bf16.gmra.mrb[0].mxu0 %v6573
        %v6764 = vpop.f32.mrb[0].mxu0
        %v6765 = vadd.f32 0.0, %v6764
        %v6766 = vpop.f32.mrb[0].mxu0
        %v6767 = vpop.f32.mrb[0].mxu0
        %v6768 = vadd.f32 0.0, %v6767
        %v6769 = vpop.f32.mrb[0].mxu0
        %6770 = vmatprep.mubr.bf16.mxu0 0
        %6771 = vmatmul.mubr.bf16.gmra.mrb[0].mxu0 %v6574
        %v6772 = vpop.f32.mrb[0].mxu0
        %v6773 = vadd.f32 0.0, %v6772
        %v6774 = vpop.f32.mrb[0].mxu0
        %v6775 = vpop.f32.mrb[0].mxu0
        %v6776 = vadd.f32 0.0, %v6775
        %v6777 = vpop.f32.mrb[0].mxu0
        %6778 = vmatprep.mubr.bf16.mxu0 0
        %6779 = vmatmul.mubr.bf16.gmra.mrb[0].mxu0 %v6575
        %v6780 = vpop.f32.mrb[0].mxu0
        %v6781 = vadd.f32 0.0, %v6780
        %v6782 = vpop.f32.mrb[0].mxu0
        %v6783 = vpop.f32.mrb[0].mxu0
        %v6784 = vadd.f32 0.0, %v6783
        %v6785 = vpop.f32.mrb[0].mxu0
        %6786 = vmatprep.mubr.bf16.mxu0 0
        %6787 = vmatmul.mubr.bf16.gmra.mrb[0].mxu0 %v6576
        %v6788 = vpop.f32.mrb[0].mxu0
        %v6789 = vadd.f32 0.0, %v6788
        %v6790 = vpop.f32.mrb[0].mxu0
        %v6791 = vpop.f32.mrb[0].mxu0
        %v6792 = vadd.f32 0.0, %v6791
        %v6793 = vpop.f32.mrb[0].mxu0
        %6794 = vmatprep.mubr.bf16.mxu0 0
        %6795 = vmatmul.mubr.bf16.gmra.mrb[0].mxu0 %v1001
        %v6796 = vpop.f32.mrb[0].mxu0
        %v6797 = vadd.f32 0.0, %v6796
        %v6798 = vpop.f32.mrb[0].mxu0
        %v6799 = vpop.f32.mrb[0].mxu0
        %v6800 = vadd.f32 0.0, %v6799
        %v6801 = vpop.f32.mrb[0].mxu0
        %6802 = vdwg.mxu0
        %v6803 = vadd.f32 %v6500, %v6677
        %v6804 = vadd.f32 %v6501, %v6680
        %v6805 = vadd.f32 %v6502, %v6685
        %v6806 = vadd.f32 %v6503, %v6688
        %v6807 = vadd.f32 %v6504, %v6693
        %v6808 = vadd.f32 %v6505, %v6696
        %v6809 = vadd.f32 %v6506, %v6701
        %v6810 = vadd.f32 %v6507, %v6704
        %v6811 = vadd.f32 %v6508, %v6709
        %v6812 = vadd.f32 %v6509, %v6712
        %v6813 = vadd.f32 %v6510, %v6717
        %v6814 = vadd.f32 %v6511, %v6720
        %v6815 = vadd.f32 %v6512, %v6725
        %v6816 = vadd.f32 %v6513, %v6728
        %v6817 = vadd.f32 %v6514, %v6733
        %v6818 = vadd.f32 %v6515, %v6736
        %v6819 = vadd.f32 %v6516, %v6741
        %v6820 = vadd.f32 %v6517, %v6744
        %v6821 = vadd.f32 %v6518, %v6749
        %v6822 = vadd.f32 %v6519, %v6752
        %v6823 = vadd.f32 %v6520, %v6757
        %v6824 = vadd.f32 %v6521, %v6760
        %v6825 = vadd.f32 %v6522, %v6765
        %v6826 = vadd.f32 %v6523, %v6768
        %v6827 = vadd.f32 %v6524, %v6773
        %v6828 = vadd.f32 %v6525, %v6776
        %v6829 = vadd.f32 %v6526, %v6781
        %v6830 = vadd.f32 %v6527, %v6784
        %v6831 = vadd.f32 %v6528, %v6789
        %v6832 = vadd.f32 %v6529, %v6792
        %v6833 = vadd.f32 %v6530, %v6797
        %v6834 = vadd.f32 %v6531, %v6800
        %v6835 = vsel %vm3878, %v4935, 0.0
        %v6836 = vsel %vm3879, %v4937, 0.0
        %v6837 = vsel %vm3880, %v4939, 0.0
        %v6838 = vsel %vm3881, %v4941, 0.0
        %v6839 = vsel %vm3882, %v4943, 0.0
        %v6840 = vsel %vm3883, %v4945, 0.0
        %v6841 = vsel %vm3884, %v4947, 0.0
        %v6842 = vsel %vm3885, %v4949, 0.0
        %v6843 = vsel %vm3886, %v4951, 0.0
        %v6844 = vsel %vm3887, %v4953, 0.0
        %v6845 = vsel %vm3888, %v4955, 0.0
        %v6846 = vsel %vm3889, %v4957, 0.0
        %v6847 = vsel %vm3890, %v4959, 0.0
        %v6848 = vsel %vm3891, %v4961, 0.0
        %v6849 = vsel %vm3892, %v4963, 0.0
        %v6850 = vsel %vm3893, %v4965, 0.0
        %v6851 = vsel %vm3894, %v4967, 0.0
        %v6852 = vsel %vm3895, %v4969, 0.0
        %v6853 = vsel %vm3896, %v4971, 0.0
        %v6854 = vsel %vm3897, %v4973, 0.0
        %v6855 = vsel %vm3898, %v4975, 0.0
        %v6856 = vsel %vm3899, %v4977, 0.0
        %v6857 = vsel %vm3900, %v4979, 0.0
        %v6858 = vsel %vm3901, %v4981, 0.0
        %v6859 = vsel %vm3902, %v4983, 0.0
        %v6860 = vsel %vm3903, %v4985, 0.0
        %v6861 = vsel %vm3904, %v4987, 0.0
        %v6862 = vsel %vm3905, %v4989, 0.0
        %v6863 = vsel %vm3906, %v5915, 0.0
        %v6864 = vsel %vm3907, %v5918, 0.0
        %v6865 = vpack.c.bf16 %v6836, %v6835
        %v6866 = vpack.c.bf16 %v6838, %v6837
        %v6867 = vpack.c.bf16 %v6840, %v6839
        %v6868 = vpack.c.bf16 %v6842, %v6841
        %v6869 = vpack.c.bf16 %v6844, %v6843
        %v6870 = vpack.c.bf16 %v6846, %v6845
        %v6871 = vpack.c.bf16 %v6848, %v6847
        %v6872 = vpack.c.bf16 %v6850, %v6849
        %v6873 = vpack.c.bf16 %v6852, %v6851
        %v6874 = vpack.c.bf16 %v6854, %v6853
        %v6875 = vpack.c.bf16 %v6856, %v6855
        %v6876 = vpack.c.bf16 %v6858, %v6857
        %v6877 = vpack.c.bf16 %v6860, %v6859
        %v6878 = vpack.c.bf16 %v6862, %v6861
        %v6879 = vpack.c.bf16 %v6864, %v6863
        %s6880 = scalar_lea.vmem %s3, 512
        %v6881 = vld [vmem:[%s6880] sm:$0xf]
        %v6882 = vld [vmem:[%s6880 + $0x4] sm:$0xf]
        %v6883 = vld [vmem:[%s6880 + $0x8] sm:$0xf]
        %v6884 = vld [vmem:[%s6880 + $0xc] sm:$0xf]
        %v6885 = vld [vmem:[%s6880 + $0x10] sm:$0xf]
        %v6886 = vld [vmem:[%s6880 + $0x14] sm:$0xf]
        %v6887 = vld [vmem:[%s6880 + $0x18] sm:$0xf]
        %v6888 = vld [vmem:[%s6880 + $0x1c] sm:$0xf]
        %v6889 = vld [vmem:[%s6880 + $0x20] sm:$0xf]
        %v6890 = vld [vmem:[%s6880 + $0x24] sm:$0xf]
        %v6891 = vld [vmem:[%s6880 + $0x28] sm:$0xf]
        %v6892 = vld [vmem:[%s6880 + $0x2c] sm:$0xf]
        %v6893 = vld [vmem:[%s6880 + $0x30] sm:$0xf]
        %v6894 = vld [vmem:[%s6880 + $0x34] sm:$0xf]
        %v6895 = vld [vmem:[%s6880 + $0x38] sm:$0xf]
        %v6896 = vld [vmem:[%s6880 + $0x3c] sm:$0xf]
        %v6913 = vunpack.c.l.b16 %v6881
        %v6914 = vunpack.c.l.b16 %v6882
        %v6915 = vunpack.c.l.b16 %v6883
        %v6916 = vunpack.c.l.b16 %v6884
        %v6917 = vunpack.c.l.b16 %v6885
        %v6918 = vunpack.c.l.b16 %v6886
        %v6919 = vunpack.c.l.b16 %v6887
        %v6920 = vunpack.c.l.b16 %v6888
        %v6921 = vunpack.c.l.b16 %v6889
        %v6922 = vunpack.c.l.b16 %v6890
        %v6923 = vunpack.c.l.b16 %v6891
        %v6924 = vunpack.c.l.b16 %v6892
        %v6925 = vunpack.c.l.b16 %v6893
        %v6926 = vunpack.c.l.b16 %v6894
        %v6927 = vunpack.c.l.b16 %v6895
        %v6928 = vunpack.c.l.b16 %v6896
        %v6929 = vpack.c.b16 %v6914, %v6913
        %v6930 = vpack.c.b16 %v6916, %v6915
        %v6931 = vpack.c.b16 %v6918, %v6917
        %v6932 = vpack.c.b16 %v6920, %v6919
        %v6933 = vpack.c.b16 %v6922, %v6921
        %v6934 = vpack.c.b16 %v6924, %v6923
        %v6935 = vpack.c.b16 %v6926, %v6925
        %v6936 = vpack.c.b16 %v6928, %v6927
        %6945 = vmatprep.subr.bf16.mxu0 0
        %6946 = vmatpush1.bf16.msra.mxu0 %v6929
        %6947 = vmatprep.subr.bf16.mxu0 0
        %6948 = vmatpush1.bf16.msra.mxu0 %v6930
        %6949 = vmatprep.subr.bf16.mxu0 0
        %6950 = vmatpush1.bf16.msra.mxu0 %v6931
        %6951 = vmatprep.subr.bf16.mxu0 0
        %6952 = vmatpush1.bf16.msra.mxu0 %v6932
        %6953 = vmatprep.subr.bf16.mxu0 0
        %6954 = vmatpush1.bf16.msra.mxu0 %v6933
        %6955 = vmatprep.subr.bf16.mxu0 0
        %6956 = vmatpush1.bf16.msra.mxu0 %v6934
        %6957 = vmatprep.subr.bf16.mxu0 0
        %6958 = vmatpush1.bf16.msra.mxu0 %v6935
        %6959 = vmatprep.subr.bf16.mxu0 0
        %6960 = vmatpush1.bf16.msra.mxu0 %v6936
        %6961 = vmatprep.subr.bf16.mxu0 0
        %6962 = vmatpush1.bf16.msra.mxu0 0
        %6963 = vmatprep.subr.bf16.mxu0 0
        %6964 = vmatpush1.bf16.msra.mxu0 0
        %6965 = vmatprep.subr.bf16.mxu0 0
        %6966 = vmatpush1.bf16.msra.mxu0 0
        %6967 = vmatprep.subr.bf16.mxu0 0
        %6968 = vmatpush1.bf16.msra.mxu0 0
        %6969 = vmatprep.subr.bf16.mxu0 0
        %6970 = vmatpush1.bf16.msra.mxu0 0
        %6971 = vmatprep.subr.bf16.mxu0 0
        %6972 = vmatpush1.bf16.msra.mxu0 0
        %6973 = vmatprep.subr.bf16.mxu0 0
        %6974 = vmatpush1.bf16.msra.mxu0 0
        %6975 = vmatprep.subr.bf16.mxu0 0
        %6976 = vmatpush1.bf16.msra.mxu0 0
        %6977 = vmatprep.mubr.bf16.mxu0 0
        %6978 = vmatmul.mubr.bf16.gmra.mrb[0].mxu0 %v6865
        %v6979 = vpop.f32.mrb[0].mxu0
        %v6980 = vadd.f32 0.0, %v6979
        %v6981 = vpop.f32.mrb[0].mxu0
        %v6982 = vpop.f32.mrb[0].mxu0
        %v6983 = vadd.f32 0.0, %v6982
        %v6984 = vpop.f32.mrb[0].mxu0
        %6985 = vmatprep.mubr.bf16.mxu0 0
        %6986 = vmatmul.mubr.bf16.gmra.mrb[0].mxu0 %v6866
        %v6987 = vpop.f32.mrb[0].mxu0
        %v6988 = vadd.f32 0.0, %v6987
        %v6989 = vpop.f32.mrb[0].mxu0
        %v6990 = vpop.f32.mrb[0].mxu0
        %v6991 = vadd.f32 0.0, %v6990
        %v6992 = vpop.f32.mrb[0].mxu0
        %6993 = vmatprep.mubr.bf16.mxu0 0
        %6994 = vmatmul.mubr.bf16.gmra.mrb[0].mxu0 %v6867
        %v6995 = vpop.f32.mrb[0].mxu0
        %v6996 = vadd.f32 0.0, %v6995
        %v6997 = vpop.f32.mrb[0].mxu0
        %v6998 = vpop.f32.mrb[0].mxu0
        %v6999 = vadd.f32 0.0, %v6998
        %v7000 = vpop.f32.mrb[0].mxu0
        %7001 = vmatprep.mubr.bf16.mxu0 0
        %7002 = vmatmul.mubr.bf16.gmra.mrb[0].mxu0 %v6868
        %v7003 = vpop.f32.mrb[0].mxu0
        %v7004 = vadd.f32 0.0, %v7003
        %v7005 = vpop.f32.mrb[0].mxu0
        %v7006 = vpop.f32.mrb[0].mxu0
        %v7007 = vadd.f32 0.0, %v7006
        %v7008 = vpop.f32.mrb[0].mxu0
        %7009 = vmatprep.mubr.bf16.mxu0 0
        %7010 = vmatmul.mubr.bf16.gmra.mrb[0].mxu0 %v6869
        %v7011 = vpop.f32.mrb[0].mxu0
        %v7012 = vadd.f32 0.0, %v7011
        %v7013 = vpop.f32.mrb[0].mxu0
        %v7014 = vpop.f32.mrb[0].mxu0
        %v7015 = vadd.f32 0.0, %v7014
        %v7016 = vpop.f32.mrb[0].mxu0
        %7017 = vmatprep.mubr.bf16.mxu0 0
        %7018 = vmatmul.mubr.bf16.gmra.mrb[0].mxu0 %v6870
        %v7019 = vpop.f32.mrb[0].mxu0
        %v7020 = vadd.f32 0.0, %v7019
        %v7021 = vpop.f32.mrb[0].mxu0
        %v7022 = vpop.f32.mrb[0].mxu0
        %v7023 = vadd.f32 0.0, %v7022
        %v7024 = vpop.f32.mrb[0].mxu0
        %7025 = vmatprep.mubr.bf16.mxu0 0
        %7026 = vmatmul.mubr.bf16.gmra.mrb[0].mxu0 %v6871
        %v7027 = vpop.f32.mrb[0].mxu0
        %v7028 = vadd.f32 0.0, %v7027
        %v7029 = vpop.f32.mrb[0].mxu0
        %v7030 = vpop.f32.mrb[0].mxu0
        %v7031 = vadd.f32 0.0, %v7030
        %v7032 = vpop.f32.mrb[0].mxu0
        %7033 = vmatprep.mubr.bf16.mxu0 0
        %7034 = vmatmul.mubr.bf16.gmra.mrb[0].mxu0 %v6872
        %v7035 = vpop.f32.mrb[0].mxu0
        %v7036 = vadd.f32 0.0, %v7035
        %v7037 = vpop.f32.mrb[0].mxu0
        %v7038 = vpop.f32.mrb[0].mxu0
        %v7039 = vadd.f32 0.0, %v7038
        %v7040 = vpop.f32.mrb[0].mxu0
        %7041 = vmatprep.mubr.bf16.mxu0 0
        %7042 = vmatmul.mubr.bf16.gmra.mrb[0].mxu0 %v6873
        %v7043 = vpop.f32.mrb[0].mxu0
        %v7044 = vadd.f32 0.0, %v7043
        %v7045 = vpop.f32.mrb[0].mxu0
        %v7046 = vpop.f32.mrb[0].mxu0
        %v7047 = vadd.f32 0.0, %v7046
        %v7048 = vpop.f32.mrb[0].mxu0
        %7049 = vmatprep.mubr.bf16.mxu0 0
        %7050 = vmatmul.mubr.bf16.gmra.mrb[0].mxu0 %v6874
        %v7051 = vpop.f32.mrb[0].mxu0
        %v7052 = vadd.f32 0.0, %v7051
        %v7053 = vpop.f32.mrb[0].mxu0
        %v7054 = vpop.f32.mrb[0].mxu0
        %v7055 = vadd.f32 0.0, %v7054
        %v7056 = vpop.f32.mrb[0].mxu0
        %7057 = vmatprep.mubr.bf16.mxu0 0
        %7058 = vmatmul.mubr.bf16.gmra.mrb[0].mxu0 %v6875
        %v7059 = vpop.f32.mrb[0].mxu0
        %v7060 = vadd.f32 0.0, %v7059
        %v7061 = vpop.f32.mrb[0].mxu0
        %v7062 = vpop.f32.mrb[0].mxu0
        %v7063 = vadd.f32 0.0, %v7062
        %v7064 = vpop.f32.mrb[0].mxu0
        %7065 = vmatprep.mubr.bf16.mxu0 0
        %7066 = vmatmul.mubr.bf16.gmra.mrb[0].mxu0 %v6876
        %v7067 = vpop.f32.mrb[0].mxu0
        %v7068 = vadd.f32 0.0, %v7067
        %v7069 = vpop.f32.mrb[0].mxu0
        %v7070 = vpop.f32.mrb[0].mxu0
        %v7071 = vadd.f32 0.0, %v7070
        %v7072 = vpop.f32.mrb[0].mxu0
        %7073 = vmatprep.mubr.bf16.mxu0 0
        %7074 = vmatmul.mubr.bf16.gmra.mrb[0].mxu0 %v6877
        %v7075 = vpop.f32.mrb[0].mxu0
        %v7076 = vadd.f32 0.0, %v7075
        %v7077 = vpop.f32.mrb[0].mxu0
        %v7078 = vpop.f32.mrb[0].mxu0
        %v7079 = vadd.f32 0.0, %v7078
        %v7080 = vpop.f32.mrb[0].mxu0
        %7081 = vmatprep.mubr.bf16.mxu0 0
        %7082 = vmatmul.mubr.bf16.gmra.mrb[0].mxu0 %v6878
        %v7083 = vpop.f32.mrb[0].mxu0
        %v7084 = vadd.f32 0.0, %v7083
        %v7085 = vpop.f32.mrb[0].mxu0
        %v7086 = vpop.f32.mrb[0].mxu0
        %v7087 = vadd.f32 0.0, %v7086
        %v7088 = vpop.f32.mrb[0].mxu0
        %7089 = vmatprep.mubr.bf16.mxu0 0
        %7090 = vmatmul.mubr.bf16.gmra.mrb[0].mxu0 %v6879
        %v7091 = vpop.f32.mrb[0].mxu0
        %v7092 = vadd.f32 0.0, %v7091
        %v7093 = vpop.f32.mrb[0].mxu0
        %v7094 = vpop.f32.mrb[0].mxu0
        %v7095 = vadd.f32 0.0, %v7094
        %v7096 = vpop.f32.mrb[0].mxu0
        %7097 = vmatprep.mubr.bf16.mxu0 0
        %7098 = vmatmul.mubr.bf16.gmra.mrb[0].mxu0 %v1001
        %v7099 = vpop.f32.mrb[0].mxu0
        %v7100 = vadd.f32 0.0, %v7099
        %v7101 = vpop.f32.mrb[0].mxu0
        %v7102 = vpop.f32.mrb[0].mxu0
        %v7103 = vadd.f32 0.0, %v7102
        %v7104 = vpop.f32.mrb[0].mxu0
        %7105 = vdwg.mxu0
        %v7106 = vadd.f32 %v6803, %v6980
        %v7107 = vadd.f32 %v6804, %v6983
        %v7108 = vadd.f32 %v6805, %v6988
        %v7109 = vadd.f32 %v6806, %v6991
        %v7110 = vadd.f32 %v6807, %v6996
        %v7111 = vadd.f32 %v6808, %v6999
        %v7112 = vadd.f32 %v6809, %v7004
        %v7113 = vadd.f32 %v6810, %v7007
        %v7114 = vadd.f32 %v6811, %v7012
        %v7115 = vadd.f32 %v6812, %v7015
        %v7116 = vadd.f32 %v6813, %v7020
        %v7117 = vadd.f32 %v6814, %v7023
        %v7118 = vadd.f32 %v6815, %v7028
        %v7119 = vadd.f32 %v6816, %v7031
        %v7120 = vadd.f32 %v6817, %v7036
        %v7121 = vadd.f32 %v6818, %v7039
        %v7122 = vadd.f32 %v6819, %v7044
        %v7123 = vadd.f32 %v6820, %v7047
        %v7124 = vadd.f32 %v6821, %v7052
        %v7125 = vadd.f32 %v6822, %v7055
        %v7126 = vadd.f32 %v6823, %v7060
        %v7127 = vadd.f32 %v6824, %v7063
        %v7128 = vadd.f32 %v6825, %v7068
        %v7129 = vadd.f32 %v6826, %v7071
        %v7130 = vadd.f32 %v6827, %v7076
        %v7131 = vadd.f32 %v6828, %v7079
        %v7132 = vadd.f32 %v6829, %v7084
        %v7133 = vadd.f32 %v6830, %v7087
        %v7134 = vadd.f32 %v6831, %v7092
        %v7135 = vadd.f32 %v6832, %v7095
        %v7136 = vadd.f32 %v6833, %v7100
        %v7137 = vadd.f32 %v6834, %v7103
        %v7138 = vld [vmem:[%s4] sm:$0x1]
        %v7140 = vlaneseq
        %v7141 = vshrl.u32 %v7140, 7
        %v7142 = vsub.s32 0, %v7141
        %v7143 = vrot.slane %v7138, %v7142
        %v7145 = vadd.f32 %v7106, %v7143
        %v7146 = vadd.f32 %v7107, %v7143
        %v7147 = vadd.f32 %v7108, %v7143
        %v7148 = vadd.f32 %v7109, %v7143
        %v7149 = vadd.f32 %v7110, %v7143
        %v7150 = vadd.f32 %v7111, %v7143
        %v7151 = vadd.f32 %v7112, %v7143
        %v7152 = vadd.f32 %v7113, %v7143
        %v7153 = vadd.f32 %v7114, %v7143
        %v7154 = vadd.f32 %v7115, %v7143
        %v7155 = vadd.f32 %v7116, %v7143
        %v7156 = vadd.f32 %v7117, %v7143
        %v7157 = vadd.f32 %v7118, %v7143
        %v7158 = vadd.f32 %v7119, %v7143
        %v7159 = vadd.f32 %v7120, %v7143
        %v7160 = vadd.f32 %v7121, %v7143
        %v7161 = vadd.f32 %v7122, %v7143
        %v7162 = vadd.f32 %v7123, %v7143
        %v7163 = vadd.f32 %v7124, %v7143
        %v7164 = vadd.f32 %v7125, %v7143
        %v7165 = vadd.f32 %v7126, %v7143
        %v7166 = vadd.f32 %v7127, %v7143
        %v7167 = vadd.f32 %v7128, %v7143
        %v7168 = vadd.f32 %v7129, %v7143
        %v7169 = vadd.f32 %v7130, %v7143
        %v7170 = vadd.f32 %v7131, %v7143
        %v7171 = vadd.f32 %v7132, %v7143
        %v7172 = vadd.f32 %v7133, %v7143
        %v7173 = vadd.f32 %v7134, %v7143
        %v7174 = vadd.f32 %v7135, %v7143
        %v7175 = vadd.f32 %v7136, %v7143
        %v7176 = vadd.f32 %v7137, %v7143
        %v7177 = vmax.f32 %v7145, 0.0
        %v7178 = vmax.f32 %v7146, 0.0
        %v7179 = vmax.f32 %v7147, 0.0
        %v7180 = vmax.f32 %v7148, 0.0
        %v7181 = vmax.f32 %v7149, 0.0
        %v7182 = vmax.f32 %v7150, 0.0
        %v7183 = vmax.f32 %v7151, 0.0
        %v7184 = vmax.f32 %v7152, 0.0
        %v7185 = vmax.f32 %v7153, 0.0
        %v7186 = vmax.f32 %v7154, 0.0
        %v7187 = vmax.f32 %v7155, 0.0
        %v7188 = vmax.f32 %v7156, 0.0
        %v7189 = vmax.f32 %v7157, 0.0
        %v7190 = vmax.f32 %v7158, 0.0
        %v7191 = vmax.f32 %v7159, 0.0
        %v7192 = vmax.f32 %v7160, 0.0
        %v7193 = vmax.f32 %v7161, 0.0
        %v7194 = vmax.f32 %v7162, 0.0
        %v7195 = vmax.f32 %v7163, 0.0
        %v7196 = vmax.f32 %v7164, 0.0
        %v7197 = vmax.f32 %v7165, 0.0
        %v7198 = vmax.f32 %v7166, 0.0
        %v7199 = vmax.f32 %v7167, 0.0
        %v7200 = vmax.f32 %v7168, 0.0
        %v7201 = vmax.f32 %v7169, 0.0
        %v7202 = vmax.f32 %v7170, 0.0
        %v7203 = vmax.f32 %v7171, 0.0
        %v7204 = vmax.f32 %v7172, 0.0
        %v7205 = vmax.f32 %v7173, 0.0
        %v7206 = vmax.f32 %v7174, 0.0
        %v7207 = vmax.f32 %v7175, 0.0
        %v7208 = vmax.f32 %v7176, 0.0
        %v7210 = vunpack.c.l.s4 1966171168
        %v7211 = vunpack.c.0.s8 %v7210
        %v7212 = vlaneseq
        %v7213 = vshrl.u32 %v7212, 7
        %v7214 = vsub.s32 %v7211, %v7213
        %v7215 = vrot.slane %v7177, %v7214
        %v7217 = vunpack.c.l.s4 1966171168
        %v7218 = vunpack.c.0.s8 %v7217
        %v7219 = vlaneseq
        %v7220 = vshrl.u32 %v7219, 7
        %v7221 = vsub.s32 %v7218, %v7220
        %v7222 = vrot.slane %v7178, %v7221
        %v7224 = vunpack.c.l.s4 1966171168
        %v7225 = vunpack.c.0.s8 %v7224
        %v7226 = vlaneseq
        %v7227 = vshrl.u32 %v7226, 7
        %v7228 = vsub.s32 %v7225, %v7227
        %v7229 = vrot.slane %v7179, %v7228
        %v7231 = vunpack.c.l.s4 1966171168
        %v7232 = vunpack.c.0.s8 %v7231
        %v7233 = vlaneseq
        %v7234 = vshrl.u32 %v7233, 7
        %v7235 = vsub.s32 %v7232, %v7234
        %v7236 = vrot.slane %v7180, %v7235
        %v7238 = vunpack.c.l.s4 1966171168
        %v7239 = vunpack.c.0.s8 %v7238
        %v7240 = vlaneseq
        %v7241 = vshrl.u32 %v7240, 7
        %v7242 = vsub.s32 %v7239, %v7241
        %v7243 = vrot.slane %v7181, %v7242
        %v7245 = vunpack.c.l.s4 1966171168
        %v7246 = vunpack.c.0.s8 %v7245
        %v7247 = vlaneseq
        %v7248 = vshrl.u32 %v7247, 7
        %v7249 = vsub.s32 %v7246, %v7248
        %v7250 = vrot.slane %v7182, %v7249
        %v7252 = vunpack.c.l.s4 1966171168
        %v7253 = vunpack.c.0.s8 %v7252
        %v7254 = vlaneseq
        %v7255 = vshrl.u32 %v7254, 7
        %v7256 = vsub.s32 %v7253, %v7255
        %v7257 = vrot.slane %v7183, %v7256
        %v7259 = vunpack.c.l.s4 1966171168
        %v7260 = vunpack.c.0.s8 %v7259
        %v7261 = vlaneseq
        %v7262 = vshrl.u32 %v7261, 7
        %v7263 = vsub.s32 %v7260, %v7262
        %v7264 = vrot.slane %v7184, %v7263
        %v7266 = vunpack.c.l.s4 1966171168
        %v7267 = vunpack.c.0.s8 %v7266
        %v7268 = vlaneseq
        %v7269 = vshrl.u32 %v7268, 7
        %v7270 = vsub.s32 %v7267, %v7269
        %v7271 = vrot.slane %v7185, %v7270
        %v7273 = vunpack.c.l.s4 1966171168
        %v7274 = vunpack.c.0.s8 %v7273
        %v7275 = vlaneseq
        %v7276 = vshrl.u32 %v7275, 7
        %v7277 = vsub.s32 %v7274, %v7276
        %v7278 = vrot.slane %v7186, %v7277
        %v7280 = vunpack.c.l.s4 1966171168
        %v7281 = vunpack.c.0.s8 %v7280
        %v7282 = vlaneseq
        %v7283 = vshrl.u32 %v7282, 7
        %v7284 = vsub.s32 %v7281, %v7283
        %v7285 = vrot.slane %v7187, %v7284
        %v7287 = vunpack.c.l.s4 1966171168
        %v7288 = vunpack.c.0.s8 %v7287
        %v7289 = vlaneseq
        %v7290 = vshrl.u32 %v7289, 7
        %v7291 = vsub.s32 %v7288, %v7290
        %v7292 = vrot.slane %v7188, %v7291
        %v7294 = vunpack.c.l.s4 1966171168
        %v7295 = vunpack.c.0.s8 %v7294
        %v7296 = vlaneseq
        %v7297 = vshrl.u32 %v7296, 7
        %v7298 = vsub.s32 %v7295, %v7297
        %v7299 = vrot.slane %v7189, %v7298
        %v7301 = vunpack.c.l.s4 1966171168
        %v7302 = vunpack.c.0.s8 %v7301
        %v7303 = vlaneseq
        %v7304 = vshrl.u32 %v7303, 7
        %v7305 = vsub.s32 %v7302, %v7304
        %v7306 = vrot.slane %v7190, %v7305
        %v7308 = vunpack.c.l.s4 1966171168
        %v7309 = vunpack.c.0.s8 %v7308
        %v7310 = vlaneseq
        %v7311 = vshrl.u32 %v7310, 7
        %v7312 = vsub.s32 %v7309, %v7311
        %v7313 = vrot.slane %v7191, %v7312
        %v7315 = vunpack.c.l.s4 1966171168
        %v7316 = vunpack.c.0.s8 %v7315
        %v7317 = vlaneseq
        %v7318 = vshrl.u32 %v7317, 7
        %v7319 = vsub.s32 %v7316, %v7318
        %v7320 = vrot.slane %v7192, %v7319
        %v7322 = vunpack.c.l.s4 1966171168
        %v7323 = vunpack.c.0.s8 %v7322
        %v7324 = vlaneseq
        %v7325 = vshrl.u32 %v7324, 7
        %v7326 = vsub.s32 %v7323, %v7325
        %v7327 = vrot.slane %v7193, %v7326
        %v7329 = vunpack.c.l.s4 1966171168
        %v7330 = vunpack.c.0.s8 %v7329
        %v7331 = vlaneseq
        %v7332 = vshrl.u32 %v7331, 7
        %v7333 = vsub.s32 %v7330, %v7332
        %v7334 = vrot.slane %v7194, %v7333
        %v7336 = vunpack.c.l.s4 1966171168
        %v7337 = vunpack.c.0.s8 %v7336
        %v7338 = vlaneseq
        %v7339 = vshrl.u32 %v7338, 7
        %v7340 = vsub.s32 %v7337, %v7339
        %v7341 = vrot.slane %v7195, %v7340
        %v7343 = vunpack.c.l.s4 1966171168
        %v7344 = vunpack.c.0.s8 %v7343
        %v7345 = vlaneseq
        %v7346 = vshrl.u32 %v7345, 7
        %v7347 = vsub.s32 %v7344, %v7346
        %v7348 = vrot.slane %v7196, %v7347
        %v7350 = vunpack.c.l.s4 1966171168
        %v7351 = vunpack.c.0.s8 %v7350
        %v7352 = vlaneseq
        %v7353 = vshrl.u32 %v7352, 7
        %v7354 = vsub.s32 %v7351, %v7353
        %v7355 = vrot.slane %v7197, %v7354
        %v7357 = vunpack.c.l.s4 1966171168
        %v7358 = vunpack.c.0.s8 %v7357
        %v7359 = vlaneseq
        %v7360 = vshrl.u32 %v7359, 7
        %v7361 = vsub.s32 %v7358, %v7360
        %v7362 = vrot.slane %v7198, %v7361
        %v7364 = vunpack.c.l.s4 1966171168
        %v7365 = vunpack.c.0.s8 %v7364
        %v7366 = vlaneseq
        %v7367 = vshrl.u32 %v7366, 7
        %v7368 = vsub.s32 %v7365, %v7367
        %v7369 = vrot.slane %v7199, %v7368
        %v7371 = vunpack.c.l.s4 1966171168
        %v7372 = vunpack.c.0.s8 %v7371
        %v7373 = vlaneseq
        %v7374 = vshrl.u32 %v7373, 7
        %v7375 = vsub.s32 %v7372, %v7374
        %v7376 = vrot.slane %v7200, %v7375
        %v7378 = vunpack.c.l.s4 1966171168
        %v7379 = vunpack.c.0.s8 %v7378
        %v7380 = vlaneseq
        %v7381 = vshrl.u32 %v7380, 7
        %v7382 = vsub.s32 %v7379, %v7381
        %v7383 = vrot.slane %v7201, %v7382
        %v7385 = vunpack.c.l.s4 1966171168
        %v7386 = vunpack.c.0.s8 %v7385
        %v7387 = vlaneseq
        %v7388 = vshrl.u32 %v7387, 7
        %v7389 = vsub.s32 %v7386, %v7388
        %v7390 = vrot.slane %v7202, %v7389
        %v7392 = vunpack.c.l.s4 1966171168
        %v7393 = vunpack.c.0.s8 %v7392
        %v7394 = vlaneseq
        %v7395 = vshrl.u32 %v7394, 7
        %v7396 = vsub.s32 %v7393, %v7395
        %v7397 = vrot.slane %v7203, %v7396
        %v7399 = vunpack.c.l.s4 1966171168
        %v7400 = vunpack.c.0.s8 %v7399
        %v7401 = vlaneseq
        %v7402 = vshrl.u32 %v7401, 7
        %v7403 = vsub.s32 %v7400, %v7402
        %v7404 = vrot.slane %v7204, %v7403
        %v7406 = vunpack.c.l.s4 1966171168
        %v7407 = vunpack.c.0.s8 %v7406
        %v7408 = vlaneseq
        %v7409 = vshrl.u32 %v7408, 7
        %v7410 = vsub.s32 %v7407, %v7409
        %v7411 = vrot.slane %v7205, %v7410
        %v7413 = vunpack.c.l.s4 1966171168
        %v7414 = vunpack.c.0.s8 %v7413
        %v7415 = vlaneseq
        %v7416 = vshrl.u32 %v7415, 7
        %v7417 = vsub.s32 %v7414, %v7416
        %v7418 = vrot.slane %v7206, %v7417
        %v7420 = vunpack.c.l.s4 1966171168
        %v7421 = vunpack.c.0.s8 %v7420
        %v7422 = vlaneseq
        %v7423 = vshrl.u32 %v7422, 7
        %v7424 = vsub.s32 %v7421, %v7423
        %v7425 = vrot.slane %v7207, %v7424
        %v7427 = vunpack.c.l.s4 1966171168
        %v7428 = vunpack.c.0.s8 %v7427
        %v7429 = vlaneseq
        %v7430 = vshrl.u32 %v7429, 7
        %v7431 = vsub.s32 %v7428, %v7430
        %v7432 = vrot.slane %v7208, %v7431
        %v7433 = vmax.f32 %v7215, %v7229
        %v7434 = vmax.f32 %v7222, %v7236
        %v7435 = vmax.f32 %v7243, %v7257
        %v7436 = vmax.f32 %v7250, %v7264
        %v7437 = vmax.f32 %v7271, %v7285
        %v7438 = vmax.f32 %v7278, %v7292
        %v7439 = vmax.f32 %v7299, %v7313
        %v7440 = vmax.f32 %v7306, %v7320
        %v7441 = vmax.f32 %v7327, %v7341
        %v7442 = vmax.f32 %v7334, %v7348
        %v7443 = vmax.f32 %v7355, %v7369
        %v7444 = vmax.f32 %v7362, %v7376
        %v7445 = vmax.f32 %v7383, %v7397
        %v7446 = vmax.f32 %v7390, %v7404
        %v7447 = vmax.f32 %v7411, %v7425
        %v7448 = vmax.f32 %v7418, %v7432
        %v7465 = vrot.slane %v7433, 4
        %v7466 = vrot.slane %v7434, 4
        %v7467 = vrot.slane %v7435, 4
        %v7468 = vrot.slane %v7436, 4
        %v7469 = vrot.slane %v7437, 4
        %v7470 = vrot.slane %v7438, 4
        %v7471 = vrot.slane %v7439, 4
        %v7472 = vrot.slane %v7440, 4
        %v7473 = vrot.slane %v7441, 4
        %v7474 = vrot.slane %v7442, 4
        %v7475 = vrot.slane %v7443, 4
        %v7476 = vrot.slane %v7444, 4
        %v7477 = vrot.slane %v7445, 4
        %v7478 = vrot.slane %v7446, 4
        %v7479 = vrot.slane %v7447, 4
        %v7480 = vrot.slane %v7448, 4
        %v7497 = vmax.f32 %v7433, %v7465
        %v7498 = vmax.f32 %v7434, %v7466
        %v7499 = vmax.f32 %v7435, %v7467
        %v7500 = vmax.f32 %v7436, %v7468
        %v7501 = vmax.f32 %v7437, %v7469
        %v7502 = vmax.f32 %v7438, %v7470
        %v7503 = vmax.f32 %v7439, %v7471
        %v7504 = vmax.f32 %v7440, %v7472
        %v7505 = vmax.f32 %v7441, %v7473
        %v7506 = vmax.f32 %v7442, %v7474
        %v7507 = vmax.f32 %v7443, %v7475
        %v7508 = vmax.f32 %v7444, %v7476
        %v7509 = vmax.f32 %v7445, %v7477
        %v7510 = vmax.f32 %v7446, %v7478
        %v7511 = vmax.f32 %v7447, %v7479
        %v7512 = vmax.f32 %v7448, %v7480
        %v7513 = vrcp.pop 8.0
        %v7514 = vmul.f32 %v536, %v7513
        %v7515 = vmul.f32 %v537, %v7513
        %v7516 = vmul.f32 %v538, %v7513
        %v7517 = vmul.f32 %v539, %v7513
        %v7518 = vmul.f32 %v540, %v7513
        %v7519 = vmul.f32 %v541, %v7513
        %v7520 = vmul.f32 %v542, %v7513
        %v7521 = vmul.f32 %v543, %v7513
        %v7522 = vfloor.f32 %v7514
        %v7523 = vfloor.f32 %v7515
        %v7524 = vfloor.f32 %v7516
        %v7525 = vfloor.f32 %v7517
        %v7526 = vfloor.f32 %v7518
        %v7527 = vfloor.f32 %v7519
        %v7528 = vfloor.f32 %v7520
        %v7529 = vfloor.f32 %v7521
        %v7530 = vmul.f32 %v7522, 8.0
        %v7531 = vmul.f32 %v7523, 8.0
        %v7532 = vmul.f32 %v7524, 8.0
        %v7533 = vmul.f32 %v7525, 8.0
        %v7534 = vmul.f32 %v7526, 8.0
        %v7535 = vmul.f32 %v7527, 8.0
        %v7536 = vmul.f32 %v7528, 8.0
        %v7537 = vmul.f32 %v7529, 8.0
        %v7538 = vsub.f32 %v504, %v7530
        %v7539 = vsub.f32 %v505, %v7531
        %v7540 = vsub.f32 %v506, %v7532
        %v7541 = vsub.f32 %v507, %v7533
        %v7542 = vsub.f32 %v508, %v7534
        %v7543 = vsub.f32 %v509, %v7535
        %v7544 = vsub.f32 %v510, %v7536
        %v7545 = vsub.f32 %v511, %v7537
        %v7560 = vcombine.low %v7497, %v7498
        %v7561 = vcombine.low %v7499, %v7500
        %v7562 = vcombine.low %v7501, %v7502
        %v7563 = vcombine.low %v7503, %v7504
        %v7564 = vcombine.low %v7505, %v7506
        %v7565 = vcombine.low %v7507, %v7508
        %v7566 = vcombine.low %v7509, %v7510
        %v7567 = vrot.slane %v7560, 7
        %v7568 = vrot.slane %v7561, 7
        %v7569 = vsel %vm727, %v7567, %v7568
        %v7570 = vrot.slane %v7562, 7
        %v7571 = vsel %vm727, %v7568, %v7570
        %v7572 = vrot.slane %v7563, 7
        %v7573 = vsel %vm727, %v7570, %v7572
        %v7574 = vrot.slane %v7564, 7
        %v7575 = vsel %vm727, %v7572, %v7574
        %v7576 = vrot.slane %v7565, 7
        %v7577 = vsel %vm727, %v7574, %v7576
        %v7578 = vrot.slane %v7566, 7
        %v7579 = vsel %vm727, %v7576, %v7578
        %v7587 = vsel %vm727, 0.0, %v7567
        %vm7588 = vcmp.ge.f32.partialorder %v7522, 0.5
        %vm7589 = vcmp.ge.f32.partialorder %v7523, 0.5
        %vm7590 = vcmp.ge.f32.partialorder %v7524, 0.5
        %vm7591 = vcmp.ge.f32.partialorder %v7525, 0.5
        %vm7592 = vcmp.ge.f32.partialorder %v7526, 0.5
        %vm7593 = vcmp.ge.f32.partialorder %v7527, 0.5
        %vm7594 = vcmp.ge.f32.partialorder %v7528, 0.5
        %vm7595 = vcmp.ge.f32.partialorder %v7529, 0.5
        %vm7596 = vcmp.ge.f32.partialorder %v7538, 0.5
        %vm7597 = vcmp.ge.f32.partialorder %v7539, 0.5
        %vm7598 = vcmp.ge.f32.partialorder %v7540, 0.5
        %vm7599 = vcmp.ge.f32.partialorder %v7541, 0.5
        %vm7600 = vcmp.ge.f32.partialorder %v7542, 0.5
        %vm7601 = vcmp.ge.f32.partialorder %v7543, 0.5
        %vm7602 = vcmp.ge.f32.partialorder %v7544, 0.5
        %vm7603 = vcmp.ge.f32.partialorder %v7545, 0.5
        %vm7604 = vmand %vm7589, %vm7597
        %vm7605 = vmand %vm7590, %vm7598
        %vm7606 = vmand %vm7591, %vm7599
        %vm7607 = vmand %vm7592, %vm7600
        %vm7608 = vmand %vm7593, %vm7601
        %vm7609 = vmand %vm7594, %vm7602
        %vm7610 = vmand %vm7595, %vm7603
        %v7611 = vsel %vm7604, 1, 0
        %v7612 = vsel %vm7605, 1, 0
        %v7613 = vsel %vm7606, 1, 0
        %v7614 = vsel %vm7607, 1, 0
        %v7615 = vsel %vm7608, 1, 0
        %v7616 = vsel %vm7609, 1, 0
        %v7617 = vsel %vm7610, 1, 0
        %vm7618 = vcmp.eq.s32.totalorder %v7611, 1
        %vm7619 = vcmp.eq.s32.totalorder %v7612, 1
        %vm7620 = vcmp.eq.s32.totalorder %v7613, 1
        %vm7621 = vcmp.eq.s32.totalorder %v7614, 1
        %vm7622 = vcmp.eq.s32.totalorder %v7615, 1
        %vm7623 = vcmp.eq.s32.totalorder %v7616, 1
        %vm7624 = vcmp.eq.s32.totalorder %v7617, 1
        %v7625 = vsel %vm7618, %v7587, 0.0
        %v7626 = vsel %vm7619, %v7569, 0.0
        %v7627 = vsel %vm7620, %v7571, 0.0
        %v7628 = vsel %vm7621, %v7573, 0.0
        %v7629 = vsel %vm7622, %v7575, 0.0
        %v7630 = vsel %vm7623, %v7577, 0.0
        %v7631 = vsel %vm7624, %v7579, 0.0
        %v7632 = vpack.c.bf16 %v7625, 0.0
        %v7633 = vpack.c.bf16 %v7627, %v7626
        %v7634 = vpack.c.bf16 %v7629, %v7628
        %v7635 = vpack.c.bf16 %v7631, %v7630
        %v7636 = vld [vmem:[%s5] sm:$0xf]
        %v7637 = vld [vmem:[%s5 + $0x4] sm:$0xf]
        %v7638 = vld [vmem:[%s5 + $0x8] sm:$0xf]
        %v7639 = vld [vmem:[%s5 + $0xc] sm:$0xf]
        %v7640 = vld [vmem:[%s5 + $0x10] sm:$0xf]
        %v7641 = vld [vmem:[%s5 + $0x14] sm:$0xf]
        %v7642 = vld [vmem:[%s5 + $0x18] sm:$0xf]
        %v7643 = vld [vmem:[%s5 + $0x1c] sm:$0xf]
        %v7644 = vld [vmem:[%s5 + $0x20] sm:$0xf]
        %v7645 = vld [vmem:[%s5 + $0x24] sm:$0xf]
        %v7646 = vld [vmem:[%s5 + $0x28] sm:$0xf]
        %v7647 = vld [vmem:[%s5 + $0x2c] sm:$0xf]
        %v7648 = vld [vmem:[%s5 + $0x30] sm:$0xf]
        %v7649 = vld [vmem:[%s5 + $0x34] sm:$0xf]
        %v7650 = vld [vmem:[%s5 + $0x38] sm:$0xf]
        %v7651 = vld [vmem:[%s5 + $0x3c] sm:$0xf]
        %v7659 = vsel %vm7589, 1, 0
        %v7660 = vsel %vm7590, 1, 0
        %v7661 = vsel %vm7591, 1, 0
        %v7662 = vsel %vm7592, 1, 0
        %v7663 = vsel %vm7593, 1, 0
        %v7664 = vsel %vm7594, 1, 0
        %v7665 = vsel %vm7595, 1, 0
        %vm7666 = vcmp.eq.s32.totalorder %v7659, 1
        %vm7667 = vcmp.eq.s32.totalorder %v7660, 1
        %vm7668 = vcmp.eq.s32.totalorder %v7661, 1
        %vm7669 = vcmp.eq.s32.totalorder %v7662, 1
        %vm7670 = vcmp.eq.s32.totalorder %v7663, 1
        %vm7671 = vcmp.eq.s32.totalorder %v7664, 1
        %vm7672 = vcmp.eq.s32.totalorder %v7665, 1
        %v7673 = vsel %vm7666, %v7560, 0.0
        %v7674 = vsel %vm7667, %v7561, 0.0
        %v7675 = vsel %vm7668, %v7562, 0.0
        %v7676 = vsel %vm7669, %v7563, 0.0
        %v7677 = vsel %vm7670, %v7564, 0.0
        %v7678 = vsel %vm7671, %v7565, 0.0
        %v7679 = vsel %vm7672, %v7566, 0.0
        %v7680 = vpack.c.bf16 %v7673, 0.0
        %v7681 = vpack.c.bf16 %v7675, %v7674
        %v7682 = vpack.c.bf16 %v7677, %v7676
        %v7683 = vpack.c.bf16 %v7679, %v7678
        %s7684 = scalar_lea.vmem %s5, 64
        %v7685 = vld [vmem:[%s7684] sm:$0xf]
        %v7686 = vld [vmem:[%s7684 + $0x4] sm:$0xf]
        %v7687 = vld [vmem:[%s7684 + $0x8] sm:$0xf]
        %v7688 = vld [vmem:[%s7684 + $0xc] sm:$0xf]
        %v7689 = vld [vmem:[%s7684 + $0x10] sm:$0xf]
        %v7690 = vld [vmem:[%s7684 + $0x14] sm:$0xf]
        %v7691 = vld [vmem:[%s7684 + $0x18] sm:$0xf]
        %v7692 = vld [vmem:[%s7684 + $0x1c] sm:$0xf]
        %v7693 = vld [vmem:[%s7684 + $0x20] sm:$0xf]
        %v7694 = vld [vmem:[%s7684 + $0x24] sm:$0xf]
        %v7695 = vld [vmem:[%s7684 + $0x28] sm:$0xf]
        %v7696 = vld [vmem:[%s7684 + $0x2c] sm:$0xf]
        %v7697 = vld [vmem:[%s7684 + $0x30] sm:$0xf]
        %v7698 = vld [vmem:[%s7684 + $0x34] sm:$0xf]
        %v7699 = vld [vmem:[%s7684 + $0x38] sm:$0xf]
        %v7700 = vld [vmem:[%s7684 + $0x3c] sm:$0xf]
        %v7717 = vunpack.c.l.b16 %v7685
        %v7718 = vunpack.c.l.b16 %v7686
        %v7719 = vunpack.c.l.b16 %v7687
        %v7720 = vunpack.c.l.b16 %v7688
        %v7721 = vunpack.c.l.b16 %v7689
        %v7722 = vunpack.c.l.b16 %v7690
        %v7723 = vunpack.c.l.b16 %v7691
        %v7724 = vunpack.c.l.b16 %v7692
        %v7725 = vunpack.c.l.b16 %v7693
        %v7726 = vunpack.c.l.b16 %v7694
        %v7727 = vunpack.c.l.b16 %v7695
        %v7728 = vunpack.c.l.b16 %v7696
        %v7729 = vunpack.c.l.b16 %v7697
        %v7730 = vunpack.c.l.b16 %v7698
        %v7731 = vunpack.c.l.b16 %v7699
        %v7732 = vunpack.c.l.b16 %v7700
        %v7733 = vpack.c.b16 %v7718, %v7717
        %v7734 = vpack.c.b16 %v7720, %v7719
        %v7735 = vpack.c.b16 %v7722, %v7721
        %v7736 = vpack.c.b16 %v7724, %v7723
        %v7737 = vpack.c.b16 %v7726, %v7725
        %v7738 = vpack.c.b16 %v7728, %v7727
        %v7739 = vpack.c.b16 %v7730, %v7729
        %v7740 = vpack.c.b16 %v7732, %v7731
        %7749 = vmatprep.subr.bf16.mxu0 0
        %7750 = vmatpush1.bf16.msra.mxu0 %v7733
        %7751 = vmatprep.subr.bf16.mxu0 0
        %7752 = vmatpush1.bf16.msra.mxu0 %v7734
        %7753 = vmatprep.subr.bf16.mxu0 0
        %7754 = vmatpush1.bf16.msra.mxu0 %v7735
        %7755 = vmatprep.subr.bf16.mxu0 0
        %7756 = vmatpush1.bf16.msra.mxu0 %v7736
        %7757 = vmatprep.subr.bf16.mxu0 0
        %7758 = vmatpush1.bf16.msra.mxu0 %v7737
        %7759 = vmatprep.subr.bf16.mxu0 0
        %7760 = vmatpush1.bf16.msra.mxu0 %v7738
        %7761 = vmatprep.subr.bf16.mxu0 0
        %7762 = vmatpush1.bf16.msra.mxu0 %v7739
        %7763 = vmatprep.subr.bf16.mxu0 0
        %7764 = vmatpush1.bf16.msra.mxu0 %v7740
        %7765 = vmatprep.subr.bf16.mxu0 0
        %7766 = vmatpush1.bf16.msra.mxu0 0
        %7767 = vmatprep.subr.bf16.mxu0 0
        %7768 = vmatpush1.bf16.msra.mxu0 0
        %7769 = vmatprep.subr.bf16.mxu0 0
        %7770 = vmatpush1.bf16.msra.mxu0 0
        %7771 = vmatprep.subr.bf16.mxu0 0
        %7772 = vmatpush1.bf16.msra.mxu0 0
        %7773 = vmatprep.subr.bf16.mxu0 0
        %7774 = vmatpush1.bf16.msra.mxu0 0
        %7775 = vmatprep.subr.bf16.mxu0 0
        %7776 = vmatpush1.bf16.msra.mxu0 0
        %7777 = vmatprep.subr.bf16.mxu0 0
        %7778 = vmatpush1.bf16.msra.mxu0 0
        %7779 = vmatprep.subr.bf16.mxu0 0
        %7780 = vmatpush1.bf16.msra.mxu0 0
        %7781 = vmatprep.mubr.bf16.mxu0 0
        %7782 = vmatmul.mubr.bf16.gmra.mrb[0].mxu0 %v7680
        %v7783 = vpop.f32.mrb[0].mxu0
        %v7784 = vadd.f32 0.0, %v7783
        %v7785 = vpop.f32.mrb[0].mxu0
        %v7786 = vpop.f32.mrb[0].mxu0
        %v7787 = vadd.f32 0.0, %v7786
        %v7788 = vpop.f32.mrb[0].mxu0
        %7789 = vmatprep.mubr.bf16.mxu0 0
        %7790 = vmatmul.mubr.bf16.gmra.mrb[0].mxu0 %v7681
        %v7791 = vpop.f32.mrb[0].mxu0
        %v7792 = vadd.f32 0.0, %v7791
        %v7793 = vpop.f32.mrb[0].mxu0
        %v7794 = vpop.f32.mrb[0].mxu0
        %v7795 = vadd.f32 0.0, %v7794
        %v7796 = vpop.f32.mrb[0].mxu0
        %7797 = vmatprep.mubr.bf16.mxu0 0
        %7798 = vmatmul.mubr.bf16.gmra.mrb[0].mxu0 %v7682
        %v7799 = vpop.f32.mrb[0].mxu0
        %v7800 = vadd.f32 0.0, %v7799
        %v7801 = vpop.f32.mrb[0].mxu0
        %v7802 = vpop.f32.mrb[0].mxu0
        %v7803 = vadd.f32 0.0, %v7802
        %v7804 = vpop.f32.mrb[0].mxu0
        %7805 = vmatprep.mubr.bf16.mxu0 0
        %7806 = vmatmul.mubr.bf16.gmra.mrb[0].mxu0 %v7683
        %v7807 = vpop.f32.mrb[0].mxu0
        %v7808 = vadd.f32 0.0, %v7807
        %v7809 = vpop.f32.mrb[0].mxu0
        %v7810 = vpop.f32.mrb[0].mxu0
        %v7811 = vadd.f32 0.0, %v7810
        %v7812 = vpop.f32.mrb[0].mxu0
        %7813 = vdwg.mxu0
        %v7830 = vunpack.c.l.b16 %v7636
        %v7831 = vunpack.c.l.b16 %v7637
        %v7832 = vunpack.c.l.b16 %v7638
        %v7833 = vunpack.c.l.b16 %v7639
        %v7834 = vunpack.c.l.b16 %v7640
        %v7835 = vunpack.c.l.b16 %v7641
        %v7836 = vunpack.c.l.b16 %v7642
        %v7837 = vunpack.c.l.b16 %v7643
        %v7838 = vunpack.c.l.b16 %v7644
        %v7839 = vunpack.c.l.b16 %v7645
        %v7840 = vunpack.c.l.b16 %v7646
        %v7841 = vunpack.c.l.b16 %v7647
        %v7842 = vunpack.c.l.b16 %v7648
        %v7843 = vunpack.c.l.b16 %v7649
        %v7844 = vunpack.c.l.b16 %v7650
        %v7845 = vunpack.c.l.b16 %v7651
        %v7846 = vpack.c.b16 %v7831, %v7830
        %v7847 = vpack.c.b16 %v7833, %v7832
        %v7848 = vpack.c.b16 %v7835, %v7834
        %v7849 = vpack.c.b16 %v7837, %v7836
        %v7850 = vpack.c.b16 %v7839, %v7838
        %v7851 = vpack.c.b16 %v7841, %v7840
        %v7852 = vpack.c.b16 %v7843, %v7842
        %v7853 = vpack.c.b16 %v7845, %v7844
        %7862 = vmatprep.subr.bf16.mxu0 0
        %7863 = vmatpush1.bf16.msra.mxu0 %v7846
        %7864 = vmatprep.subr.bf16.mxu0 0
        %7865 = vmatpush1.bf16.msra.mxu0 %v7847
        %7866 = vmatprep.subr.bf16.mxu0 0
        %7867 = vmatpush1.bf16.msra.mxu0 %v7848
        %7868 = vmatprep.subr.bf16.mxu0 0
        %7869 = vmatpush1.bf16.msra.mxu0 %v7849
        %7870 = vmatprep.subr.bf16.mxu0 0
        %7871 = vmatpush1.bf16.msra.mxu0 %v7850
        %7872 = vmatprep.subr.bf16.mxu0 0
        %7873 = vmatpush1.bf16.msra.mxu0 %v7851
        %7874 = vmatprep.subr.bf16.mxu0 0
        %7875 = vmatpush1.bf16.msra.mxu0 %v7852
        %7876 = vmatprep.subr.bf16.mxu0 0
        %7877 = vmatpush1.bf16.msra.mxu0 %v7853
        %7878 = vmatprep.subr.bf16.mxu0 0
        %7879 = vmatpush1.bf16.msra.mxu0 0
        %7880 = vmatprep.subr.bf16.mxu0 0
        %7881 = vmatpush1.bf16.msra.mxu0 0
        %7882 = vmatprep.subr.bf16.mxu0 0
        %7883 = vmatpush1.bf16.msra.mxu0 0
        %7884 = vmatprep.subr.bf16.mxu0 0
        %7885 = vmatpush1.bf16.msra.mxu0 0
        %7886 = vmatprep.subr.bf16.mxu0 0
        %7887 = vmatpush1.bf16.msra.mxu0 0
        %7888 = vmatprep.subr.bf16.mxu0 0
        %7889 = vmatpush1.bf16.msra.mxu0 0
        %7890 = vmatprep.subr.bf16.mxu0 0
        %7891 = vmatpush1.bf16.msra.mxu0 0
        %7892 = vmatprep.subr.bf16.mxu0 0
        %7893 = vmatpush1.bf16.msra.mxu0 0
        %7894 = vmatprep.mubr.bf16.mxu0 0
        %7895 = vmatmul.mubr.bf16.gmra.mrb[0].mxu0 %v7632
        %v7896 = vpop.f32.mrb[0].mxu0
        %v7897 = vadd.f32 %v7784, %v7896
        %v7898 = vpop.f32.mrb[0].mxu0
        %v7899 = vpop.f32.mrb[0].mxu0
        %v7900 = vadd.f32 %v7787, %v7899
        %v7901 = vpop.f32.mrb[0].mxu0
        %7902 = vmatprep.mubr.bf16.mxu0 0
        %7903 = vmatmul.mubr.bf16.gmra.mrb[0].mxu0 %v7633
        %v7904 = vpop.f32.mrb[0].mxu0
        %v7905 = vadd.f32 %v7792, %v7904
        %v7906 = vpop.f32.mrb[0].mxu0
        %v7907 = vpop.f32.mrb[0].mxu0
        %v7908 = vadd.f32 %v7795, %v7907
        %v7909 = vpop.f32.mrb[0].mxu0
        %7910 = vmatprep.mubr.bf16.mxu0 0
        %7911 = vmatmul.mubr.bf16.gmra.mrb[0].mxu0 %v7634
        %v7912 = vpop.f32.mrb[0].mxu0
        %v7913 = vadd.f32 %v7800, %v7912
        %v7914 = vpop.f32.mrb[0].mxu0
        %v7915 = vpop.f32.mrb[0].mxu0
        %v7916 = vadd.f32 %v7803, %v7915
        %v7917 = vpop.f32.mrb[0].mxu0
        %7918 = vmatprep.mubr.bf16.mxu0 0
        %7919 = vmatmul.mubr.bf16.gmra.mrb[0].mxu0 %v7635
        %v7920 = vpop.f32.mrb[0].mxu0
        %v7921 = vadd.f32 %v7808, %v7920
        %v7922 = vpop.f32.mrb[0].mxu0
        %v7923 = vpop.f32.mrb[0].mxu0
        %v7924 = vadd.f32 %v7811, %v7923
        %v7925 = vpop.f32.mrb[0].mxu0
        %7926 = vdwg.mxu0
        %v7928 = vrot.slane %v7560, 1
        %v7929 = vrot.slane %v7561, 1
        %v7930 = vsel %vm1549, %v7928, %v7929
        %v7931 = vrot.slane %v7562, 1
        %v7932 = vsel %vm1549, %v7929, %v7931
        %v7933 = vrot.slane %v7563, 1
        %v7934 = vsel %vm1549, %v7931, %v7933
        %v7935 = vrot.slane %v7564, 1
        %v7936 = vsel %vm1549, %v7933, %v7935
        %v7937 = vrot.slane %v7565, 1
        %v7938 = vsel %vm1549, %v7935, %v7937
        %v7939 = vrot.slane %v7566, 1
        %v7940 = vsel %vm1549, %v7937, %v7939
        %v7941 = vrot.slane %v7511, 1
        %v7942 = vsel %vm1549, %v7939, %v7941
        %v7951 = vsel %vm1549, 0.0, %v7928
        %vm7952 = vcmp.le.f32.partialorder %v7538, 6.5
        %vm7953 = vcmp.le.f32.partialorder %v7539, 6.5
        %vm7954 = vcmp.le.f32.partialorder %v7540, 6.5
        %vm7955 = vcmp.le.f32.partialorder %v7541, 6.5
        %vm7956 = vcmp.le.f32.partialorder %v7542, 6.5
        %vm7957 = vcmp.le.f32.partialorder %v7543, 6.5
        %vm7958 = vcmp.le.f32.partialorder %v7544, 6.5
        %vm7959 = vcmp.le.f32.partialorder %v7545, 6.5
        %vm7960 = vmand %vm7588, %vm7952
        %vm7961 = vmand %vm7589, %vm7953
        %vm7962 = vmand %vm7590, %vm7954
        %vm7963 = vmand %vm7591, %vm7955
        %vm7964 = vmand %vm7592, %vm7956
        %vm7965 = vmand %vm7593, %vm7957
        %vm7966 = vmand %vm7594, %vm7958
        %vm7967 = vmand %vm7595, %vm7959
        %v7968 = vsel %vm7960, 1, 0
        %v7969 = vsel %vm7961, 1, 0
        %v7970 = vsel %vm7962, 1, 0
        %v7971 = vsel %vm7963, 1, 0
        %v7972 = vsel %vm7964, 1, 0
        %v7973 = vsel %vm7965, 1, 0
        %v7974 = vsel %vm7966, 1, 0
        %v7975 = vsel %vm7967, 1, 0
        %vm7976 = vcmp.eq.s32.totalorder %v7968, 1
        %vm7977 = vcmp.eq.s32.totalorder %v7969, 1
        %vm7978 = vcmp.eq.s32.totalorder %v7970, 1
        %vm7979 = vcmp.eq.s32.totalorder %v7971, 1
        %vm7980 = vcmp.eq.s32.totalorder %v7972, 1
        %vm7981 = vcmp.eq.s32.totalorder %v7973, 1
        %vm7982 = vcmp.eq.s32.totalorder %v7974, 1
        %vm7983 = vcmp.eq.s32.totalorder %v7975, 1
        %v7984 = vsel %vm7976, %v7951, 0.0
        %v7985 = vsel %vm7977, %v7930, 0.0
        %v7986 = vsel %vm7978, %v7932, 0.0
        %v7987 = vsel %vm7979, %v7934, 0.0
        %v7988 = vsel %vm7980, %v7936, 0.0
        %v7989 = vsel %vm7981, %v7938, 0.0
        %v7990 = vsel %vm7982, %v7940, 0.0
        %v7991 = vsel %vm7983, %v7942, 0.0
        %v7992 = vpack.c.bf16 %v7985, %v7984
        %v7993 = vpack.c.bf16 %v7987, %v7986
        %v7994 = vpack.c.bf16 %v7989, %v7988
        %v7995 = vpack.c.bf16 %v7991, %v7990
        %s7996 = scalar_lea.vmem %s5, 128
        %v7997 = vld [vmem:[%s7996] sm:$0xf]
        %v7998 = vld [vmem:[%s7996 + $0x4] sm:$0xf]
        %v7999 = vld [vmem:[%s7996 + $0x8] sm:$0xf]
        %v8000 = vld [vmem:[%s7996 + $0xc] sm:$0xf]
        %v8001 = vld [vmem:[%s7996 + $0x10] sm:$0xf]
        %v8002 = vld [vmem:[%s7996 + $0x14] sm:$0xf]
        %v8003 = vld [vmem:[%s7996 + $0x18] sm:$0xf]
        %v8004 = vld [vmem:[%s7996 + $0x1c] sm:$0xf]
        %v8005 = vld [vmem:[%s7996 + $0x20] sm:$0xf]
        %v8006 = vld [vmem:[%s7996 + $0x24] sm:$0xf]
        %v8007 = vld [vmem:[%s7996 + $0x28] sm:$0xf]
        %v8008 = vld [vmem:[%s7996 + $0x2c] sm:$0xf]
        %v8009 = vld [vmem:[%s7996 + $0x30] sm:$0xf]
        %v8010 = vld [vmem:[%s7996 + $0x34] sm:$0xf]
        %v8011 = vld [vmem:[%s7996 + $0x38] sm:$0xf]
        %v8012 = vld [vmem:[%s7996 + $0x3c] sm:$0xf]
        %v8029 = vunpack.c.l.b16 %v7997
        %v8030 = vunpack.c.l.b16 %v7998
        %v8031 = vunpack.c.l.b16 %v7999
        %v8032 = vunpack.c.l.b16 %v8000
        %v8033 = vunpack.c.l.b16 %v8001
        %v8034 = vunpack.c.l.b16 %v8002
        %v8035 = vunpack.c.l.b16 %v8003
        %v8036 = vunpack.c.l.b16 %v8004
        %v8037 = vunpack.c.l.b16 %v8005
        %v8038 = vunpack.c.l.b16 %v8006
        %v8039 = vunpack.c.l.b16 %v8007
        %v8040 = vunpack.c.l.b16 %v8008
        %v8041 = vunpack.c.l.b16 %v8009
        %v8042 = vunpack.c.l.b16 %v8010
        %v8043 = vunpack.c.l.b16 %v8011
        %v8044 = vunpack.c.l.b16 %v8012
        %v8045 = vpack.c.b16 %v8030, %v8029
        %v8046 = vpack.c.b16 %v8032, %v8031
        %v8047 = vpack.c.b16 %v8034, %v8033
        %v8048 = vpack.c.b16 %v8036, %v8035
        %v8049 = vpack.c.b16 %v8038, %v8037
        %v8050 = vpack.c.b16 %v8040, %v8039
        %v8051 = vpack.c.b16 %v8042, %v8041
        %v8052 = vpack.c.b16 %v8044, %v8043
        %8061 = vmatprep.subr.bf16.mxu0 0
        %8062 = vmatpush1.bf16.msra.mxu0 %v8045
        %8063 = vmatprep.subr.bf16.mxu0 0
        %8064 = vmatpush1.bf16.msra.mxu0 %v8046
        %8065 = vmatprep.subr.bf16.mxu0 0
        %8066 = vmatpush1.bf16.msra.mxu0 %v8047
        %8067 = vmatprep.subr.bf16.mxu0 0
        %8068 = vmatpush1.bf16.msra.mxu0 %v8048
        %8069 = vmatprep.subr.bf16.mxu0 0
        %8070 = vmatpush1.bf16.msra.mxu0 %v8049
        %8071 = vmatprep.subr.bf16.mxu0 0
        %8072 = vmatpush1.bf16.msra.mxu0 %v8050
        %8073 = vmatprep.subr.bf16.mxu0 0
        %8074 = vmatpush1.bf16.msra.mxu0 %v8051
        %8075 = vmatprep.subr.bf16.mxu0 0
        %8076 = vmatpush1.bf16.msra.mxu0 %v8052
        %8077 = vmatprep.subr.bf16.mxu0 0
        %8078 = vmatpush1.bf16.msra.mxu0 0
        %8079 = vmatprep.subr.bf16.mxu0 0
        %8080 = vmatpush1.bf16.msra.mxu0 0
        %8081 = vmatprep.subr.bf16.mxu0 0
        %8082 = vmatpush1.bf16.msra.mxu0 0
        %8083 = vmatprep.subr.bf16.mxu0 0
        %8084 = vmatpush1.bf16.msra.mxu0 0
        %8085 = vmatprep.subr.bf16.mxu0 0
        %8086 = vmatpush1.bf16.msra.mxu0 0
        %8087 = vmatprep.subr.bf16.mxu0 0
        %8088 = vmatpush1.bf16.msra.mxu0 0
        %8089 = vmatprep.subr.bf16.mxu0 0
        %8090 = vmatpush1.bf16.msra.mxu0 0
        %8091 = vmatprep.subr.bf16.mxu0 0
        %8092 = vmatpush1.bf16.msra.mxu0 0
        %8093 = vmatprep.mubr.bf16.mxu0 0
        %8094 = vmatmul.mubr.bf16.gmra.mrb[0].mxu0 %v7992
        %v8095 = vpop.f32.mrb[0].mxu0
        %v8096 = vadd.f32 0.0, %v8095
        %v8097 = vpop.f32.mrb[0].mxu0
        %v8098 = vpop.f32.mrb[0].mxu0
        %v8099 = vadd.f32 0.0, %v8098
        %v8100 = vpop.f32.mrb[0].mxu0
        %8101 = vmatprep.mubr.bf16.mxu0 0
        %8102 = vmatmul.mubr.bf16.gmra.mrb[0].mxu0 %v7993
        %v8103 = vpop.f32.mrb[0].mxu0
        %v8104 = vadd.f32 0.0, %v8103
        %v8105 = vpop.f32.mrb[0].mxu0
        %v8106 = vpop.f32.mrb[0].mxu0
        %v8107 = vadd.f32 0.0, %v8106
        %v8108 = vpop.f32.mrb[0].mxu0
        %8109 = vmatprep.mubr.bf16.mxu0 0
        %8110 = vmatmul.mubr.bf16.gmra.mrb[0].mxu0 %v7994
        %v8111 = vpop.f32.mrb[0].mxu0
        %v8112 = vadd.f32 0.0, %v8111
        %v8113 = vpop.f32.mrb[0].mxu0
        %v8114 = vpop.f32.mrb[0].mxu0
        %v8115 = vadd.f32 0.0, %v8114
        %v8116 = vpop.f32.mrb[0].mxu0
        %8117 = vmatprep.mubr.bf16.mxu0 0
        %8118 = vmatmul.mubr.bf16.gmra.mrb[0].mxu0 %v7995
        %v8119 = vpop.f32.mrb[0].mxu0
        %v8120 = vadd.f32 0.0, %v8119
        %v8121 = vpop.f32.mrb[0].mxu0
        %v8122 = vpop.f32.mrb[0].mxu0
        %v8123 = vadd.f32 0.0, %v8122
        %v8124 = vpop.f32.mrb[0].mxu0
        %8125 = vdwg.mxu0
        %v8126 = vadd.f32 %v7897, %v8096
        %v8127 = vadd.f32 %v7900, %v8099
        %v8128 = vadd.f32 %v7905, %v8104
        %v8129 = vadd.f32 %v7908, %v8107
        %v8130 = vadd.f32 %v7913, %v8112
        %v8131 = vadd.f32 %v7916, %v8115
        %v8132 = vadd.f32 %v7921, %v8120
        %v8133 = vadd.f32 %v7924, %v8123
        %v8135 = vcombine.low %v7511, %v7512
        %v8136 = vrot.slane %v8135, 7
        %v8137 = vsel %vm727, %v7578, %v8136
        %v8139 = vsel %vm7596, 1, 0
        %v8140 = vsel %vm7597, 1, 0
        %v8141 = vsel %vm7598, 1, 0
        %v8142 = vsel %vm7599, 1, 0
        %v8143 = vsel %vm7600, 1, 0
        %v8144 = vsel %vm7601, 1, 0
        %v8145 = vsel %vm7602, 1, 0
        %v8146 = vsel %vm7603, 1, 0
        %vm8147 = vcmp.eq.s32.totalorder %v8139, 1
        %vm8148 = vcmp.eq.s32.totalorder %v8140, 1
        %vm8149 = vcmp.eq.s32.totalorder %v8141, 1
        %vm8150 = vcmp.eq.s32.totalorder %v8142, 1
        %vm8151 = vcmp.eq.s32.totalorder %v8143, 1
        %vm8152 = vcmp.eq.s32.totalorder %v8144, 1
        %vm8153 = vcmp.eq.s32.totalorder %v8145, 1
        %vm8154 = vcmp.eq.s32.totalorder %v8146, 1
        %v8155 = vsel %vm8147, %v7587, 0.0
        %v8156 = vsel %vm8148, %v7569, 0.0
        %v8157 = vsel %vm8149, %v7571, 0.0
        %v8158 = vsel %vm8150, %v7573, 0.0
        %v8159 = vsel %vm8151, %v7575, 0.0
        %v8160 = vsel %vm8152, %v7577, 0.0
        %v8161 = vsel %vm8153, %v7579, 0.0
        %v8162 = vsel %vm8154, %v8137, 0.0
        %v8163 = vpack.c.bf16 %v8156, %v8155
        %v8164 = vpack.c.bf16 %v8158, %v8157
        %v8165 = vpack.c.bf16 %v8160, %v8159
        %v8166 = vpack.c.bf16 %v8162, %v8161
        %s8167 = scalar_lea.vmem %s5, 192
        %v8168 = vld [vmem:[%s8167] sm:$0xf]
        %v8169 = vld [vmem:[%s8167 + $0x4] sm:$0xf]
        %v8170 = vld [vmem:[%s8167 + $0x8] sm:$0xf]
        %v8171 = vld [vmem:[%s8167 + $0xc] sm:$0xf]
        %v8172 = vld [vmem:[%s8167 + $0x10] sm:$0xf]
        %v8173 = vld [vmem:[%s8167 + $0x14] sm:$0xf]
        %v8174 = vld [vmem:[%s8167 + $0x18] sm:$0xf]
        %v8175 = vld [vmem:[%s8167 + $0x1c] sm:$0xf]
        %v8176 = vld [vmem:[%s8167 + $0x20] sm:$0xf]
        %v8177 = vld [vmem:[%s8167 + $0x24] sm:$0xf]
        %v8178 = vld [vmem:[%s8167 + $0x28] sm:$0xf]
        %v8179 = vld [vmem:[%s8167 + $0x2c] sm:$0xf]
        %v8180 = vld [vmem:[%s8167 + $0x30] sm:$0xf]
        %v8181 = vld [vmem:[%s8167 + $0x34] sm:$0xf]
        %v8182 = vld [vmem:[%s8167 + $0x38] sm:$0xf]
        %v8183 = vld [vmem:[%s8167 + $0x3c] sm:$0xf]
        %v8200 = vunpack.c.l.b16 %v8168
        %v8201 = vunpack.c.l.b16 %v8169
        %v8202 = vunpack.c.l.b16 %v8170
        %v8203 = vunpack.c.l.b16 %v8171
        %v8204 = vunpack.c.l.b16 %v8172
        %v8205 = vunpack.c.l.b16 %v8173
        %v8206 = vunpack.c.l.b16 %v8174
        %v8207 = vunpack.c.l.b16 %v8175
        %v8208 = vunpack.c.l.b16 %v8176
        %v8209 = vunpack.c.l.b16 %v8177
        %v8210 = vunpack.c.l.b16 %v8178
        %v8211 = vunpack.c.l.b16 %v8179
        %v8212 = vunpack.c.l.b16 %v8180
        %v8213 = vunpack.c.l.b16 %v8181
        %v8214 = vunpack.c.l.b16 %v8182
        %v8215 = vunpack.c.l.b16 %v8183
        %v8216 = vpack.c.b16 %v8201, %v8200
        %v8217 = vpack.c.b16 %v8203, %v8202
        %v8218 = vpack.c.b16 %v8205, %v8204
        %v8219 = vpack.c.b16 %v8207, %v8206
        %v8220 = vpack.c.b16 %v8209, %v8208
        %v8221 = vpack.c.b16 %v8211, %v8210
        %v8222 = vpack.c.b16 %v8213, %v8212
        %v8223 = vpack.c.b16 %v8215, %v8214
        %8232 = vmatprep.subr.bf16.mxu0 0
        %8233 = vmatpush1.bf16.msra.mxu0 %v8216
        %8234 = vmatprep.subr.bf16.mxu0 0
        %8235 = vmatpush1.bf16.msra.mxu0 %v8217
        %8236 = vmatprep.subr.bf16.mxu0 0
        %8237 = vmatpush1.bf16.msra.mxu0 %v8218
        %8238 = vmatprep.subr.bf16.mxu0 0
        %8239 = vmatpush1.bf16.msra.mxu0 %v8219
        %8240 = vmatprep.subr.bf16.mxu0 0
        %8241 = vmatpush1.bf16.msra.mxu0 %v8220
        %8242 = vmatprep.subr.bf16.mxu0 0
        %8243 = vmatpush1.bf16.msra.mxu0 %v8221
        %8244 = vmatprep.subr.bf16.mxu0 0
        %8245 = vmatpush1.bf16.msra.mxu0 %v8222
        %8246 = vmatprep.subr.bf16.mxu0 0
        %8247 = vmatpush1.bf16.msra.mxu0 %v8223
        %8248 = vmatprep.subr.bf16.mxu0 0
        %8249 = vmatpush1.bf16.msra.mxu0 0
        %8250 = vmatprep.subr.bf16.mxu0 0
        %8251 = vmatpush1.bf16.msra.mxu0 0
        %8252 = vmatprep.subr.bf16.mxu0 0
        %8253 = vmatpush1.bf16.msra.mxu0 0
        %8254 = vmatprep.subr.bf16.mxu0 0
        %8255 = vmatpush1.bf16.msra.mxu0 0
        %8256 = vmatprep.subr.bf16.mxu0 0
        %8257 = vmatpush1.bf16.msra.mxu0 0
        %8258 = vmatprep.subr.bf16.mxu0 0
        %8259 = vmatpush1.bf16.msra.mxu0 0
        %8260 = vmatprep.subr.bf16.mxu0 0
        %8261 = vmatpush1.bf16.msra.mxu0 0
        %8262 = vmatprep.subr.bf16.mxu0 0
        %8263 = vmatpush1.bf16.msra.mxu0 0
        %8264 = vmatprep.mubr.bf16.mxu0 0
        %8265 = vmatmul.mubr.bf16.gmra.mrb[0].mxu0 %v8163
        %v8266 = vpop.f32.mrb[0].mxu0
        %v8267 = vadd.f32 0.0, %v8266
        %v8268 = vpop.f32.mrb[0].mxu0
        %v8269 = vpop.f32.mrb[0].mxu0
        %v8270 = vadd.f32 0.0, %v8269
        %v8271 = vpop.f32.mrb[0].mxu0
        %8272 = vmatprep.mubr.bf16.mxu0 0
        %8273 = vmatmul.mubr.bf16.gmra.mrb[0].mxu0 %v8164
        %v8274 = vpop.f32.mrb[0].mxu0
        %v8275 = vadd.f32 0.0, %v8274
        %v8276 = vpop.f32.mrb[0].mxu0
        %v8277 = vpop.f32.mrb[0].mxu0
        %v8278 = vadd.f32 0.0, %v8277
        %v8279 = vpop.f32.mrb[0].mxu0
        %8280 = vmatprep.mubr.bf16.mxu0 0
        %8281 = vmatmul.mubr.bf16.gmra.mrb[0].mxu0 %v8165
        %v8282 = vpop.f32.mrb[0].mxu0
        %v8283 = vadd.f32 0.0, %v8282
        %v8284 = vpop.f32.mrb[0].mxu0
        %v8285 = vpop.f32.mrb[0].mxu0
        %v8286 = vadd.f32 0.0, %v8285
        %v8287 = vpop.f32.mrb[0].mxu0
        %8288 = vmatprep.mubr.bf16.mxu0 0
        %8289 = vmatmul.mubr.bf16.gmra.mrb[0].mxu0 %v8166
        %v8290 = vpop.f32.mrb[0].mxu0
        %v8291 = vadd.f32 0.0, %v8290
        %v8292 = vpop.f32.mrb[0].mxu0
        %v8293 = vpop.f32.mrb[0].mxu0
        %v8294 = vadd.f32 0.0, %v8293
        %v8295 = vpop.f32.mrb[0].mxu0
        %8296 = vdwg.mxu0
        %v8297 = vadd.f32 %v8126, %v8267
        %v8298 = vadd.f32 %v8127, %v8270
        %v8299 = vadd.f32 %v8128, %v8275
        %v8300 = vadd.f32 %v8129, %v8278
        %v8301 = vadd.f32 %v8130, %v8283
        %v8302 = vadd.f32 %v8131, %v8286
        %v8303 = vadd.f32 %v8132, %v8291
        %v8304 = vadd.f32 %v8133, %v8294
        %v8306 = vpack.c.bf16 %v7561, %v7560
        %v8307 = vpack.c.bf16 %v7563, %v7562
        %v8308 = vpack.c.bf16 %v7565, %v7564
        %v8309 = vpack.c.bf16 %v8135, %v7566
        %s8310 = scalar_lea.vmem %s5, 256
        %v8311 = vld [vmem:[%s8310] sm:$0xf]
        %v8312 = vld [vmem:[%s8310 + $0x4] sm:$0xf]
        %v8313 = vld [vmem:[%s8310 + $0x8] sm:$0xf]
        %v8314 = vld [vmem:[%s8310 + $0xc] sm:$0xf]
        %v8315 = vld [vmem:[%s8310 + $0x10] sm:$0xf]
        %v8316 = vld [vmem:[%s8310 + $0x14] sm:$0xf]
        %v8317 = vld [vmem:[%s8310 + $0x18] sm:$0xf]
        %v8318 = vld [vmem:[%s8310 + $0x1c] sm:$0xf]
        %v8319 = vld [vmem:[%s8310 + $0x20] sm:$0xf]
        %v8320 = vld [vmem:[%s8310 + $0x24] sm:$0xf]
        %v8321 = vld [vmem:[%s8310 + $0x28] sm:$0xf]
        %v8322 = vld [vmem:[%s8310 + $0x2c] sm:$0xf]
        %v8323 = vld [vmem:[%s8310 + $0x30] sm:$0xf]
        %v8324 = vld [vmem:[%s8310 + $0x34] sm:$0xf]
        %v8325 = vld [vmem:[%s8310 + $0x38] sm:$0xf]
        %v8326 = vld [vmem:[%s8310 + $0x3c] sm:$0xf]
        %v8343 = vunpack.c.l.b16 %v8311
        %v8344 = vunpack.c.l.b16 %v8312
        %v8345 = vunpack.c.l.b16 %v8313
        %v8346 = vunpack.c.l.b16 %v8314
        %v8347 = vunpack.c.l.b16 %v8315
        %v8348 = vunpack.c.l.b16 %v8316
        %v8349 = vunpack.c.l.b16 %v8317
        %v8350 = vunpack.c.l.b16 %v8318
        %v8351 = vunpack.c.l.b16 %v8319
        %v8352 = vunpack.c.l.b16 %v8320
        %v8353 = vunpack.c.l.b16 %v8321
        %v8354 = vunpack.c.l.b16 %v8322
        %v8355 = vunpack.c.l.b16 %v8323
        %v8356 = vunpack.c.l.b16 %v8324
        %v8357 = vunpack.c.l.b16 %v8325
        %v8358 = vunpack.c.l.b16 %v8326
        %v8359 = vpack.c.b16 %v8344, %v8343
        %v8360 = vpack.c.b16 %v8346, %v8345
        %v8361 = vpack.c.b16 %v8348, %v8347
        %v8362 = vpack.c.b16 %v8350, %v8349
        %v8363 = vpack.c.b16 %v8352, %v8351
        %v8364 = vpack.c.b16 %v8354, %v8353
        %v8365 = vpack.c.b16 %v8356, %v8355
        %v8366 = vpack.c.b16 %v8358, %v8357
        %8375 = vmatprep.subr.bf16.mxu0 0
        %8376 = vmatpush1.bf16.msra.mxu0 %v8359
        %8377 = vmatprep.subr.bf16.mxu0 0
        %8378 = vmatpush1.bf16.msra.mxu0 %v8360
        %8379 = vmatprep.subr.bf16.mxu0 0
        %8380 = vmatpush1.bf16.msra.mxu0 %v8361
        %8381 = vmatprep.subr.bf16.mxu0 0
        %8382 = vmatpush1.bf16.msra.mxu0 %v8362
        %8383 = vmatprep.subr.bf16.mxu0 0
        %8384 = vmatpush1.bf16.msra.mxu0 %v8363
        %8385 = vmatprep.subr.bf16.mxu0 0
        %8386 = vmatpush1.bf16.msra.mxu0 %v8364
        %8387 = vmatprep.subr.bf16.mxu0 0
        %8388 = vmatpush1.bf16.msra.mxu0 %v8365
        %8389 = vmatprep.subr.bf16.mxu0 0
        %8390 = vmatpush1.bf16.msra.mxu0 %v8366
        %8391 = vmatprep.subr.bf16.mxu0 0
        %8392 = vmatpush1.bf16.msra.mxu0 0
        %8393 = vmatprep.subr.bf16.mxu0 0
        %8394 = vmatpush1.bf16.msra.mxu0 0
        %8395 = vmatprep.subr.bf16.mxu0 0
        %8396 = vmatpush1.bf16.msra.mxu0 0
        %8397 = vmatprep.subr.bf16.mxu0 0
        %8398 = vmatpush1.bf16.msra.mxu0 0
        %8399 = vmatprep.subr.bf16.mxu0 0
        %8400 = vmatpush1.bf16.msra.mxu0 0
        %8401 = vmatprep.subr.bf16.mxu0 0
        %8402 = vmatpush1.bf16.msra.mxu0 0
        %8403 = vmatprep.subr.bf16.mxu0 0
        %8404 = vmatpush1.bf16.msra.mxu0 0
        %8405 = vmatprep.subr.bf16.mxu0 0
        %8406 = vmatpush1.bf16.msra.mxu0 0
        %8407 = vmatprep.mubr.bf16.mxu0 0
        %8408 = vmatmul.mubr.bf16.gmra.mrb[0].mxu0 %v8306
        %v8409 = vpop.f32.mrb[0].mxu0
        %v8410 = vadd.f32 0.0, %v8409
        %v8411 = vpop.f32.mrb[0].mxu0
        %v8412 = vpop.f32.mrb[0].mxu0
        %v8413 = vadd.f32 0.0, %v8412
        %v8414 = vpop.f32.mrb[0].mxu0
        %8415 = vmatprep.mubr.bf16.mxu0 0
        %8416 = vmatmul.mubr.bf16.gmra.mrb[0].mxu0 %v8307
        %v8417 = vpop.f32.mrb[0].mxu0
        %v8418 = vadd.f32 0.0, %v8417
        %v8419 = vpop.f32.mrb[0].mxu0
        %v8420 = vpop.f32.mrb[0].mxu0
        %v8421 = vadd.f32 0.0, %v8420
        %v8422 = vpop.f32.mrb[0].mxu0
        %8423 = vmatprep.mubr.bf16.mxu0 0
        %8424 = vmatmul.mubr.bf16.gmra.mrb[0].mxu0 %v8308
        %v8425 = vpop.f32.mrb[0].mxu0
        %v8426 = vadd.f32 0.0, %v8425
        %v8427 = vpop.f32.mrb[0].mxu0
        %v8428 = vpop.f32.mrb[0].mxu0
        %v8429 = vadd.f32 0.0, %v8428
        %v8430 = vpop.f32.mrb[0].mxu0
        %8431 = vmatprep.mubr.bf16.mxu0 0
        %8432 = vmatmul.mubr.bf16.gmra.mrb[0].mxu0 %v8309
        %v8433 = vpop.f32.mrb[0].mxu0
        %v8434 = vadd.f32 0.0, %v8433
        %v8435 = vpop.f32.mrb[0].mxu0
        %v8436 = vpop.f32.mrb[0].mxu0
        %v8437 = vadd.f32 0.0, %v8436
        %v8438 = vpop.f32.mrb[0].mxu0
        %8439 = vdwg.mxu0
        %v8440 = vadd.f32 %v8297, %v8410
        %v8441 = vadd.f32 %v8298, %v8413
        %v8442 = vadd.f32 %v8299, %v8418
        %v8443 = vadd.f32 %v8300, %v8421
        %v8444 = vadd.f32 %v8301, %v8426
        %v8445 = vadd.f32 %v8302, %v8429
        %v8446 = vadd.f32 %v8303, %v8434
        %v8447 = vadd.f32 %v8304, %v8437
        %v8448 = vrot.slane %v8135, 1
        %v8449 = vsel %vm1549, %v7939, %v8448
        %v8452 = vsel %vm1549, %v8448, 0.0
        %v8453 = vsel %vm7952, 1, 0
        %v8454 = vsel %vm7953, 1, 0
        %v8455 = vsel %vm7954, 1, 0
        %v8456 = vsel %vm7955, 1, 0
        %v8457 = vsel %vm7956, 1, 0
        %v8458 = vsel %vm7957, 1, 0
        %v8459 = vsel %vm7958, 1, 0
        %v8460 = vsel %vm7959, 1, 0
        %vm8461 = vcmp.eq.s32.totalorder %v8453, 1
        %vm8462 = vcmp.eq.s32.totalorder %v8454, 1
        %vm8463 = vcmp.eq.s32.totalorder %v8455, 1
        %vm8464 = vcmp.eq.s32.totalorder %v8456, 1
        %vm8465 = vcmp.eq.s32.totalorder %v8457, 1
        %vm8466 = vcmp.eq.s32.totalorder %v8458, 1
        %vm8467 = vcmp.eq.s32.totalorder %v8459, 1
        %vm8468 = vcmp.eq.s32.totalorder %v8460, 1
        %v8469 = vsel %vm8461, %v7930, 0.0
        %v8470 = vsel %vm8462, %v7932, 0.0
        %v8471 = vsel %vm8463, %v7934, 0.0
        %v8472 = vsel %vm8464, %v7936, 0.0
        %v8473 = vsel %vm8465, %v7938, 0.0
        %v8474 = vsel %vm8466, %v7940, 0.0
        %v8475 = vsel %vm8467, %v8449, 0.0
        %v8476 = vsel %vm8468, %v8452, 0.0
        %v8477 = vpack.c.bf16 %v8470, %v8469
        %v8478 = vpack.c.bf16 %v8472, %v8471
        %v8479 = vpack.c.bf16 %v8474, %v8473
        %v8480 = vpack.c.bf16 %v8476, %v8475
        %s8481 = scalar_lea.vmem %s5, 320
        %v8482 = vld [vmem:[%s8481] sm:$0xf]
        %v8483 = vld [vmem:[%s8481 + $0x4] sm:$0xf]
        %v8484 = vld [vmem:[%s8481 + $0x8] sm:$0xf]
        %v8485 = vld [vmem:[%s8481 + $0xc] sm:$0xf]
        %v8486 = vld [vmem:[%s8481 + $0x10] sm:$0xf]
        %v8487 = vld [vmem:[%s8481 + $0x14] sm:$0xf]
        %v8488 = vld [vmem:[%s8481 + $0x18] sm:$0xf]
        %v8489 = vld [vmem:[%s8481 + $0x1c] sm:$0xf]
        %v8490 = vld [vmem:[%s8481 + $0x20] sm:$0xf]
        %v8491 = vld [vmem:[%s8481 + $0x24] sm:$0xf]
        %v8492 = vld [vmem:[%s8481 + $0x28] sm:$0xf]
        %v8493 = vld [vmem:[%s8481 + $0x2c] sm:$0xf]
        %v8494 = vld [vmem:[%s8481 + $0x30] sm:$0xf]
        %v8495 = vld [vmem:[%s8481 + $0x34] sm:$0xf]
        %v8496 = vld [vmem:[%s8481 + $0x38] sm:$0xf]
        %v8497 = vld [vmem:[%s8481 + $0x3c] sm:$0xf]
        %v8514 = vunpack.c.l.b16 %v8482
        %v8515 = vunpack.c.l.b16 %v8483
        %v8516 = vunpack.c.l.b16 %v8484
        %v8517 = vunpack.c.l.b16 %v8485
        %v8518 = vunpack.c.l.b16 %v8486
        %v8519 = vunpack.c.l.b16 %v8487
        %v8520 = vunpack.c.l.b16 %v8488
        %v8521 = vunpack.c.l.b16 %v8489
        %v8522 = vunpack.c.l.b16 %v8490
        %v8523 = vunpack.c.l.b16 %v8491
        %v8524 = vunpack.c.l.b16 %v8492
        %v8525 = vunpack.c.l.b16 %v8493
        %v8526 = vunpack.c.l.b16 %v8494
        %v8527 = vunpack.c.l.b16 %v8495
        %v8528 = vunpack.c.l.b16 %v8496
        %v8529 = vunpack.c.l.b16 %v8497
        %v8530 = vpack.c.b16 %v8515, %v8514
        %v8531 = vpack.c.b16 %v8517, %v8516
        %v8532 = vpack.c.b16 %v8519, %v8518
        %v8533 = vpack.c.b16 %v8521, %v8520
        %v8534 = vpack.c.b16 %v8523, %v8522
        %v8535 = vpack.c.b16 %v8525, %v8524
        %v8536 = vpack.c.b16 %v8527, %v8526
        %v8537 = vpack.c.b16 %v8529, %v8528
        %8546 = vmatprep.subr.bf16.mxu0 0
        %8547 = vmatpush1.bf16.msra.mxu0 %v8530
        %8548 = vmatprep.subr.bf16.mxu0 0
        %8549 = vmatpush1.bf16.msra.mxu0 %v8531
        %8550 = vmatprep.subr.bf16.mxu0 0
        %8551 = vmatpush1.bf16.msra.mxu0 %v8532
        %8552 = vmatprep.subr.bf16.mxu0 0
        %8553 = vmatpush1.bf16.msra.mxu0 %v8533
        %8554 = vmatprep.subr.bf16.mxu0 0
        %8555 = vmatpush1.bf16.msra.mxu0 %v8534
        %8556 = vmatprep.subr.bf16.mxu0 0
        %8557 = vmatpush1.bf16.msra.mxu0 %v8535
        %8558 = vmatprep.subr.bf16.mxu0 0
        %8559 = vmatpush1.bf16.msra.mxu0 %v8536
        %8560 = vmatprep.subr.bf16.mxu0 0
        %8561 = vmatpush1.bf16.msra.mxu0 %v8537
        %8562 = vmatprep.subr.bf16.mxu0 0
        %8563 = vmatpush1.bf16.msra.mxu0 0
        %8564 = vmatprep.subr.bf16.mxu0 0
        %8565 = vmatpush1.bf16.msra.mxu0 0
        %8566 = vmatprep.subr.bf16.mxu0 0
        %8567 = vmatpush1.bf16.msra.mxu0 0
        %8568 = vmatprep.subr.bf16.mxu0 0
        %8569 = vmatpush1.bf16.msra.mxu0 0
        %8570 = vmatprep.subr.bf16.mxu0 0
        %8571 = vmatpush1.bf16.msra.mxu0 0
        %8572 = vmatprep.subr.bf16.mxu0 0
        %8573 = vmatpush1.bf16.msra.mxu0 0
        %8574 = vmatprep.subr.bf16.mxu0 0
        %8575 = vmatpush1.bf16.msra.mxu0 0
        %8576 = vmatprep.subr.bf16.mxu0 0
        %8577 = vmatpush1.bf16.msra.mxu0 0
        %8578 = vmatprep.mubr.bf16.mxu0 0
        %8579 = vmatmul.mubr.bf16.gmra.mrb[0].mxu0 %v8477
        %v8580 = vpop.f32.mrb[0].mxu0
        %v8581 = vadd.f32 0.0, %v8580
        %v8582 = vpop.f32.mrb[0].mxu0
        %v8583 = vpop.f32.mrb[0].mxu0
        %v8584 = vadd.f32 0.0, %v8583
        %v8585 = vpop.f32.mrb[0].mxu0
        %8586 = vmatprep.mubr.bf16.mxu0 0
        %8587 = vmatmul.mubr.bf16.gmra.mrb[0].mxu0 %v8478
        %v8588 = vpop.f32.mrb[0].mxu0
        %v8589 = vadd.f32 0.0, %v8588
        %v8590 = vpop.f32.mrb[0].mxu0
        %v8591 = vpop.f32.mrb[0].mxu0
        %v8592 = vadd.f32 0.0, %v8591
        %v8593 = vpop.f32.mrb[0].mxu0
        %8594 = vmatprep.mubr.bf16.mxu0 0
        %8595 = vmatmul.mubr.bf16.gmra.mrb[0].mxu0 %v8479
        %v8596 = vpop.f32.mrb[0].mxu0
        %v8597 = vadd.f32 0.0, %v8596
        %v8598 = vpop.f32.mrb[0].mxu0
        %v8599 = vpop.f32.mrb[0].mxu0
        %v8600 = vadd.f32 0.0, %v8599
        %v8601 = vpop.f32.mrb[0].mxu0
        %8602 = vmatprep.mubr.bf16.mxu0 0
        %8603 = vmatmul.mubr.bf16.gmra.mrb[0].mxu0 %v8480
        %v8604 = vpop.f32.mrb[0].mxu0
        %v8605 = vadd.f32 0.0, %v8604
        %v8606 = vpop.f32.mrb[0].mxu0
        %v8607 = vpop.f32.mrb[0].mxu0
        %v8608 = vadd.f32 0.0, %v8607
        %v8609 = vpop.f32.mrb[0].mxu0
        %8610 = vdwg.mxu0
        %v8611 = vadd.f32 %v8440, %v8581
        %v8612 = vadd.f32 %v8441, %v8584
        %v8613 = vadd.f32 %v8442, %v8589
        %v8614 = vadd.f32 %v8443, %v8592
        %v8615 = vadd.f32 %v8444, %v8597
        %v8616 = vadd.f32 %v8445, %v8600
        %v8617 = vadd.f32 %v8446, %v8605
        %v8618 = vadd.f32 %v8447, %v8608
        %v8619 = vcombine.low %v7498, %v7499
        %v8620 = vcombine.low %v7500, %v7501
        %v8621 = vcombine.low %v7502, %v7503
        %v8622 = vcombine.low %v7504, %v7505
        %v8623 = vcombine.low %v7506, %v7507
        %v8624 = vcombine.low %v7508, %v7509
        %v8625 = vcombine.low %v7510, %v7511
        %vm8626 = vcmask 1044480
        %v8627 = vrot.slane %v8619, 3
        %v8628 = vrot.slane %v8620, 3
        %v8629 = vsel %vm8626, %v8627, %v8628
        %v8630 = vrot.slane %v8621, 3
        %v8631 = vsel %vm8626, %v8628, %v8630
        %v8632 = vrot.slane %v8622, 3
        %v8633 = vsel %vm8626, %v8630, %v8632
        %v8634 = vrot.slane %v8623, 3
        %v8635 = vsel %vm8626, %v8632, %v8634
        %v8636 = vrot.slane %v8624, 3
        %v8637 = vsel %vm8626, %v8634, %v8636
        %v8638 = vrot.slane %v8625, 3
        %v8639 = vsel %vm8626, %v8636, %v8638
        %v8640 = vrot.slane %v7512, 3
        %v8641 = vsel %vm8626, %v8638, %v8640
        %v8650 = vsel %vm727, %v8640, 0.0
        %vm8651 = vcmp.le.f32.partialorder %v7522, 6.5
        %vm8652 = vcmp.le.f32.partialorder %v7523, 6.5
        %vm8653 = vcmp.le.f32.partialorder %v7524, 6.5
        %vm8654 = vcmp.le.f32.partialorder %v7525, 6.5
        %vm8655 = vcmp.le.f32.partialorder %v7526, 6.5
        %vm8656 = vcmp.le.f32.partialorder %v7527, 6.5
        %vm8657 = vcmp.le.f32.partialorder %v7528, 6.5
        %vm8658 = vcmp.le.f32.partialorder %v7529, 6.5
        %vm8659 = vmand %vm8651, %vm7596
        %vm8660 = vmand %vm8652, %vm7597
        %vm8661 = vmand %vm8653, %vm7598
        %vm8662 = vmand %vm8654, %vm7599
        %vm8663 = vmand %vm8655, %vm7600
        %vm8664 = vmand %vm8656, %vm7601
        %vm8665 = vmand %vm8657, %vm7602
        %vm8666 = vmand %vm8658, %vm7603
        %v8667 = vsel %vm8659, 1, 0
        %v8668 = vsel %vm8660, 1, 0
        %v8669 = vsel %vm8661, 1, 0
        %v8670 = vsel %vm8662, 1, 0
        %v8671 = vsel %vm8663, 1, 0
        %v8672 = vsel %vm8664, 1, 0
        %v8673 = vsel %vm8665, 1, 0
        %v8674 = vsel %vm8666, 1, 0
        %vm8675 = vcmp.eq.s32.totalorder %v8667, 1
        %vm8676 = vcmp.eq.s32.totalorder %v8668, 1
        %vm8677 = vcmp.eq.s32.totalorder %v8669, 1
        %vm8678 = vcmp.eq.s32.totalorder %v8670, 1
        %vm8679 = vcmp.eq.s32.totalorder %v8671, 1
        %vm8680 = vcmp.eq.s32.totalorder %v8672, 1
        %vm8681 = vcmp.eq.s32.totalorder %v8673, 1
        %vm8682 = vcmp.eq.s32.totalorder %v8674, 1
        %v8683 = vsel %vm8675, %v8629, 0.0
        %v8684 = vsel %vm8676, %v8631, 0.0
        %v8685 = vsel %vm8677, %v8633, 0.0
        %v8686 = vsel %vm8678, %v8635, 0.0
        %v8687 = vsel %vm8679, %v8637, 0.0
        %v8688 = vsel %vm8680, %v8639, 0.0
        %v8689 = vsel %vm8681, %v8641, 0.0
        %v8690 = vsel %vm8682, %v8650, 0.0
        %v8691 = vpack.c.bf16 %v8684, %v8683
        %v8692 = vpack.c.bf16 %v8686, %v8685
        %v8693 = vpack.c.bf16 %v8688, %v8687
        %v8694 = vpack.c.bf16 %v8690, %v8689
        %s8695 = scalar_lea.vmem %s5, 384
        %v8696 = vld [vmem:[%s8695] sm:$0xf]
        %v8697 = vld [vmem:[%s8695 + $0x4] sm:$0xf]
        %v8698 = vld [vmem:[%s8695 + $0x8] sm:$0xf]
        %v8699 = vld [vmem:[%s8695 + $0xc] sm:$0xf]
        %v8700 = vld [vmem:[%s8695 + $0x10] sm:$0xf]
        %v8701 = vld [vmem:[%s8695 + $0x14] sm:$0xf]
        %v8702 = vld [vmem:[%s8695 + $0x18] sm:$0xf]
        %v8703 = vld [vmem:[%s8695 + $0x1c] sm:$0xf]
        %v8704 = vld [vmem:[%s8695 + $0x20] sm:$0xf]
        %v8705 = vld [vmem:[%s8695 + $0x24] sm:$0xf]
        %v8706 = vld [vmem:[%s8695 + $0x28] sm:$0xf]
        %v8707 = vld [vmem:[%s8695 + $0x2c] sm:$0xf]
        %v8708 = vld [vmem:[%s8695 + $0x30] sm:$0xf]
        %v8709 = vld [vmem:[%s8695 + $0x34] sm:$0xf]
        %v8710 = vld [vmem:[%s8695 + $0x38] sm:$0xf]
        %v8711 = vld [vmem:[%s8695 + $0x3c] sm:$0xf]
        %v8728 = vunpack.c.l.b16 %v8696
        %v8729 = vunpack.c.l.b16 %v8697
        %v8730 = vunpack.c.l.b16 %v8698
        %v8731 = vunpack.c.l.b16 %v8699
        %v8732 = vunpack.c.l.b16 %v8700
        %v8733 = vunpack.c.l.b16 %v8701
        %v8734 = vunpack.c.l.b16 %v8702
        %v8735 = vunpack.c.l.b16 %v8703
        %v8736 = vunpack.c.l.b16 %v8704
        %v8737 = vunpack.c.l.b16 %v8705
        %v8738 = vunpack.c.l.b16 %v8706
        %v8739 = vunpack.c.l.b16 %v8707
        %v8740 = vunpack.c.l.b16 %v8708
        %v8741 = vunpack.c.l.b16 %v8709
        %v8742 = vunpack.c.l.b16 %v8710
        %v8743 = vunpack.c.l.b16 %v8711
        %v8744 = vpack.c.b16 %v8729, %v8728
        %v8745 = vpack.c.b16 %v8731, %v8730
        %v8746 = vpack.c.b16 %v8733, %v8732
        %v8747 = vpack.c.b16 %v8735, %v8734
        %v8748 = vpack.c.b16 %v8737, %v8736
        %v8749 = vpack.c.b16 %v8739, %v8738
        %v8750 = vpack.c.b16 %v8741, %v8740
        %v8751 = vpack.c.b16 %v8743, %v8742
        %8760 = vmatprep.subr.bf16.mxu0 0
        %8761 = vmatpush1.bf16.msra.mxu0 %v8744
        %8762 = vmatprep.subr.bf16.mxu0 0
        %8763 = vmatpush1.bf16.msra.mxu0 %v8745
        %8764 = vmatprep.subr.bf16.mxu0 0
        %8765 = vmatpush1.bf16.msra.mxu0 %v8746
        %8766 = vmatprep.subr.bf16.mxu0 0
        %8767 = vmatpush1.bf16.msra.mxu0 %v8747
        %8768 = vmatprep.subr.bf16.mxu0 0
        %8769 = vmatpush1.bf16.msra.mxu0 %v8748
        %8770 = vmatprep.subr.bf16.mxu0 0
        %8771 = vmatpush1.bf16.msra.mxu0 %v8749
        %8772 = vmatprep.subr.bf16.mxu0 0
        %8773 = vmatpush1.bf16.msra.mxu0 %v8750
        %8774 = vmatprep.subr.bf16.mxu0 0
        %8775 = vmatpush1.bf16.msra.mxu0 %v8751
        %8776 = vmatprep.subr.bf16.mxu0 0
        %8777 = vmatpush1.bf16.msra.mxu0 0
        %8778 = vmatprep.subr.bf16.mxu0 0
        %8779 = vmatpush1.bf16.msra.mxu0 0
        %8780 = vmatprep.subr.bf16.mxu0 0
        %8781 = vmatpush1.bf16.msra.mxu0 0
        %8782 = vmatprep.subr.bf16.mxu0 0
        %8783 = vmatpush1.bf16.msra.mxu0 0
        %8784 = vmatprep.subr.bf16.mxu0 0
        %8785 = vmatpush1.bf16.msra.mxu0 0
        %8786 = vmatprep.subr.bf16.mxu0 0
        %8787 = vmatpush1.bf16.msra.mxu0 0
        %8788 = vmatprep.subr.bf16.mxu0 0
        %8789 = vmatpush1.bf16.msra.mxu0 0
        %8790 = vmatprep.subr.bf16.mxu0 0
        %8791 = vmatpush1.bf16.msra.mxu0 0
        %8792 = vmatprep.mubr.bf16.mxu0 0
        %8793 = vmatmul.mubr.bf16.gmra.mrb[0].mxu0 %v8691
        %v8794 = vpop.f32.mrb[0].mxu0
        %v8795 = vadd.f32 0.0, %v8794
        %v8796 = vpop.f32.mrb[0].mxu0
        %v8797 = vpop.f32.mrb[0].mxu0
        %v8798 = vadd.f32 0.0, %v8797
        %v8799 = vpop.f32.mrb[0].mxu0
        %8800 = vmatprep.mubr.bf16.mxu0 0
        %8801 = vmatmul.mubr.bf16.gmra.mrb[0].mxu0 %v8692
        %v8802 = vpop.f32.mrb[0].mxu0
        %v8803 = vadd.f32 0.0, %v8802
        %v8804 = vpop.f32.mrb[0].mxu0
        %v8805 = vpop.f32.mrb[0].mxu0
        %v8806 = vadd.f32 0.0, %v8805
        %v8807 = vpop.f32.mrb[0].mxu0
        %8808 = vmatprep.mubr.bf16.mxu0 0
        %8809 = vmatmul.mubr.bf16.gmra.mrb[0].mxu0 %v8693
        %v8810 = vpop.f32.mrb[0].mxu0
        %v8811 = vadd.f32 0.0, %v8810
        %v8812 = vpop.f32.mrb[0].mxu0
        %v8813 = vpop.f32.mrb[0].mxu0
        %v8814 = vadd.f32 0.0, %v8813
        %v8815 = vpop.f32.mrb[0].mxu0
        %8816 = vmatprep.mubr.bf16.mxu0 0
        %8817 = vmatmul.mubr.bf16.gmra.mrb[0].mxu0 %v8694
        %v8818 = vpop.f32.mrb[0].mxu0
        %v8819 = vadd.f32 0.0, %v8818
        %v8820 = vpop.f32.mrb[0].mxu0
        %v8821 = vpop.f32.mrb[0].mxu0
        %v8822 = vadd.f32 0.0, %v8821
        %v8823 = vpop.f32.mrb[0].mxu0
        %8824 = vdwg.mxu0
        %v8825 = vadd.f32 %v8611, %v8795
        %v8826 = vadd.f32 %v8612, %v8798
        %v8827 = vadd.f32 %v8613, %v8803
        %v8828 = vadd.f32 %v8614, %v8806
        %v8829 = vadd.f32 %v8615, %v8811
        %v8830 = vadd.f32 %v8616, %v8814
        %v8831 = vadd.f32 %v8617, %v8819
        %v8832 = vadd.f32 %v8618, %v8822
        %v8833 = vsel %vm8651, 1, 0
        %v8834 = vsel %vm8652, 1, 0
        %v8835 = vsel %vm8653, 1, 0
        %v8836 = vsel %vm8654, 1, 0
        %v8837 = vsel %vm8655, 1, 0
        %v8838 = vsel %vm8656, 1, 0
        %v8839 = vsel %vm8657, 1, 0
        %vm8840 = vcmp.eq.s32.totalorder %v8833, 1
        %vm8841 = vcmp.eq.s32.totalorder %v8834, 1
        %vm8842 = vcmp.eq.s32.totalorder %v8835, 1
        %vm8843 = vcmp.eq.s32.totalorder %v8836, 1
        %vm8844 = vcmp.eq.s32.totalorder %v8837, 1
        %vm8845 = vcmp.eq.s32.totalorder %v8838, 1
        %vm8846 = vcmp.eq.s32.totalorder %v8839, 1
        %v8847 = vsel %vm8840, %v7561, 0.0
        %v8848 = vsel %vm8841, %v7562, 0.0
        %v8849 = vsel %vm8842, %v7563, 0.0
        %v8850 = vsel %vm8843, %v7564, 0.0
        %v8851 = vsel %vm8844, %v7565, 0.0
        %v8852 = vsel %vm8845, %v7566, 0.0
        %v8853 = vsel %vm8846, %v8135, 0.0
        %v8854 = vpack.c.bf16 %v8848, %v8847
        %v8855 = vpack.c.bf16 %v8850, %v8849
        %v8856 = vpack.c.bf16 %v8852, %v8851
        %v8857 = vpack.c.bf16 0.0, %v8853
        %s8858 = scalar_lea.vmem %s5, 448
        %v8859 = vld [vmem:[%s8858] sm:$0xf]
        %v8860 = vld [vmem:[%s8858 + $0x4] sm:$0xf]
        %v8861 = vld [vmem:[%s8858 + $0x8] sm:$0xf]
        %v8862 = vld [vmem:[%s8858 + $0xc] sm:$0xf]
        %v8863 = vld [vmem:[%s8858 + $0x10] sm:$0xf]
        %v8864 = vld [vmem:[%s8858 + $0x14] sm:$0xf]
        %v8865 = vld [vmem:[%s8858 + $0x18] sm:$0xf]
        %v8866 = vld [vmem:[%s8858 + $0x1c] sm:$0xf]
        %v8867 = vld [vmem:[%s8858 + $0x20] sm:$0xf]
        %v8868 = vld [vmem:[%s8858 + $0x24] sm:$0xf]
        %v8869 = vld [vmem:[%s8858 + $0x28] sm:$0xf]
        %v8870 = vld [vmem:[%s8858 + $0x2c] sm:$0xf]
        %v8871 = vld [vmem:[%s8858 + $0x30] sm:$0xf]
        %v8872 = vld [vmem:[%s8858 + $0x34] sm:$0xf]
        %v8873 = vld [vmem:[%s8858 + $0x38] sm:$0xf]
        %v8874 = vld [vmem:[%s8858 + $0x3c] sm:$0xf]
        %v8891 = vunpack.c.l.b16 %v8859
        %v8892 = vunpack.c.l.b16 %v8860
        %v8893 = vunpack.c.l.b16 %v8861
        %v8894 = vunpack.c.l.b16 %v8862
        %v8895 = vunpack.c.l.b16 %v8863
        %v8896 = vunpack.c.l.b16 %v8864
        %v8897 = vunpack.c.l.b16 %v8865
        %v8898 = vunpack.c.l.b16 %v8866
        %v8899 = vunpack.c.l.b16 %v8867
        %v8900 = vunpack.c.l.b16 %v8868
        %v8901 = vunpack.c.l.b16 %v8869
        %v8902 = vunpack.c.l.b16 %v8870
        %v8903 = vunpack.c.l.b16 %v8871
        %v8904 = vunpack.c.l.b16 %v8872
        %v8905 = vunpack.c.l.b16 %v8873
        %v8906 = vunpack.c.l.b16 %v8874
        %v8907 = vpack.c.b16 %v8892, %v8891
        %v8908 = vpack.c.b16 %v8894, %v8893
        %v8909 = vpack.c.b16 %v8896, %v8895
        %v8910 = vpack.c.b16 %v8898, %v8897
        %v8911 = vpack.c.b16 %v8900, %v8899
        %v8912 = vpack.c.b16 %v8902, %v8901
        %v8913 = vpack.c.b16 %v8904, %v8903
        %v8914 = vpack.c.b16 %v8906, %v8905
        %8923 = vmatprep.subr.bf16.mxu0 0
        %8924 = vmatpush1.bf16.msra.mxu0 %v8907
        %8925 = vmatprep.subr.bf16.mxu0 0
        %8926 = vmatpush1.bf16.msra.mxu0 %v8908
        %8927 = vmatprep.subr.bf16.mxu0 0
        %8928 = vmatpush1.bf16.msra.mxu0 %v8909
        %8929 = vmatprep.subr.bf16.mxu0 0
        %8930 = vmatpush1.bf16.msra.mxu0 %v8910
        %8931 = vmatprep.subr.bf16.mxu0 0
        %8932 = vmatpush1.bf16.msra.mxu0 %v8911
        %8933 = vmatprep.subr.bf16.mxu0 0
        %8934 = vmatpush1.bf16.msra.mxu0 %v8912
        %8935 = vmatprep.subr.bf16.mxu0 0
        %8936 = vmatpush1.bf16.msra.mxu0 %v8913
        %8937 = vmatprep.subr.bf16.mxu0 0
        %8938 = vmatpush1.bf16.msra.mxu0 %v8914
        %8939 = vmatprep.subr.bf16.mxu0 0
        %8940 = vmatpush1.bf16.msra.mxu0 0
        %8941 = vmatprep.subr.bf16.mxu0 0
        %8942 = vmatpush1.bf16.msra.mxu0 0
        %8943 = vmatprep.subr.bf16.mxu0 0
        %8944 = vmatpush1.bf16.msra.mxu0 0
        %8945 = vmatprep.subr.bf16.mxu0 0
        %8946 = vmatpush1.bf16.msra.mxu0 0
        %8947 = vmatprep.subr.bf16.mxu0 0
        %8948 = vmatpush1.bf16.msra.mxu0 0
        %8949 = vmatprep.subr.bf16.mxu0 0
        %8950 = vmatpush1.bf16.msra.mxu0 0
        %8951 = vmatprep.subr.bf16.mxu0 0
        %8952 = vmatpush1.bf16.msra.mxu0 0
        %8953 = vmatprep.subr.bf16.mxu0 0
        %8954 = vmatpush1.bf16.msra.mxu0 0
        %8955 = vmatprep.mubr.bf16.mxu0 0
        %8956 = vmatmul.mubr.bf16.gmra.mrb[0].mxu0 %v8854
        %v8957 = vpop.f32.mrb[0].mxu0
        %v8958 = vadd.f32 0.0, %v8957
        %v8959 = vpop.f32.mrb[0].mxu0
        %v8960 = vpop.f32.mrb[0].mxu0
        %v8961 = vadd.f32 0.0, %v8960
        %v8962 = vpop.f32.mrb[0].mxu0
        %8963 = vmatprep.mubr.bf16.mxu0 0
        %8964 = vmatmul.mubr.bf16.gmra.mrb[0].mxu0 %v8855
        %v8965 = vpop.f32.mrb[0].mxu0
        %v8966 = vadd.f32 0.0, %v8965
        %v8967 = vpop.f32.mrb[0].mxu0
        %v8968 = vpop.f32.mrb[0].mxu0
        %v8969 = vadd.f32 0.0, %v8968
        %v8970 = vpop.f32.mrb[0].mxu0
        %8971 = vmatprep.mubr.bf16.mxu0 0
        %8972 = vmatmul.mubr.bf16.gmra.mrb[0].mxu0 %v8856
        %v8973 = vpop.f32.mrb[0].mxu0
        %v8974 = vadd.f32 0.0, %v8973
        %v8975 = vpop.f32.mrb[0].mxu0
        %v8976 = vpop.f32.mrb[0].mxu0
        %v8977 = vadd.f32 0.0, %v8976
        %v8978 = vpop.f32.mrb[0].mxu0
        %8979 = vmatprep.mubr.bf16.mxu0 0
        %8980 = vmatmul.mubr.bf16.gmra.mrb[0].mxu0 %v8857
        %v8981 = vpop.f32.mrb[0].mxu0
        %v8982 = vadd.f32 0.0, %v8981
        %v8983 = vpop.f32.mrb[0].mxu0
        %v8984 = vpop.f32.mrb[0].mxu0
        %v8985 = vadd.f32 0.0, %v8984
        %v8986 = vpop.f32.mrb[0].mxu0
        %8987 = vdwg.mxu0
        %v8988 = vadd.f32 %v8825, %v8958
        %v8989 = vadd.f32 %v8826, %v8961
        %v8990 = vadd.f32 %v8827, %v8966
        %v8991 = vadd.f32 %v8828, %v8969
        %v8992 = vadd.f32 %v8829, %v8974
        %v8993 = vadd.f32 %v8830, %v8977
        %v8994 = vadd.f32 %v8831, %v8982
        %v8995 = vadd.f32 %v8832, %v8985
        %vm8996 = vmand %vm8651, %vm7952
        %vm8997 = vmand %vm8652, %vm7953
        %vm8998 = vmand %vm8653, %vm7954
        %vm8999 = vmand %vm8654, %vm7955
        %vm9000 = vmand %vm8655, %vm7956
        %vm9001 = vmand %vm8656, %vm7957
        %vm9002 = vmand %vm8657, %vm7958
        %v9003 = vsel %vm8996, 1, 0
        %v9004 = vsel %vm8997, 1, 0
        %v9005 = vsel %vm8998, 1, 0
        %v9006 = vsel %vm8999, 1, 0
        %v9007 = vsel %vm9000, 1, 0
        %v9008 = vsel %vm9001, 1, 0
        %v9009 = vsel %vm9002, 1, 0
        %vm9010 = vcmp.eq.s32.totalorder %v9003, 1
        %vm9011 = vcmp.eq.s32.totalorder %v9004, 1
        %vm9012 = vcmp.eq.s32.totalorder %v9005, 1
        %vm9013 = vcmp.eq.s32.totalorder %v9006, 1
        %vm9014 = vcmp.eq.s32.totalorder %v9007, 1
        %vm9015 = vcmp.eq.s32.totalorder %v9008, 1
        %vm9016 = vcmp.eq.s32.totalorder %v9009, 1
        %v9017 = vsel %vm9010, %v7932, 0.0
        %v9018 = vsel %vm9011, %v7934, 0.0
        %v9019 = vsel %vm9012, %v7936, 0.0
        %v9020 = vsel %vm9013, %v7938, 0.0
        %v9021 = vsel %vm9014, %v7940, 0.0
        %v9022 = vsel %vm9015, %v8449, 0.0
        %v9023 = vsel %vm9016, %v8452, 0.0
        %v9024 = vpack.c.bf16 %v9018, %v9017
        %v9025 = vpack.c.bf16 %v9020, %v9019
        %v9026 = vpack.c.bf16 %v9022, %v9021
        %v9027 = vpack.c.bf16 0.0, %v9023
        %s9028 = scalar_lea.vmem %s5, 512
        %v9029 = vld [vmem:[%s9028] sm:$0xf]
        %v9030 = vld [vmem:[%s9028 + $0x4] sm:$0xf]
        %v9031 = vld [vmem:[%s9028 + $0x8] sm:$0xf]
        %v9032 = vld [vmem:[%s9028 + $0xc] sm:$0xf]
        %v9033 = vld [vmem:[%s9028 + $0x10] sm:$0xf]
        %v9034 = vld [vmem:[%s9028 + $0x14] sm:$0xf]
        %v9035 = vld [vmem:[%s9028 + $0x18] sm:$0xf]
        %v9036 = vld [vmem:[%s9028 + $0x1c] sm:$0xf]
        %v9037 = vld [vmem:[%s9028 + $0x20] sm:$0xf]
        %v9038 = vld [vmem:[%s9028 + $0x24] sm:$0xf]
        %v9039 = vld [vmem:[%s9028 + $0x28] sm:$0xf]
        %v9040 = vld [vmem:[%s9028 + $0x2c] sm:$0xf]
        %v9041 = vld [vmem:[%s9028 + $0x30] sm:$0xf]
        %v9042 = vld [vmem:[%s9028 + $0x34] sm:$0xf]
        %v9043 = vld [vmem:[%s9028 + $0x38] sm:$0xf]
        %v9044 = vld [vmem:[%s9028 + $0x3c] sm:$0xf]
        %v9061 = vunpack.c.l.b16 %v9029
        %v9062 = vunpack.c.l.b16 %v9030
        %v9063 = vunpack.c.l.b16 %v9031
        %v9064 = vunpack.c.l.b16 %v9032
        %v9065 = vunpack.c.l.b16 %v9033
        %v9066 = vunpack.c.l.b16 %v9034
        %v9067 = vunpack.c.l.b16 %v9035
        %v9068 = vunpack.c.l.b16 %v9036
        %v9069 = vunpack.c.l.b16 %v9037
        %v9070 = vunpack.c.l.b16 %v9038
        %v9071 = vunpack.c.l.b16 %v9039
        %v9072 = vunpack.c.l.b16 %v9040
        %v9073 = vunpack.c.l.b16 %v9041
        %v9074 = vunpack.c.l.b16 %v9042
        %v9075 = vunpack.c.l.b16 %v9043
        %v9076 = vunpack.c.l.b16 %v9044
        %v9077 = vpack.c.b16 %v9062, %v9061
        %v9078 = vpack.c.b16 %v9064, %v9063
        %v9079 = vpack.c.b16 %v9066, %v9065
        %v9080 = vpack.c.b16 %v9068, %v9067
        %v9081 = vpack.c.b16 %v9070, %v9069
        %v9082 = vpack.c.b16 %v9072, %v9071
        %v9083 = vpack.c.b16 %v9074, %v9073
        %v9084 = vpack.c.b16 %v9076, %v9075
        %9093 = vmatprep.subr.bf16.mxu0 0
        %9094 = vmatpush1.bf16.msra.mxu0 %v9077
        %9095 = vmatprep.subr.bf16.mxu0 0
        %9096 = vmatpush1.bf16.msra.mxu0 %v9078
        %9097 = vmatprep.subr.bf16.mxu0 0
        %9098 = vmatpush1.bf16.msra.mxu0 %v9079
        %9099 = vmatprep.subr.bf16.mxu0 0
        %9100 = vmatpush1.bf16.msra.mxu0 %v9080
        %9101 = vmatprep.subr.bf16.mxu0 0
        %9102 = vmatpush1.bf16.msra.mxu0 %v9081
        %9103 = vmatprep.subr.bf16.mxu0 0
        %9104 = vmatpush1.bf16.msra.mxu0 %v9082
        %9105 = vmatprep.subr.bf16.mxu0 0
        %9106 = vmatpush1.bf16.msra.mxu0 %v9083
        %9107 = vmatprep.subr.bf16.mxu0 0
        %9108 = vmatpush1.bf16.msra.mxu0 %v9084
        %9109 = vmatprep.subr.bf16.mxu0 0
        %9110 = vmatpush1.bf16.msra.mxu0 0
        %9111 = vmatprep.subr.bf16.mxu0 0
        %9112 = vmatpush1.bf16.msra.mxu0 0
        %9113 = vmatprep.subr.bf16.mxu0 0
        %9114 = vmatpush1.bf16.msra.mxu0 0
        %9115 = vmatprep.subr.bf16.mxu0 0
        %9116 = vmatpush1.bf16.msra.mxu0 0
        %9117 = vmatprep.subr.bf16.mxu0 0
        %9118 = vmatpush1.bf16.msra.mxu0 0
        %9119 = vmatprep.subr.bf16.mxu0 0
        %9120 = vmatpush1.bf16.msra.mxu0 0
        %9121 = vmatprep.subr.bf16.mxu0 0
        %9122 = vmatpush1.bf16.msra.mxu0 0
        %9123 = vmatprep.subr.bf16.mxu0 0
        %9124 = vmatpush1.bf16.msra.mxu0 0
        %9125 = vmatprep.mubr.bf16.mxu0 0
        %9126 = vmatmul.mubr.bf16.gmra.mrb[0].mxu0 %v9024
        %v9127 = vpop.f32.mrb[0].mxu0
        %v9128 = vadd.f32 0.0, %v9127
        %v9129 = vpop.f32.mrb[0].mxu0
        %v9130 = vpop.f32.mrb[0].mxu0
        %v9131 = vadd.f32 0.0, %v9130
        %v9132 = vpop.f32.mrb[0].mxu0
        %9133 = vmatprep.mubr.bf16.mxu0 0
        %9134 = vmatmul.mubr.bf16.gmra.mrb[0].mxu0 %v9025
        %v9135 = vpop.f32.mrb[0].mxu0
        %v9136 = vadd.f32 0.0, %v9135
        %v9137 = vpop.f32.mrb[0].mxu0
        %v9138 = vpop.f32.mrb[0].mxu0
        %v9139 = vadd.f32 0.0, %v9138
        %v9140 = vpop.f32.mrb[0].mxu0
        %9141 = vmatprep.mubr.bf16.mxu0 0
        %9142 = vmatmul.mubr.bf16.gmra.mrb[0].mxu0 %v9026
        %v9143 = vpop.f32.mrb[0].mxu0
        %v9144 = vadd.f32 0.0, %v9143
        %v9145 = vpop.f32.mrb[0].mxu0
        %v9146 = vpop.f32.mrb[0].mxu0
        %v9147 = vadd.f32 0.0, %v9146
        %v9148 = vpop.f32.mrb[0].mxu0
        %9149 = vmatprep.mubr.bf16.mxu0 0
        %9150 = vmatmul.mubr.bf16.gmra.mrb[0].mxu0 %v9027
        %v9151 = vpop.f32.mrb[0].mxu0
        %v9152 = vadd.f32 0.0, %v9151
        %v9153 = vpop.f32.mrb[0].mxu0
        %v9154 = vpop.f32.mrb[0].mxu0
        %v9155 = vadd.f32 0.0, %v9154
        %v9156 = vpop.f32.mrb[0].mxu0
        %9157 = vdwg.mxu0
        %v9158 = vadd.f32 %v8988, %v9128
        %v9159 = vadd.f32 %v8989, %v9131
        %v9160 = vadd.f32 %v8990, %v9136
        %v9161 = vadd.f32 %v8991, %v9139
        %v9162 = vadd.f32 %v8992, %v9144
        %v9163 = vadd.f32 %v8993, %v9147
        %v9164 = vadd.f32 %v8994, %v9152
        %v9165 = vadd.f32 %v8995, %v9155
        %v9166 = vld [vmem:[%s6] sm:$0x1]
        %v9168 = vlaneseq
        %v9169 = vshrl.u32 %v9168, 7
        %v9170 = vsub.s32 0, %v9169
        %v9171 = vrot.slane %v9166, %v9170
        %v9173 = vadd.f32 %v9158, %v9171
        %v9174 = vadd.f32 %v9159, %v9171
        %v9175 = vadd.f32 %v9160, %v9171
        %v9176 = vadd.f32 %v9161, %v9171
        %v9177 = vadd.f32 %v9162, %v9171
        %v9178 = vadd.f32 %v9163, %v9171
        %v9179 = vadd.f32 %v9164, %v9171
        %v9180 = vadd.f32 %v9165, %v9171
        %v9181 = vmax.f32 %v9173, 0.0
        %v9182 = vmax.f32 %v9174, 0.0
        %v9183 = vmax.f32 %v9175, 0.0
        %v9184 = vmax.f32 %v9176, 0.0
        %v9185 = vmax.f32 %v9177, 0.0
        %v9186 = vmax.f32 %v9178, 0.0
        %v9187 = vmax.f32 %v9179, 0.0
        %v9188 = vmax.f32 %v9180, 0.0
        %v9196 = vrot.slane %v9181, 7
        %v9197 = vrot.slane %v9182, 7
        %v9198 = vsel %vm727, %v9196, %v9197
        %v9199 = vrot.slane %v9183, 7
        %v9200 = vsel %vm727, %v9197, %v9199
        %v9201 = vrot.slane %v9184, 7
        %v9202 = vsel %vm727, %v9199, %v9201
        %v9203 = vrot.slane %v9185, 7
        %v9204 = vsel %vm727, %v9201, %v9203
        %v9205 = vrot.slane %v9186, 7
        %v9206 = vsel %vm727, %v9203, %v9205
        %v9207 = vrot.slane %v9187, 7
        %v9208 = vsel %vm727, %v9205, %v9207
        %v9216 = vsel %vm727, 0.0, %v9196
        %v9217 = vsel %vm7618, %v9216, 0.0
        %v9218 = vsel %vm7619, %v9198, 0.0
        %v9219 = vsel %vm7620, %v9200, 0.0
        %v9220 = vsel %vm7621, %v9202, 0.0
        %v9221 = vsel %vm7622, %v9204, 0.0
        %v9222 = vsel %vm7623, %v9206, 0.0
        %v9223 = vsel %vm7624, %v9208, 0.0
        %v9224 = vpack.c.bf16 %v9217, 0.0
        %v9225 = vpack.c.bf16 %v9219, %v9218
        %v9226 = vpack.c.bf16 %v9221, %v9220
        %v9227 = vpack.c.bf16 %v9223, %v9222
        %v9228 = vld [vmem:[%s7] sm:$0xf]
        %v9229 = vld [vmem:[%s7 + $0x4] sm:$0xf]
        %v9230 = vld [vmem:[%s7 + $0x8] sm:$0xf]
        %v9231 = vld [vmem:[%s7 + $0xc] sm:$0xf]
        %v9232 = vld [vmem:[%s7 + $0x10] sm:$0xf]
        %v9233 = vld [vmem:[%s7 + $0x14] sm:$0xf]
        %v9234 = vld [vmem:[%s7 + $0x18] sm:$0xf]
        %v9235 = vld [vmem:[%s7 + $0x1c] sm:$0xf]
        %v9236 = vld [vmem:[%s7 + $0x20] sm:$0xf]
        %v9237 = vld [vmem:[%s7 + $0x24] sm:$0xf]
        %v9238 = vld [vmem:[%s7 + $0x28] sm:$0xf]
        %v9239 = vld [vmem:[%s7 + $0x2c] sm:$0xf]
        %v9240 = vld [vmem:[%s7 + $0x30] sm:$0xf]
        %v9241 = vld [vmem:[%s7 + $0x34] sm:$0xf]
        %v9242 = vld [vmem:[%s7 + $0x38] sm:$0xf]
        %v9243 = vld [vmem:[%s7 + $0x3c] sm:$0xf]
        %v9244 = vsel %vm7666, %v9181, 0.0
        %v9245 = vsel %vm7667, %v9182, 0.0
        %v9246 = vsel %vm7668, %v9183, 0.0
        %v9247 = vsel %vm7669, %v9184, 0.0
        %v9248 = vsel %vm7670, %v9185, 0.0
        %v9249 = vsel %vm7671, %v9186, 0.0
        %v9250 = vsel %vm7672, %v9187, 0.0
        %v9251 = vpack.c.bf16 %v9244, 0.0
        %v9252 = vpack.c.bf16 %v9246, %v9245
        %v9253 = vpack.c.bf16 %v9248, %v9247
        %v9254 = vpack.c.bf16 %v9250, %v9249
        %s9255 = scalar_lea.vmem %s7, 64
        %v9256 = vld [vmem:[%s9255] sm:$0xf]
        %v9257 = vld [vmem:[%s9255 + $0x4] sm:$0xf]
        %v9258 = vld [vmem:[%s9255 + $0x8] sm:$0xf]
        %v9259 = vld [vmem:[%s9255 + $0xc] sm:$0xf]
        %v9260 = vld [vmem:[%s9255 + $0x10] sm:$0xf]
        %v9261 = vld [vmem:[%s9255 + $0x14] sm:$0xf]
        %v9262 = vld [vmem:[%s9255 + $0x18] sm:$0xf]
        %v9263 = vld [vmem:[%s9255 + $0x1c] sm:$0xf]
        %v9264 = vld [vmem:[%s9255 + $0x20] sm:$0xf]
        %v9265 = vld [vmem:[%s9255 + $0x24] sm:$0xf]
        %v9266 = vld [vmem:[%s9255 + $0x28] sm:$0xf]
        %v9267 = vld [vmem:[%s9255 + $0x2c] sm:$0xf]
        %v9268 = vld [vmem:[%s9255 + $0x30] sm:$0xf]
        %v9269 = vld [vmem:[%s9255 + $0x34] sm:$0xf]
        %v9270 = vld [vmem:[%s9255 + $0x38] sm:$0xf]
        %v9271 = vld [vmem:[%s9255 + $0x3c] sm:$0xf]
        %v9288 = vunpack.c.l.b16 %v9256
        %v9289 = vunpack.c.l.b16 %v9257
        %v9290 = vunpack.c.l.b16 %v9258
        %v9291 = vunpack.c.l.b16 %v9259
        %v9292 = vunpack.c.l.b16 %v9260
        %v9293 = vunpack.c.l.b16 %v9261
        %v9294 = vunpack.c.l.b16 %v9262
        %v9295 = vunpack.c.l.b16 %v9263
        %v9296 = vunpack.c.l.b16 %v9264
        %v9297 = vunpack.c.l.b16 %v9265
        %v9298 = vunpack.c.l.b16 %v9266
        %v9299 = vunpack.c.l.b16 %v9267
        %v9300 = vunpack.c.l.b16 %v9268
        %v9301 = vunpack.c.l.b16 %v9269
        %v9302 = vunpack.c.l.b16 %v9270
        %v9303 = vunpack.c.l.b16 %v9271
        %v9304 = vpack.c.b16 %v9289, %v9288
        %v9305 = vpack.c.b16 %v9291, %v9290
        %v9306 = vpack.c.b16 %v9293, %v9292
        %v9307 = vpack.c.b16 %v9295, %v9294
        %v9308 = vpack.c.b16 %v9297, %v9296
        %v9309 = vpack.c.b16 %v9299, %v9298
        %v9310 = vpack.c.b16 %v9301, %v9300
        %v9311 = vpack.c.b16 %v9303, %v9302
        %9320 = vmatprep.subr.bf16.mxu0 0
        %9321 = vmatpush1.bf16.msra.mxu0 %v9304
        %9322 = vmatprep.subr.bf16.mxu0 0
        %9323 = vmatpush1.bf16.msra.mxu0 %v9305
        %9324 = vmatprep.subr.bf16.mxu0 0
        %9325 = vmatpush1.bf16.msra.mxu0 %v9306
        %9326 = vmatprep.subr.bf16.mxu0 0
        %9327 = vmatpush1.bf16.msra.mxu0 %v9307
        %9328 = vmatprep.subr.bf16.mxu0 0
        %9329 = vmatpush1.bf16.msra.mxu0 %v9308
        %9330 = vmatprep.subr.bf16.mxu0 0
        %9331 = vmatpush1.bf16.msra.mxu0 %v9309
        %9332 = vmatprep.subr.bf16.mxu0 0
        %9333 = vmatpush1.bf16.msra.mxu0 %v9310
        %9334 = vmatprep.subr.bf16.mxu0 0
        %9335 = vmatpush1.bf16.msra.mxu0 %v9311
        %9336 = vmatprep.subr.bf16.mxu0 0
        %9337 = vmatpush1.bf16.msra.mxu0 0
        %9338 = vmatprep.subr.bf16.mxu0 0
        %9339 = vmatpush1.bf16.msra.mxu0 0
        %9340 = vmatprep.subr.bf16.mxu0 0
        %9341 = vmatpush1.bf16.msra.mxu0 0
        %9342 = vmatprep.subr.bf16.mxu0 0
        %9343 = vmatpush1.bf16.msra.mxu0 0
        %9344 = vmatprep.subr.bf16.mxu0 0
        %9345 = vmatpush1.bf16.msra.mxu0 0
        %9346 = vmatprep.subr.bf16.mxu0 0
        %9347 = vmatpush1.bf16.msra.mxu0 0
        %9348 = vmatprep.subr.bf16.mxu0 0
        %9349 = vmatpush1.bf16.msra.mxu0 0
        %9350 = vmatprep.subr.bf16.mxu0 0
        %9351 = vmatpush1.bf16.msra.mxu0 0
        %9352 = vmatprep.mubr.bf16.mxu0 0
        %9353 = vmatmul.mubr.bf16.gmra.mrb[0].mxu0 %v9251
        %v9354 = vpop.f32.mrb[0].mxu0
        %v9355 = vadd.f32 0.0, %v9354
        %v9356 = vpop.f32.mrb[0].mxu0
        %v9357 = vpop.f32.mrb[0].mxu0
        %v9358 = vadd.f32 0.0, %v9357
        %v9359 = vpop.f32.mrb[0].mxu0
        %9360 = vmatprep.mubr.bf16.mxu0 0
        %9361 = vmatmul.mubr.bf16.gmra.mrb[0].mxu0 %v9252
        %v9362 = vpop.f32.mrb[0].mxu0
        %v9363 = vadd.f32 0.0, %v9362
        %v9364 = vpop.f32.mrb[0].mxu0
        %v9365 = vpop.f32.mrb[0].mxu0
        %v9366 = vadd.f32 0.0, %v9365
        %v9367 = vpop.f32.mrb[0].mxu0
        %9368 = vmatprep.mubr.bf16.mxu0 0
        %9369 = vmatmul.mubr.bf16.gmra.mrb[0].mxu0 %v9253
        %v9370 = vpop.f32.mrb[0].mxu0
        %v9371 = vadd.f32 0.0, %v9370
        %v9372 = vpop.f32.mrb[0].mxu0
        %v9373 = vpop.f32.mrb[0].mxu0
        %v9374 = vadd.f32 0.0, %v9373
        %v9375 = vpop.f32.mrb[0].mxu0
        %9376 = vmatprep.mubr.bf16.mxu0 0
        %9377 = vmatmul.mubr.bf16.gmra.mrb[0].mxu0 %v9254
        %v9378 = vpop.f32.mrb[0].mxu0
        %v9379 = vadd.f32 0.0, %v9378
        %v9380 = vpop.f32.mrb[0].mxu0
        %v9381 = vpop.f32.mrb[0].mxu0
        %v9382 = vadd.f32 0.0, %v9381
        %v9383 = vpop.f32.mrb[0].mxu0
        %9384 = vdwg.mxu0
        %v9401 = vunpack.c.l.b16 %v9228
        %v9402 = vunpack.c.l.b16 %v9229
        %v9403 = vunpack.c.l.b16 %v9230
        %v9404 = vunpack.c.l.b16 %v9231
        %v9405 = vunpack.c.l.b16 %v9232
        %v9406 = vunpack.c.l.b16 %v9233
        %v9407 = vunpack.c.l.b16 %v9234
        %v9408 = vunpack.c.l.b16 %v9235
        %v9409 = vunpack.c.l.b16 %v9236
        %v9410 = vunpack.c.l.b16 %v9237
        %v9411 = vunpack.c.l.b16 %v9238
        %v9412 = vunpack.c.l.b16 %v9239
        %v9413 = vunpack.c.l.b16 %v9240
        %v9414 = vunpack.c.l.b16 %v9241
        %v9415 = vunpack.c.l.b16 %v9242
        %v9416 = vunpack.c.l.b16 %v9243
        %v9417 = vpack.c.b16 %v9402, %v9401
        %v9418 = vpack.c.b16 %v9404, %v9403
        %v9419 = vpack.c.b16 %v9406, %v9405
        %v9420 = vpack.c.b16 %v9408, %v9407
        %v9421 = vpack.c.b16 %v9410, %v9409
        %v9422 = vpack.c.b16 %v9412, %v9411
        %v9423 = vpack.c.b16 %v9414, %v9413
        %v9424 = vpack.c.b16 %v9416, %v9415
        %9433 = vmatprep.subr.bf16.mxu0 0
        %9434 = vmatpush1.bf16.msra.mxu0 %v9417
        %9435 = vmatprep.subr.bf16.mxu0 0
        %9436 = vmatpush1.bf16.msra.mxu0 %v9418
        %9437 = vmatprep.subr.bf16.mxu0 0
        %9438 = vmatpush1.bf16.msra.mxu0 %v9419
        %9439 = vmatprep.subr.bf16.mxu0 0
        %9440 = vmatpush1.bf16.msra.mxu0 %v9420
        %9441 = vmatprep.subr.bf16.mxu0 0
        %9442 = vmatpush1.bf16.msra.mxu0 %v9421
        %9443 = vmatprep.subr.bf16.mxu0 0
        %9444 = vmatpush1.bf16.msra.mxu0 %v9422
        %9445 = vmatprep.subr.bf16.mxu0 0
        %9446 = vmatpush1.bf16.msra.mxu0 %v9423
        %9447 = vmatprep.subr.bf16.mxu0 0
        %9448 = vmatpush1.bf16.msra.mxu0 %v9424
        %9449 = vmatprep.subr.bf16.mxu0 0
        %9450 = vmatpush1.bf16.msra.mxu0 0
        %9451 = vmatprep.subr.bf16.mxu0 0
        %9452 = vmatpush1.bf16.msra.mxu0 0
        %9453 = vmatprep.subr.bf16.mxu0 0
        %9454 = vmatpush1.bf16.msra.mxu0 0
        %9455 = vmatprep.subr.bf16.mxu0 0
        %9456 = vmatpush1.bf16.msra.mxu0 0
        %9457 = vmatprep.subr.bf16.mxu0 0
        %9458 = vmatpush1.bf16.msra.mxu0 0
        %9459 = vmatprep.subr.bf16.mxu0 0
        %9460 = vmatpush1.bf16.msra.mxu0 0
        %9461 = vmatprep.subr.bf16.mxu0 0
        %9462 = vmatpush1.bf16.msra.mxu0 0
        %9463 = vmatprep.subr.bf16.mxu0 0
        %9464 = vmatpush1.bf16.msra.mxu0 0
        %9465 = vmatprep.mubr.bf16.mxu0 0
        %9466 = vmatmul.mubr.bf16.gmra.mrb[0].mxu0 %v9224
        %v9467 = vpop.f32.mrb[0].mxu0
        %v9468 = vadd.f32 %v9355, %v9467
        %v9469 = vpop.f32.mrb[0].mxu0
        %v9470 = vpop.f32.mrb[0].mxu0
        %v9471 = vadd.f32 %v9358, %v9470
        %v9472 = vpop.f32.mrb[0].mxu0
        %9473 = vmatprep.mubr.bf16.mxu0 0
        %9474 = vmatmul.mubr.bf16.gmra.mrb[0].mxu0 %v9225
        %v9475 = vpop.f32.mrb[0].mxu0
        %v9476 = vadd.f32 %v9363, %v9475
        %v9477 = vpop.f32.mrb[0].mxu0
        %v9478 = vpop.f32.mrb[0].mxu0
        %v9479 = vadd.f32 %v9366, %v9478
        %v9480 = vpop.f32.mrb[0].mxu0
        %9481 = vmatprep.mubr.bf16.mxu0 0
        %9482 = vmatmul.mubr.bf16.gmra.mrb[0].mxu0 %v9226
        %v9483 = vpop.f32.mrb[0].mxu0
        %v9484 = vadd.f32 %v9371, %v9483
        %v9485 = vpop.f32.mrb[0].mxu0
        %v9486 = vpop.f32.mrb[0].mxu0
        %v9487 = vadd.f32 %v9374, %v9486
        %v9488 = vpop.f32.mrb[0].mxu0
        %9489 = vmatprep.mubr.bf16.mxu0 0
        %9490 = vmatmul.mubr.bf16.gmra.mrb[0].mxu0 %v9227
        %v9491 = vpop.f32.mrb[0].mxu0
        %v9492 = vadd.f32 %v9379, %v9491
        %v9493 = vpop.f32.mrb[0].mxu0
        %v9494 = vpop.f32.mrb[0].mxu0
        %v9495 = vadd.f32 %v9382, %v9494
        %v9496 = vpop.f32.mrb[0].mxu0
        %9497 = vdwg.mxu0
        %v9499 = vrot.slane %v9181, 1
        %v9500 = vrot.slane %v9182, 1
        %v9501 = vsel %vm1549, %v9499, %v9500
        %v9502 = vrot.slane %v9183, 1
        %v9503 = vsel %vm1549, %v9500, %v9502
        %v9504 = vrot.slane %v9184, 1
        %v9505 = vsel %vm1549, %v9502, %v9504
        %v9506 = vrot.slane %v9185, 1
        %v9507 = vsel %vm1549, %v9504, %v9506
        %v9508 = vrot.slane %v9186, 1
        %v9509 = vsel %vm1549, %v9506, %v9508
        %v9510 = vrot.slane %v9187, 1
        %v9511 = vsel %vm1549, %v9508, %v9510
        %v9512 = vrot.slane %v9188, 1
        %v9513 = vsel %vm1549, %v9510, %v9512
        %v9522 = vsel %vm1549, 0.0, %v9499
        %v9523 = vsel %vm7976, %v9522, 0.0
        %v9524 = vsel %vm7977, %v9501, 0.0
        %v9525 = vsel %vm7978, %v9503, 0.0
        %v9526 = vsel %vm7979, %v9505, 0.0
        %v9527 = vsel %vm7980, %v9507, 0.0
        %v9528 = vsel %vm7981, %v9509, 0.0
        %v9529 = vsel %vm7982, %v9511, 0.0
        %v9530 = vsel %vm7983, %v9513, 0.0
        %v9531 = vpack.c.bf16 %v9524, %v9523
        %v9532 = vpack.c.bf16 %v9526, %v9525
        %v9533 = vpack.c.bf16 %v9528, %v9527
        %v9534 = vpack.c.bf16 %v9530, %v9529
        %s9535 = scalar_lea.vmem %s7, 128
        %v9536 = vld [vmem:[%s9535] sm:$0xf]
        %v9537 = vld [vmem:[%s9535 + $0x4] sm:$0xf]
        %v9538 = vld [vmem:[%s9535 + $0x8] sm:$0xf]
        %v9539 = vld [vmem:[%s9535 + $0xc] sm:$0xf]
        %v9540 = vld [vmem:[%s9535 + $0x10] sm:$0xf]
        %v9541 = vld [vmem:[%s9535 + $0x14] sm:$0xf]
        %v9542 = vld [vmem:[%s9535 + $0x18] sm:$0xf]
        %v9543 = vld [vmem:[%s9535 + $0x1c] sm:$0xf]
        %v9544 = vld [vmem:[%s9535 + $0x20] sm:$0xf]
        %v9545 = vld [vmem:[%s9535 + $0x24] sm:$0xf]
        %v9546 = vld [vmem:[%s9535 + $0x28] sm:$0xf]
        %v9547 = vld [vmem:[%s9535 + $0x2c] sm:$0xf]
        %v9548 = vld [vmem:[%s9535 + $0x30] sm:$0xf]
        %v9549 = vld [vmem:[%s9535 + $0x34] sm:$0xf]
        %v9550 = vld [vmem:[%s9535 + $0x38] sm:$0xf]
        %v9551 = vld [vmem:[%s9535 + $0x3c] sm:$0xf]
        %v9568 = vunpack.c.l.b16 %v9536
        %v9569 = vunpack.c.l.b16 %v9537
        %v9570 = vunpack.c.l.b16 %v9538
        %v9571 = vunpack.c.l.b16 %v9539
        %v9572 = vunpack.c.l.b16 %v9540
        %v9573 = vunpack.c.l.b16 %v9541
        %v9574 = vunpack.c.l.b16 %v9542
        %v9575 = vunpack.c.l.b16 %v9543
        %v9576 = vunpack.c.l.b16 %v9544
        %v9577 = vunpack.c.l.b16 %v9545
        %v9578 = vunpack.c.l.b16 %v9546
        %v9579 = vunpack.c.l.b16 %v9547
        %v9580 = vunpack.c.l.b16 %v9548
        %v9581 = vunpack.c.l.b16 %v9549
        %v9582 = vunpack.c.l.b16 %v9550
        %v9583 = vunpack.c.l.b16 %v9551
        %v9584 = vpack.c.b16 %v9569, %v9568
        %v9585 = vpack.c.b16 %v9571, %v9570
        %v9586 = vpack.c.b16 %v9573, %v9572
        %v9587 = vpack.c.b16 %v9575, %v9574
        %v9588 = vpack.c.b16 %v9577, %v9576
        %v9589 = vpack.c.b16 %v9579, %v9578
        %v9590 = vpack.c.b16 %v9581, %v9580
        %v9591 = vpack.c.b16 %v9583, %v9582
        %9600 = vmatprep.subr.bf16.mxu0 0
        %9601 = vmatpush1.bf16.msra.mxu0 %v9584
        %9602 = vmatprep.subr.bf16.mxu0 0
        %9603 = vmatpush1.bf16.msra.mxu0 %v9585
        %9604 = vmatprep.subr.bf16.mxu0 0
        %9605 = vmatpush1.bf16.msra.mxu0 %v9586
        %9606 = vmatprep.subr.bf16.mxu0 0
        %9607 = vmatpush1.bf16.msra.mxu0 %v9587
        %9608 = vmatprep.subr.bf16.mxu0 0
        %9609 = vmatpush1.bf16.msra.mxu0 %v9588
        %9610 = vmatprep.subr.bf16.mxu0 0
        %9611 = vmatpush1.bf16.msra.mxu0 %v9589
        %9612 = vmatprep.subr.bf16.mxu0 0
        %9613 = vmatpush1.bf16.msra.mxu0 %v9590
        %9614 = vmatprep.subr.bf16.mxu0 0
        %9615 = vmatpush1.bf16.msra.mxu0 %v9591
        %9616 = vmatprep.subr.bf16.mxu0 0
        %9617 = vmatpush1.bf16.msra.mxu0 0
        %9618 = vmatprep.subr.bf16.mxu0 0
        %9619 = vmatpush1.bf16.msra.mxu0 0
        %9620 = vmatprep.subr.bf16.mxu0 0
        %9621 = vmatpush1.bf16.msra.mxu0 0
        %9622 = vmatprep.subr.bf16.mxu0 0
        %9623 = vmatpush1.bf16.msra.mxu0 0
        %9624 = vmatprep.subr.bf16.mxu0 0
        %9625 = vmatpush1.bf16.msra.mxu0 0
        %9626 = vmatprep.subr.bf16.mxu0 0
        %9627 = vmatpush1.bf16.msra.mxu0 0
        %9628 = vmatprep.subr.bf16.mxu0 0
        %9629 = vmatpush1.bf16.msra.mxu0 0
        %9630 = vmatprep.subr.bf16.mxu0 0
        %9631 = vmatpush1.bf16.msra.mxu0 0
        %9632 = vmatprep.mubr.bf16.mxu0 0
        %9633 = vmatmul.mubr.bf16.gmra.mrb[0].mxu0 %v9531
        %v9634 = vpop.f32.mrb[0].mxu0
        %v9635 = vadd.f32 0.0, %v9634
        %v9636 = vpop.f32.mrb[0].mxu0
        %v9637 = vpop.f32.mrb[0].mxu0
        %v9638 = vadd.f32 0.0, %v9637
        %v9639 = vpop.f32.mrb[0].mxu0
        %9640 = vmatprep.mubr.bf16.mxu0 0
        %9641 = vmatmul.mubr.bf16.gmra.mrb[0].mxu0 %v9532
        %v9642 = vpop.f32.mrb[0].mxu0
        %v9643 = vadd.f32 0.0, %v9642
        %v9644 = vpop.f32.mrb[0].mxu0
        %v9645 = vpop.f32.mrb[0].mxu0
        %v9646 = vadd.f32 0.0, %v9645
        %v9647 = vpop.f32.mrb[0].mxu0
        %9648 = vmatprep.mubr.bf16.mxu0 0
        %9649 = vmatmul.mubr.bf16.gmra.mrb[0].mxu0 %v9533
        %v9650 = vpop.f32.mrb[0].mxu0
        %v9651 = vadd.f32 0.0, %v9650
        %v9652 = vpop.f32.mrb[0].mxu0
        %v9653 = vpop.f32.mrb[0].mxu0
        %v9654 = vadd.f32 0.0, %v9653
        %v9655 = vpop.f32.mrb[0].mxu0
        %9656 = vmatprep.mubr.bf16.mxu0 0
        %9657 = vmatmul.mubr.bf16.gmra.mrb[0].mxu0 %v9534
        %v9658 = vpop.f32.mrb[0].mxu0
        %v9659 = vadd.f32 0.0, %v9658
        %v9660 = vpop.f32.mrb[0].mxu0
        %v9661 = vpop.f32.mrb[0].mxu0
        %v9662 = vadd.f32 0.0, %v9661
        %v9663 = vpop.f32.mrb[0].mxu0
        %9664 = vdwg.mxu0
        %v9665 = vadd.f32 %v9468, %v9635
        %v9666 = vadd.f32 %v9471, %v9638
        %v9667 = vadd.f32 %v9476, %v9643
        %v9668 = vadd.f32 %v9479, %v9646
        %v9669 = vadd.f32 %v9484, %v9651
        %v9670 = vadd.f32 %v9487, %v9654
        %v9671 = vadd.f32 %v9492, %v9659
        %v9672 = vadd.f32 %v9495, %v9662
        %v9673 = vrot.slane %v9188, 7
        %v9674 = vsel %vm727, %v9207, %v9673
        %v9676 = vsel %vm8147, %v9216, 0.0
        %v9677 = vsel %vm8148, %v9198, 0.0
        %v9678 = vsel %vm8149, %v9200, 0.0
        %v9679 = vsel %vm8150, %v9202, 0.0
        %v9680 = vsel %vm8151, %v9204, 0.0
        %v9681 = vsel %vm8152, %v9206, 0.0
        %v9682 = vsel %vm8153, %v9208, 0.0
        %v9683 = vsel %vm8154, %v9674, 0.0
        %v9684 = vpack.c.bf16 %v9677, %v9676
        %v9685 = vpack.c.bf16 %v9679, %v9678
        %v9686 = vpack.c.bf16 %v9681, %v9680
        %v9687 = vpack.c.bf16 %v9683, %v9682
        %s9688 = scalar_lea.vmem %s7, 192
        %v9689 = vld [vmem:[%s9688] sm:$0xf]
        %v9690 = vld [vmem:[%s9688 + $0x4] sm:$0xf]
        %v9691 = vld [vmem:[%s9688 + $0x8] sm:$0xf]
        %v9692 = vld [vmem:[%s9688 + $0xc] sm:$0xf]
        %v9693 = vld [vmem:[%s9688 + $0x10] sm:$0xf]
        %v9694 = vld [vmem:[%s9688 + $0x14] sm:$0xf]
        %v9695 = vld [vmem:[%s9688 + $0x18] sm:$0xf]
        %v9696 = vld [vmem:[%s9688 + $0x1c] sm:$0xf]
        %v9697 = vld [vmem:[%s9688 + $0x20] sm:$0xf]
        %v9698 = vld [vmem:[%s9688 + $0x24] sm:$0xf]
        %v9699 = vld [vmem:[%s9688 + $0x28] sm:$0xf]
        %v9700 = vld [vmem:[%s9688 + $0x2c] sm:$0xf]
        %v9701 = vld [vmem:[%s9688 + $0x30] sm:$0xf]
        %v9702 = vld [vmem:[%s9688 + $0x34] sm:$0xf]
        %v9703 = vld [vmem:[%s9688 + $0x38] sm:$0xf]
        %v9704 = vld [vmem:[%s9688 + $0x3c] sm:$0xf]
        %v9721 = vunpack.c.l.b16 %v9689
        %v9722 = vunpack.c.l.b16 %v9690
        %v9723 = vunpack.c.l.b16 %v9691
        %v9724 = vunpack.c.l.b16 %v9692
        %v9725 = vunpack.c.l.b16 %v9693
        %v9726 = vunpack.c.l.b16 %v9694
        %v9727 = vunpack.c.l.b16 %v9695
        %v9728 = vunpack.c.l.b16 %v9696
        %v9729 = vunpack.c.l.b16 %v9697
        %v9730 = vunpack.c.l.b16 %v9698
        %v9731 = vunpack.c.l.b16 %v9699
        %v9732 = vunpack.c.l.b16 %v9700
        %v9733 = vunpack.c.l.b16 %v9701
        %v9734 = vunpack.c.l.b16 %v9702
        %v9735 = vunpack.c.l.b16 %v9703
        %v9736 = vunpack.c.l.b16 %v9704
        %v9737 = vpack.c.b16 %v9722, %v9721
        %v9738 = vpack.c.b16 %v9724, %v9723
        %v9739 = vpack.c.b16 %v9726, %v9725
        %v9740 = vpack.c.b16 %v9728, %v9727
        %v9741 = vpack.c.b16 %v9730, %v9729
        %v9742 = vpack.c.b16 %v9732, %v9731
        %v9743 = vpack.c.b16 %v9734, %v9733
        %v9744 = vpack.c.b16 %v9736, %v9735
        %9753 = vmatprep.subr.bf16.mxu0 0
        %9754 = vmatpush1.bf16.msra.mxu0 %v9737
        %9755 = vmatprep.subr.bf16.mxu0 0
        %9756 = vmatpush1.bf16.msra.mxu0 %v9738
        %9757 = vmatprep.subr.bf16.mxu0 0
        %9758 = vmatpush1.bf16.msra.mxu0 %v9739
        %9759 = vmatprep.subr.bf16.mxu0 0
        %9760 = vmatpush1.bf16.msra.mxu0 %v9740
        %9761 = vmatprep.subr.bf16.mxu0 0
        %9762 = vmatpush1.bf16.msra.mxu0 %v9741
        %9763 = vmatprep.subr.bf16.mxu0 0
        %9764 = vmatpush1.bf16.msra.mxu0 %v9742
        %9765 = vmatprep.subr.bf16.mxu0 0
        %9766 = vmatpush1.bf16.msra.mxu0 %v9743
        %9767 = vmatprep.subr.bf16.mxu0 0
        %9768 = vmatpush1.bf16.msra.mxu0 %v9744
        %9769 = vmatprep.subr.bf16.mxu0 0
        %9770 = vmatpush1.bf16.msra.mxu0 0
        %9771 = vmatprep.subr.bf16.mxu0 0
        %9772 = vmatpush1.bf16.msra.mxu0 0
        %9773 = vmatprep.subr.bf16.mxu0 0
        %9774 = vmatpush1.bf16.msra.mxu0 0
        %9775 = vmatprep.subr.bf16.mxu0 0
        %9776 = vmatpush1.bf16.msra.mxu0 0
        %9777 = vmatprep.subr.bf16.mxu0 0
        %9778 = vmatpush1.bf16.msra.mxu0 0
        %9779 = vmatprep.subr.bf16.mxu0 0
        %9780 = vmatpush1.bf16.msra.mxu0 0
        %9781 = vmatprep.subr.bf16.mxu0 0
        %9782 = vmatpush1.bf16.msra.mxu0 0
        %9783 = vmatprep.subr.bf16.mxu0 0
        %9784 = vmatpush1.bf16.msra.mxu0 0
        %9785 = vmatprep.mubr.bf16.mxu0 0
        %9786 = vmatmul.mubr.bf16.gmra.mrb[0].mxu0 %v9684
        %v9787 = vpop.f32.mrb[0].mxu0
        %v9788 = vadd.f32 0.0, %v9787
        %v9789 = vpop.f32.mrb[0].mxu0
        %v9790 = vpop.f32.mrb[0].mxu0
        %v9791 = vadd.f32 0.0, %v9790
        %v9792 = vpop.f32.mrb[0].mxu0
        %9793 = vmatprep.mubr.bf16.mxu0 0
        %9794 = vmatmul.mubr.bf16.gmra.mrb[0].mxu0 %v9685
        %v9795 = vpop.f32.mrb[0].mxu0
        %v9796 = vadd.f32 0.0, %v9795
        %v9797 = vpop.f32.mrb[0].mxu0
        %v9798 = vpop.f32.mrb[0].mxu0
        %v9799 = vadd.f32 0.0, %v9798
        %v9800 = vpop.f32.mrb[0].mxu0
        %9801 = vmatprep.mubr.bf16.mxu0 0
        %9802 = vmatmul.mubr.bf16.gmra.mrb[0].mxu0 %v9686
        %v9803 = vpop.f32.mrb[0].mxu0
        %v9804 = vadd.f32 0.0, %v9803
        %v9805 = vpop.f32.mrb[0].mxu0
        %v9806 = vpop.f32.mrb[0].mxu0
        %v9807 = vadd.f32 0.0, %v9806
        %v9808 = vpop.f32.mrb[0].mxu0
        %9809 = vmatprep.mubr.bf16.mxu0 0
        %9810 = vmatmul.mubr.bf16.gmra.mrb[0].mxu0 %v9687
        %v9811 = vpop.f32.mrb[0].mxu0
        %v9812 = vadd.f32 0.0, %v9811
        %v9813 = vpop.f32.mrb[0].mxu0
        %v9814 = vpop.f32.mrb[0].mxu0
        %v9815 = vadd.f32 0.0, %v9814
        %v9816 = vpop.f32.mrb[0].mxu0
        %9817 = vdwg.mxu0
        %v9818 = vadd.f32 %v9665, %v9788
        %v9819 = vadd.f32 %v9666, %v9791
        %v9820 = vadd.f32 %v9667, %v9796
        %v9821 = vadd.f32 %v9668, %v9799
        %v9822 = vadd.f32 %v9669, %v9804
        %v9823 = vadd.f32 %v9670, %v9807
        %v9824 = vadd.f32 %v9671, %v9812
        %v9825 = vadd.f32 %v9672, %v9815
        %v9826 = vpack.c.bf16 %v9182, %v9181
        %v9827 = vpack.c.bf16 %v9184, %v9183
        %v9828 = vpack.c.bf16 %v9186, %v9185
        %v9829 = vpack.c.bf16 %v9188, %v9187
        %s9830 = scalar_lea.vmem %s7, 256
        %v9831 = vld [vmem:[%s9830] sm:$0xf]
        %v9832 = vld [vmem:[%s9830 + $0x4] sm:$0xf]
        %v9833 = vld [vmem:[%s9830 + $0x8] sm:$0xf]
        %v9834 = vld [vmem:[%s9830 + $0xc] sm:$0xf]
        %v9835 = vld [vmem:[%s9830 + $0x10] sm:$0xf]
        %v9836 = vld [vmem:[%s9830 + $0x14] sm:$0xf]
        %v9837 = vld [vmem:[%s9830 + $0x18] sm:$0xf]
        %v9838 = vld [vmem:[%s9830 + $0x1c] sm:$0xf]
        %v9839 = vld [vmem:[%s9830 + $0x20] sm:$0xf]
        %v9840 = vld [vmem:[%s9830 + $0x24] sm:$0xf]
        %v9841 = vld [vmem:[%s9830 + $0x28] sm:$0xf]
        %v9842 = vld [vmem:[%s9830 + $0x2c] sm:$0xf]
        %v9843 = vld [vmem:[%s9830 + $0x30] sm:$0xf]
        %v9844 = vld [vmem:[%s9830 + $0x34] sm:$0xf]
        %v9845 = vld [vmem:[%s9830 + $0x38] sm:$0xf]
        %v9846 = vld [vmem:[%s9830 + $0x3c] sm:$0xf]
        %v9863 = vunpack.c.l.b16 %v9831
        %v9864 = vunpack.c.l.b16 %v9832
        %v9865 = vunpack.c.l.b16 %v9833
        %v9866 = vunpack.c.l.b16 %v9834
        %v9867 = vunpack.c.l.b16 %v9835
        %v9868 = vunpack.c.l.b16 %v9836
        %v9869 = vunpack.c.l.b16 %v9837
        %v9870 = vunpack.c.l.b16 %v9838
        %v9871 = vunpack.c.l.b16 %v9839
        %v9872 = vunpack.c.l.b16 %v9840
        %v9873 = vunpack.c.l.b16 %v9841
        %v9874 = vunpack.c.l.b16 %v9842
        %v9875 = vunpack.c.l.b16 %v9843
        %v9876 = vunpack.c.l.b16 %v9844
        %v9877 = vunpack.c.l.b16 %v9845
        %v9878 = vunpack.c.l.b16 %v9846
        %v9879 = vpack.c.b16 %v9864, %v9863
        %v9880 = vpack.c.b16 %v9866, %v9865
        %v9881 = vpack.c.b16 %v9868, %v9867
        %v9882 = vpack.c.b16 %v9870, %v9869
        %v9883 = vpack.c.b16 %v9872, %v9871
        %v9884 = vpack.c.b16 %v9874, %v9873
        %v9885 = vpack.c.b16 %v9876, %v9875
        %v9886 = vpack.c.b16 %v9878, %v9877
        %9895 = vmatprep.subr.bf16.mxu0 0
        %9896 = vmatpush1.bf16.msra.mxu0 %v9879
        %9897 = vmatprep.subr.bf16.mxu0 0
        %9898 = vmatpush1.bf16.msra.mxu0 %v9880
        %9899 = vmatprep.subr.bf16.mxu0 0
        %9900 = vmatpush1.bf16.msra.mxu0 %v9881
        %9901 = vmatprep.subr.bf16.mxu0 0
        %9902 = vmatpush1.bf16.msra.mxu0 %v9882
        %9903 = vmatprep.subr.bf16.mxu0 0
        %9904 = vmatpush1.bf16.msra.mxu0 %v9883
        %9905 = vmatprep.subr.bf16.mxu0 0
        %9906 = vmatpush1.bf16.msra.mxu0 %v9884
        %9907 = vmatprep.subr.bf16.mxu0 0
        %9908 = vmatpush1.bf16.msra.mxu0 %v9885
        %9909 = vmatprep.subr.bf16.mxu0 0
        %9910 = vmatpush1.bf16.msra.mxu0 %v9886
        %9911 = vmatprep.subr.bf16.mxu0 0
        %9912 = vmatpush1.bf16.msra.mxu0 0
        %9913 = vmatprep.subr.bf16.mxu0 0
        %9914 = vmatpush1.bf16.msra.mxu0 0
        %9915 = vmatprep.subr.bf16.mxu0 0
        %9916 = vmatpush1.bf16.msra.mxu0 0
        %9917 = vmatprep.subr.bf16.mxu0 0
        %9918 = vmatpush1.bf16.msra.mxu0 0
        %9919 = vmatprep.subr.bf16.mxu0 0
        %9920 = vmatpush1.bf16.msra.mxu0 0
        %9921 = vmatprep.subr.bf16.mxu0 0
        %9922 = vmatpush1.bf16.msra.mxu0 0
        %9923 = vmatprep.subr.bf16.mxu0 0
        %9924 = vmatpush1.bf16.msra.mxu0 0
        %9925 = vmatprep.subr.bf16.mxu0 0
        %9926 = vmatpush1.bf16.msra.mxu0 0
        %9927 = vmatprep.mubr.bf16.mxu0 0
        %9928 = vmatmul.mubr.bf16.gmra.mrb[0].mxu0 %v9826
        %v9929 = vpop.f32.mrb[0].mxu0
        %v9930 = vadd.f32 0.0, %v9929
        %v9931 = vpop.f32.mrb[0].mxu0
        %v9932 = vpop.f32.mrb[0].mxu0
        %v9933 = vadd.f32 0.0, %v9932
        %v9934 = vpop.f32.mrb[0].mxu0
        %9935 = vmatprep.mubr.bf16.mxu0 0
        %9936 = vmatmul.mubr.bf16.gmra.mrb[0].mxu0 %v9827
        %v9937 = vpop.f32.mrb[0].mxu0
        %v9938 = vadd.f32 0.0, %v9937
        %v9939 = vpop.f32.mrb[0].mxu0
        %v9940 = vpop.f32.mrb[0].mxu0
        %v9941 = vadd.f32 0.0, %v9940
        %v9942 = vpop.f32.mrb[0].mxu0
        %9943 = vmatprep.mubr.bf16.mxu0 0
        %9944 = vmatmul.mubr.bf16.gmra.mrb[0].mxu0 %v9828
        %v9945 = vpop.f32.mrb[0].mxu0
        %v9946 = vadd.f32 0.0, %v9945
        %v9947 = vpop.f32.mrb[0].mxu0
        %v9948 = vpop.f32.mrb[0].mxu0
        %v9949 = vadd.f32 0.0, %v9948
        %v9950 = vpop.f32.mrb[0].mxu0
        %9951 = vmatprep.mubr.bf16.mxu0 0
        %9952 = vmatmul.mubr.bf16.gmra.mrb[0].mxu0 %v9829
        %v9953 = vpop.f32.mrb[0].mxu0
        %v9954 = vadd.f32 0.0, %v9953
        %v9955 = vpop.f32.mrb[0].mxu0
        %v9956 = vpop.f32.mrb[0].mxu0
        %v9957 = vadd.f32 0.0, %v9956
        %v9958 = vpop.f32.mrb[0].mxu0
        %9959 = vdwg.mxu0
        %v9960 = vadd.f32 %v9818, %v9930
        %v9961 = vadd.f32 %v9819, %v9933
        %v9962 = vadd.f32 %v9820, %v9938
        %v9963 = vadd.f32 %v9821, %v9941
        %v9964 = vadd.f32 %v9822, %v9946
        %v9965 = vadd.f32 %v9823, %v9949
        %v9966 = vadd.f32 %v9824, %v9954
        %v9967 = vadd.f32 %v9825, %v9957
        %v9969 = vsel %vm1549, %v9512, 0.0
        %v9970 = vsel %vm8461, %v9501, 0.0
        %v9971 = vsel %vm8462, %v9503, 0.0
        %v9972 = vsel %vm8463, %v9505, 0.0
        %v9973 = vsel %vm8464, %v9507, 0.0
        %v9974 = vsel %vm8465, %v9509, 0.0
        %v9975 = vsel %vm8466, %v9511, 0.0
        %v9976 = vsel %vm8467, %v9513, 0.0
        %v9977 = vsel %vm8468, %v9969, 0.0
        %v9978 = vpack.c.bf16 %v9971, %v9970
        %v9979 = vpack.c.bf16 %v9973, %v9972
        %v9980 = vpack.c.bf16 %v9975, %v9974
        %v9981 = vpack.c.bf16 %v9977, %v9976
        %s9982 = scalar_lea.vmem %s7, 320
        %v9983 = vld [vmem:[%s9982] sm:$0xf]
        %v9984 = vld [vmem:[%s9982 + $0x4] sm:$0xf]
        %v9985 = vld [vmem:[%s9982 + $0x8] sm:$0xf]
        %v9986 = vld [vmem:[%s9982 + $0xc] sm:$0xf]
        %v9987 = vld [vmem:[%s9982 + $0x10] sm:$0xf]
        %v9988 = vld [vmem:[%s9982 + $0x14] sm:$0xf]
        %v9989 = vld [vmem:[%s9982 + $0x18] sm:$0xf]
        %v9990 = vld [vmem:[%s9982 + $0x1c] sm:$0xf]
        %v9991 = vld [vmem:[%s9982 + $0x20] sm:$0xf]
        %v9992 = vld [vmem:[%s9982 + $0x24] sm:$0xf]
        %v9993 = vld [vmem:[%s9982 + $0x28] sm:$0xf]
        %v9994 = vld [vmem:[%s9982 + $0x2c] sm:$0xf]
        %v9995 = vld [vmem:[%s9982 + $0x30] sm:$0xf]
        %v9996 = vld [vmem:[%s9982 + $0x34] sm:$0xf]
        %v9997 = vld [vmem:[%s9982 + $0x38] sm:$0xf]
        %v9998 = vld [vmem:[%s9982 + $0x3c] sm:$0xf]
        %v10015 = vunpack.c.l.b16 %v9983
        %v10016 = vunpack.c.l.b16 %v9984
        %v10017 = vunpack.c.l.b16 %v9985
        %v10018 = vunpack.c.l.b16 %v9986
        %v10019 = vunpack.c.l.b16 %v9987
        %v10020 = vunpack.c.l.b16 %v9988
        %v10021 = vunpack.c.l.b16 %v9989
        %v10022 = vunpack.c.l.b16 %v9990
        %v10023 = vunpack.c.l.b16 %v9991
        %v10024 = vunpack.c.l.b16 %v9992
        %v10025 = vunpack.c.l.b16 %v9993
        %v10026 = vunpack.c.l.b16 %v9994
        %v10027 = vunpack.c.l.b16 %v9995
        %v10028 = vunpack.c.l.b16 %v9996
        %v10029 = vunpack.c.l.b16 %v9997
        %v10030 = vunpack.c.l.b16 %v9998
        %v10031 = vpack.c.b16 %v10016, %v10015
        %v10032 = vpack.c.b16 %v10018, %v10017
        %v10033 = vpack.c.b16 %v10020, %v10019
        %v10034 = vpack.c.b16 %v10022, %v10021
        %v10035 = vpack.c.b16 %v10024, %v10023
        %v10036 = vpack.c.b16 %v10026, %v10025
        %v10037 = vpack.c.b16 %v10028, %v10027
        %v10038 = vpack.c.b16 %v10030, %v10029
        %10047 = vmatprep.subr.bf16.mxu0 0
        %10048 = vmatpush1.bf16.msra.mxu0 %v10031
        %10049 = vmatprep.subr.bf16.mxu0 0
        %10050 = vmatpush1.bf16.msra.mxu0 %v10032
        %10051 = vmatprep.subr.bf16.mxu0 0
        %10052 = vmatpush1.bf16.msra.mxu0 %v10033
        %10053 = vmatprep.subr.bf16.mxu0 0
        %10054 = vmatpush1.bf16.msra.mxu0 %v10034
        %10055 = vmatprep.subr.bf16.mxu0 0
        %10056 = vmatpush1.bf16.msra.mxu0 %v10035
        %10057 = vmatprep.subr.bf16.mxu0 0
        %10058 = vmatpush1.bf16.msra.mxu0 %v10036
        %10059 = vmatprep.subr.bf16.mxu0 0
        %10060 = vmatpush1.bf16.msra.mxu0 %v10037
        %10061 = vmatprep.subr.bf16.mxu0 0
        %10062 = vmatpush1.bf16.msra.mxu0 %v10038
        %10063 = vmatprep.subr.bf16.mxu0 0
        %10064 = vmatpush1.bf16.msra.mxu0 0
        %10065 = vmatprep.subr.bf16.mxu0 0
        %10066 = vmatpush1.bf16.msra.mxu0 0
        %10067 = vmatprep.subr.bf16.mxu0 0
        %10068 = vmatpush1.bf16.msra.mxu0 0
        %10069 = vmatprep.subr.bf16.mxu0 0
        %10070 = vmatpush1.bf16.msra.mxu0 0
        %10071 = vmatprep.subr.bf16.mxu0 0
        %10072 = vmatpush1.bf16.msra.mxu0 0
        %10073 = vmatprep.subr.bf16.mxu0 0
        %10074 = vmatpush1.bf16.msra.mxu0 0
        %10075 = vmatprep.subr.bf16.mxu0 0
        %10076 = vmatpush1.bf16.msra.mxu0 0
        %10077 = vmatprep.subr.bf16.mxu0 0
        %10078 = vmatpush1.bf16.msra.mxu0 0
        %10079 = vmatprep.mubr.bf16.mxu0 0
        %10080 = vmatmul.mubr.bf16.gmra.mrb[0].mxu0 %v9978
        %v10081 = vpop.f32.mrb[0].mxu0
        %v10082 = vadd.f32 0.0, %v10081
        %v10083 = vpop.f32.mrb[0].mxu0
        %v10084 = vpop.f32.mrb[0].mxu0
        %v10085 = vadd.f32 0.0, %v10084
        %v10086 = vpop.f32.mrb[0].mxu0
        %10087 = vmatprep.mubr.bf16.mxu0 0
        %10088 = vmatmul.mubr.bf16.gmra.mrb[0].mxu0 %v9979
        %v10089 = vpop.f32.mrb[0].mxu0
        %v10090 = vadd.f32 0.0, %v10089
        %v10091 = vpop.f32.mrb[0].mxu0
        %v10092 = vpop.f32.mrb[0].mxu0
        %v10093 = vadd.f32 0.0, %v10092
        %v10094 = vpop.f32.mrb[0].mxu0
        %10095 = vmatprep.mubr.bf16.mxu0 0
        %10096 = vmatmul.mubr.bf16.gmra.mrb[0].mxu0 %v9980
        %v10097 = vpop.f32.mrb[0].mxu0
        %v10098 = vadd.f32 0.0, %v10097
        %v10099 = vpop.f32.mrb[0].mxu0
        %v10100 = vpop.f32.mrb[0].mxu0
        %v10101 = vadd.f32 0.0, %v10100
        %v10102 = vpop.f32.mrb[0].mxu0
        %10103 = vmatprep.mubr.bf16.mxu0 0
        %10104 = vmatmul.mubr.bf16.gmra.mrb[0].mxu0 %v9981
        %v10105 = vpop.f32.mrb[0].mxu0
        %v10106 = vadd.f32 0.0, %v10105
        %v10107 = vpop.f32.mrb[0].mxu0
        %v10108 = vpop.f32.mrb[0].mxu0
        %v10109 = vadd.f32 0.0, %v10108
        %v10110 = vpop.f32.mrb[0].mxu0
        %10111 = vdwg.mxu0
        %v10112 = vadd.f32 %v9960, %v10082
        %v10113 = vadd.f32 %v9961, %v10085
        %v10114 = vadd.f32 %v9962, %v10090
        %v10115 = vadd.f32 %v9963, %v10093
        %v10116 = vadd.f32 %v9964, %v10098
        %v10117 = vadd.f32 %v9965, %v10101
        %v10118 = vadd.f32 %v9966, %v10106
        %v10119 = vadd.f32 %v9967, %v10109
        %v10121 = vsel %vm727, %v9673, 0.0
        %v10122 = vsel %vm8675, %v9198, 0.0
        %v10123 = vsel %vm8676, %v9200, 0.0
        %v10124 = vsel %vm8677, %v9202, 0.0
        %v10125 = vsel %vm8678, %v9204, 0.0
        %v10126 = vsel %vm8679, %v9206, 0.0
        %v10127 = vsel %vm8680, %v9208, 0.0
        %v10128 = vsel %vm8681, %v9674, 0.0
        %v10129 = vsel %vm8682, %v10121, 0.0
        %v10130 = vpack.c.bf16 %v10123, %v10122
        %v10131 = vpack.c.bf16 %v10125, %v10124
        %v10132 = vpack.c.bf16 %v10127, %v10126
        %v10133 = vpack.c.bf16 %v10129, %v10128
        %s10134 = scalar_lea.vmem %s7, 384
        %v10135 = vld [vmem:[%s10134] sm:$0xf]
        %v10136 = vld [vmem:[%s10134 + $0x4] sm:$0xf]
        %v10137 = vld [vmem:[%s10134 + $0x8] sm:$0xf]
        %v10138 = vld [vmem:[%s10134 + $0xc] sm:$0xf]
        %v10139 = vld [vmem:[%s10134 + $0x10] sm:$0xf]
        %v10140 = vld [vmem:[%s10134 + $0x14] sm:$0xf]
        %v10141 = vld [vmem:[%s10134 + $0x18] sm:$0xf]
        %v10142 = vld [vmem:[%s10134 + $0x1c] sm:$0xf]
        %v10143 = vld [vmem:[%s10134 + $0x20] sm:$0xf]
        %v10144 = vld [vmem:[%s10134 + $0x24] sm:$0xf]
        %v10145 = vld [vmem:[%s10134 + $0x28] sm:$0xf]
        %v10146 = vld [vmem:[%s10134 + $0x2c] sm:$0xf]
        %v10147 = vld [vmem:[%s10134 + $0x30] sm:$0xf]
        %v10148 = vld [vmem:[%s10134 + $0x34] sm:$0xf]
        %v10149 = vld [vmem:[%s10134 + $0x38] sm:$0xf]
        %v10150 = vld [vmem:[%s10134 + $0x3c] sm:$0xf]
        %v10167 = vunpack.c.l.b16 %v10135
        %v10168 = vunpack.c.l.b16 %v10136
        %v10169 = vunpack.c.l.b16 %v10137
        %v10170 = vunpack.c.l.b16 %v10138
        %v10171 = vunpack.c.l.b16 %v10139
        %v10172 = vunpack.c.l.b16 %v10140
        %v10173 = vunpack.c.l.b16 %v10141
        %v10174 = vunpack.c.l.b16 %v10142
        %v10175 = vunpack.c.l.b16 %v10143
        %v10176 = vunpack.c.l.b16 %v10144
        %v10177 = vunpack.c.l.b16 %v10145
        %v10178 = vunpack.c.l.b16 %v10146
        %v10179 = vunpack.c.l.b16 %v10147
        %v10180 = vunpack.c.l.b16 %v10148
        %v10181 = vunpack.c.l.b16 %v10149
        %v10182 = vunpack.c.l.b16 %v10150
        %v10183 = vpack.c.b16 %v10168, %v10167
        %v10184 = vpack.c.b16 %v10170, %v10169
        %v10185 = vpack.c.b16 %v10172, %v10171
        %v10186 = vpack.c.b16 %v10174, %v10173
        %v10187 = vpack.c.b16 %v10176, %v10175
        %v10188 = vpack.c.b16 %v10178, %v10177
        %v10189 = vpack.c.b16 %v10180, %v10179
        %v10190 = vpack.c.b16 %v10182, %v10181
        %10199 = vmatprep.subr.bf16.mxu0 0
        %10200 = vmatpush1.bf16.msra.mxu0 %v10183
        %10201 = vmatprep.subr.bf16.mxu0 0
        %10202 = vmatpush1.bf16.msra.mxu0 %v10184
        %10203 = vmatprep.subr.bf16.mxu0 0
        %10204 = vmatpush1.bf16.msra.mxu0 %v10185
        %10205 = vmatprep.subr.bf16.mxu0 0
        %10206 = vmatpush1.bf16.msra.mxu0 %v10186
        %10207 = vmatprep.subr.bf16.mxu0 0
        %10208 = vmatpush1.bf16.msra.mxu0 %v10187
        %10209 = vmatprep.subr.bf16.mxu0 0
        %10210 = vmatpush1.bf16.msra.mxu0 %v10188
        %10211 = vmatprep.subr.bf16.mxu0 0
        %10212 = vmatpush1.bf16.msra.mxu0 %v10189
        %10213 = vmatprep.subr.bf16.mxu0 0
        %10214 = vmatpush1.bf16.msra.mxu0 %v10190
        %10215 = vmatprep.subr.bf16.mxu0 0
        %10216 = vmatpush1.bf16.msra.mxu0 0
        %10217 = vmatprep.subr.bf16.mxu0 0
        %10218 = vmatpush1.bf16.msra.mxu0 0
        %10219 = vmatprep.subr.bf16.mxu0 0
        %10220 = vmatpush1.bf16.msra.mxu0 0
        %10221 = vmatprep.subr.bf16.mxu0 0
        %10222 = vmatpush1.bf16.msra.mxu0 0
        %10223 = vmatprep.subr.bf16.mxu0 0
        %10224 = vmatpush1.bf16.msra.mxu0 0
        %10225 = vmatprep.subr.bf16.mxu0 0
        %10226 = vmatpush1.bf16.msra.mxu0 0
        %10227 = vmatprep.subr.bf16.mxu0 0
        %10228 = vmatpush1.bf16.msra.mxu0 0
        %10229 = vmatprep.subr.bf16.mxu0 0
        %10230 = vmatpush1.bf16.msra.mxu0 0
        %10231 = vmatprep.mubr.bf16.mxu0 0
        %10232 = vmatmul.mubr.bf16.gmra.mrb[0].mxu0 %v10130
        %v10233 = vpop.f32.mrb[0].mxu0
        %v10234 = vadd.f32 0.0, %v10233
        %v10235 = vpop.f32.mrb[0].mxu0
        %v10236 = vpop.f32.mrb[0].mxu0
        %v10237 = vadd.f32 0.0, %v10236
        %v10238 = vpop.f32.mrb[0].mxu0
        %10239 = vmatprep.mubr.bf16.mxu0 0
        %10240 = vmatmul.mubr.bf16.gmra.mrb[0].mxu0 %v10131
        %v10241 = vpop.f32.mrb[0].mxu0
        %v10242 = vadd.f32 0.0, %v10241
        %v10243 = vpop.f32.mrb[0].mxu0
        %v10244 = vpop.f32.mrb[0].mxu0
        %v10245 = vadd.f32 0.0, %v10244
        %v10246 = vpop.f32.mrb[0].mxu0
        %10247 = vmatprep.mubr.bf16.mxu0 0
        %10248 = vmatmul.mubr.bf16.gmra.mrb[0].mxu0 %v10132
        %v10249 = vpop.f32.mrb[0].mxu0
        %v10250 = vadd.f32 0.0, %v10249
        %v10251 = vpop.f32.mrb[0].mxu0
        %v10252 = vpop.f32.mrb[0].mxu0
        %v10253 = vadd.f32 0.0, %v10252
        %v10254 = vpop.f32.mrb[0].mxu0
        %10255 = vmatprep.mubr.bf16.mxu0 0
        %10256 = vmatmul.mubr.bf16.gmra.mrb[0].mxu0 %v10133
        %v10257 = vpop.f32.mrb[0].mxu0
        %v10258 = vadd.f32 0.0, %v10257
        %v10259 = vpop.f32.mrb[0].mxu0
        %v10260 = vpop.f32.mrb[0].mxu0
        %v10261 = vadd.f32 0.0, %v10260
        %v10262 = vpop.f32.mrb[0].mxu0
        %10263 = vdwg.mxu0
        %v10264 = vadd.f32 %v10112, %v10234
        %v10265 = vadd.f32 %v10113, %v10237
        %v10266 = vadd.f32 %v10114, %v10242
        %v10267 = vadd.f32 %v10115, %v10245
        %v10268 = vadd.f32 %v10116, %v10250
        %v10269 = vadd.f32 %v10117, %v10253
        %v10270 = vadd.f32 %v10118, %v10258
        %v10271 = vadd.f32 %v10119, %v10261
        %v10272 = vsel %vm8840, %v9182, 0.0
        %v10273 = vsel %vm8841, %v9183, 0.0
        %v10274 = vsel %vm8842, %v9184, 0.0
        %v10275 = vsel %vm8843, %v9185, 0.0
        %v10276 = vsel %vm8844, %v9186, 0.0
        %v10277 = vsel %vm8845, %v9187, 0.0
        %v10278 = vsel %vm8846, %v9188, 0.0
        %v10279 = vpack.c.bf16 %v10273, %v10272
        %v10280 = vpack.c.bf16 %v10275, %v10274
        %v10281 = vpack.c.bf16 %v10277, %v10276
        %v10282 = vpack.c.bf16 0.0, %v10278
        %s10283 = scalar_lea.vmem %s7, 448
        %v10284 = vld [vmem:[%s10283] sm:$0xf]
        %v10285 = vld [vmem:[%s10283 + $0x4] sm:$0xf]
        %v10286 = vld [vmem:[%s10283 + $0x8] sm:$0xf]
        %v10287 = vld [vmem:[%s10283 + $0xc] sm:$0xf]
        %v10288 = vld [vmem:[%s10283 + $0x10] sm:$0xf]
        %v10289 = vld [vmem:[%s10283 + $0x14] sm:$0xf]
        %v10290 = vld [vmem:[%s10283 + $0x18] sm:$0xf]
        %v10291 = vld [vmem:[%s10283 + $0x1c] sm:$0xf]
        %v10292 = vld [vmem:[%s10283 + $0x20] sm:$0xf]
        %v10293 = vld [vmem:[%s10283 + $0x24] sm:$0xf]
        %v10294 = vld [vmem:[%s10283 + $0x28] sm:$0xf]
        %v10295 = vld [vmem:[%s10283 + $0x2c] sm:$0xf]
        %v10296 = vld [vmem:[%s10283 + $0x30] sm:$0xf]
        %v10297 = vld [vmem:[%s10283 + $0x34] sm:$0xf]
        %v10298 = vld [vmem:[%s10283 + $0x38] sm:$0xf]
        %v10299 = vld [vmem:[%s10283 + $0x3c] sm:$0xf]
        %v10316 = vunpack.c.l.b16 %v10284
        %v10317 = vunpack.c.l.b16 %v10285
        %v10318 = vunpack.c.l.b16 %v10286
        %v10319 = vunpack.c.l.b16 %v10287
        %v10320 = vunpack.c.l.b16 %v10288
        %v10321 = vunpack.c.l.b16 %v10289
        %v10322 = vunpack.c.l.b16 %v10290
        %v10323 = vunpack.c.l.b16 %v10291
        %v10324 = vunpack.c.l.b16 %v10292
        %v10325 = vunpack.c.l.b16 %v10293
        %v10326 = vunpack.c.l.b16 %v10294
        %v10327 = vunpack.c.l.b16 %v10295
        %v10328 = vunpack.c.l.b16 %v10296
        %v10329 = vunpack.c.l.b16 %v10297
        %v10330 = vunpack.c.l.b16 %v10298
        %v10331 = vunpack.c.l.b16 %v10299
        %v10332 = vpack.c.b16 %v10317, %v10316
        %v10333 = vpack.c.b16 %v10319, %v10318
        %v10334 = vpack.c.b16 %v10321, %v10320
        %v10335 = vpack.c.b16 %v10323, %v10322
        %v10336 = vpack.c.b16 %v10325, %v10324
        %v10337 = vpack.c.b16 %v10327, %v10326
        %v10338 = vpack.c.b16 %v10329, %v10328
        %v10339 = vpack.c.b16 %v10331, %v10330
        %10348 = vmatprep.subr.bf16.mxu0 0
        %10349 = vmatpush1.bf16.msra.mxu0 %v10332
        %10350 = vmatprep.subr.bf16.mxu0 0
        %10351 = vmatpush1.bf16.msra.mxu0 %v10333
        %10352 = vmatprep.subr.bf16.mxu0 0
        %10353 = vmatpush1.bf16.msra.mxu0 %v10334
        %10354 = vmatprep.subr.bf16.mxu0 0
        %10355 = vmatpush1.bf16.msra.mxu0 %v10335
        %10356 = vmatprep.subr.bf16.mxu0 0
        %10357 = vmatpush1.bf16.msra.mxu0 %v10336
        %10358 = vmatprep.subr.bf16.mxu0 0
        %10359 = vmatpush1.bf16.msra.mxu0 %v10337
        %10360 = vmatprep.subr.bf16.mxu0 0
        %10361 = vmatpush1.bf16.msra.mxu0 %v10338
        %10362 = vmatprep.subr.bf16.mxu0 0
        %10363 = vmatpush1.bf16.msra.mxu0 %v10339
        %10364 = vmatprep.subr.bf16.mxu0 0
        %10365 = vmatpush1.bf16.msra.mxu0 0
        %10366 = vmatprep.subr.bf16.mxu0 0
        %10367 = vmatpush1.bf16.msra.mxu0 0
        %10368 = vmatprep.subr.bf16.mxu0 0
        %10369 = vmatpush1.bf16.msra.mxu0 0
        %10370 = vmatprep.subr.bf16.mxu0 0
        %10371 = vmatpush1.bf16.msra.mxu0 0
        %10372 = vmatprep.subr.bf16.mxu0 0
        %10373 = vmatpush1.bf16.msra.mxu0 0
        %10374 = vmatprep.subr.bf16.mxu0 0
        %10375 = vmatpush1.bf16.msra.mxu0 0
        %10376 = vmatprep.subr.bf16.mxu0 0
        %10377 = vmatpush1.bf16.msra.mxu0 0
        %10378 = vmatprep.subr.bf16.mxu0 0
        %10379 = vmatpush1.bf16.msra.mxu0 0
        %10380 = vmatprep.mubr.bf16.mxu0 0
        %10381 = vmatmul.mubr.bf16.gmra.mrb[0].mxu0 %v10279
        %v10382 = vpop.f32.mrb[0].mxu0
        %v10383 = vadd.f32 0.0, %v10382
        %v10384 = vpop.f32.mrb[0].mxu0
        %v10385 = vpop.f32.mrb[0].mxu0
        %v10386 = vadd.f32 0.0, %v10385
        %v10387 = vpop.f32.mrb[0].mxu0
        %10388 = vmatprep.mubr.bf16.mxu0 0
        %10389 = vmatmul.mubr.bf16.gmra.mrb[0].mxu0 %v10280
        %v10390 = vpop.f32.mrb[0].mxu0
        %v10391 = vadd.f32 0.0, %v10390
        %v10392 = vpop.f32.mrb[0].mxu0
        %v10393 = vpop.f32.mrb[0].mxu0
        %v10394 = vadd.f32 0.0, %v10393
        %v10395 = vpop.f32.mrb[0].mxu0
        %10396 = vmatprep.mubr.bf16.mxu0 0
        %10397 = vmatmul.mubr.bf16.gmra.mrb[0].mxu0 %v10281
        %v10398 = vpop.f32.mrb[0].mxu0
        %v10399 = vadd.f32 0.0, %v10398
        %v10400 = vpop.f32.mrb[0].mxu0
        %v10401 = vpop.f32.mrb[0].mxu0
        %v10402 = vadd.f32 0.0, %v10401
        %v10403 = vpop.f32.mrb[0].mxu0
        %10404 = vmatprep.mubr.bf16.mxu0 0
        %10405 = vmatmul.mubr.bf16.gmra.mrb[0].mxu0 %v10282
        %v10406 = vpop.f32.mrb[0].mxu0
        %v10407 = vadd.f32 0.0, %v10406
        %v10408 = vpop.f32.mrb[0].mxu0
        %v10409 = vpop.f32.mrb[0].mxu0
        %v10410 = vadd.f32 0.0, %v10409
        %v10411 = vpop.f32.mrb[0].mxu0
        %10412 = vdwg.mxu0
        %v10413 = vadd.f32 %v10264, %v10383
        %v10414 = vadd.f32 %v10265, %v10386
        %v10415 = vadd.f32 %v10266, %v10391
        %v10416 = vadd.f32 %v10267, %v10394
        %v10417 = vadd.f32 %v10268, %v10399
        %v10418 = vadd.f32 %v10269, %v10402
        %v10419 = vadd.f32 %v10270, %v10407
        %v10420 = vadd.f32 %v10271, %v10410
        %v10421 = vsel %vm9010, %v9503, 0.0
        %v10422 = vsel %vm9011, %v9505, 0.0
        %v10423 = vsel %vm9012, %v9507, 0.0
        %v10424 = vsel %vm9013, %v9509, 0.0
        %v10425 = vsel %vm9014, %v9511, 0.0
        %v10426 = vsel %vm9015, %v9513, 0.0
        %v10427 = vsel %vm9016, %v9969, 0.0
        %v10428 = vpack.c.bf16 %v10422, %v10421
        %v10429 = vpack.c.bf16 %v10424, %v10423
        %v10430 = vpack.c.bf16 %v10426, %v10425
        %v10431 = vpack.c.bf16 0.0, %v10427
        %s10432 = scalar_lea.vmem %s7, 512
        %v10433 = vld [vmem:[%s10432] sm:$0xf]
        %v10434 = vld [vmem:[%s10432 + $0x4] sm:$0xf]
        %v10435 = vld [vmem:[%s10432 + $0x8] sm:$0xf]
        %v10436 = vld [vmem:[%s10432 + $0xc] sm:$0xf]
        %v10437 = vld [vmem:[%s10432 + $0x10] sm:$0xf]
        %v10438 = vld [vmem:[%s10432 + $0x14] sm:$0xf]
        %v10439 = vld [vmem:[%s10432 + $0x18] sm:$0xf]
        %v10440 = vld [vmem:[%s10432 + $0x1c] sm:$0xf]
        %v10441 = vld [vmem:[%s10432 + $0x20] sm:$0xf]
        %v10442 = vld [vmem:[%s10432 + $0x24] sm:$0xf]
        %v10443 = vld [vmem:[%s10432 + $0x28] sm:$0xf]
        %v10444 = vld [vmem:[%s10432 + $0x2c] sm:$0xf]
        %v10445 = vld [vmem:[%s10432 + $0x30] sm:$0xf]
        %v10446 = vld [vmem:[%s10432 + $0x34] sm:$0xf]
        %v10447 = vld [vmem:[%s10432 + $0x38] sm:$0xf]
        %v10448 = vld [vmem:[%s10432 + $0x3c] sm:$0xf]
        %v10465 = vunpack.c.l.b16 %v10433
        %v10466 = vunpack.c.l.b16 %v10434
        %v10467 = vunpack.c.l.b16 %v10435
        %v10468 = vunpack.c.l.b16 %v10436
        %v10469 = vunpack.c.l.b16 %v10437
        %v10470 = vunpack.c.l.b16 %v10438
        %v10471 = vunpack.c.l.b16 %v10439
        %v10472 = vunpack.c.l.b16 %v10440
        %v10473 = vunpack.c.l.b16 %v10441
        %v10474 = vunpack.c.l.b16 %v10442
        %v10475 = vunpack.c.l.b16 %v10443
        %v10476 = vunpack.c.l.b16 %v10444
        %v10477 = vunpack.c.l.b16 %v10445
        %v10478 = vunpack.c.l.b16 %v10446
        %v10479 = vunpack.c.l.b16 %v10447
        %v10480 = vunpack.c.l.b16 %v10448
        %v10481 = vpack.c.b16 %v10466, %v10465
        %v10482 = vpack.c.b16 %v10468, %v10467
        %v10483 = vpack.c.b16 %v10470, %v10469
        %v10484 = vpack.c.b16 %v10472, %v10471
        %v10485 = vpack.c.b16 %v10474, %v10473
        %v10486 = vpack.c.b16 %v10476, %v10475
        %v10487 = vpack.c.b16 %v10478, %v10477
        %v10488 = vpack.c.b16 %v10480, %v10479
        %10497 = vmatprep.subr.bf16.mxu0 0
        %10498 = vmatpush1.bf16.msra.mxu0 %v10481
        %10499 = vmatprep.subr.bf16.mxu0 0
        %10500 = vmatpush1.bf16.msra.mxu0 %v10482
        %10501 = vmatprep.subr.bf16.mxu0 0
        %10502 = vmatpush1.bf16.msra.mxu0 %v10483
        %10503 = vmatprep.subr.bf16.mxu0 0
        %10504 = vmatpush1.bf16.msra.mxu0 %v10484
        %10505 = vmatprep.subr.bf16.mxu0 0
        %10506 = vmatpush1.bf16.msra.mxu0 %v10485
        %10507 = vmatprep.subr.bf16.mxu0 0
        %10508 = vmatpush1.bf16.msra.mxu0 %v10486
        %10509 = vmatprep.subr.bf16.mxu0 0
        %10510 = vmatpush1.bf16.msra.mxu0 %v10487
        %10511 = vmatprep.subr.bf16.mxu0 0
        %10512 = vmatpush1.bf16.msra.mxu0 %v10488
        %10513 = vmatprep.subr.bf16.mxu0 0
        %10514 = vmatpush1.bf16.msra.mxu0 0
        %10515 = vmatprep.subr.bf16.mxu0 0
        %10516 = vmatpush1.bf16.msra.mxu0 0
        %10517 = vmatprep.subr.bf16.mxu0 0
        %10518 = vmatpush1.bf16.msra.mxu0 0
        %10519 = vmatprep.subr.bf16.mxu0 0
        %10520 = vmatpush1.bf16.msra.mxu0 0
        %10521 = vmatprep.subr.bf16.mxu0 0
        %10522 = vmatpush1.bf16.msra.mxu0 0
        %10523 = vmatprep.subr.bf16.mxu0 0
        %10524 = vmatpush1.bf16.msra.mxu0 0
        %10525 = vmatprep.subr.bf16.mxu0 0
        %10526 = vmatpush1.bf16.msra.mxu0 0
        %10527 = vmatprep.subr.bf16.mxu0 0
        %10528 = vmatpush1.bf16.msra.mxu0 0
        %10529 = vmatprep.mubr.bf16.mxu0 0
        %10530 = vmatmul.mubr.bf16.gmra.mrb[0].mxu0 %v10428
        %v10531 = vpop.f32.mrb[0].mxu0
        %v10532 = vadd.f32 0.0, %v10531
        %v10533 = vpop.f32.mrb[0].mxu0
        %v10534 = vpop.f32.mrb[0].mxu0
        %v10535 = vadd.f32 0.0, %v10534
        %v10536 = vpop.f32.mrb[0].mxu0
        %10537 = vmatprep.mubr.bf16.mxu0 0
        %10538 = vmatmul.mubr.bf16.gmra.mrb[0].mxu0 %v10429
        %v10539 = vpop.f32.mrb[0].mxu0
        %v10540 = vadd.f32 0.0, %v10539
        %v10541 = vpop.f32.mrb[0].mxu0
        %v10542 = vpop.f32.mrb[0].mxu0
        %v10543 = vadd.f32 0.0, %v10542
        %v10544 = vpop.f32.mrb[0].mxu0
        %10545 = vmatprep.mubr.bf16.mxu0 0
        %10546 = vmatmul.mubr.bf16.gmra.mrb[0].mxu0 %v10430
        %v10547 = vpop.f32.mrb[0].mxu0
        %v10548 = vadd.f32 0.0, %v10547
        %v10549 = vpop.f32.mrb[0].mxu0
        %v10550 = vpop.f32.mrb[0].mxu0
        %v10551 = vadd.f32 0.0, %v10550
        %v10552 = vpop.f32.mrb[0].mxu0
        %10553 = vmatprep.mubr.bf16.mxu0 0
        %10554 = vmatmul.mubr.bf16.gmra.mrb[0].mxu0 %v10431
        %v10555 = vpop.f32.mrb[0].mxu0
        %v10556 = vadd.f32 0.0, %v10555
        %v10557 = vpop.f32.mrb[0].mxu0
        %v10558 = vpop.f32.mrb[0].mxu0
        %v10559 = vadd.f32 0.0, %v10558
        %v10560 = vpop.f32.mrb[0].mxu0
        %10561 = vdwg.mxu0
        %v10562 = vadd.f32 %v10413, %v10532
        %v10563 = vadd.f32 %v10414, %v10535
        %v10564 = vadd.f32 %v10415, %v10540
        %v10565 = vadd.f32 %v10416, %v10543
        %v10566 = vadd.f32 %v10417, %v10548
        %v10567 = vadd.f32 %v10418, %v10551
        %v10568 = vadd.f32 %v10419, %v10556
        %v10569 = vadd.f32 %v10420, %v10559
        %v10570 = vld [vmem:[%s8] sm:$0x1]
        %v10572 = vlaneseq
        %v10573 = vshrl.u32 %v10572, 7
        %v10574 = vsub.s32 0, %v10573
        %v10575 = vrot.slane %v10570, %v10574
        %v10577 = vadd.f32 %v10562, %v10575
        %v10578 = vadd.f32 %v10563, %v10575
        %v10579 = vadd.f32 %v10564, %v10575
        %v10580 = vadd.f32 %v10565, %v10575
        %v10581 = vadd.f32 %v10566, %v10575
        %v10582 = vadd.f32 %v10567, %v10575
        %v10583 = vadd.f32 %v10568, %v10575
        %v10584 = vadd.f32 %v10569, %v10575
        %v10585 = vmax.f32 %v10577, 0.0
        %v10586 = vmax.f32 %v10578, 0.0
        %v10587 = vmax.f32 %v10579, 0.0
        %v10588 = vmax.f32 %v10580, 0.0
        %v10589 = vmax.f32 %v10581, 0.0
        %v10590 = vmax.f32 %v10582, 0.0
        %v10591 = vmax.f32 %v10583, 0.0
        %v10592 = vmax.f32 %v10584, 0.0
        %v10594 = vunpack.c.l.s4 1966171168
        %v10595 = vunpack.c.0.s8 %v10594
        %v10596 = vlaneseq
        %v10597 = vshrl.u32 %v10596, 7
        %v10598 = vsub.s32 %v10595, %v10597
        %v10599 = vrot.slane %v10585, %v10598
        %v10601 = vunpack.c.l.s4 1966171168
        %v10602 = vunpack.c.0.s8 %v10601
        %v10603 = vlaneseq
        %v10604 = vshrl.u32 %v10603, 7
        %v10605 = vsub.s32 %v10602, %v10604
        %v10606 = vrot.slane %v10586, %v10605
        %v10608 = vunpack.c.l.s4 1966171168
        %v10609 = vunpack.c.0.s8 %v10608
        %v10610 = vlaneseq
        %v10611 = vshrl.u32 %v10610, 7
        %v10612 = vsub.s32 %v10609, %v10611
        %v10613 = vrot.slane %v10587, %v10612
        %v10615 = vunpack.c.l.s4 1966171168
        %v10616 = vunpack.c.0.s8 %v10615
        %v10617 = vlaneseq
        %v10618 = vshrl.u32 %v10617, 7
        %v10619 = vsub.s32 %v10616, %v10618
        %v10620 = vrot.slane %v10588, %v10619
        %v10622 = vunpack.c.l.s4 1966171168
        %v10623 = vunpack.c.0.s8 %v10622
        %v10624 = vlaneseq
        %v10625 = vshrl.u32 %v10624, 7
        %v10626 = vsub.s32 %v10623, %v10625
        %v10627 = vrot.slane %v10589, %v10626
        %v10629 = vunpack.c.l.s4 1966171168
        %v10630 = vunpack.c.0.s8 %v10629
        %v10631 = vlaneseq
        %v10632 = vshrl.u32 %v10631, 7
        %v10633 = vsub.s32 %v10630, %v10632
        %v10634 = vrot.slane %v10590, %v10633
        %v10636 = vunpack.c.l.s4 1966171168
        %v10637 = vunpack.c.0.s8 %v10636
        %v10638 = vlaneseq
        %v10639 = vshrl.u32 %v10638, 7
        %v10640 = vsub.s32 %v10637, %v10639
        %v10641 = vrot.slane %v10591, %v10640
        %v10643 = vunpack.c.l.s4 1966171168
        %v10644 = vunpack.c.0.s8 %v10643
        %v10645 = vlaneseq
        %v10646 = vshrl.u32 %v10645, 7
        %v10647 = vsub.s32 %v10644, %v10646
        %v10648 = vrot.slane %v10592, %v10647
        %v10649 = vmax.f32 %v10599, %v10606
        %v10650 = vmax.f32 %v10613, %v10620
        %v10651 = vmax.f32 %v10627, %v10634
        %v10652 = vmax.f32 %v10641, %v10648
        %v10657 = vrot.slane %v10649, 4
        %v10658 = vrot.slane %v10650, 4
        %v10659 = vrot.slane %v10651, 4
        %v10660 = vrot.slane %v10652, 4
        %v10665 = vmax.f32 %v10649, %v10657
        %v10666 = vmax.f32 %v10650, %v10658
        %v10667 = vmax.f32 %v10651, %v10659
        %v10668 = vmax.f32 %v10652, %v10660
        %v10673 = vcombine.low %v10665, %v10666
        %v10674 = vcombine.low %v10667, %v10668
        %v10677 = vmax.f32 %v10673, %v10674
        %v10678 = vrot.slane %v10677, 4
        %v10679 = vmax.f32 %v10677, %v10678
        %v10680 = vrot.slane %v10679, 2
        %v10681 = vmax.f32 %v10679, %v10680
        %v10682 = vrot.slane %v10681, 1
        %v10683 = vmax.f32 %v10681, %v10682
        %v10684 = vpack.c.bf16 %v10683, %v10683
        %v10685 = vld [vmem:[%s9] sm:$0xf]
        %v10686 = vld [vmem:[%s9 + $0x4] sm:$0xf]
        %v10687 = vld [vmem:[%s9 + $0x8] sm:$0xf]
        %v10688 = vld [vmem:[%s9 + $0xc] sm:$0xf]
        %v10689 = vld [vmem:[%s9 + $0x10] sm:$0xf]
        %v10690 = vld [vmem:[%s9 + $0x14] sm:$0xf]
        %v10691 = vld [vmem:[%s9 + $0x18] sm:$0xf]
        %v10692 = vld [vmem:[%s9 + $0x1c] sm:$0xf]
        %v10693 = vld [vmem:[%s9 + $0x20] sm:$0xf]
        %v10694 = vld [vmem:[%s9 + $0x24] sm:$0xf]
        %v10695 = vld [vmem:[%s9 + $0x28] sm:$0xf]
        %v10696 = vld [vmem:[%s9 + $0x2c] sm:$0xf]
        %v10697 = vld [vmem:[%s9 + $0x30] sm:$0xf]
        %v10698 = vld [vmem:[%s9 + $0x34] sm:$0xf]
        %v10699 = vld [vmem:[%s9 + $0x38] sm:$0xf]
        %v10700 = vld [vmem:[%s9 + $0x3c] sm:$0xf]
        %v10701 = vld [vmem:[%s10] sm:$0x1]
        %v10718 = vunpack.c.l.b16 %v10685
        %v10719 = vunpack.c.l.b16 %v10686
        %v10720 = vunpack.c.l.b16 %v10687
        %v10721 = vunpack.c.l.b16 %v10688
        %v10722 = vunpack.c.l.b16 %v10689
        %v10723 = vunpack.c.l.b16 %v10690
        %v10724 = vunpack.c.l.b16 %v10691
        %v10725 = vunpack.c.l.b16 %v10692
        %v10726 = vunpack.c.l.b16 %v10693
        %v10727 = vunpack.c.l.b16 %v10694
        %v10728 = vunpack.c.l.b16 %v10695
        %v10729 = vunpack.c.l.b16 %v10696
        %v10730 = vunpack.c.l.b16 %v10697
        %v10731 = vunpack.c.l.b16 %v10698
        %v10732 = vunpack.c.l.b16 %v10699
        %v10733 = vunpack.c.l.b16 %v10700
        %v10734 = vpack.c.b16 %v10719, %v10718
        %v10735 = vpack.c.b16 %v10721, %v10720
        %v10736 = vpack.c.b16 %v10723, %v10722
        %v10737 = vpack.c.b16 %v10725, %v10724
        %v10738 = vpack.c.b16 %v10727, %v10726
        %v10739 = vpack.c.b16 %v10729, %v10728
        %v10740 = vpack.c.b16 %v10731, %v10730
        %v10741 = vpack.c.b16 %v10733, %v10732
        %10750 = vmatprep.subr.bf16.mxu0 0
        %10751 = vmatpush1.bf16.msra.mxu0 %v10734
        %10752 = vmatprep.subr.bf16.mxu0 0
        %10753 = vmatpush1.bf16.msra.mxu0 %v10735
        %10754 = vmatprep.subr.bf16.mxu0 0
        %10755 = vmatpush1.bf16.msra.mxu0 %v10736
        %10756 = vmatprep.subr.bf16.mxu0 0
        %10757 = vmatpush1.bf16.msra.mxu0 %v10737
        %10758 = vmatprep.subr.bf16.mxu0 0
        %10759 = vmatpush1.bf16.msra.mxu0 %v10738
        %10760 = vmatprep.subr.bf16.mxu0 0
        %10761 = vmatpush1.bf16.msra.mxu0 %v10739
        %10762 = vmatprep.subr.bf16.mxu0 0
        %10763 = vmatpush1.bf16.msra.mxu0 %v10740
        %10764 = vmatprep.subr.bf16.mxu0 0
        %10765 = vmatpush1.bf16.msra.mxu0 %v10741
        %10766 = vmatprep.subr.bf16.mxu0 0
        %10767 = vmatpush1.bf16.msra.mxu0 0
        %10768 = vmatprep.subr.bf16.mxu0 0
        %10769 = vmatpush1.bf16.msra.mxu0 0
        %10770 = vmatprep.subr.bf16.mxu0 0
        %10771 = vmatpush1.bf16.msra.mxu0 0
        %10772 = vmatprep.subr.bf16.mxu0 0
        %10773 = vmatpush1.bf16.msra.mxu0 0
        %10774 = vmatprep.subr.bf16.mxu0 0
        %10775 = vmatpush1.bf16.msra.mxu0 0
        %10776 = vmatprep.subr.bf16.mxu0 0
        %10777 = vmatpush1.bf16.msra.mxu0 0
        %10778 = vmatprep.subr.bf16.mxu0 0
        %10779 = vmatpush1.bf16.msra.mxu0 0
        %10780 = vmatprep.subr.bf16.mxu0 0
        %10781 = vmatpush1.bf16.msra.mxu0 0
        %10782 = vmatprep.mubr.bf16.mxu0 0
        %10783 = vmatmul.mubr.bf16.gmra.mrb[0].mxu0 %v10684
        %v10784 = vpop.f32.mrb[0].mxu0
        %v10785 = vadd.f32 %v10701, %v10784
        %v10786 = vpop.f32.mrb[0].mxu0
        %v10787 = vpop.f32.mrb[0].mxu0
        %v10788 = vpop.f32.mrb[0].mxu0
        %10789 = vdwg.mxu0
        %v10790 = vmax.f32 %v10785, 0.0
        %v10791 = vpack.c.bf16 %v10790, %v10790
        %v10792 = vld [vmem:[%s11] sm:$0xf]
        %v10793 = vld [vmem:[%s11 + $0x4] sm:$0xf]
        %v10794 = vld [vmem:[%s11 + $0x8] sm:$0xf]
        %v10795 = vld [vmem:[%s11 + $0xc] sm:$0xf]
        %v10796 = vld [vmem:[%s11 + $0x10] sm:$0xf]
        %v10797 = vld [vmem:[%s11 + $0x14] sm:$0xf]
        %v10798 = vld [vmem:[%s11 + $0x18] sm:$0xf]
        %v10799 = vld [vmem:[%s11 + $0x1c] sm:$0xf]
        %v10800 = vld [vmem:[%s11 + $0x20] sm:$0xf]
        %v10801 = vld [vmem:[%s11 + $0x24] sm:$0xf]
        %v10802 = vld [vmem:[%s11 + $0x28] sm:$0xf]
        %v10803 = vld [vmem:[%s11 + $0x2c] sm:$0xf]
        %v10804 = vld [vmem:[%s11 + $0x30] sm:$0xf]
        %v10805 = vld [vmem:[%s11 + $0x34] sm:$0xf]
        %v10806 = vld [vmem:[%s11 + $0x38] sm:$0xf]
        %v10807 = vld [vmem:[%s11 + $0x3c] sm:$0xf]
        %v10808 = vld [vmem:[%s12] sm:$0x1]
        %v10825 = vunpack.c.l.b16 %v10792
        %v10826 = vunpack.c.l.b16 %v10793
        %v10827 = vunpack.c.l.b16 %v10794
        %v10828 = vunpack.c.l.b16 %v10795
        %v10829 = vunpack.c.l.b16 %v10796
        %v10830 = vunpack.c.l.b16 %v10797
        %v10831 = vunpack.c.l.b16 %v10798
        %v10832 = vunpack.c.l.b16 %v10799
        %v10833 = vunpack.c.l.b16 %v10800
        %v10834 = vunpack.c.l.b16 %v10801
        %v10835 = vunpack.c.l.b16 %v10802
        %v10836 = vunpack.c.l.b16 %v10803
        %v10837 = vunpack.c.l.b16 %v10804
        %v10838 = vunpack.c.l.b16 %v10805
        %v10839 = vunpack.c.l.b16 %v10806
        %v10840 = vunpack.c.l.b16 %v10807
        %v10841 = vpack.c.b16 %v10826, %v10825
        %v10842 = vpack.c.b16 %v10828, %v10827
        %v10843 = vpack.c.b16 %v10830, %v10829
        %v10844 = vpack.c.b16 %v10832, %v10831
        %v10845 = vpack.c.b16 %v10834, %v10833
        %v10846 = vpack.c.b16 %v10836, %v10835
        %v10847 = vpack.c.b16 %v10838, %v10837
        %v10848 = vpack.c.b16 %v10840, %v10839
        %10857 = vmatprep.subr.bf16.mxu0 0
        %10858 = vmatpush1.bf16.msra.mxu0 %v10841
        %10859 = vmatprep.subr.bf16.mxu0 0
        %10860 = vmatpush1.bf16.msra.mxu0 %v10842
        %10861 = vmatprep.subr.bf16.mxu0 0
        %10862 = vmatpush1.bf16.msra.mxu0 %v10843
        %10863 = vmatprep.subr.bf16.mxu0 0
        %10864 = vmatpush1.bf16.msra.mxu0 %v10844
        %10865 = vmatprep.subr.bf16.mxu0 0
        %10866 = vmatpush1.bf16.msra.mxu0 %v10845
        %10867 = vmatprep.subr.bf16.mxu0 0
        %10868 = vmatpush1.bf16.msra.mxu0 %v10846
        %10869 = vmatprep.subr.bf16.mxu0 0
        %10870 = vmatpush1.bf16.msra.mxu0 %v10847
        %10871 = vmatprep.subr.bf16.mxu0 0
        %10872 = vmatpush1.bf16.msra.mxu0 %v10848
        %10873 = vmatprep.subr.bf16.mxu0 0
        %10874 = vmatpush1.bf16.msra.mxu0 0
        %10875 = vmatprep.subr.bf16.mxu0 0
        %10876 = vmatpush1.bf16.msra.mxu0 0
        %10877 = vmatprep.subr.bf16.mxu0 0
        %10878 = vmatpush1.bf16.msra.mxu0 0
        %10879 = vmatprep.subr.bf16.mxu0 0
        %10880 = vmatpush1.bf16.msra.mxu0 0
        %10881 = vmatprep.subr.bf16.mxu0 0
        %10882 = vmatpush1.bf16.msra.mxu0 0
        %10883 = vmatprep.subr.bf16.mxu0 0
        %10884 = vmatpush1.bf16.msra.mxu0 0
        %10885 = vmatprep.subr.bf16.mxu0 0
        %10886 = vmatpush1.bf16.msra.mxu0 0
        %10887 = vmatprep.subr.bf16.mxu0 0
        %10888 = vmatpush1.bf16.msra.mxu0 0
        %10889 = vmatprep.mubr.bf16.mxu0 0
        %10890 = vmatmul.mubr.bf16.gmra.mrb[0].mxu0 %v10791
        %v10891 = vpop.f32.mrb[0].mxu0
        %v10892 = vadd.f32 %v10808, %v10891
        %v10893 = vpop.f32.mrb[0].mxu0
        %v10894 = vpop.f32.mrb[0].mxu0
        %v10895 = vpop.f32.mrb[0].mxu0
        %10896 = vdwg.mxu0
        %10897 = vst [vmem:[%s432] sm:$0x1] %v10892
        %s10898 = sand.u32 %s313, 1
        %s10899 = scalar_lea.sflag [#allocation3], %s10898
        %s10900 = sand.u32 %s313, 1
        %s10901 = scalar_lea.vmem [#allocation2], %s10900
        // Predicated region
        $region73: #{cnn_forward.1} parent=71 // pred_check
          %p10902 = pneg %p323
        $region74: #{cnn_forward.1} parent=71 // pred_check_branch
          %10904 = sbr.rel (%p10902) target = $region76
        $region75: #{cnn_forward.1} parent=71 // pred_region
          %s10906 = ssub.s32 16, 16
          %10907 = vsyncadd %s10899, %s10906
          %s10908 = smul.addr %s27, 16
          %s10909 = scalar_lea.hbm %s13, %s10908
          %s10911 = sshll.u32 %s10901, 4
          %s10912 = int_to_ptr.vmem [resolvable:$true] %s10911
          %10914 = dma.vmem_to_hbm [thread:$0]  %s10912, 16, %s10909, %s10899
        $region76: #{cnn_forward.1} parent=71 // pred_fallthru
          _
      $region72: #{cnn_forward.1} parent=5 // pred_fallthru
        _
      %p10915 = scmp.le.s32.totalorder 2, %s22
      // Predicated region
      $region77: #{cnn_forward.1} parent=5 // pred_check
        %p10916 = pneg %p10915
      $region78: #{cnn_forward.1} parent=5 // pred_check_branch
        %10918 = sbr.rel (%p10916) target = $region80
      $region79: #{cnn_forward.1} parent=5 // pred_region
        %s10919 = ssub.s32 %s22, 2
        // Predicated region
        $region81: #{cnn_forward.1} parent=79 // pred_check
          %p10920 = pneg %p329
        $region82: #{cnn_forward.1} parent=79 // pred_check_branch
          %10922 = sbr.rel (%p10920) target = $region84
        $region83: #{cnn_forward.1} parent=79 // pred_region
          %s10923 = sand.u32 %s314, 1
          %s10924 = scalar_lea.sflag [#allocation3], %s10923
          %s10925 = sand.u32 %s314, 1
          %s10926 = scalar_lea.vmem [#allocation2], %s10925
          %10927 = dma.done %s10924, 16
        $region84: #{cnn_forward.1} parent=79 // pred_fallthru
          _
      $region80: #{cnn_forward.1} parent=5 // pred_fallthru
        _
    $region6: #{cnn_forward.1} parent=1 // loop_footer
      %s26 = sadd.s32 1, %s22
    $region7: #{cnn_forward.1} parent=1 // loop_footer_branch
      %21 = sbr.rel target = $region3
    $region8: #{cnn_forward.1} parent=1 // loop_exit
      _
    %10928 = vsyncpa [#allocation3], 1
    %s10929 = scalar_lea.sflag [#allocation3], 1
    %10930 = vsyncpa %s10929, 1

</llo_original>
